<compile_context>
chip_gen: v6e
topology: v6e:2x2x1
jax: 0.10.0
libtpu: 0.0.40
codegen_flags: <defaults>
</compile_context>

<pallas_src>
import functools

import numpy as np

import jax
import jax.numpy as jnp
from jax.experimental import pallas as pl
from jax.experimental.pallas import tpu as pltpu

NEG_SLOPE = 0.05
BN_EPS = 1e-5
# Set to jnp.bfloat16 on v6e / v7x for native MXU rate (f32 kept for numerics).
MATMUL_INPUT_DTYPE = jnp.float32


# ------------------------------------------------------------------ helpers --
def _vmem():
    return pl.BlockSpec(memory_space=pltpu.MemorySpace.VMEM)


def _dot(a, b):
    return jnp.dot(a.astype(MATMUL_INPUT_DTYPE), b.astype(MATMUL_INPUT_DTYPE),
                   preferred_element_type=jnp.float32)


def _apply_act(y, act):
    if act == "none":
        return y
    if act == "relu":
        return jnp.maximum(y, 0.0)
    if act == "lrelu":
        return jnp.where(y >= 0, y, NEG_SLOPE * y)
    raise ValueError(act)


def _shift_flat(x, d):
    """y[..., p] = x[..., (p + d) mod M]; out-of-image sources are masked by caller."""
    M = x.shape[-1]
    d = d % M
    if d == 0:
        return x
    return jnp.concatenate([x[..., d:], x[..., :d]], axis=-1)


def bn_fold(bn):
    scale = bn["gamma"] / jnp.sqrt(bn["var"] + BN_EPS)
    shift = bn["beta"] - bn["mean"] * scale
    return scale, shift


def _active_taps(H, W, K):
    """Static list of (dy, dx) tap offsets whose receptive field intersects the image."""
    pad = (K - 1) // 2
    taps = []
    for ky in range(K):
        for kx in range(K):
            dy, dx = ky - pad, kx - pad
            if abs(dy) < H and abs(dx) < W:
                taps.append((dy, dx))
    return tuple(taps)


def _tap_masks(N, H, W, offsets):
    """(ntap, 1, N*H*W) f32 validity masks for flat shift-based conv taps (static)."""
    ii = np.arange(H).reshape(H, 1)
    jj = np.arange(W).reshape(1, W)
    ms = []
    for dy, dx in offsets:
        m = ((ii + dy >= 0) & (ii + dy < H) & (jj + dx >= 0) & (jj + dx < W))
        ms.append(np.tile(m.reshape(H * W).astype(np.float32), N))
    return np.stack(ms, axis=0).reshape(len(offsets), 1, N * H * W)


# ------------------------------------------------------------ Pallas kernels --
def _pointwise_kernel(x_ref, wT_ref, b_ref, o_ref, *, act):
    # x: (Cin, M)  wT: (Cout, Cin)  b: (Cout, 1)  -> lane-dense (Cout, M)
    y = _dot(wT_ref[...], x_ref[...]) + b_ref[...]
    o_ref[...] = _apply_act(y, act).astype(o_ref.dtype)


def pointwise(x, wT, b, act="none"):
    cout = wT.shape[0]
    M = x.shape[1]
    return pl.pallas_call(
        functools.partial(_pointwise_kernel, act=act),
        out_shape=jax.ShapeDtypeStruct((cout, M), jnp.float32),
        in_specs=[_vmem()] * 3,
        out_specs=_vmem(),
    )(x, wT, b.reshape(cout, 1))


def _multiception135_kernel(x_ref, mask_ref, w1T_ref, tap3_ref, w3T_ref, tap5_ref, w5T_ref,
                            b_ref, o_ref, *, W, offsets, act, add_residual):
    """Fused Multiception([1,3,5]) + (optional residual) + activation.

    x: (C, M)  masks: (ntap, 1, M)  tapK: (C, K*K) depthwise weights
    wKT: (Cout, C) BN-folded pointwise blocks  b: (Cout, 1)
    """
    x = x_ref[...]
    masks = mask_ref[...]
    acc = _dot(w1T_ref[...], x) + b_ref[...]          # K=1 branch fully folded
    tap3 = tap3_ref[...]
    tap5 = tap5_ref[...]
    sep3 = jnp.zeros_like(x)
    sep5 = jnp.zeros_like(x)
    for mi, (dy, dx) in enumerate(offsets):
        xs = _shift_flat(x, dy * W + dx) * masks[mi]  # depthwise tap source (zero-padded)
        t5 = (dy + 2) * 5 + (dx + 2)
        sep5 = sep5 + tap5[:, t5:t5 + 1] * xs
        if abs(dy) <= 1 and abs(dx) <= 1:
            t3 = (dy + 1) * 3 + (dx + 1)
            sep3 = sep3 + tap3[:, t3:t3 + 1] * xs
    acc = acc + _dot(w3T_ref[...], sep3)
    acc = acc + _dot(w5T_ref[...], sep5)
    if add_residual:
        acc = acc + x
    o_ref[...] = _apply_act(acc, act).astype(o_ref.dtype)


def _c5_conv1_kernel(d1_ref, d2_ref, d3_ref, r4_ref, wa_ref, wb_ref, wc_ref, wd_ref, b5_ref,
                     w1T_ref, b1_ref, out_ref, c1_ref):
    # c5 as four accumulated column-block matmuls (no HBM concat) + fused ESA.conv1.
    acc = _dot(wa_ref[...], d1_ref[...])
    acc = acc + _dot(wb_ref[...], d2_ref[...])
    acc = acc + _dot(wc_ref[...], d3_ref[...])
    acc = acc + _dot(wd_ref[...], r4_ref[...])
    acc = acc + b5_ref[...]
    out_ref[...] = acc.astype(out_ref.dtype)
    c1_ref[...] = (_dot(w1T_ref[...], acc) + b1_ref[...]).astype(c1_ref.dtype)


def _dense_conv3_taps(x, w, b, masks, offsets, W, act):
    # Dense 3x3 pad-1 conv on flat (Cin, M); w: (9, Cout, Cin), b: (Cout, 1).
    cout = w.shape[1]
    M = x.shape[1]
    acc = jnp.zeros((cout, M), jnp.float32) + b
    for mi, (dy, dx) in enumerate(offsets):
        t = (dy + 1) * 3 + (dx + 1)
        xs = _shift_flat(x, dy * W + dx) * masks[mi]
        acc = acc + _dot(w[t], xs)
    return _apply_act(acc, act)


def _esa_mid_kernel(win_ref, mask_ref, wm_ref, bm_ref, w3_ref, b3_ref, w3b_ref, b3b_ref, o_ref,
                    *, W, offsets):
    # Fused: max_pool(7,3) (running max over stacked windows) + conv_max+relu
    #        + conv3+relu + conv3_ at the pooled resolution.
    v = jnp.max(win_ref[...], axis=0)                 # (f, M3)
    masks = mask_ref[...]
    v = _dense_conv3_taps(v, wm_ref[...], bm_ref[...], masks, offsets, W, "relu")
    v = _dense_conv3_taps(v, w3_ref[...], b3_ref[...], masks, offsets, W, "relu")
    v = _dense_conv3_taps(v, w3b_ref[...], b3b_ref[...], masks, offsets, W, "none")
    o_ref[...] = v.astype(o_ref.dtype)


def _esa_tail_kernel(x_ref, c1_ref, c3_ref, wfT_ref, bf_ref, w4T_ref, b4_ref, o_ref):
    # Fused: conv_f(1x1) + add + conv4(1x1) + sigmoid gate (x * sigmoid(c4)).
    cf = _dot(wfT_ref[...], c1_ref[...]) + bf_ref[...]
    c4 = _dot(w4T_ref[...], c3_ref[...] + cf) + b4_ref[...]
    m = 0.5 * (jnp.tanh(0.5 * c4) + 1.0)              # numerically-stable sigmoid
    o_ref[...] = (x_ref[...] * m).astype(o_ref.dtype)


# -------------------------------------------------- BN / Multiception folding --
def _fold_multiception_1(p):
    # Multiception(kernels=[1]) collapses entirely to one 1x1 conv (dw1 + BN folded).
    s1, t1 = bn_fold(p["bn1"])
    s2, t2 = bn_fold(p["bn2"])
    Wpw = p["pw"]["w"][0, 0]                          # (C, Cout)
    C = Wpw.shape[0]
    w1 = p["seps"][0]["w"].reshape(C)
    b1 = p["seps"][0]["b"]
    w_eff = (w1 * s1)[:, None] * Wpw * s2[None, :]
    b_eff = ((b1 * s1 + t1) @ Wpw) * s2 + p["pw"]["b"] * s2 + t2
    return w_eff.T, b_eff                             # (Cout, C), (Cout,)


def _fold_multiception_135(p):
    s1, t1 = bn_fold(p["bn1"])
    s2, t2 = bn_fold(p["bn2"])
    Wpw = p["pw"]["w"][0, 0]                          # (3C, Cout)
    C = p["seps"][0]["w"].shape[-1]
    b_eff = p["pw"]["b"] * s2 + t2
    fold = {}
    for idx, K in enumerate((1, 3, 5)):
        sl = slice(idx * C, (idx + 1) * C)
        Wk = Wpw[sl]
        s1k, t1k = s1[sl], t1[sl]
        wk_eff = s1k[:, None] * Wk * s2[None, :]      # (C, Cout)
        b_eff = b_eff + ((p["seps"][idx]["b"] * s1k + t1k) @ Wk) * s2
        if K == 1:
            w1 = p["seps"][idx]["w"].reshape(C)
            fold["w1T"] = (w1[:, None] * wk_eff).T    # (Cout, C)
        else:
            fold["tap%d" % K] = p["seps"][idx]["w"].reshape(K * K, C).T   # (C, K*K)
            fold["w%dT" % K] = wk_eff.T               # (Cout, C)
    fold["b"] = b_eff
    return fold


def multiception_1(p, x, act):
    wT, b = _fold_multiception_1(p)
    return pointwise(x, wT, b, act=act)


def multiception_135(p, x, masks, offsets, W, act, add_residual):
    fold = _fold_multiception_135(p)
    cout = fold["w1T"].shape[0]
    M = x.shape[1]
    kern = functools.partial(_multiception135_kernel, W=W, offsets=offsets,
                             act=act, add_residual=add_residual)
    return pl.pallas_call(
        kern,
        out_shape=jax.ShapeDtypeStruct((cout, M), jnp.float32),
        in_specs=[_vmem()] * 8,
        out_specs=_vmem(),
    )(x, masks, fold["w1T"], fold["tap3"], fold["w3T"], fold["tap5"], fold["w5T"],
      fold["b"].reshape(cout, 1))


def c5_and_esa_conv1(params, d1, d2, d3, r4):
    W5 = params["c5"]["w"][0, 0]                      # (4*dc, C0)
    b5 = params["c5"]["b"]
    dc, M = d1.shape
    C0 = W5.shape[1]
    blocks = [W5[i * dc:(i + 1) * dc].T for i in range(4)]
    w1 = params["esa"]["conv1"]["w"][0, 0]            # (C0, f)
    b1 = params["esa"]["conv1"]["b"]
    f = w1.shape[1]
    return pl.pallas_call(
        _c5_conv1_kernel,
        out_shape=(jax.ShapeDtypeStruct((C0, M), jnp.float32),
                   jax.ShapeDtypeStruct((f, M), jnp.float32)),
        in_specs=[_vmem()] * 11,
        out_specs=(_vmem(), _vmem()),
    )(d1, d2, d3, r4, blocks[0], blocks[1], blocks[2], blocks[3],
      b5.reshape(C0, 1), w1.T, b1.reshape(f, 1))


# ------------------------------------------------------------------- bilinear --
def _interp_matrix(out_size, in_size):
    # F.interpolate(mode='bilinear', align_corners=False) semantics.
    scale = in_size / out_size
    dst = jnp.arange(out_size, dtype=jnp.float32)
    src = jnp.maximum((dst + 0.5) * scale - 0.5, 0.0)
    lo = jnp.minimum(jnp.floor(src).astype(jnp.int32), in_size - 1)
    hi = jnp.minimum(lo + 1, in_size - 1)
    w_hi = src - lo.astype(jnp.float32)
    w_lo = 1.0 - w_hi
    M = jnp.zeros((out_size, in_size), jnp.float32)
    M = M.at[jnp.arange(out_size), lo].add(w_lo)
    M = M.at[jnp.arange(out_size), hi].add(w_hi)
    return M


# ------------------------------------------------------------------------ ESA --
def esa_forward(p, out_flat, c1_flat, N, H, W):
    C0, M = out_flat.shape
    f = c1_flat.shape[0]

    # conv2: 3x3, stride 2, pad 0 (tiny strided patch extraction is wrapper glue).
    Ho2, Wo2 = (H - 3) // 2 + 1, (W - 3) // 2 + 1
    c1_sp = c1_flat.reshape(f, N, H, W)
    pats = []
    for ky in range(3):
        for kx in range(3):
            pats.append(c1_sp[:, :, ky:ky + 2 * (Ho2 - 1) + 1:2, kx:kx + 2 * (Wo2 - 1) + 1:2])
    M2 = N * Ho2 * Wo2
    pat = jnp.stack(pats, axis=0).reshape(9 * f, M2)
    w2T = p["conv2"]["w"].reshape(9 * f, f).T
    c1 = pointwise(pat, w2T, p["conv2"]["b"], act="none")           # (f, M2)

    # max_pool2d(7, stride 3) windows (tiny strided extraction is wrapper glue).
    k, s = 7, 3
    Ho3, Wo3 = (Ho2 - k) // s + 1, (Wo2 - k) // s + 1
    M3 = N * Ho3 * Wo3
    c1_sp2 = c1.reshape(f, N, Ho2, Wo2)
    wins = []
    for dy in range(k):
        for dx in range(k):
            wins.append(c1_sp2[:, :, dy:dy + s * (Ho3 - 1) + 1:s, dx:dx + s * (Wo3 - 1) + 1:s])
    winstack = jnp.stack(wins, axis=0).reshape(k * k, f, M3)

    # fused: maxpool + conv_max(+relu) + conv3(+relu) + conv3_
    offsets = _active_taps(Ho3, Wo3, 3)
    masks = _tap_masks(N, Ho3, Wo3, offsets)

    def taps_w(cp):
        return cp["w"].reshape(9, f, f).transpose(0, 2, 1)          # (9, Cout, Cin)

    c3s = pl.pallas_call(
        functools.partial(_esa_mid_kernel, W=Wo3, offsets=offsets),
        out_shape=jax.ShapeDtypeStruct((f, M3), jnp.float32),
        in_specs=[_vmem()] * 8,
        out_specs=_vmem(),
    )(winstack, masks,
      taps_w(p["conv_max"]), p["conv_max"]["b"].reshape(f, 1),
      taps_w(p["conv3"]), p["conv3"]["b"].reshape(f, 1),
      taps_w(p["conv3_"]), p["conv3_"]["b"].reshape(f, 1))

    # bilinear upsample back to (H, W) — tiny linear map, plain-JAX glue.
    Mh = _interp_matrix(H, Ho3)
    Mw = _interp_matrix(W, Wo3)
    c3up = jnp.einsum("ip,jq,fnpq->fnij", Mh, Mw,
                      c3s.reshape(f, N, Ho3, Wo3)).reshape(f, M)

    # fused tail: conv_f + add + conv4 + sigmoid gate.
    return pl.pallas_call(
        _esa_tail_kernel,
        out_shape=jax.ShapeDtypeStruct((C0, M), jnp.float32),
        in_specs=[_vmem()] * 7,
        out_specs=_vmem(),
    )(out_flat, c1_flat, c3up,
      p["conv_f"]["w"][0, 0].T, p["conv_f"]["b"].reshape(f, 1),
      p["conv4"]["w"][0, 0].T, p["conv4"]["b"].reshape(C0, 1))


# --------------------------------------------------------------------- m_RFDB --
def m_rfdb_forward(params, x_nchw):
    N, C0, H, W = x_nchw.shape
    M = N * H * W
    x = jnp.transpose(x_nchw, (1, 0, 2, 3)).reshape(C0, M).astype(jnp.float32)

    offsets5 = _active_taps(H, W, 5)
    masks5 = _tap_masks(N, H, W, offsets5)

    def mc135(p, inp, act, add_residual):
        return multiception_135(p, inp, masks5, offsets5, W, act, add_residual)

    d1 = multiception_1(params["c1_d"], x, act="lrelu")
    r1 = mc135(params["c1_r"], x, "lrelu", True)
    d2 = multiception_1(params["c2_d"], r1, act="lrelu")
    r2 = mc135(params["c2_r"], r1, "lrelu", True)
    d3 = multiception_1(params["c3_d"], r2, act="lrelu")
    r3 = mc135(params["c3_r"], r2, "lrelu", True)
    r4 = mc135(params["c4"], r3, "lrelu", False)

    out, c1_ = c5_and_esa_conv1(params, d1, d2, d3, r4)   # c5 (no concat) + ESA.conv1
    y = esa_forward(params["esa"], out, c1_, N, H, W)
    return jnp.transpose(y.reshape(C0, N, H, W), (1, 0, 2, 3))      # -> NCHW


# ------------------------------------------------------------------ parameters --
def init_params(key, in_channels):
    dc = in_channels // 2
    rc = in_channels
    f = in_channels // 4
    keys = iter(jax.random.split(key, 256))

    def nk():
        return next(keys)

    def conv_p(K, cin, cout):
        fan = float(K * K * cin)
        return {
            "w": jax.random.normal(nk(), (K, K, cin, cout), jnp.float32) / jnp.sqrt(fan),
            "b": 0.05 * jax.random.normal(nk(), (cout,), jnp.float32),
        }

    def dw_p(K, c):
        return {
            "w": jax.random.normal(nk(), (K, K, c), jnp.float32) / float(K),
            "b": 0.05 * jax.random.normal(nk(), (c,), jnp.float32),
        }

    def bn_p(c):
        return {
            "gamma": 1.0 + 0.1 * jax.random.normal(nk(), (c,), jnp.float32),
            "beta": 0.05 * jax.random.normal(nk(), (c,), jnp.float32),
            "mean": 0.05 * jax.random.normal(nk(), (c,), jnp.float32),
            "var": 1.0 + 0.1 * jax.random.uniform(nk(), (c,), jnp.float32),
        }

    def multi_p(cin, cout, kernels):
        return {
            "seps": [dw_p(k, cin) for k in kernels],
            "bn1": bn_p(cin * len(kernels)),
            "pw": conv_p(1, cin * len(kernels), cout),
            "bn2": bn_p(cout),
        }

    return {
        "c1_d": multi_p(in_channels, dc, [1]),
        "c1_r": multi_p(in_channels, rc, [1, 3, 5]),
        "c2_d": multi_p(rc, dc, [1]),
        "c2_r": multi_p(rc, rc, [1, 3, 5]),
        "c3_d": multi_p(rc, dc, [1]),
        "c3_r": multi_p(rc, rc, [1, 3, 5]),
        "c4": multi_p(rc, dc, [1, 3, 5]),
        "c5": conv_p(1, dc * 4, in_channels),
        "esa": {
            "conv1": conv_p(1, in_channels, f),
            "conv_f": conv_p(1, f, f),
            "conv_max": conv_p(3, f, f),
            "conv2": conv_p(3, f, f),
            "conv3": conv_p(3, f, f),
            "conv3_": conv_p(3, f, f),
            "conv4": conv_p(1, f, in_channels),
        },
    }


if __name__ == "__main__":
    key = jax.random.PRNGKey(0)
    pkey, xkey = jax.random.split(key)

    in_channels = 8          # divisible by 4 (ESA) and 2 (distilled channels)
    N, H, W = 2, 16, 16      # H,W >= 15 so conv2(stride 2) + maxpool(7,3) is valid

    params = init_params(pkey, in_channels)
    x = jax.random.normal(xkey, (N, in_channels, H, W), jnp.float32)

    fwd = jax.jit(m_rfdb_forward)
    y = fwd(params, x)
    jax.block_until_ready(y)

    assert y.shape == (N, in_channels, H, W)
    assert bool(jnp.all(jnp.isfinite(y)))
    print("KERNEL_OK")
</pallas_src>

<mosaic_0001>
module attributes {stable_mosaic.version = 11 : i64} {
  func.func private @main(%arg0: i32) attributes {dimension_semantics = [#tpu.dimension_semantics<core_parallel>], iteration_bounds = array<i64: 2>, tpu.core_type = #tpu.core_type<sc_scalar_subcore>, window_params = []} {
    return
  }
}

module attributes {stable_mosaic.version = 11 : i64} {
  func.func private @main(%arg0: i32) attributes {dimension_semantics = [#tpu.dimension_semantics<core_parallel>], iteration_bounds = array<i64: 2>, tpu.core_type = #tpu.core_type<sc_scalar_subcore>, window_params = []} {
    return
  }
}

module attributes {stable_mosaic.version = 11 : i64} {
  func.func @_pointwise_kernel(%arg0: memref<8x512xf32, #tpu.memory_space<vmem>>, %arg1: memref<4x8xf32, #tpu.memory_space<vmem>>, %arg2: memref<4x1xf32, #tpu.memory_space<vmem>>, %arg3: memref<4x512xf32, #tpu.memory_space<vmem>>) attributes {dimension_semantics = [], scalar_prefetch = 0 : i64, scratch_operands = 0 : i64, tpu.core_type = #tpu.core_type<tc>} {
    %c0 = arith.constant 0 : index
    %c0_0 = arith.constant 0 : index
    %0 = vector.load %arg1[%c0, %c0_0] : memref<4x8xf32, #tpu.memory_space<vmem>>, vector<4x8xf32>
    %c0_1 = arith.constant 0 : index
    %c0_2 = arith.constant 0 : index
    %1 = vector.load %arg0[%c0_1, %c0_2] : memref<8x512xf32, #tpu.memory_space<vmem>>, vector<8x512xf32>
    %cst = arith.constant dense<0.000000e+00> : vector<4x512xf32>
    %2 = tpu.matmul %0, %1, %cst {dimension_numbers = #tpu.dot_dimension_numbers<[1], [0], [0], [1], [0, 0, 1, 1], [], []>} : vector<4x8xf32>, vector<8x512xf32>, vector<4x512xf32> -> vector<4x512xf32>
    %c0_3 = arith.constant 0 : index
    %c0_4 = arith.constant 0 : index
    %3 = vector.load %arg2[%c0_3, %c0_4] : memref<4x1xf32, #tpu.memory_space<vmem>>, vector<4x1xf32>
    %4 = vector.broadcast %3 : vector<4x1xf32> to vector<4x512xf32>
    %5 = arith.addf %2, %4 : vector<4x512xf32>
    %cst_5 = arith.constant 0.000000e+00 : f32
    %6 = vector.broadcast %cst_5 : f32 to vector<4x512xf32>
    %7 = arith.cmpf oge, %5, %6 : vector<4x512xf32>
    %cst_6 = arith.constant 5.000000e-02 : f32
    %8 = vector.broadcast %cst_6 : f32 to vector<4x512xf32>
    %9 = arith.mulf %8, %5 : vector<4x512xf32>
    %10 = arith.select %7, %5, %9 : vector<4x512xi1>, vector<4x512xf32>
    %c0_7 = arith.constant 0 : index
    %c0_8 = arith.constant 0 : index
    %11 = vector.load %arg3[%c0_7, %c0_8] : memref<4x512xf32, #tpu.memory_space<vmem>>, vector<4x512xf32>
    tpu.vector_store %arg3[%c0_7, %c0_8], %10 {strides = array<i32>} : memref<4x512xf32, #tpu.memory_space<vmem>>, vector<4x512xf32>,
    return
  }
}

module attributes {stable_mosaic.version = 11 : i64} {
  func.func @_multiception135_kernel(%arg0: memref<8x512xf32, #tpu.memory_space<vmem>>, %arg1: memref<25x1x512xf32, #tpu.memory_space<vmem>>, %arg2: memref<8x8xf32, #tpu.memory_space<vmem>>, %arg3: memref<8x9xf32, #tpu.memory_space<vmem>>, %arg4: memref<8x8xf32, #tpu.memory_space<vmem>>, %arg5: memref<8x25xf32, #tpu.memory_space<vmem>>, %arg6: memref<8x8xf32, #tpu.memory_space<vmem>>, %arg7: memref<8x1xf32, #tpu.memory_space<vmem>>, %arg8: memref<8x512xf32, #tpu.memory_space<vmem>>) attributes {dimension_semantics = [], scalar_prefetch = 0 : i64, scratch_operands = 0 : i64, tpu.core_type = #tpu.core_type<tc>} {
    %c0 = arith.constant 0 : index
    %c0_0 = arith.constant 0 : index
    %0 = vector.load %arg0[%c0, %c0_0] : memref<8x512xf32, #tpu.memory_space<vmem>>, vector<8x512xf32>
    %c0_1 = arith.constant 0 : index
    %c0_2 = arith.constant 0 : index
    %c0_3 = arith.constant 0 : index
    %1 = vector.load %arg1[%c0_1, %c0_2, %c0_3] : memref<25x1x512xf32, #tpu.memory_space<vmem>>, vector<25x1x512xf32>
    %c0_4 = arith.constant 0 : index
    %c0_5 = arith.constant 0 : index
    %2 = vector.load %arg2[%c0_4, %c0_5] : memref<8x8xf32, #tpu.memory_space<vmem>>, vector<8x8xf32>
    %cst = arith.constant dense<0.000000e+00> : vector<8x512xf32>
    %3 = tpu.matmul %2, %0, %cst {dimension_numbers = #tpu.dot_dimension_numbers<[1], [0], [0], [1], [0, 0, 1, 1], [], []>} : vector<8x8xf32>, vector<8x512xf32>, vector<8x512xf32> -> vector<8x512xf32>
    %c0_6 = arith.constant 0 : index
    %c0_7 = arith.constant 0 : index
    %4 = vector.load %arg7[%c0_6, %c0_7] : memref<8x1xf32, #tpu.memory_space<vmem>>, vector<8x1xf32>
    %5 = vector.broadcast %4 : vector<8x1xf32> to vector<8x512xf32>
    %6 = arith.addf %3, %5 : vector<8x512xf32>
    %c0_8 = arith.constant 0 : index
    %c0_9 = arith.constant 0 : index
    %7 = vector.load %arg3[%c0_8, %c0_9] : memref<8x9xf32, #tpu.memory_space<vmem>>, vector<8x9xf32>
    %c0_10 = arith.constant 0 : index
    %c0_11 = arith.constant 0 : index
    %8 = vector.load %arg5[%c0_10, %c0_11] : memref<8x25xf32, #tpu.memory_space<vmem>>, vector<8x25xf32>
    %cst_12 = arith.constant 0.000000e+00 : f32
    %9 = vector.broadcast %cst_12 : f32 to vector<8x512xf32>
    %cst_13 = arith.constant 0.000000e+00 : f32
    %10 = vector.broadcast %cst_13 : f32 to vector<8x512xf32>
    %11 = vector.extract_strided_slice %0 {offsets = [0, 478], sizes = [8, 34], strides = [1, 1]} : vector<8x512xf32> to vector<8x34xf32>
    %12 = vector.extract_strided_slice %0 {offsets = [0, 0], sizes = [8, 478], strides = [1, 1]} : vector<8x512xf32> to vector<8x478xf32>
    %13 = tpu.concatenate %11, %12 in 1 : vector<8x34xf32>, vector<8x478xf32> -> vector<8x512xf32>
    %14 = vector.extract_strided_slice %1 {offsets = [0, 0, 0], sizes = [1, 1, 512], strides = [1, 1, 1]} : vector<25x1x512xf32> to vector<1x1x512xf32>
    %15 = vector.shape_cast %14 : vector<1x1x512xf32> to vector<1x512xf32>
    %16 = vector.broadcast %15 : vector<1x512xf32> to vector<8x512xf32>
    %17 = arith.mulf %13, %16 : vector<8x512xf32>
    %18 = vector.extract_strided_slice %8 {offsets = [0, 0], sizes = [8, 1], strides = [1, 1]} : vector<8x25xf32> to vector<8x1xf32>
    %19 = vector.broadcast %18 : vector<8x1xf32> to vector<8x512xf32>
    %20 = arith.mulf %19, %17 : vector<8x512xf32>
    %21 = arith.addf %10, %20 : vector<8x512xf32>
    %22 = vector.extract_strided_slice %0 {offsets = [0, 479], sizes = [8, 33], strides = [1, 1]} : vector<8x512xf32> to vector<8x33xf32>
    %23 = vector.extract_strided_slice %0 {offsets = [0, 0], sizes = [8, 479], strides = [1, 1]} : vector<8x512xf32> to vector<8x479xf32>
    %24 = tpu.concatenate %22, %23 in 1 : vector<8x33xf32>, vector<8x479xf32> -> vector<8x512xf32>
    %25 = vector.extract_strided_slice %1 {offsets = [1, 0, 0], sizes = [1, 1, 512], strides = [1, 1, 1]} : vector<25x1x512xf32> to vector<1x1x512xf32>
    %26 = vector.shape_cast %25 : vector<1x1x512xf32> to vector<1x512xf32>
    %27 = vector.broadcast %26 : vector<1x512xf32> to vector<8x512xf32>
    %28 = arith.mulf %24, %27 : vector<8x512xf32>
    %29 = vector.extract_strided_slice %8 {offsets = [0, 1], sizes = [8, 1], strides = [1, 1]} : vector<8x25xf32> to vector<8x1xf32>
    %30 = vector.broadcast %29 : vector<8x1xf32> to vector<8x512xf32>
    %31 = arith.mulf %30, %28 : vector<8x512xf32>
    %32 = arith.addf %21, %31 : vector<8x512xf32>
    %33 = vector.extract_strided_slice %0 {offsets = [0, 480], sizes = [8, 32], strides = [1, 1]} : vector<8x512xf32> to vector<8x32xf32>
    %34 = vector.extract_strided_slice %0 {offsets = [0, 0], sizes = [8, 480], strides = [1, 1]} : vector<8x512xf32> to vector<8x480xf32>
    %35 = tpu.concatenate %33, %34 in 1 : vector<8x32xf32>, vector<8x480xf32> -> vector<8x512xf32>
    %36 = vector.extract_strided_slice %1 {offsets = [2, 0, 0], sizes = [1, 1, 512], strides = [1, 1, 1]} : vector<25x1x512xf32> to vector<1x1x512xf32>
    %37 = vector.shape_cast %36 : vector<1x1x512xf32> to vector<1x512xf32>
    %38 = vector.broadcast %37 : vector<1x512xf32> to vector<8x512xf32>
    %39 = arith.mulf %35, %38 : vector<8x512xf32>
    %40 = vector.extract_strided_slice %8 {offsets = [0, 2], sizes = [8, 1], strides = [1, 1]} : vector<8x25xf32> to vector<8x1xf32>
    %41 = vector.broadcast %40 : vector<8x1xf32> to vector<8x512xf32>
    %42 = arith.mulf %41, %39 : vector<8x512xf32>
    %43 = arith.addf %32, %42 : vector<8x512xf32>
    %44 = vector.extract_strided_slice %0 {offsets = [0, 481], sizes = [8, 31], strides = [1, 1]} : vector<8x512xf32> to vector<8x31xf32>
    %45 = vector.extract_strided_slice %0 {offsets = [0, 0], sizes = [8, 481], strides = [1, 1]} : vector<8x512xf32> to vector<8x481xf32>
    %46 = tpu.concatenate %44, %45 in 1 : vector<8x31xf32>, vector<8x481xf32> -> vector<8x512xf32>
    %47 = vector.extract_strided_slice %1 {offsets = [3, 0, 0], sizes = [1, 1, 512], strides = [1, 1, 1]} : vector<25x1x512xf32> to vector<1x1x512xf32>
    %48 = vector.shape_cast %47 : vector<1x1x512xf32> to vector<1x512xf32>
    %49 = vector.broadcast %48 : vector<1x512xf32> to vector<8x512xf32>
    %50 = arith.mulf %46, %49 : vector<8x512xf32>
    %51 = vector.extract_strided_slice %8 {offsets = [0, 3], sizes = [8, 1], strides = [1, 1]} : vector<8x25xf32> to vector<8x1xf32>
    %52 = vector.broadcast %51 : vector<8x1xf32> to vector<8x512xf32>
    %53 = arith.mulf %52, %50 : vector<8x512xf32>
    %54 = arith.addf %43, %53 : vector<8x512xf32>
    %55 = vector.extract_strided_slice %0 {offsets = [0, 482], sizes = [8, 30], strides = [1, 1]} : vector<8x512xf32> to vector<8x30xf32>
    %56 = vector.extract_strided_slice %0 {offsets = [0, 0], sizes = [8, 482], strides = [1, 1]} : vector<8x512xf32> to vector<8x482xf32>
    %57 = tpu.concatenate %55, %56 in 1 : vector<8x30xf32>, vector<8x482xf32> -> vector<8x512xf32>
    %58 = vector.extract_strided_slice %1 {offsets = [4, 0, 0], sizes = [1, 1, 512], strides = [1, 1, 1]} : vector<25x1x512xf32> to vector<1x1x512xf32>
    %59 = vector.shape_cast %58 : vector<1x1x512xf32> to vector<1x512xf32>
    %60 = vector.broadcast %59 : vector<1x512xf32> to vector<8x512xf32>
    %61 = arith.mulf %57, %60 : vector<8x512xf32>
    %62 = vector.extract_strided_slice %8 {offsets = [0, 4], sizes = [8, 1], strides = [1, 1]} : vector<8x25xf32> to vector<8x1xf32>
    %63 = vector.broadcast %62 : vector<8x1xf32> to vector<8x512xf32>
    %64 = arith.mulf %63, %61 : vector<8x512xf32>
    %65 = arith.addf %54, %64 : vector<8x512xf32>
    %66 = vector.extract_strided_slice %0 {offsets = [0, 494], sizes = [8, 18], strides = [1, 1]} : vector<8x512xf32> to vector<8x18xf32>
    %67 = vector.extract_strided_slice %0 {offsets = [0, 0], sizes = [8, 494], strides = [1, 1]} : vector<8x512xf32> to vector<8x494xf32>
    %68 = tpu.concatenate %66, %67 in 1 : vector<8x18xf32>, vector<8x494xf32> -> vector<8x512xf32>
    %69 = vector.extract_strided_slice %1 {offsets = [5, 0, 0], sizes = [1, 1, 512], strides = [1, 1, 1]} : vector<25x1x512xf32> to vector<1x1x512xf32>
    %70 = vector.shape_cast %69 : vector<1x1x512xf32> to vector<1x512xf32>
    %71 = vector.broadcast %70 : vector<1x512xf32> to vector<8x512xf32>
    %72 = arith.mulf %68, %71 : vector<8x512xf32>
    %73 = vector.extract_strided_slice %8 {offsets = [0, 5], sizes = [8, 1], strides = [1, 1]} : vector<8x25xf32> to vector<8x1xf32>
    %74 = vector.broadcast %73 : vector<8x1xf32> to vector<8x512xf32>
    %75 = arith.mulf %74, %72 : vector<8x512xf32>
    %76 = arith.addf %65, %75 : vector<8x512xf32>
    %77 = vector.extract_strided_slice %0 {offsets = [0, 495], sizes = [8, 17], strides = [1, 1]} : vector<8x512xf32> to vector<8x17xf32>
    %78 = vector.extract_strided_slice %0 {offsets = [0, 0], sizes = [8, 495], strides = [1, 1]} : vector<8x512xf32> to vector<8x495xf32>
    %79 = tpu.concatenate %77, %78 in 1 : vector<8x17xf32>, vector<8x495xf32> -> vector<8x512xf32>
    %80 = vector.extract_strided_slice %1 {offsets = [6, 0, 0], sizes = [1, 1, 512], strides = [1, 1, 1]} : vector<25x1x512xf32> to vector<1x1x512xf32>
    %81 = vector.shape_cast %80 : vector<1x1x512xf32> to vector<1x512xf32>
    %82 = vector.broadcast %81 : vector<1x512xf32> to vector<8x512xf32>
    %83 = arith.mulf %79, %82 : vector<8x512xf32>
    %84 = vector.extract_strided_slice %8 {offsets = [0, 6], sizes = [8, 1], strides = [1, 1]} : vector<8x25xf32> to vector<8x1xf32>
    %85 = vector.broadcast %84 : vector<8x1xf32> to vector<8x512xf32>
    %86 = arith.mulf %85, %83 : vector<8x512xf32>
    %87 = arith.addf %76, %86 : vector<8x512xf32>
    %88 = vector.extract_strided_slice %7 {offsets = [0, 0], sizes = [8, 1], strides = [1, 1]} : vector<8x9xf32> to vector<8x1xf32>
    %89 = vector.broadcast %88 : vector<8x1xf32> to vector<8x512xf32>
    %90 = arith.mulf %89, %83 : vector<8x512xf32>
    %91 = arith.addf %9, %90 : vector<8x512xf32>
    %92 = vector.extract_strided_slice %0 {offsets = [0, 496], sizes = [8, 16], strides = [1, 1]} : vector<8x512xf32> to vector<8x16xf32>
    %93 = vector.extract_strided_slice %0 {offsets = [0, 0], sizes = [8, 496], strides = [1, 1]} : vector<8x512xf32> to vector<8x496xf32>
    %94 = tpu.concatenate %92, %93 in 1 : vector<8x16xf32>, vector<8x496xf32> -> vector<8x512xf32>
    %95 = vector.extract_strided_slice %1 {offsets = [7, 0, 0], sizes = [1, 1, 512], strides = [1, 1, 1]} : vector<25x1x512xf32> to vector<1x1x512xf32>
    %96 = vector.shape_cast %95 : vector<1x1x512xf32> to vector<1x512xf32>
    %97 = vector.broadcast %96 : vector<1x512xf32> to vector<8x512xf32>
    %98 = arith.mulf %94, %97 : vector<8x512xf32>
    %99 = vector.extract_strided_slice %8 {offsets = [0, 7], sizes = [8, 1], strides = [1, 1]} : vector<8x25xf32> to vector<8x1xf32>
    %100 = vector.broadcast %99 : vector<8x1xf32> to vector<8x512xf32>
    %101 = arith.mulf %100, %98 : vector<8x512xf32>
    %102 = arith.addf %87, %101 : vector<8x512xf32>
    %103 = vector.extract_strided_slice %7 {offsets = [0, 1], sizes = [8, 1], strides = [1, 1]} : vector<8x9xf32> to vector<8x1xf32>
    %104 = vector.broadcast %103 : vector<8x1xf32> to vector<8x512xf32>
    %105 = arith.mulf %104, %98 : vector<8x512xf32>
    %106 = arith.addf %91, %105 : vector<8x512xf32>
    %107 = vector.extract_strided_slice %0 {offsets = [0, 497], sizes = [8, 15], strides = [1, 1]} : vector<8x512xf32> to vector<8x15xf32>
    %108 = vector.extract_strided_slice %0 {offsets = [0, 0], sizes = [8, 497], strides = [1, 1]} : vector<8x512xf32> to vector<8x497xf32>
    %109 = tpu.concatenate %107, %108 in 1 : vector<8x15xf32>, vector<8x497xf32> -> vector<8x512xf32>
    %110 = vector.extract_strided_slice %1 {offsets = [8, 0, 0], sizes = [1, 1, 512], strides = [1, 1, 1]} : vector<25x1x512xf32> to vector<1x1x512xf32>
    %111 = vector.shape_cast %110 : vector<1x1x512xf32> to vector<1x512xf32>
    %112 = vector.broadcast %111 : vector<1x512xf32> to vector<8x512xf32>
    %113 = arith.mulf %109, %112 : vector<8x512xf32>
    %114 = vector.extract_strided_slice %8 {offsets = [0, 8], sizes = [8, 1], strides = [1, 1]} : vector<8x25xf32> to vector<8x1xf32>
    %115 = vector.broadcast %114 : vector<8x1xf32> to vector<8x512xf32>
    %116 = arith.mulf %115, %113 : vector<8x512xf32>
    %117 = arith.addf %102, %116 : vector<8x512xf32>
    %118 = vector.extract_strided_slice %7 {offsets = [0, 2], sizes = [8, 1], strides = [1, 1]} : vector<8x9xf32> to vector<8x1xf32>
    %119 = vector.broadcast %118 : vector<8x1xf32> to vector<8x512xf32>
    %120 = arith.mulf %119, %113 : vector<8x512xf32>
    %121 = arith.addf %106, %120 : vector<8x512xf32>
    %122 = vector.extract_strided_slice %0 {offsets = [0, 498], sizes = [8, 14], strides = [1, 1]} : vector<8x512xf32> to vector<8x14xf32>
    %123 = vector.extract_strided_slice %0 {offsets = [0, 0], sizes = [8, 498], strides = [1, 1]} : vector<8x512xf32> to vector<8x498xf32>
    %124 = tpu.concatenate %122, %123 in 1 : vector<8x14xf32>, vector<8x498xf32> -> vector<8x512xf32>
    %125 = vector.extract_strided_slice %1 {offsets = [9, 0, 0], sizes = [1, 1, 512], strides = [1, 1, 1]} : vector<25x1x512xf32> to vector<1x1x512xf32>
    %126 = vector.shape_cast %125 : vector<1x1x512xf32> to vector<1x512xf32>
    %127 = vector.broadcast %126 : vector<1x512xf32> to vector<8x512xf32>
    %128 = arith.mulf %124, %127 : vector<8x512xf32>
    %129 = vector.extract_strided_slice %8 {offsets = [0, 9], sizes = [8, 1], strides = [1, 1]} : vector<8x25xf32> to vector<8x1xf32>
    %130 = vector.broadcast %129 : vector<8x1xf32> to vector<8x512xf32>
    %131 = arith.mulf %130, %128 : vector<8x512xf32>
    %132 = arith.addf %117, %131 : vector<8x512xf32>
    %133 = vector.extract_strided_slice %0 {offsets = [0, 510], sizes = [8, 2], strides = [1, 1]} : vector<8x512xf32> to vector<8x2xf32>
    %134 = vector.extract_strided_slice %0 {offsets = [0, 0], sizes = [8, 510], strides = [1, 1]} : vector<8x512xf32> to vector<8x510xf32>
    %135 = tpu.concatenate %133, %134 in 1 : vector<8x2xf32>, vector<8x510xf32> -> vector<8x512xf32>
    %136 = vector.extract_strided_slice %1 {offsets = [10, 0, 0], sizes = [1, 1, 512], strides = [1, 1, 1]} : vector<25x1x512xf32> to vector<1x1x512xf32>
    %137 = vector.shape_cast %136 : vector<1x1x512xf32> to vector<1x512xf32>
    %138 = vector.broadcast %137 : vector<1x512xf32> to vector<8x512xf32>
    %139 = arith.mulf %135, %138 : vector<8x512xf32>
    %140 = vector.extract_strided_slice %8 {offsets = [0, 10], sizes = [8, 1], strides = [1, 1]} : vector<8x25xf32> to vector<8x1xf32>
    %141 = vector.broadcast %140 : vector<8x1xf32> to vector<8x512xf32>
    %142 = arith.mulf %141, %139 : vector<8x512xf32>
    %143 = arith.addf %132, %142 : vector<8x512xf32>
    %144 = vector.extract_strided_slice %0 {offsets = [0, 511], sizes = [8, 1], strides = [1, 1]} : vector<8x512xf32> to vector<8x1xf32>
    %145 = vector.extract_strided_slice %0 {offsets = [0, 0], sizes = [8, 511], strides = [1, 1]} : vector<8x512xf32> to vector<8x511xf32>
    %146 = tpu.concatenate %144, %145 in 1 : vector<8x1xf32>, vector<8x511xf32> -> vector<8x512xf32>
    %147 = vector.extract_strided_slice %1 {offsets = [11, 0, 0], sizes = [1, 1, 512], strides = [1, 1, 1]} : vector<25x1x512xf32> to vector<1x1x512xf32>
    %148 = vector.shape_cast %147 : vector<1x1x512xf32> to vector<1x512xf32>
    %149 = vector.broadcast %148 : vector<1x512xf32> to vector<8x512xf32>
    %150 = arith.mulf %146, %149 : vector<8x512xf32>
    %151 = vector.extract_strided_slice %8 {offsets = [0, 11], sizes = [8, 1], strides = [1, 1]} : vector<8x25xf32> to vector<8x1xf32>
    %152 = vector.broadcast %151 : vector<8x1xf32> to vector<8x512xf32>
    %153 = arith.mulf %152, %150 : vector<8x512xf32>
    %154 = arith.addf %143, %153 : vector<8x512xf32>
    %155 = vector.extract_strided_slice %7 {offsets = [0, 3], sizes = [8, 1], strides = [1, 1]} : vector<8x9xf32> to vector<8x1xf32>
    %156 = vector.broadcast %155 : vector<8x1xf32> to vector<8x512xf32>
    %157 = arith.mulf %156, %150 : vector<8x512xf32>
    %158 = arith.addf %121, %157 : vector<8x512xf32>
    %159 = vector.extract_strided_slice %1 {offsets = [12, 0, 0], sizes = [1, 1, 512], strides = [1, 1, 1]} : vector<25x1x512xf32> to vector<1x1x512xf32>
    %160 = vector.shape_cast %159 : vector<1x1x512xf32> to vector<1x512xf32>
    %161 = vector.broadcast %160 : vector<1x512xf32> to vector<8x512xf32>
    %162 = arith.mulf %0, %161 : vector<8x512xf32>
    %163 = vector.extract_strided_slice %8 {offsets = [0, 12], sizes = [8, 1], strides = [1, 1]} : vector<8x25xf32> to vector<8x1xf32>
    %164 = vector.broadcast %163 : vector<8x1xf32> to vector<8x512xf32>
    %165 = arith.mulf %164, %162 : vector<8x512xf32>
    %166 = arith.addf %154, %165 : vector<8x512xf32>
    %167 = vector.extract_strided_slice %7 {offsets = [0, 4], sizes = [8, 1], strides = [1, 1]} : vector<8x9xf32> to vector<8x1xf32>
    %168 = vector.broadcast %167 : vector<8x1xf32> to vector<8x512xf32>
    %169 = arith.mulf %168, %162 : vector<8x512xf32>
    %170 = arith.addf %158, %169 : vector<8x512xf32>
    %171 = vector.extract_strided_slice %0 {offsets = [0, 1], sizes = [8, 511], strides = [1, 1]} : vector<8x512xf32> to vector<8x511xf32>
    %172 = vector.extract_strided_slice %0 {offsets = [0, 0], sizes = [8, 1], strides = [1, 1]} : vector<8x512xf32> to vector<8x1xf32>
    %173 = tpu.concatenate %171, %172 in 1 : vector<8x511xf32>, vector<8x1xf32> -> vector<8x512xf32>
    %174 = vector.extract_strided_slice %1 {offsets = [13, 0, 0], sizes = [1, 1, 512], strides = [1, 1, 1]} : vector<25x1x512xf32> to vector<1x1x512xf32>
    %175 = vector.shape_cast %174 : vector<1x1x512xf32> to vector<1x512xf32>
    %176 = vector.broadcast %175 : vector<1x512xf32> to vector<8x512xf32>
    %177 = arith.mulf %173, %176 : vector<8x512xf32>
    %178 = vector.extract_strided_slice %8 {offsets = [0, 13], sizes = [8, 1], strides = [1, 1]} : vector<8x25xf32> to vector<8x1xf32>
    %179 = vector.broadcast %178 : vector<8x1xf32> to vector<8x512xf32>
    %180 = arith.mulf %179, %177 : vector<8x512xf32>
    %181 = arith.addf %166, %180 : vector<8x512xf32>
    %182 = vector.extract_strided_slice %7 {offsets = [0, 5], sizes = [8, 1], strides = [1, 1]} : vector<8x9xf32> to vector<8x1xf32>
    %183 = vector.broadcast %182 : vector<8x1xf32> to vector<8x512xf32>
    %184 = arith.mulf %183, %177 : vector<8x512xf32>
    %185 = arith.addf %170, %184 : vector<8x512xf32>
    %186 = vector.extract_strided_slice %0 {offsets = [0, 2], sizes = [8, 510], strides = [1, 1]} : vector<8x512xf32> to vector<8x510xf32>
    %187 = vector.extract_strided_slice %0 {offsets = [0, 0], sizes = [8, 2], strides = [1, 1]} : vector<8x512xf32> to vector<8x2xf32>
    %188 = tpu.concatenate %186, %187 in 1 : vector<8x510xf32>, vector<8x2xf32> -> vector<8x512xf32>
    %189 = vector.extract_strided_slice %1 {offsets = [14, 0, 0], sizes = [1, 1, 512], strides = [1, 1, 1]} : vector<25x1x512xf32> to vector<1x1x512xf32>
    %190 = vector.shape_cast %189 : vector<1x1x512xf32> to vector<1x512xf32>
    %191 = vector.broadcast %190 : vector<1x512xf32> to vector<8x512xf32>
    %192 = arith.mulf %188, %191 : vector<8x512xf32>
    %193 = vector.extract_strided_slice %8 {offsets = [0, 14], sizes = [8, 1], strides = [1, 1]} : vector<8x25xf32> to vector<8x1xf32>
    %194 = vector.broadcast %193 : vector<8x1xf32> to vector<8x512xf32>
    %195 = arith.mulf %194, %192 : vector<8x512xf32>
    %196 = arith.addf %181, %195 : vector<8x512xf32>
    %197 = vector.extract_strided_slice %0 {offsets = [0, 14], sizes = [8, 498], strides = [1, 1]} : vector<8x512xf32> to vector<8x498xf32>
    %198 = vector.extract_strided_slice %0 {offsets = [0, 0], sizes = [8, 14], strides = [1, 1]} : vector<8x512xf32> to vector<8x14xf32>
    %199 = tpu.concatenate %197, %198 in 1 : vector<8x498xf32>, vector<8x14xf32> -> vector<8x512xf32>
    %200 = vector.extract_strided_slice %1 {offsets = [15, 0, 0], sizes = [1, 1, 512], strides = [1, 1, 1]} : vector<25x1x512xf32> to vector<1x1x512xf32>
    %201 = vector.shape_cast %200 : vector<1x1x512xf32> to vector<1x512xf32>
    %202 = vector.broadcast %201 : vector<1x512xf32> to vector<8x512xf32>
    %203 = arith.mulf %199, %202 : vector<8x512xf32>
    %204 = vector.extract_strided_slice %8 {offsets = [0, 15], sizes = [8, 1], strides = [1, 1]} : vector<8x25xf32> to vector<8x1xf32>
    %205 = vector.broadcast %204 : vector<8x1xf32> to vector<8x512xf32>
    %206 = arith.mulf %205, %203 : vector<8x512xf32>
    %207 = arith.addf %196, %206 : vector<8x512xf32>
    %208 = vector.extract_strided_slice %0 {offsets = [0, 15], sizes = [8, 497], strides = [1, 1]} : vector<8x512xf32> to vector<8x497xf32>
    %209 = vector.extract_strided_slice %0 {offsets = [0, 0], sizes = [8, 15], strides = [1, 1]} : vector<8x512xf32> to vector<8x15xf32>
    %210 = tpu.concatenate %208, %209 in 1 : vector<8x497xf32>, vector<8x15xf32> -> vector<8x512xf32>
    %211 = vector.extract_strided_slice %1 {offsets = [16, 0, 0], sizes = [1, 1, 512], strides = [1, 1, 1]} : vector<25x1x512xf32> to vector<1x1x512xf32>
    %212 = vector.shape_cast %211 : vector<1x1x512xf32> to vector<1x512xf32>
    %213 = vector.broadcast %212 : vector<1x512xf32> to vector<8x512xf32>
    %214 = arith.mulf %210, %213 : vector<8x512xf32>
    %215 = vector.extract_strided_slice %8 {offsets = [0, 16], sizes = [8, 1], strides = [1, 1]} : vector<8x25xf32> to vector<8x1xf32>
    %216 = vector.broadcast %215 : vector<8x1xf32> to vector<8x512xf32>
    %217 = arith.mulf %216, %214 : vector<8x512xf32>
    %218 = arith.addf %207, %217 : vector<8x512xf32>
    %219 = vector.extract_strided_slice %7 {offsets = [0, 6], sizes = [8, 1], strides = [1, 1]} : vector<8x9xf32> to vector<8x1xf32>
    %220 = vector.broadcast %219 : vector<8x1xf32> to vector<8x512xf32>
    %221 = arith.mulf %220, %214 : vector<8x512xf32>
    %222 = arith.addf %185, %221 : vector<8x512xf32>
    %223 = vector.extract_strided_slice %0 {offsets = [0, 16], sizes = [8, 496], strides = [1, 1]} : vector<8x512xf32> to vector<8x496xf32>
    %224 = vector.extract_strided_slice %0 {offsets = [0, 0], sizes = [8, 16], strides = [1, 1]} : vector<8x512xf32> to vector<8x16xf32>
    %225 = tpu.concatenate %223, %224 in 1 : vector<8x496xf32>, vector<8x16xf32> -> vector<8x512xf32>
    %226 = vector.extract_strided_slice %1 {offsets = [17, 0, 0], sizes = [1, 1, 512], strides = [1, 1, 1]} : vector<25x1x512xf32> to vector<1x1x512xf32>
    %227 = vector.shape_cast %226 : vector<1x1x512xf32> to vector<1x512xf32>
    %228 = vector.broadcast %227 : vector<1x512xf32> to vector<8x512xf32>
    %229 = arith.mulf %225, %228 : vector<8x512xf32>
    %230 = vector.extract_strided_slice %8 {offsets = [0, 17], sizes = [8, 1], strides = [1, 1]} : vector<8x25xf32> to vector<8x1xf32>
    %231 = vector.broadcast %230 : vector<8x1xf32> to vector<8x512xf32>
    %232 = arith.mulf %231, %229 : vector<8x512xf32>
    %233 = arith.addf %218, %232 : vector<8x512xf32>
    %234 = vector.extract_strided_slice %7 {offsets = [0, 7], sizes = [8, 1], strides = [1, 1]} : vector<8x9xf32> to vector<8x1xf32>
    %235 = vector.broadcast %234 : vector<8x1xf32> to vector<8x512xf32>
    %236 = arith.mulf %235, %229 : vector<8x512xf32>
    %237 = arith.addf %222, %236 : vector<8x512xf32>
    %238 = vector.extract_strided_slice %0 {offsets = [0, 17], sizes = [8, 495], strides = [1, 1]} : vector<8x512xf32> to vector<8x495xf32>
    %239 = vector.extract_strided_slice %0 {offsets = [0, 0], sizes = [8, 17], strides = [1, 1]} : vector<8x512xf32> to vector<8x17xf32>
    %240 = tpu.concatenate %238, %239 in 1 : vector<8x495xf32>, vector<8x17xf32> -> vector<8x512xf32>
    %241 = vector.extract_strided_slice %1 {offsets = [18, 0, 0], sizes = [1, 1, 512], strides = [1, 1, 1]} : vector<25x1x512xf32> to vector<1x1x512xf32>
    %242 = vector.shape_cast %241 : vector<1x1x512xf32> to vector<1x512xf32>
    %243 = vector.broadcast %242 : vector<1x512xf32> to vector<8x512xf32>
    %244 = arith.mulf %240, %243 : vector<8x512xf32>
    %245 = vector.extract_strided_slice %8 {offsets = [0, 18], sizes = [8, 1], strides = [1, 1]} : vector<8x25xf32> to vector<8x1xf32>
    %246 = vector.broadcast %245 : vector<8x1xf32> to vector<8x512xf32>
    %247 = arith.mulf %246, %244 : vector<8x512xf32>
    %248 = arith.addf %233, %247 : vector<8x512xf32>
    %249 = vector.extract_strided_slice %7 {offsets = [0, 8], sizes = [8, 1], strides = [1, 1]} : vector<8x9xf32> to vector<8x1xf32>
    %250 = vector.broadcast %249 : vector<8x1xf32> to vector<8x512xf32>
    %251 = arith.mulf %250, %244 : vector<8x512xf32>
    %252 = arith.addf %237, %251 : vector<8x512xf32>
    %253 = vector.extract_strided_slice %0 {offsets = [0, 18], sizes = [8, 494], strides = [1, 1]} : vector<8x512xf32> to vector<8x494xf32>
    %254 = vector.extract_strided_slice %0 {offsets = [0, 0], sizes = [8, 18], strides = [1, 1]} : vector<8x512xf32> to vector<8x18xf32>
    %255 = tpu.concatenate %253, %254 in 1 : vector<8x494xf32>, vector<8x18xf32> -> vector<8x512xf32>
    %256 = vector.extract_strided_slice %1 {offsets = [19, 0, 0], sizes = [1, 1, 512], strides = [1, 1, 1]} : vector<25x1x512xf32> to vector<1x1x512xf32>
    %257 = vector.shape_cast %256 : vector<1x1x512xf32> to vector<1x512xf32>
    %258 = vector.broadcast %257 : vector<1x512xf32> to vector<8x512xf32>
    %259 = arith.mulf %255, %258 : vector<8x512xf32>
    %260 = vector.extract_strided_slice %8 {offsets = [0, 19], sizes = [8, 1], strides = [1, 1]} : vector<8x25xf32> to vector<8x1xf32>
    %261 = vector.broadcast %260 : vector<8x1xf32> to vector<8x512xf32>
    %262 = arith.mulf %261, %259 : vector<8x512xf32>
    %263 = arith.addf %248, %262 : vector<8x512xf32>
    %264 = vector.extract_strided_slice %0 {offsets = [0, 30], sizes = [8, 482], strides = [1, 1]} : vector<8x512xf32> to vector<8x482xf32>
    %265 = vector.extract_strided_slice %0 {offsets = [0, 0], sizes = [8, 30], strides = [1, 1]} : vector<8x512xf32> to vector<8x30xf32>
    %266 = tpu.concatenate %264, %265 in 1 : vector<8x482xf32>, vector<8x30xf32> -> vector<8x512xf32>
    %267 = vector.extract_strided_slice %1 {offsets = [20, 0, 0], sizes = [1, 1, 512], strides = [1, 1, 1]} : vector<25x1x512xf32> to vector<1x1x512xf32>
    %268 = vector.shape_cast %267 : vector<1x1x512xf32> to vector<1x512xf32>
    %269 = vector.broadcast %268 : vector<1x512xf32> to vector<8x512xf32>
    %270 = arith.mulf %266, %269 : vector<8x512xf32>
    %271 = vector.extract_strided_slice %8 {offsets = [0, 20], sizes = [8, 1], strides = [1, 1]} : vector<8x25xf32> to vector<8x1xf32>
    %272 = vector.broadcast %271 : vector<8x1xf32> to vector<8x512xf32>
    %273 = arith.mulf %272, %270 : vector<8x512xf32>
    %274 = arith.addf %263, %273 : vector<8x512xf32>
    %275 = vector.extract_strided_slice %0 {offsets = [0, 31], sizes = [8, 481], strides = [1, 1]} : vector<8x512xf32> to vector<8x481xf32>
    %276 = vector.extract_strided_slice %0 {offsets = [0, 0], sizes = [8, 31], strides = [1, 1]} : vector<8x512xf32> to vector<8x31xf32>
    %277 = tpu.concatenate %275, %276 in 1 : vector<8x481xf32>, vector<8x31xf32> -> vector<8x512xf32>
    %278 = vector.extract_strided_slice %1 {offsets = [21, 0, 0], sizes = [1, 1, 512], strides = [1, 1, 1]} : vector<25x1x512xf32> to vector<1x1x512xf32>
    %279 = vector.shape_cast %278 : vector<1x1x512xf32> to vector<1x512xf32>
    %280 = vector.broadcast %279 : vector<1x512xf32> to vector<8x512xf32>
    %281 = arith.mulf %277, %280 : vector<8x512xf32>
    %282 = vector.extract_strided_slice %8 {offsets = [0, 21], sizes = [8, 1], strides = [1, 1]} : vector<8x25xf32> to vector<8x1xf32>
    %283 = vector.broadcast %282 : vector<8x1xf32> to vector<8x512xf32>
    %284 = arith.mulf %283, %281 : vector<8x512xf32>
    %285 = arith.addf %274, %284 : vector<8x512xf32>
    %286 = vector.extract_strided_slice %0 {offsets = [0, 32], sizes = [8, 480], strides = [1, 1]} : vector<8x512xf32> to vector<8x480xf32>
    %287 = vector.extract_strided_slice %0 {offsets = [0, 0], sizes = [8, 32], strides = [1, 1]} : vector<8x512xf32> to vector<8x32xf32>
    %288 = tpu.concatenate %286, %287 in 1 : vector<8x480xf32>, vector<8x32xf32> -> vector<8x512xf32>
    %289 = vector.extract_strided_slice %1 {offsets = [22, 0, 0], sizes = [1, 1, 512], strides = [1, 1, 1]} : vector<25x1x512xf32> to vector<1x1x512xf32>
    %290 = vector.shape_cast %289 : vector<1x1x512xf32> to vector<1x512xf32>
    %291 = vector.broadcast %290 : vector<1x512xf32> to vector<8x512xf32>
    %292 = arith.mulf %288, %291 : vector<8x512xf32>
    %293 = vector.extract_strided_slice %8 {offsets = [0, 22], sizes = [8, 1], strides = [1, 1]} : vector<8x25xf32> to vector<8x1xf32>
    %294 = vector.broadcast %293 : vector<8x1xf32> to vector<8x512xf32>
    %295 = arith.mulf %294, %292 : vector<8x512xf32>
    %296 = arith.addf %285, %295 : vector<8x512xf32>
    %297 = vector.extract_strided_slice %0 {offsets = [0, 33], sizes = [8, 479], strides = [1, 1]} : vector<8x512xf32> to vector<8x479xf32>
    %298 = vector.extract_strided_slice %0 {offsets = [0, 0], sizes = [8, 33], strides = [1, 1]} : vector<8x512xf32> to vector<8x33xf32>
    %299 = tpu.concatenate %297, %298 in 1 : vector<8x479xf32>, vector<8x33xf32> -> vector<8x512xf32>
    %300 = vector.extract_strided_slice %1 {offsets = [23, 0, 0], sizes = [1, 1, 512], strides = [1, 1, 1]} : vector<25x1x512xf32> to vector<1x1x512xf32>
    %301 = vector.shape_cast %300 : vector<1x1x512xf32> to vector<1x512xf32>
    %302 = vector.broadcast %301 : vector<1x512xf32> to vector<8x512xf32>
    %303 = arith.mulf %299, %302 : vector<8x512xf32>
    %304 = vector.extract_strided_slice %8 {offsets = [0, 23], sizes = [8, 1], strides = [1, 1]} : vector<8x25xf32> to vector<8x1xf32>
    %305 = vector.broadcast %304 : vector<8x1xf32> to vector<8x512xf32>
    %306 = arith.mulf %305, %303 : vector<8x512xf32>
    %307 = arith.addf %296, %306 : vector<8x512xf32>
    %308 = vector.extract_strided_slice %0 {offsets = [0, 34], sizes = [8, 478], strides = [1, 1]} : vector<8x512xf32> to vector<8x478xf32>
    %309 = vector.extract_strided_slice %0 {offsets = [0, 0], sizes = [8, 34], strides = [1, 1]} : vector<8x512xf32> to vector<8x34xf32>
    %310 = tpu.concatenate %308, %309 in 1 : vector<8x478xf32>, vector<8x34xf32> -> vector<8x512xf32>
    %311 = vector.extract_strided_slice %1 {offsets = [24, 0, 0], sizes = [1, 1, 512], strides = [1, 1, 1]} : vector<25x1x512xf32> to vector<1x1x512xf32>
    %312 = vector.shape_cast %311 : vector<1x1x512xf32> to vector<1x512xf32>
    %313 = vector.broadcast %312 : vector<1x512xf32> to vector<8x512xf32>
    %314 = arith.mulf %310, %313 : vector<8x512xf32>
    %315 = vector.extract_strided_slice %8 {offsets = [0, 24], sizes = [8, 1], strides = [1, 1]} : vector<8x25xf32> to vector<8x1xf32>
    %316 = vector.broadcast %315 : vector<8x1xf32> to vector<8x512xf32>
    %317 = arith.mulf %316, %314 : vector<8x512xf32>
    %318 = arith.addf %307, %317 : vector<8x512xf32>
    %c0_14 = arith.constant 0 : index
    %c0_15 = arith.constant 0 : index
    %319 = vector.load %arg4[%c0_14, %c0_15] : memref<8x8xf32, #tpu.memory_space<vmem>>, vector<8x8xf32>
    %cst_16 = arith.constant dense<0.000000e+00> : vector<8x512xf32>
    %320 = tpu.matmul %319, %252, %cst_16 {dimension_numbers = #tpu.dot_dimension_numbers<[1], [0], [0], [1], [0, 0, 1, 1], [], []>} : vector<8x8xf32>, vector<8x512xf32>, vector<8x512xf32> -> vector<8x512xf32>
    %321 = arith.addf %6, %320 : vector<8x512xf32>
    %c0_17 = arith.constant 0 : index
    %c0_18 = arith.constant 0 : index
    %322 = vector.load %arg6[%c0_17, %c0_18] : memref<8x8xf32, #tpu.memory_space<vmem>>, vector<8x8xf32>
    %cst_19 = arith.constant dense<0.000000e+00> : vector<8x512xf32>
    %323 = tpu.matmul %322, %318, %cst_19 {dimension_numbers = #tpu.dot_dimension_numbers<[1], [0], [0], [1], [0, 0, 1, 1], [], []>} : vector<8x8xf32>, vector<8x512xf32>, vector<8x512xf32> -> vector<8x512xf32>
    %324 = arith.addf %321, %323 : vector<8x512xf32>
    %325 = arith.addf %324, %0 : vector<8x512xf32>
    %cst_20 = arith.constant 0.000000e+00 : f32
    %326 = vector.broadcast %cst_20 : f32 to vector<8x512xf32>
    %327 = arith.cmpf oge, %325, %326 : vector<8x512xf32>
    %cst_21 = arith.constant 5.000000e-02 : f32
    %328 = vector.broadcast %cst_21 : f32 to vector<8x512xf32>
    %329 = arith.mulf %328, %325 : vector<8x512xf32>
    %330 = arith.select %327, %325, %329 : vector<8x512xi1>, vector<8x512xf32>
    %c0_22 = arith.constant 0 : index
    %c0_23 = arith.constant 0 : index
    %331 = vector.load %arg8[%c0_22, %c0_23] : memref<8x512xf32, #tpu.memory_space<vmem>>, vector<8x512xf32>
    tpu.vector_store %arg8[%c0_22, %c0_23], %330 {strides = array<i32>} : memref<8x512xf32, #tpu.memory_space<vmem>>, vector<8x512xf32>,
    return
  }
}

module attributes {stable_mosaic.version = 11 : i64} {
  func.func @_c5_conv1_kernel(%arg0: memref<4x512xf32, #tpu.memory_space<vmem>>, %arg1: memref<4x512xf32, #tpu.memory_space<vmem>>, %arg2: memref<4x512xf32, #tpu.memory_space<vmem>>, %arg3: memref<4x512xf32, #tpu.memory_space<vmem>>, %arg4: memref<8x4xf32, #tpu.memory_space<vmem>>, %arg5: memref<8x4xf32, #tpu.memory_space<vmem>>, %arg6: memref<8x4xf32, #tpu.memory_space<vmem>>, %arg7: memref<8x4xf32, #tpu.memory_space<vmem>>, %arg8: memref<8x1xf32, #tpu.memory_space<vmem>>, %arg9: memref<2x8xf32, #tpu.memory_space<vmem>>, %arg10: memref<2x1xf32, #tpu.memory_space<vmem>>, %arg11: memref<8x512xf32, #tpu.memory_space<vmem>>, %arg12: memref<2x512xf32, #tpu.memory_space<vmem>>) attributes {dimension_semantics = [], scalar_prefetch = 0 : i64, scratch_operands = 0 : i64, tpu.core_type = #tpu.core_type<tc>} {
    %c0 = arith.constant 0 : index
    %c0_0 = arith.constant 0 : index
    %0 = vector.load %arg4[%c0, %c0_0] : memref<8x4xf32, #tpu.memory_space<vmem>>, vector<8x4xf32>
    %c0_1 = arith.constant 0 : index
    %c0_2 = arith.constant 0 : index
    %1 = vector.load %arg0[%c0_1, %c0_2] : memref<4x512xf32, #tpu.memory_space<vmem>>, vector<4x512xf32>
    %cst = arith.constant dense<0.000000e+00> : vector<8x512xf32>
    %2 = tpu.matmul %0, %1, %cst {dimension_numbers = #tpu.dot_dimension_numbers<[1], [0], [0], [1], [0, 0, 1, 1], [], []>} : vector<8x4xf32>, vector<4x512xf32>, vector<8x512xf32> -> vector<8x512xf32>
    %c0_3 = arith.constant 0 : index
    %c0_4 = arith.constant 0 : index
    %3 = vector.load %arg5[%c0_3, %c0_4] : memref<8x4xf32, #tpu.memory_space<vmem>>, vector<8x4xf32>
    %c0_5 = arith.constant 0 : index
    %c0_6 = arith.constant 0 : index
    %4 = vector.load %arg1[%c0_5, %c0_6] : memref<4x512xf32, #tpu.memory_space<vmem>>, vector<4x512xf32>
    %cst_7 = arith.constant dense<0.000000e+00> : vector<8x512xf32>
    %5 = tpu.matmul %3, %4, %cst_7 {dimension_numbers = #tpu.dot_dimension_numbers<[1], [0], [0], [1], [0, 0, 1, 1], [], []>} : vector<8x4xf32>, vector<4x512xf32>, vector<8x512xf32> -> vector<8x512xf32>
    %6 = arith.addf %2, %5 : vector<8x512xf32>
    %c0_8 = arith.constant 0 : index
    %c0_9 = arith.constant 0 : index
    %7 = vector.load %arg6[%c0_8, %c0_9] : memref<8x4xf32, #tpu.memory_space<vmem>>, vector<8x4xf32>
    %c0_10 = arith.constant 0 : index
    %c0_11 = arith.constant 0 : index
    %8 = vector.load %arg2[%c0_10, %c0_11] : memref<4x512xf32, #tpu.memory_space<vmem>>, vector<4x512xf32>
    %cst_12 = arith.constant dense<0.000000e+00> : vector<8x512xf32>
    %9 = tpu.matmul %7, %8, %cst_12 {dimension_numbers = #tpu.dot_dimension_numbers<[1], [0], [0], [1], [0, 0, 1, 1], [], []>} : vector<8x4xf32>, vector<4x512xf32>, vector<8x512xf32> -> vector<8x512xf32>
    %10 = arith.addf %6, %9 : vector<8x512xf32>
    %c0_13 = arith.constant 0 : index
    %c0_14 = arith.constant 0 : index
    %11 = vector.load %arg7[%c0_13, %c0_14] : memref<8x4xf32, #tpu.memory_space<vmem>>, vector<8x4xf32>
    %c0_15 = arith.constant 0 : index
    %c0_16 = arith.constant 0 : index
    %12 = vector.load %arg3[%c0_15, %c0_16] : memref<4x512xf32, #tpu.memory_space<vmem>>, vector<4x512xf32>
    %cst_17 = arith.constant dense<0.000000e+00> : vector<8x512xf32>
    %13 = tpu.matmul %11, %12, %cst_17 {dimension_numbers = #tpu.dot_dimension_numbers<[1], [0], [0], [1], [0, 0, 1, 1], [], []>} : vector<8x4xf32>, vector<4x512xf32>, vector<8x512xf32> -> vector<8x512xf32>
    %14 = arith.addf %10, %13 : vector<8x512xf32>
    %c0_18 = arith.constant 0 : index
    %c0_19 = arith.constant 0 : index
    %15 = vector.load %arg8[%c0_18, %c0_19] : memref<8x1xf32, #tpu.memory_space<vmem>>, vector<8x1xf32>
    %16 = vector.broadcast %15 : vector<8x1xf32> to vector<8x512xf32>
    %17 = arith.addf %14, %16 : vector<8x512xf32>
    %c0_20 = arith.constant 0 : index
    %c0_21 = arith.constant 0 : index
    %18 = vector.load %arg11[%c0_20, %c0_21] : memref<8x512xf32, #tpu.memory_space<vmem>>, vector<8x512xf32>
    tpu.vector_store %arg11[%c0_20, %c0_21], %17 {strides = array<i32>} : memref<8x512xf32, #tpu.memory_space<vmem>>, vector<8x512xf32>,
    %c0_22 = arith.constant 0 : index
    %c0_23 = arith.constant 0 : index
    %19 = vector.load %arg9[%c0_22, %c0_23] : memref<2x8xf32, #tpu.memory_space<vmem>>, vector<2x8xf32>
    %cst_24 = arith.constant dense<0.000000e+00> : vector<2x512xf32>
    %20 = tpu.matmul %19, %17, %cst_24 {dimension_numbers = #tpu.dot_dimension_numbers<[1], [0], [0], [1], [0, 0, 1, 1], [], []>} : vector<2x8xf32>, vector<8x512xf32>, vector<2x512xf32> -> vector<2x512xf32>
    %c0_25 = arith.constant 0 : index
    %c0_26 = arith.constant 0 : index
    %21 = vector.load %arg10[%c0_25, %c0_26] : memref<2x1xf32, #tpu.memory_space<vmem>>, vector<2x1xf32>
    %22 = vector.broadcast %21 : vector<2x1xf32> to vector<2x512xf32>
    %23 = arith.addf %20, %22 : vector<2x512xf32>
    %c0_27 = arith.constant 0 : index
    %c0_28 = arith.constant 0 : index
    %24 = vector.load %arg12[%c0_27, %c0_28] : memref<2x512xf32, #tpu.memory_space<vmem>>, vector<2x512xf32>
    tpu.vector_store %arg12[%c0_27, %c0_28], %23 {strides = array<i32>} : memref<2x512xf32, #tpu.memory_space<vmem>>, vector<2x512xf32>,
    return
  }
}

module attributes {stable_mosaic.version = 11 : i64} {
  func.func @_multiception135_kernel(%arg0: memref<8x512xf32, #tpu.memory_space<vmem>>, %arg1: memref<25x1x512xf32, #tpu.memory_space<vmem>>, %arg2: memref<4x8xf32, #tpu.memory_space<vmem>>, %arg3: memref<8x9xf32, #tpu.memory_space<vmem>>, %arg4: memref<4x8xf32, #tpu.memory_space<vmem>>, %arg5: memref<8x25xf32, #tpu.memory_space<vmem>>, %arg6: memref<4x8xf32, #tpu.memory_space<vmem>>, %arg7: memref<4x1xf32, #tpu.memory_space<vmem>>, %arg8: memref<4x512xf32, #tpu.memory_space<vmem>>) attributes {dimension_semantics = [], scalar_prefetch = 0 : i64, scratch_operands = 0 : i64, tpu.core_type = #tpu.core_type<tc>} {
    %c0 = arith.constant 0 : index
    %c0_0 = arith.constant 0 : index
    %0 = vector.load %arg0[%c0, %c0_0] : memref<8x512xf32, #tpu.memory_space<vmem>>, vector<8x512xf32>
    %c0_1 = arith.constant 0 : index
    %c0_2 = arith.constant 0 : index
    %c0_3 = arith.constant 0 : index
    %1 = vector.load %arg1[%c0_1, %c0_2, %c0_3] : memref<25x1x512xf32, #tpu.memory_space<vmem>>, vector<25x1x512xf32>
    %c0_4 = arith.constant 0 : index
    %c0_5 = arith.constant 0 : index
    %2 = vector.load %arg2[%c0_4, %c0_5] : memref<4x8xf32, #tpu.memory_space<vmem>>, vector<4x8xf32>
    %cst = arith.constant dense<0.000000e+00> : vector<4x512xf32>
    %3 = tpu.matmul %2, %0, %cst {dimension_numbers = #tpu.dot_dimension_numbers<[1], [0], [0], [1], [0, 0, 1, 1], [], []>} : vector<4x8xf32>, vector<8x512xf32>, vector<4x512xf32> -> vector<4x512xf32>
    %c0_6 = arith.constant 0 : index
    %c0_7 = arith.constant 0 : index
    %4 = vector.load %arg7[%c0_6, %c0_7] : memref<4x1xf32, #tpu.memory_space<vmem>>, vector<4x1xf32>
    %5 = vector.broadcast %4 : vector<4x1xf32> to vector<4x512xf32>
    %6 = arith.addf %3, %5 : vector<4x512xf32>
    %c0_8 = arith.constant 0 : index
    %c0_9 = arith.constant 0 : index
    %7 = vector.load %arg3[%c0_8, %c0_9] : memref<8x9xf32, #tpu.memory_space<vmem>>, vector<8x9xf32>
    %c0_10 = arith.constant 0 : index
    %c0_11 = arith.constant 0 : index
    %8 = vector.load %arg5[%c0_10, %c0_11] : memref<8x25xf32, #tpu.memory_space<vmem>>, vector<8x25xf32>
    %cst_12 = arith.constant 0.000000e+00 : f32
    %9 = vector.broadcast %cst_12 : f32 to vector<8x512xf32>
    %cst_13 = arith.constant 0.000000e+00 : f32
    %10 = vector.broadcast %cst_13 : f32 to vector<8x512xf32>
    %11 = vector.extract_strided_slice %0 {offsets = [0, 478], sizes = [8, 34], strides = [1, 1]} : vector<8x512xf32> to vector<8x34xf32>
    %12 = vector.extract_strided_slice %0 {offsets = [0, 0], sizes = [8, 478], strides = [1, 1]} : vector<8x512xf32> to vector<8x478xf32>
    %13 = tpu.concatenate %11, %12 in 1 : vector<8x34xf32>, vector<8x478xf32> -> vector<8x512xf32>
    %14 = vector.extract_strided_slice %1 {offsets = [0, 0, 0], sizes = [1, 1, 512], strides = [1, 1, 1]} : vector<25x1x512xf32> to vector<1x1x512xf32>
    %15 = vector.shape_cast %14 : vector<1x1x512xf32> to vector<1x512xf32>
    %16 = vector.broadcast %15 : vector<1x512xf32> to vector<8x512xf32>
    %17 = arith.mulf %13, %16 : vector<8x512xf32>
    %18 = vector.extract_strided_slice %8 {offsets = [0, 0], sizes = [8, 1], strides = [1, 1]} : vector<8x25xf32> to vector<8x1xf32>
    %19 = vector.broadcast %18 : vector<8x1xf32> to vector<8x512xf32>
    %20 = arith.mulf %19, %17 : vector<8x512xf32>
    %21 = arith.addf %10, %20 : vector<8x512xf32>
    %22 = vector.extract_strided_slice %0 {offsets = [0, 479], sizes = [8, 33], strides = [1, 1]} : vector<8x512xf32> to vector<8x33xf32>
    %23 = vector.extract_strided_slice %0 {offsets = [0, 0], sizes = [8, 479], strides = [1, 1]} : vector<8x512xf32> to vector<8x479xf32>
    %24 = tpu.concatenate %22, %23 in 1 : vector<8x33xf32>, vector<8x479xf32> -> vector<8x512xf32>
    %25 = vector.extract_strided_slice %1 {offsets = [1, 0, 0], sizes = [1, 1, 512], strides = [1, 1, 1]} : vector<25x1x512xf32> to vector<1x1x512xf32>
    %26 = vector.shape_cast %25 : vector<1x1x512xf32> to vector<1x512xf32>
    %27 = vector.broadcast %26 : vector<1x512xf32> to vector<8x512xf32>
    %28 = arith.mulf %24, %27 : vector<8x512xf32>
    %29 = vector.extract_strided_slice %8 {offsets = [0, 1], sizes = [8, 1], strides = [1, 1]} : vector<8x25xf32> to vector<8x1xf32>
    %30 = vector.broadcast %29 : vector<8x1xf32> to vector<8x512xf32>
    %31 = arith.mulf %30, %28 : vector<8x512xf32>
    %32 = arith.addf %21, %31 : vector<8x512xf32>
    %33 = vector.extract_strided_slice %0 {offsets = [0, 480], sizes = [8, 32], strides = [1, 1]} : vector<8x512xf32> to vector<8x32xf32>
    %34 = vector.extract_strided_slice %0 {offsets = [0, 0], sizes = [8, 480], strides = [1, 1]} : vector<8x512xf32> to vector<8x480xf32>
    %35 = tpu.concatenate %33, %34 in 1 : vector<8x32xf32>, vector<8x480xf32> -> vector<8x512xf32>
    %36 = vector.extract_strided_slice %1 {offsets = [2, 0, 0], sizes = [1, 1, 512], strides = [1, 1, 1]} : vector<25x1x512xf32> to vector<1x1x512xf32>
    %37 = vector.shape_cast %36 : vector<1x1x512xf32> to vector<1x512xf32>
    %38 = vector.broadcast %37 : vector<1x512xf32> to vector<8x512xf32>
    %39 = arith.mulf %35, %38 : vector<8x512xf32>
    %40 = vector.extract_strided_slice %8 {offsets = [0, 2], sizes = [8, 1], strides = [1, 1]} : vector<8x25xf32> to vector<8x1xf32>
    %41 = vector.broadcast %40 : vector<8x1xf32> to vector<8x512xf32>
    %42 = arith.mulf %41, %39 : vector<8x512xf32>
    %43 = arith.addf %32, %42 : vector<8x512xf32>
    %44 = vector.extract_strided_slice %0 {offsets = [0, 481], sizes = [8, 31], strides = [1, 1]} : vector<8x512xf32> to vector<8x31xf32>
    %45 = vector.extract_strided_slice %0 {offsets = [0, 0], sizes = [8, 481], strides = [1, 1]} : vector<8x512xf32> to vector<8x481xf32>
    %46 = tpu.concatenate %44, %45 in 1 : vector<8x31xf32>, vector<8x481xf32> -> vector<8x512xf32>
    %47 = vector.extract_strided_slice %1 {offsets = [3, 0, 0], sizes = [1, 1, 512], strides = [1, 1, 1]} : vector<25x1x512xf32> to vector<1x1x512xf32>
    %48 = vector.shape_cast %47 : vector<1x1x512xf32> to vector<1x512xf32>
    %49 = vector.broadcast %48 : vector<1x512xf32> to vector<8x512xf32>
    %50 = arith.mulf %46, %49 : vector<8x512xf32>
    %51 = vector.extract_strided_slice %8 {offsets = [0, 3], sizes = [8, 1], strides = [1, 1]} : vector<8x25xf32> to vector<8x1xf32>
    %52 = vector.broadcast %51 : vector<8x1xf32> to vector<8x512xf32>
    %53 = arith.mulf %52, %50 : vector<8x512xf32>
    %54 = arith.addf %43, %53 : vector<8x512xf32>
    %55 = vector.extract_strided_slice %0 {offsets = [0, 482], sizes = [8, 30], strides = [1, 1]} : vector<8x512xf32> to vector<8x30xf32>
    %56 = vector.extract_strided_slice %0 {offsets = [0, 0], sizes = [8, 482], strides = [1, 1]} : vector<8x512xf32> to vector<8x482xf32>
    %57 = tpu.concatenate %55, %56 in 1 : vector<8x30xf32>, vector<8x482xf32> -> vector<8x512xf32>
    %58 = vector.extract_strided_slice %1 {offsets = [4, 0, 0], sizes = [1, 1, 512], strides = [1, 1, 1]} : vector<25x1x512xf32> to vector<1x1x512xf32>
    %59 = vector.shape_cast %58 : vector<1x1x512xf32> to vector<1x512xf32>
    %60 = vector.broadcast %59 : vector<1x512xf32> to vector<8x512xf32>
    %61 = arith.mulf %57, %60 : vector<8x512xf32>
    %62 = vector.extract_strided_slice %8 {offsets = [0, 4], sizes = [8, 1], strides = [1, 1]} : vector<8x25xf32> to vector<8x1xf32>
    %63 = vector.broadcast %62 : vector<8x1xf32> to vector<8x512xf32>
    %64 = arith.mulf %63, %61 : vector<8x512xf32>
    %65 = arith.addf %54, %64 : vector<8x512xf32>
    %66 = vector.extract_strided_slice %0 {offsets = [0, 494], sizes = [8, 18], strides = [1, 1]} : vector<8x512xf32> to vector<8x18xf32>
    %67 = vector.extract_strided_slice %0 {offsets = [0, 0], sizes = [8, 494], strides = [1, 1]} : vector<8x512xf32> to vector<8x494xf32>
    %68 = tpu.concatenate %66, %67 in 1 : vector<8x18xf32>, vector<8x494xf32> -> vector<8x512xf32>
    %69 = vector.extract_strided_slice %1 {offsets = [5, 0, 0], sizes = [1, 1, 512], strides = [1, 1, 1]} : vector<25x1x512xf32> to vector<1x1x512xf32>
    %70 = vector.shape_cast %69 : vector<1x1x512xf32> to vector<1x512xf32>
    %71 = vector.broadcast %70 : vector<1x512xf32> to vector<8x512xf32>
    %72 = arith.mulf %68, %71 : vector<8x512xf32>
    %73 = vector.extract_strided_slice %8 {offsets = [0, 5], sizes = [8, 1], strides = [1, 1]} : vector<8x25xf32> to vector<8x1xf32>
    %74 = vector.broadcast %73 : vector<8x1xf32> to vector<8x512xf32>
    %75 = arith.mulf %74, %72 : vector<8x512xf32>
    %76 = arith.addf %65, %75 : vector<8x512xf32>
    %77 = vector.extract_strided_slice %0 {offsets = [0, 495], sizes = [8, 17], strides = [1, 1]} : vector<8x512xf32> to vector<8x17xf32>
    %78 = vector.extract_strided_slice %0 {offsets = [0, 0], sizes = [8, 495], strides = [1, 1]} : vector<8x512xf32> to vector<8x495xf32>
    %79 = tpu.concatenate %77, %78 in 1 : vector<8x17xf32>, vector<8x495xf32> -> vector<8x512xf32>
    %80 = vector.extract_strided_slice %1 {offsets = [6, 0, 0], sizes = [1, 1, 512], strides = [1, 1, 1]} : vector<25x1x512xf32> to vector<1x1x512xf32>
    %81 = vector.shape_cast %80 : vector<1x1x512xf32> to vector<1x512xf32>
    %82 = vector.broadcast %81 : vector<1x512xf32> to vector<8x512xf32>
    %83 = arith.mulf %79, %82 : vector<8x512xf32>
    %84 = vector.extract_strided_slice %8 {offsets = [0, 6], sizes = [8, 1], strides = [1, 1]} : vector<8x25xf32> to vector<8x1xf32>
    %85 = vector.broadcast %84 : vector<8x1xf32> to vector<8x512xf32>
    %86 = arith.mulf %85, %83 : vector<8x512xf32>
    %87 = arith.addf %76, %86 : vector<8x512xf32>
    %88 = vector.extract_strided_slice %7 {offsets = [0, 0], sizes = [8, 1], strides = [1, 1]} : vector<8x9xf32> to vector<8x1xf32>
    %89 = vector.broadcast %88 : vector<8x1xf32> to vector<8x512xf32>
    %90 = arith.mulf %89, %83 : vector<8x512xf32>
    %91 = arith.addf %9, %90 : vector<8x512xf32>
    %92 = vector.extract_strided_slice %0 {offsets = [0, 496], sizes = [8, 16], strides = [1, 1]} : vector<8x512xf32> to vector<8x16xf32>
    %93 = vector.extract_strided_slice %0 {offsets = [0, 0], sizes = [8, 496], strides = [1, 1]} : vector<8x512xf32> to vector<8x496xf32>
    %94 = tpu.concatenate %92, %93 in 1 : vector<8x16xf32>, vector<8x496xf32> -> vector<8x512xf32>
    %95 = vector.extract_strided_slice %1 {offsets = [7, 0, 0], sizes = [1, 1, 512], strides = [1, 1, 1]} : vector<25x1x512xf32> to vector<1x1x512xf32>
    %96 = vector.shape_cast %95 : vector<1x1x512xf32> to vector<1x512xf32>
    %97 = vector.broadcast %96 : vector<1x512xf32> to vector<8x512xf32>
    %98 = arith.mulf %94, %97 : vector<8x512xf32>
    %99 = vector.extract_strided_slice %8 {offsets = [0, 7], sizes = [8, 1], strides = [1, 1]} : vector<8x25xf32> to vector<8x1xf32>
    %100 = vector.broadcast %99 : vector<8x1xf32> to vector<8x512xf32>
    %101 = arith.mulf %100, %98 : vector<8x512xf32>
    %102 = arith.addf %87, %101 : vector<8x512xf32>
    %103 = vector.extract_strided_slice %7 {offsets = [0, 1], sizes = [8, 1], strides = [1, 1]} : vector<8x9xf32> to vector<8x1xf32>
    %104 = vector.broadcast %103 : vector<8x1xf32> to vector<8x512xf32>
    %105 = arith.mulf %104, %98 : vector<8x512xf32>
    %106 = arith.addf %91, %105 : vector<8x512xf32>
    %107 = vector.extract_strided_slice %0 {offsets = [0, 497], sizes = [8, 15], strides = [1, 1]} : vector<8x512xf32> to vector<8x15xf32>
    %108 = vector.extract_strided_slice %0 {offsets = [0, 0], sizes = [8, 497], strides = [1, 1]} : vector<8x512xf32> to vector<8x497xf32>
    %109 = tpu.concatenate %107, %108 in 1 : vector<8x15xf32>, vector<8x497xf32> -> vector<8x512xf32>
    %110 = vector.extract_strided_slice %1 {offsets = [8, 0, 0], sizes = [1, 1, 512], strides = [1, 1, 1]} : vector<25x1x512xf32> to vector<1x1x512xf32>
    %111 = vector.shape_cast %110 : vector<1x1x512xf32> to vector<1x512xf32>
    %112 = vector.broadcast %111 : vector<1x512xf32> to vector<8x512xf32>
    %113 = arith.mulf %109, %112 : vector<8x512xf32>
    %114 = vector.extract_strided_slice %8 {offsets = [0, 8], sizes = [8, 1], strides = [1, 1]} : vector<8x25xf32> to vector<8x1xf32>
    %115 = vector.broadcast %114 : vector<8x1xf32> to vector<8x512xf32>
    %116 = arith.mulf %115, %113 : vector<8x512xf32>
    %117 = arith.addf %102, %116 : vector<8x512xf32>
    %118 = vector.extract_strided_slice %7 {offsets = [0, 2], sizes = [8, 1], strides = [1, 1]} : vector<8x9xf32> to vector<8x1xf32>
    %119 = vector.broadcast %118 : vector<8x1xf32> to vector<8x512xf32>
    %120 = arith.mulf %119, %113 : vector<8x512xf32>
    %121 = arith.addf %106, %120 : vector<8x512xf32>
    %122 = vector.extract_strided_slice %0 {offsets = [0, 498], sizes = [8, 14], strides = [1, 1]} : vector<8x512xf32> to vector<8x14xf32>
    %123 = vector.extract_strided_slice %0 {offsets = [0, 0], sizes = [8, 498], strides = [1, 1]} : vector<8x512xf32> to vector<8x498xf32>
    %124 = tpu.concatenate %122, %123 in 1 : vector<8x14xf32>, vector<8x498xf32> -> vector<8x512xf32>
    %125 = vector.extract_strided_slice %1 {offsets = [9, 0, 0], sizes = [1, 1, 512], strides = [1, 1, 1]} : vector<25x1x512xf32> to vector<1x1x512xf32>
    %126 = vector.shape_cast %125 : vector<1x1x512xf32> to vector<1x512xf32>
    %127 = vector.broadcast %126 : vector<1x512xf32> to vector<8x512xf32>
    %128 = arith.mulf %124, %127 : vector<8x512xf32>
    %129 = vector.extract_strided_slice %8 {offsets = [0, 9], sizes = [8, 1], strides = [1, 1]} : vector<8x25xf32> to vector<8x1xf32>
    %130 = vector.broadcast %129 : vector<8x1xf32> to vector<8x512xf32>
    %131 = arith.mulf %130, %128 : vector<8x512xf32>
    %132 = arith.addf %117, %131 : vector<8x512xf32>
    %133 = vector.extract_strided_slice %0 {offsets = [0, 510], sizes = [8, 2], strides = [1, 1]} : vector<8x512xf32> to vector<8x2xf32>
    %134 = vector.extract_strided_slice %0 {offsets = [0, 0], sizes = [8, 510], strides = [1, 1]} : vector<8x512xf32> to vector<8x510xf32>
    %135 = tpu.concatenate %133, %134 in 1 : vector<8x2xf32>, vector<8x510xf32> -> vector<8x512xf32>
    %136 = vector.extract_strided_slice %1 {offsets = [10, 0, 0], sizes = [1, 1, 512], strides = [1, 1, 1]} : vector<25x1x512xf32> to vector<1x1x512xf32>
    %137 = vector.shape_cast %136 : vector<1x1x512xf32> to vector<1x512xf32>
    %138 = vector.broadcast %137 : vector<1x512xf32> to vector<8x512xf32>
    %139 = arith.mulf %135, %138 : vector<8x512xf32>
    %140 = vector.extract_strided_slice %8 {offsets = [0, 10], sizes = [8, 1], strides = [1, 1]} : vector<8x25xf32> to vector<8x1xf32>
    %141 = vector.broadcast %140 : vector<8x1xf32> to vector<8x512xf32>
    %142 = arith.mulf %141, %139 : vector<8x512xf32>
    %143 = arith.addf %132, %142 : vector<8x512xf32>
    %144 = vector.extract_strided_slice %0 {offsets = [0, 511], sizes = [8, 1], strides = [1, 1]} : vector<8x512xf32> to vector<8x1xf32>
    %145 = vector.extract_strided_slice %0 {offsets = [0, 0], sizes = [8, 511], strides = [1, 1]} : vector<8x512xf32> to vector<8x511xf32>
    %146 = tpu.concatenate %144, %145 in 1 : vector<8x1xf32>, vector<8x511xf32> -> vector<8x512xf32>
    %147 = vector.extract_strided_slice %1 {offsets = [11, 0, 0], sizes = [1, 1, 512], strides = [1, 1, 1]} : vector<25x1x512xf32> to vector<1x1x512xf32>
    %148 = vector.shape_cast %147 : vector<1x1x512xf32> to vector<1x512xf32>
    %149 = vector.broadcast %148 : vector<1x512xf32> to vector<8x512xf32>
    %150 = arith.mulf %146, %149 : vector<8x512xf32>
    %151 = vector.extract_strided_slice %8 {offsets = [0, 11], sizes = [8, 1], strides = [1, 1]} : vector<8x25xf32> to vector<8x1xf32>
    %152 = vector.broadcast %151 : vector<8x1xf32> to vector<8x512xf32>
    %153 = arith.mulf %152, %150 : vector<8x512xf32>
    %154 = arith.addf %143, %153 : vector<8x512xf32>
    %155 = vector.extract_strided_slice %7 {offsets = [0, 3], sizes = [8, 1], strides = [1, 1]} : vector<8x9xf32> to vector<8x1xf32>
    %156 = vector.broadcast %155 : vector<8x1xf32> to vector<8x512xf32>
    %157 = arith.mulf %156, %150 : vector<8x512xf32>
    %158 = arith.addf %121, %157 : vector<8x512xf32>
    %159 = vector.extract_strided_slice %1 {offsets = [12, 0, 0], sizes = [1, 1, 512], strides = [1, 1, 1]} : vector<25x1x512xf32> to vector<1x1x512xf32>
    %160 = vector.shape_cast %159 : vector<1x1x512xf32> to vector<1x512xf32>
    %161 = vector.broadcast %160 : vector<1x512xf32> to vector<8x512xf32>
    %162 = arith.mulf %0, %161 : vector<8x512xf32>
    %163 = vector.extract_strided_slice %8 {offsets = [0, 12], sizes = [8, 1], strides = [1, 1]} : vector<8x25xf32> to vector<8x1xf32>
    %164 = vector.broadcast %163 : vector<8x1xf32> to vector<8x512xf32>
    %165 = arith.mulf %164, %162 : vector<8x512xf32>
    %166 = arith.addf %154, %165 : vector<8x512xf32>
    %167 = vector.extract_strided_slice %7 {offsets = [0, 4], sizes = [8, 1], strides = [1, 1]} : vector<8x9xf32> to vector<8x1xf32>
    %168 = vector.broadcast %167 : vector<8x1xf32> to vector<8x512xf32>
    %169 = arith.mulf %168, %162 : vector<8x512xf32>
    %170 = arith.addf %158, %169 : vector<8x512xf32>
    %171 = vector.extract_strided_slice %0 {offsets = [0, 1], sizes = [8, 511], strides = [1, 1]} : vector<8x512xf32> to vector<8x511xf32>
    %172 = vector.extract_strided_slice %0 {offsets = [0, 0], sizes = [8, 1], strides = [1, 1]} : vector<8x512xf32> to vector<8x1xf32>
    %173 = tpu.concatenate %171, %172 in 1 : vector<8x511xf32>, vector<8x1xf32> -> vector<8x512xf32>
    %174 = vector.extract_strided_slice %1 {offsets = [13, 0, 0], sizes = [1, 1, 512], strides = [1, 1, 1]} : vector<25x1x512xf32> to vector<1x1x512xf32>
    %175 = vector.shape_cast %174 : vector<1x1x512xf32> to vector<1x512xf32>
    %176 = vector.broadcast %175 : vector<1x512xf32> to vector<8x512xf32>
    %177 = arith.mulf %173, %176 : vector<8x512xf32>
    %178 = vector.extract_strided_slice %8 {offsets = [0, 13], sizes = [8, 1], strides = [1, 1]} : vector<8x25xf32> to vector<8x1xf32>
    %179 = vector.broadcast %178 : vector<8x1xf32> to vector<8x512xf32>
    %180 = arith.mulf %179, %177 : vector<8x512xf32>
    %181 = arith.addf %166, %180 : vector<8x512xf32>
    %182 = vector.extract_strided_slice %7 {offsets = [0, 5], sizes = [8, 1], strides = [1, 1]} : vector<8x9xf32> to vector<8x1xf32>
    %183 = vector.broadcast %182 : vector<8x1xf32> to vector<8x512xf32>
    %184 = arith.mulf %183, %177 : vector<8x512xf32>
    %185 = arith.addf %170, %184 : vector<8x512xf32>
    %186 = vector.extract_strided_slice %0 {offsets = [0, 2], sizes = [8, 510], strides = [1, 1]} : vector<8x512xf32> to vector<8x510xf32>
    %187 = vector.extract_strided_slice %0 {offsets = [0, 0], sizes = [8, 2], strides = [1, 1]} : vector<8x512xf32> to vector<8x2xf32>
    %188 = tpu.concatenate %186, %187 in 1 : vector<8x510xf32>, vector<8x2xf32> -> vector<8x512xf32>
    %189 = vector.extract_strided_slice %1 {offsets = [14, 0, 0], sizes = [1, 1, 512], strides = [1, 1, 1]} : vector<25x1x512xf32> to vector<1x1x512xf32>
    %190 = vector.shape_cast %189 : vector<1x1x512xf32> to vector<1x512xf32>
    %191 = vector.broadcast %190 : vector<1x512xf32> to vector<8x512xf32>
    %192 = arith.mulf %188, %191 : vector<8x512xf32>
    %193 = vector.extract_strided_slice %8 {offsets = [0, 14], sizes = [8, 1], strides = [1, 1]} : vector<8x25xf32> to vector<8x1xf32>
    %194 = vector.broadcast %193 : vector<8x1xf32> to vector<8x512xf32>
    %195 = arith.mulf %194, %192 : vector<8x512xf32>
    %196 = arith.addf %181, %195 : vector<8x512xf32>
    %197 = vector.extract_strided_slice %0 {offsets = [0, 14], sizes = [8, 498], strides = [1, 1]} : vector<8x512xf32> to vector<8x498xf32>
    %198 = vector.extract_strided_slice %0 {offsets = [0, 0], sizes = [8, 14], strides = [1, 1]} : vector<8x512xf32> to vector<8x14xf32>
    %199 = tpu.concatenate %197, %198 in 1 : vector<8x498xf32>, vector<8x14xf32> -> vector<8x512xf32>
    %200 = vector.extract_strided_slice %1 {offsets = [15, 0, 0], sizes = [1, 1, 512], strides = [1, 1, 1]} : vector<25x1x512xf32> to vector<1x1x512xf32>
    %201 = vector.shape_cast %200 : vector<1x1x512xf32> to vector<1x512xf32>
    %202 = vector.broadcast %201 : vector<1x512xf32> to vector<8x512xf32>
    %203 = arith.mulf %199, %202 : vector<8x512xf32>
    %204 = vector.extract_strided_slice %8 {offsets = [0, 15], sizes = [8, 1], strides = [1, 1]} : vector<8x25xf32> to vector<8x1xf32>
    %205 = vector.broadcast %204 : vector<8x1xf32> to vector<8x512xf32>
    %206 = arith.mulf %205, %203 : vector<8x512xf32>
    %207 = arith.addf %196, %206 : vector<8x512xf32>
    %208 = vector.extract_strided_slice %0 {offsets = [0, 15], sizes = [8, 497], strides = [1, 1]} : vector<8x512xf32> to vector<8x497xf32>
    %209 = vector.extract_strided_slice %0 {offsets = [0, 0], sizes = [8, 15], strides = [1, 1]} : vector<8x512xf32> to vector<8x15xf32>
    %210 = tpu.concatenate %208, %209 in 1 : vector<8x497xf32>, vector<8x15xf32> -> vector<8x512xf32>
    %211 = vector.extract_strided_slice %1 {offsets = [16, 0, 0], sizes = [1, 1, 512], strides = [1, 1, 1]} : vector<25x1x512xf32> to vector<1x1x512xf32>
    %212 = vector.shape_cast %211 : vector<1x1x512xf32> to vector<1x512xf32>
    %213 = vector.broadcast %212 : vector<1x512xf32> to vector<8x512xf32>
    %214 = arith.mulf %210, %213 : vector<8x512xf32>
    %215 = vector.extract_strided_slice %8 {offsets = [0, 16], sizes = [8, 1], strides = [1, 1]} : vector<8x25xf32> to vector<8x1xf32>
    %216 = vector.broadcast %215 : vector<8x1xf32> to vector<8x512xf32>
    %217 = arith.mulf %216, %214 : vector<8x512xf32>
    %218 = arith.addf %207, %217 : vector<8x512xf32>
    %219 = vector.extract_strided_slice %7 {offsets = [0, 6], sizes = [8, 1], strides = [1, 1]} : vector<8x9xf32> to vector<8x1xf32>
    %220 = vector.broadcast %219 : vector<8x1xf32> to vector<8x512xf32>
    %221 = arith.mulf %220, %214 : vector<8x512xf32>
    %222 = arith.addf %185, %221 : vector<8x512xf32>
    %223 = vector.extract_strided_slice %0 {offsets = [0, 16], sizes = [8, 496], strides = [1, 1]} : vector<8x512xf32> to vector<8x496xf32>
    %224 = vector.extract_strided_slice %0 {offsets = [0, 0], sizes = [8, 16], strides = [1, 1]} : vector<8x512xf32> to vector<8x16xf32>
    %225 = tpu.concatenate %223, %224 in 1 : vector<8x496xf32>, vector<8x16xf32> -> vector<8x512xf32>
    %226 = vector.extract_strided_slice %1 {offsets = [17, 0, 0], sizes = [1, 1, 512], strides = [1, 1, 1]} : vector<25x1x512xf32> to vector<1x1x512xf32>
    %227 = vector.shape_cast %226 : vector<1x1x512xf32> to vector<1x512xf32>
    %228 = vector.broadcast %227 : vector<1x512xf32> to vector<8x512xf32>
    %229 = arith.mulf %225, %228 : vector<8x512xf32>
    %230 = vector.extract_strided_slice %8 {offsets = [0, 17], sizes = [8, 1], strides = [1, 1]} : vector<8x25xf32> to vector<8x1xf32>
    %231 = vector.broadcast %230 : vector<8x1xf32> to vector<8x512xf32>
    %232 = arith.mulf %231, %229 : vector<8x512xf32>
    %233 = arith.addf %218, %232 : vector<8x512xf32>
    %234 = vector.extract_strided_slice %7 {offsets = [0, 7], sizes = [8, 1], strides = [1, 1]} : vector<8x9xf32> to vector<8x1xf32>
    %235 = vector.broadcast %234 : vector<8x1xf32> to vector<8x512xf32>
    %236 = arith.mulf %235, %229 : vector<8x512xf32>
    %237 = arith.addf %222, %236 : vector<8x512xf32>
    %238 = vector.extract_strided_slice %0 {offsets = [0, 17], sizes = [8, 495], strides = [1, 1]} : vector<8x512xf32> to vector<8x495xf32>
    %239 = vector.extract_strided_slice %0 {offsets = [0, 0], sizes = [8, 17], strides = [1, 1]} : vector<8x512xf32> to vector<8x17xf32>
    %240 = tpu.concatenate %238, %239 in 1 : vector<8x495xf32>, vector<8x17xf32> -> vector<8x512xf32>
    %241 = vector.extract_strided_slice %1 {offsets = [18, 0, 0], sizes = [1, 1, 512], strides = [1, 1, 1]} : vector<25x1x512xf32> to vector<1x1x512xf32>
    %242 = vector.shape_cast %241 : vector<1x1x512xf32> to vector<1x512xf32>
    %243 = vector.broadcast %242 : vector<1x512xf32> to vector<8x512xf32>
    %244 = arith.mulf %240, %243 : vector<8x512xf32>
    %245 = vector.extract_strided_slice %8 {offsets = [0, 18], sizes = [8, 1], strides = [1, 1]} : vector<8x25xf32> to vector<8x1xf32>
    %246 = vector.broadcast %245 : vector<8x1xf32> to vector<8x512xf32>
    %247 = arith.mulf %246, %244 : vector<8x512xf32>
    %248 = arith.addf %233, %247 : vector<8x512xf32>
    %249 = vector.extract_strided_slice %7 {offsets = [0, 8], sizes = [8, 1], strides = [1, 1]} : vector<8x9xf32> to vector<8x1xf32>
    %250 = vector.broadcast %249 : vector<8x1xf32> to vector<8x512xf32>
    %251 = arith.mulf %250, %244 : vector<8x512xf32>
    %252 = arith.addf %237, %251 : vector<8x512xf32>
    %253 = vector.extract_strided_slice %0 {offsets = [0, 18], sizes = [8, 494], strides = [1, 1]} : vector<8x512xf32> to vector<8x494xf32>
    %254 = vector.extract_strided_slice %0 {offsets = [0, 0], sizes = [8, 18], strides = [1, 1]} : vector<8x512xf32> to vector<8x18xf32>
    %255 = tpu.concatenate %253, %254 in 1 : vector<8x494xf32>, vector<8x18xf32> -> vector<8x512xf32>
    %256 = vector.extract_strided_slice %1 {offsets = [19, 0, 0], sizes = [1, 1, 512], strides = [1, 1, 1]} : vector<25x1x512xf32> to vector<1x1x512xf32>
    %257 = vector.shape_cast %256 : vector<1x1x512xf32> to vector<1x512xf32>
    %258 = vector.broadcast %257 : vector<1x512xf32> to vector<8x512xf32>
    %259 = arith.mulf %255, %258 : vector<8x512xf32>
    %260 = vector.extract_strided_slice %8 {offsets = [0, 19], sizes = [8, 1], strides = [1, 1]} : vector<8x25xf32> to vector<8x1xf32>
    %261 = vector.broadcast %260 : vector<8x1xf32> to vector<8x512xf32>
    %262 = arith.mulf %261, %259 : vector<8x512xf32>
    %263 = arith.addf %248, %262 : vector<8x512xf32>
    %264 = vector.extract_strided_slice %0 {offsets = [0, 30], sizes = [8, 482], strides = [1, 1]} : vector<8x512xf32> to vector<8x482xf32>
    %265 = vector.extract_strided_slice %0 {offsets = [0, 0], sizes = [8, 30], strides = [1, 1]} : vector<8x512xf32> to vector<8x30xf32>
    %266 = tpu.concatenate %264, %265 in 1 : vector<8x482xf32>, vector<8x30xf32> -> vector<8x512xf32>
    %267 = vector.extract_strided_slice %1 {offsets = [20, 0, 0], sizes = [1, 1, 512], strides = [1, 1, 1]} : vector<25x1x512xf32> to vector<1x1x512xf32>
    %268 = vector.shape_cast %267 : vector<1x1x512xf32> to vector<1x512xf32>
    %269 = vector.broadcast %268 : vector<1x512xf32> to vector<8x512xf32>
    %270 = arith.mulf %266, %269 : vector<8x512xf32>
    %271 = vector.extract_strided_slice %8 {offsets = [0, 20], sizes = [8, 1], strides = [1, 1]} : vector<8x25xf32> to vector<8x1xf32>
    %272 = vector.broadcast %271 : vector<8x1xf32> to vector<8x512xf32>
    %273 = arith.mulf %272, %270 : vector<8x512xf32>
    %274 = arith.addf %263, %273 : vector<8x512xf32>
    %275 = vector.extract_strided_slice %0 {offsets = [0, 31], sizes = [8, 481], strides = [1, 1]} : vector<8x512xf32> to vector<8x481xf32>
    %276 = vector.extract_strided_slice %0 {offsets = [0, 0], sizes = [8, 31], strides = [1, 1]} : vector<8x512xf32> to vector<8x31xf32>
    %277 = tpu.concatenate %275, %276 in 1 : vector<8x481xf32>, vector<8x31xf32> -> vector<8x512xf32>
    %278 = vector.extract_strided_slice %1 {offsets = [21, 0, 0], sizes = [1, 1, 512], strides = [1, 1, 1]} : vector<25x1x512xf32> to vector<1x1x512xf32>
    %279 = vector.shape_cast %278 : vector<1x1x512xf32> to vector<1x512xf32>
    %280 = vector.broadcast %279 : vector<1x512xf32> to vector<8x512xf32>
    %281 = arith.mulf %277, %280 : vector<8x512xf32>
    %282 = vector.extract_strided_slice %8 {offsets = [0, 21], sizes = [8, 1], strides = [1, 1]} : vector<8x25xf32> to vector<8x1xf32>
    %283 = vector.broadcast %282 : vector<8x1xf32> to vector<8x512xf32>
    %284 = arith.mulf %283, %281 : vector<8x512xf32>
    %285 = arith.addf %274, %284 : vector<8x512xf32>
    %286 = vector.extract_strided_slice %0 {offsets = [0, 32], sizes = [8, 480], strides = [1, 1]} : vector<8x512xf32> to vector<8x480xf32>
    %287 = vector.extract_strided_slice %0 {offsets = [0, 0], sizes = [8, 32], strides = [1, 1]} : vector<8x512xf32> to vector<8x32xf32>
    %288 = tpu.concatenate %286, %287 in 1 : vector<8x480xf32>, vector<8x32xf32> -> vector<8x512xf32>
    %289 = vector.extract_strided_slice %1 {offsets = [22, 0, 0], sizes = [1, 1, 512], strides = [1, 1, 1]} : vector<25x1x512xf32> to vector<1x1x512xf32>
    %290 = vector.shape_cast %289 : vector<1x1x512xf32> to vector<1x512xf32>
    %291 = vector.broadcast %290 : vector<1x512xf32> to vector<8x512xf32>
    %292 = arith.mulf %288, %291 : vector<8x512xf32>
    %293 = vector.extract_strided_slice %8 {offsets = [0, 22], sizes = [8, 1], strides = [1, 1]} : vector<8x25xf32> to vector<8x1xf32>
    %294 = vector.broadcast %293 : vector<8x1xf32> to vector<8x512xf32>
    %295 = arith.mulf %294, %292 : vector<8x512xf32>
    %296 = arith.addf %285, %295 : vector<8x512xf32>
    %297 = vector.extract_strided_slice %0 {offsets = [0, 33], sizes = [8, 479], strides = [1, 1]} : vector<8x512xf32> to vector<8x479xf32>
    %298 = vector.extract_strided_slice %0 {offsets = [0, 0], sizes = [8, 33], strides = [1, 1]} : vector<8x512xf32> to vector<8x33xf32>
    %299 = tpu.concatenate %297, %298 in 1 : vector<8x479xf32>, vector<8x33xf32> -> vector<8x512xf32>
    %300 = vector.extract_strided_slice %1 {offsets = [23, 0, 0], sizes = [1, 1, 512], strides = [1, 1, 1]} : vector<25x1x512xf32> to vector<1x1x512xf32>
    %301 = vector.shape_cast %300 : vector<1x1x512xf32> to vector<1x512xf32>
    %302 = vector.broadcast %301 : vector<1x512xf32> to vector<8x512xf32>
    %303 = arith.mulf %299, %302 : vector<8x512xf32>
    %304 = vector.extract_strided_slice %8 {offsets = [0, 23], sizes = [8, 1], strides = [1, 1]} : vector<8x25xf32> to vector<8x1xf32>
    %305 = vector.broadcast %304 : vector<8x1xf32> to vector<8x512xf32>
    %306 = arith.mulf %305, %303 : vector<8x512xf32>
    %307 = arith.addf %296, %306 : vector<8x512xf32>
    %308 = vector.extract_strided_slice %0 {offsets = [0, 34], sizes = [8, 478], strides = [1, 1]} : vector<8x512xf32> to vector<8x478xf32>
    %309 = vector.extract_strided_slice %0 {offsets = [0, 0], sizes = [8, 34], strides = [1, 1]} : vector<8x512xf32> to vector<8x34xf32>
    %310 = tpu.concatenate %308, %309 in 1 : vector<8x478xf32>, vector<8x34xf32> -> vector<8x512xf32>
    %311 = vector.extract_strided_slice %1 {offsets = [24, 0, 0], sizes = [1, 1, 512], strides = [1, 1, 1]} : vector<25x1x512xf32> to vector<1x1x512xf32>
    %312 = vector.shape_cast %311 : vector<1x1x512xf32> to vector<1x512xf32>
    %313 = vector.broadcast %312 : vector<1x512xf32> to vector<8x512xf32>
    %314 = arith.mulf %310, %313 : vector<8x512xf32>
    %315 = vector.extract_strided_slice %8 {offsets = [0, 24], sizes = [8, 1], strides = [1, 1]} : vector<8x25xf32> to vector<8x1xf32>
    %316 = vector.broadcast %315 : vector<8x1xf32> to vector<8x512xf32>
    %317 = arith.mulf %316, %314 : vector<8x512xf32>
    %318 = arith.addf %307, %317 : vector<8x512xf32>
    %c0_14 = arith.constant 0 : index
    %c0_15 = arith.constant 0 : index
    %319 = vector.load %arg4[%c0_14, %c0_15] : memref<4x8xf32, #tpu.memory_space<vmem>>, vector<4x8xf32>
    %cst_16 = arith.constant dense<0.000000e+00> : vector<4x512xf32>
    %320 = tpu.matmul %319, %252, %cst_16 {dimension_numbers = #tpu.dot_dimension_numbers<[1], [0], [0], [1], [0, 0, 1, 1], [], []>} : vector<4x8xf32>, vector<8x512xf32>, vector<4x512xf32> -> vector<4x512xf32>
    %321 = arith.addf %6, %320 : vector<4x512xf32>
    %c0_17 = arith.constant 0 : index
    %c0_18 = arith.constant 0 : index
    %322 = vector.load %arg6[%c0_17, %c0_18] : memref<4x8xf32, #tpu.memory_space<vmem>>, vector<4x8xf32>
    %cst_19 = arith.constant dense<0.000000e+00> : vector<4x512xf32>
    %323 = tpu.matmul %322, %318, %cst_19 {dimension_numbers = #tpu.dot_dimension_numbers<[1], [0], [0], [1], [0, 0, 1, 1], [], []>} : vector<4x8xf32>, vector<8x512xf32>, vector<4x512xf32> -> vector<4x512xf32>
    %324 = arith.addf %321, %323 : vector<4x512xf32>
    %cst_20 = arith.constant 0.000000e+00 : f32
    %325 = vector.broadcast %cst_20 : f32 to vector<4x512xf32>
    %326 = arith.cmpf oge, %324, %325 : vector<4x512xf32>
    %cst_21 = arith.constant 5.000000e-02 : f32
    %327 = vector.broadcast %cst_21 : f32 to vector<4x512xf32>
    %328 = arith.mulf %327, %324 : vector<4x512xf32>
    %329 = arith.select %326, %324, %328 : vector<4x512xi1>, vector<4x512xf32>
    %c0_22 = arith.constant 0 : index
    %c0_23 = arith.constant 0 : index
    %330 = vector.load %arg8[%c0_22, %c0_23] : memref<4x512xf32, #tpu.memory_space<vmem>>, vector<4x512xf32>
    tpu.vector_store %arg8[%c0_22, %c0_23], %329 {strides = array<i32>} : memref<4x512xf32, #tpu.memory_space<vmem>>, vector<4x512xf32>,
    return
  }
}

module attributes {stable_mosaic.version = 11 : i64} {
  func.func @_pointwise_kernel(%arg0: memref<18x98xf32, #tpu.memory_space<vmem>>, %arg1: memref<2x18xf32, #tpu.memory_space<vmem>>, %arg2: memref<2x1xf32, #tpu.memory_space<vmem>>, %arg3: memref<2x98xf32, #tpu.memory_space<vmem>>) attributes {dimension_semantics = [], scalar_prefetch = 0 : i64, scratch_operands = 0 : i64, tpu.core_type = #tpu.core_type<tc>} {
    %c0 = arith.constant 0 : index
    %c0_0 = arith.constant 0 : index
    %0 = vector.load %arg1[%c0, %c0_0] : memref<2x18xf32, #tpu.memory_space<vmem>>, vector<2x18xf32>
    %c0_1 = arith.constant 0 : index
    %c0_2 = arith.constant 0 : index
    %1 = vector.load %arg0[%c0_1, %c0_2] : memref<18x98xf32, #tpu.memory_space<vmem>>, vector<18x98xf32>
    %cst = arith.constant dense<0.000000e+00> : vector<2x98xf32>
    %2 = tpu.matmul %0, %1, %cst {dimension_numbers = #tpu.dot_dimension_numbers<[1], [0], [0], [1], [0, 0, 1, 1], [], []>} : vector<2x18xf32>, vector<18x98xf32>, vector<2x98xf32> -> vector<2x98xf32>
    %c0_3 = arith.constant 0 : index
    %c0_4 = arith.constant 0 : index
    %3 = vector.load %arg2[%c0_3, %c0_4] : memref<2x1xf32, #tpu.memory_space<vmem>>, vector<2x1xf32>
    %4 = vector.broadcast %3 : vector<2x1xf32> to vector<2x98xf32>
    %5 = arith.addf %2, %4 : vector<2x98xf32>
    %c0_5 = arith.constant 0 : index
    %c0_6 = arith.constant 0 : index
    %6 = vector.load %arg3[%c0_5, %c0_6] : memref<2x98xf32, #tpu.memory_space<vmem>>, vector<2x98xf32>
    tpu.vector_store %arg3[%c0_5, %c0_6], %5 {strides = array<i32>} : memref<2x98xf32, #tpu.memory_space<vmem>>, vector<2x98xf32>,
    return
  }
}

module attributes {stable_mosaic.version = 11 : i64} {
  func.func @_esa_mid_kernel(%arg0: memref<49x2x2xf32, #tpu.memory_space<vmem>>, %arg1: memref<1x1x2xf32, #tpu.memory_space<vmem>>, %arg2: memref<9x2x2xf32, #tpu.memory_space<vmem>>, %arg3: memref<2x1xf32, #tpu.memory_space<vmem>>, %arg4: memref<9x2x2xf32, #tpu.memory_space<vmem>>, %arg5: memref<2x1xf32, #tpu.memory_space<vmem>>, %arg6: memref<9x2x2xf32, #tpu.memory_space<vmem>>, %arg7: memref<2x1xf32, #tpu.memory_space<vmem>>, %arg8: memref<2x2xf32, #tpu.memory_space<vmem>>) attributes {dimension_semantics = [], scalar_prefetch = 0 : i64, scratch_operands = 0 : i64, tpu.core_type = #tpu.core_type<tc>} {
    %c0 = arith.constant 0 : index
    %c0_0 = arith.constant 0 : index
    %c0_1 = arith.constant 0 : index
    %0 = vector.load %arg0[%c0, %c0_0, %c0_1] : memref<49x2x2xf32, #tpu.memory_space<vmem>>, vector<49x2x2xf32>
    %cst = arith.constant dense<0xFF800000> : vector<2x2xf32>
    %1 = vector.multi_reduction <maximumf>, %0, %cst [0] : vector<49x2x2xf32> to vector<2x2xf32>
    %c0_2 = arith.constant 0 : index
    %c0_3 = arith.constant 0 : index
    %c0_4 = arith.constant 0 : index
    %2 = vector.load %arg1[%c0_2, %c0_3, %c0_4] : memref<1x1x2xf32, #tpu.memory_space<vmem>>, vector<1x1x2xf32>
    %c0_5 = arith.constant 0 : index
    %c0_6 = arith.constant 0 : index
    %c0_7 = arith.constant 0 : index
    %3 = vector.load %arg2[%c0_5, %c0_6, %c0_7] : memref<9x2x2xf32, #tpu.memory_space<vmem>>, vector<9x2x2xf32>
    %c0_8 = arith.constant 0 : index
    %c0_9 = arith.constant 0 : index
    %4 = vector.load %arg3[%c0_8, %c0_9] : memref<2x1xf32, #tpu.memory_space<vmem>>, vector<2x1xf32>
    %cst_10 = arith.constant 0.000000e+00 : f32
    %5 = vector.broadcast %cst_10 : f32 to vector<2x2xf32>
    %6 = vector.broadcast %4 : vector<2x1xf32> to vector<2x2xf32>
    %7 = arith.addf %5, %6 : vector<2x2xf32>
    %8 = vector.shape_cast %2 : vector<1x1x2xf32> to vector<1x2xf32>
    %9 = vector.broadcast %8 : vector<1x2xf32> to vector<2x2xf32>
    %10 = arith.mulf %1, %9 : vector<2x2xf32>
    %11 = vector.extract_strided_slice %3 {offsets = [4, 0, 0], sizes = [1, 2, 2], strides = [1, 1, 1]} : vector<9x2x2xf32> to vector<1x2x2xf32>
    %12 = vector.shape_cast %11 : vector<1x2x2xf32> to vector<2x2xf32>
    %cst_11 = arith.constant dense<0.000000e+00> : vector<2x2xf32>
    %13 = tpu.matmul %12, %10, %cst_11 {dimension_numbers = #tpu.dot_dimension_numbers<[1], [0], [0], [1], [0, 0, 1, 1], [], []>} : vector<2x2xf32>, vector<2x2xf32>, vector<2x2xf32> -> vector<2x2xf32>
    %14 = arith.addf %7, %13 : vector<2x2xf32>
    %cst_12 = arith.constant 0.000000e+00 : f32
    %15 = vector.broadcast %cst_12 : f32 to vector<2x2xf32>
    %16 = arith.maximumf %14, %15 : vector<2x2xf32>
    %c0_13 = arith.constant 0 : index
    %c0_14 = arith.constant 0 : index
    %c0_15 = arith.constant 0 : index
    %17 = vector.load %arg4[%c0_13, %c0_14, %c0_15] : memref<9x2x2xf32, #tpu.memory_space<vmem>>, vector<9x2x2xf32>
    %c0_16 = arith.constant 0 : index
    %c0_17 = arith.constant 0 : index
    %18 = vector.load %arg5[%c0_16, %c0_17] : memref<2x1xf32, #tpu.memory_space<vmem>>, vector<2x1xf32>
    %cst_18 = arith.constant 0.000000e+00 : f32
    %19 = vector.broadcast %cst_18 : f32 to vector<2x2xf32>
    %20 = vector.broadcast %18 : vector<2x1xf32> to vector<2x2xf32>
    %21 = arith.addf %19, %20 : vector<2x2xf32>
    %22 = vector.shape_cast %2 : vector<1x1x2xf32> to vector<1x2xf32>
    %23 = vector.broadcast %22 : vector<1x2xf32> to vector<2x2xf32>
    %24 = arith.mulf %16, %23 : vector<2x2xf32>
    %25 = vector.extract_strided_slice %17 {offsets = [4, 0, 0], sizes = [1, 2, 2], strides = [1, 1, 1]} : vector<9x2x2xf32> to vector<1x2x2xf32>
    %26 = vector.shape_cast %25 : vector<1x2x2xf32> to vector<2x2xf32>
    %cst_19 = arith.constant dense<0.000000e+00> : vector<2x2xf32>
    %27 = tpu.matmul %26, %24, %cst_19 {dimension_numbers = #tpu.dot_dimension_numbers<[1], [0], [0], [1], [0, 0, 1, 1], [], []>} : vector<2x2xf32>, vector<2x2xf32>, vector<2x2xf32> -> vector<2x2xf32>
    %28 = arith.addf %21, %27 : vector<2x2xf32>
    %cst_20 = arith.constant 0.000000e+00 : f32
    %29 = vector.broadcast %cst_20 : f32 to vector<2x2xf32>
    %30 = arith.maximumf %28, %29 : vector<2x2xf32>
    %c0_21 = arith.constant 0 : index
    %c0_22 = arith.constant 0 : index
    %c0_23 = arith.constant 0 : index
    %31 = vector.load %arg6[%c0_21, %c0_22, %c0_23] : memref<9x2x2xf32, #tpu.memory_space<vmem>>, vector<9x2x2xf32>
    %c0_24 = arith.constant 0 : index
    %c0_25 = arith.constant 0 : index
    %32 = vector.load %arg7[%c0_24, %c0_25] : memref<2x1xf32, #tpu.memory_space<vmem>>, vector<2x1xf32>
    %cst_26 = arith.constant 0.000000e+00 : f32
    %33 = vector.broadcast %cst_26 : f32 to vector<2x2xf32>
    %34 = vector.broadcast %32 : vector<2x1xf32> to vector<2x2xf32>
    %35 = arith.addf %33, %34 : vector<2x2xf32>
    %36 = vector.shape_cast %2 : vector<1x1x2xf32> to vector<1x2xf32>
    %37 = vector.broadcast %36 : vector<1x2xf32> to vector<2x2xf32>
    %38 = arith.mulf %30, %37 : vector<2x2xf32>
    %39 = vector.extract_strided_slice %31 {offsets = [4, 0, 0], sizes = [1, 2, 2], strides = [1, 1, 1]} : vector<9x2x2xf32> to vector<1x2x2xf32>
    %40 = vector.shape_cast %39 : vector<1x2x2xf32> to vector<2x2xf32>
    %cst_27 = arith.constant dense<0.000000e+00> : vector<2x2xf32>
    %41 = tpu.matmul %40, %38, %cst_27 {dimension_numbers = #tpu.dot_dimension_numbers<[1], [0], [0], [1], [0, 0, 1, 1], [], []>} : vector<2x2xf32>, vector<2x2xf32>, vector<2x2xf32> -> vector<2x2xf32>
    %42 = arith.addf %35, %41 : vector<2x2xf32>
    %c0_28 = arith.constant 0 : index
    %c0_29 = arith.constant 0 : index
    %43 = vector.load %arg8[%c0_28, %c0_29] : memref<2x2xf32, #tpu.memory_space<vmem>>, vector<2x2xf32>
    tpu.vector_store %arg8[%c0_28, %c0_29], %42 {strides = array<i32>} : memref<2x2xf32, #tpu.memory_space<vmem>>, vector<2x2xf32>,
    return
  }
}

module attributes {stable_mosaic.version = 11 : i64} {
  func.func @_esa_tail_kernel(%arg0: memref<8x512xf32, #tpu.memory_space<vmem>>, %arg1: memref<2x512xf32, #tpu.memory_space<vmem>>, %arg2: memref<2x512xf32, #tpu.memory_space<vmem>>, %arg3: memref<2x2xf32, #tpu.memory_space<vmem>>, %arg4: memref<2x1xf32, #tpu.memory_space<vmem>>, %arg5: memref<8x2xf32, #tpu.memory_space<vmem>>, %arg6: memref<8x1xf32, #tpu.memory_space<vmem>>, %arg7: memref<8x512xf32, #tpu.memory_space<vmem>>) attributes {dimension_semantics = [], scalar_prefetch = 0 : i64, scratch_operands = 0 : i64, tpu.core_type = #tpu.core_type<tc>} {
    %c0 = arith.constant 0 : index
    %c0_0 = arith.constant 0 : index
    %0 = vector.load %arg3[%c0, %c0_0] : memref<2x2xf32, #tpu.memory_space<vmem>>, vector<2x2xf32>
    %c0_1 = arith.constant 0 : index
    %c0_2 = arith.constant 0 : index
    %1 = vector.load %arg1[%c0_1, %c0_2] : memref<2x512xf32, #tpu.memory_space<vmem>>, vector<2x512xf32>
    %cst = arith.constant dense<0.000000e+00> : vector<2x512xf32>
    %2 = tpu.matmul %0, %1, %cst {dimension_numbers = #tpu.dot_dimension_numbers<[1], [0], [0], [1], [0, 0, 1, 1], [], []>} : vector<2x2xf32>, vector<2x512xf32>, vector<2x512xf32> -> vector<2x512xf32>
    %c0_3 = arith.constant 0 : index
    %c0_4 = arith.constant 0 : index
    %3 = vector.load %arg4[%c0_3, %c0_4] : memref<2x1xf32, #tpu.memory_space<vmem>>, vector<2x1xf32>
    %4 = vector.broadcast %3 : vector<2x1xf32> to vector<2x512xf32>
    %5 = arith.addf %2, %4 : vector<2x512xf32>
    %c0_5 = arith.constant 0 : index
    %c0_6 = arith.constant 0 : index
    %6 = vector.load %arg5[%c0_5, %c0_6] : memref<8x2xf32, #tpu.memory_space<vmem>>, vector<8x2xf32>
    %c0_7 = arith.constant 0 : index
    %c0_8 = arith.constant 0 : index
    %7 = vector.load %arg2[%c0_7, %c0_8] : memref<2x512xf32, #tpu.memory_space<vmem>>, vector<2x512xf32>
    %8 = arith.addf %7, %5 : vector<2x512xf32>
    %cst_9 = arith.constant dense<0.000000e+00> : vector<8x512xf32>
    %9 = tpu.matmul %6, %8, %cst_9 {dimension_numbers = #tpu.dot_dimension_numbers<[1], [0], [0], [1], [0, 0, 1, 1], [], []>} : vector<8x2xf32>, vector<2x512xf32>, vector<8x512xf32> -> vector<8x512xf32>
    %c0_10 = arith.constant 0 : index
    %c0_11 = arith.constant 0 : index
    %10 = vector.load %arg6[%c0_10, %c0_11] : memref<8x1xf32, #tpu.memory_space<vmem>>, vector<8x1xf32>
    %11 = vector.broadcast %10 : vector<8x1xf32> to vector<8x512xf32>
    %12 = arith.addf %9, %11 : vector<8x512xf32>
    %cst_12 = arith.constant 5.000000e-01 : f32
    %13 = vector.broadcast %cst_12 : f32 to vector<8x512xf32>
    %14 = arith.mulf %13, %12 : vector<8x512xf32>
    %15 = math.tanh %14 : vector<8x512xf32>
    %cst_13 = arith.constant 1.000000e+00 : f32
    %16 = vector.broadcast %cst_13 : f32 to vector<8x512xf32>
    %17 = arith.addf %15, %16 : vector<8x512xf32>
    %cst_14 = arith.constant 5.000000e-01 : f32
    %18 = vector.broadcast %cst_14 : f32 to vector<8x512xf32>
    %19 = arith.mulf %18, %17 : vector<8x512xf32>
    %c0_15 = arith.constant 0 : index
    %c0_16 = arith.constant 0 : index
    %20 = vector.load %arg0[%c0_15, %c0_16] : memref<8x512xf32, #tpu.memory_space<vmem>>, vector<8x512xf32>
    %21 = arith.mulf %20, %19 : vector<8x512xf32>
    %c0_17 = arith.constant 0 : index
    %c0_18 = arith.constant 0 : index
    %22 = vector.load %arg7[%c0_17, %c0_18] : memref<8x512xf32, #tpu.memory_space<vmem>>, vector<8x512xf32>
    tpu.vector_store %arg7[%c0_17, %c0_18], %21 {strides = array<i32>} : memref<8x512xf32, #tpu.memory_space<vmem>>, vector<8x512xf32>,
    return
  }
}

</mosaic_0001>

<llo_original>
// kernel: m_rfdb_forward.11
$region0: #{m_rfdb_forward.11}
  #allocation0 [shape = 'u32[]', space=smem, size = 0x4, offset = 0x4, fixed_abs, tag = 'smem constant byte address 0x4 - core index']
  #allocation1 [shape = 'u32[144,128]{1,0:T(1,128)}', space=vmem, size = 0x12000, scoped, tag = 'internal scratch']
  %s0 = inlined_call_operand.vmem [shape: f32[8,512], index: 0, kind: input, shape index: {}]
  %s1 = inlined_call_operand.vmem [shape: f32[4,8], index: 1, kind: input, shape index: {}]
  %s2 = inlined_call_operand.vmem [shape: f32[4,1], index: 2, kind: input, shape index: {}]
  %s3 = inlined_call_operand.vmem [shape: f32[4,512], index: 3, kind: output, shape index: {}]
  %s4 = sld [smem:[#allocation0]]
  $region22: #{m_rfdb_forward.11} parent=0
    _
  %s6 = ssub.s32 1, %s4
  %s7 = scalar_select 0, %s6, %s4
  // Predicated region
  $region2: #{m_rfdb_forward.11} parent=0 // pred_check
    _
  $region3: #{m_rfdb_forward.11} parent=0 // pred_check_branch
    %9 = sbr.rel (0) target = $region5
  $region4: #{m_rfdb_forward.11} parent=0 // pred_region
    _
  $region5: #{m_rfdb_forward.11} parent=0 // pred_fallthru
    _
  // Predicated region
  $region6: #{m_rfdb_forward.11} parent=0 // pred_check
    _
  $region7: #{m_rfdb_forward.11} parent=0 // pred_check_branch
    %11 = sbr.rel (0) target = $region9
  $region8: #{m_rfdb_forward.11} parent=0 // pred_region
    _
  $region9: #{m_rfdb_forward.11} parent=0 // pred_fallthru
    _
  // Predicated region
  $region10: #{m_rfdb_forward.11} parent=0 // pred_check
    _
  $region11: #{m_rfdb_forward.11} parent=0 // pred_check_branch
    %13 = sbr.rel (0) target = $region13
  $region12: #{m_rfdb_forward.11} parent=0 // pred_region
    _
  $region13: #{m_rfdb_forward.11} parent=0 // pred_fallthru
    _
  %v14 = vld [vmem:[%s1] sm:$0xf]
  %v15 = vld [vmem:[%s0] sm:$0xff]
  %v16 = vld [vmem:[%s0 + $0x8] sm:$0xff]
  %v17 = vld [vmem:[%s0 + $0x10] sm:$0xff]
  %v18 = vld [vmem:[%s0 + $0x18] sm:$0xff]
  %v19 = vld [vmem:[%s2] sm:$0xf]
  %21 = vset.pattern.permute.xlu0 0
  %22 = vperm.xlu0 %21, %v19
  %v23 = vpop.permute.xlu0 %22
  %vm25 = vcmask 64512
  %v27 = vsel %vm25, %v14, 0
  %29 = vmatprep.subr.mxu0 0.0
  %30 = vmatpush1.msra.mxu0 0.0
  %31 = vmatprep.subr.mxu0 0.0
  %32 = vmatpush1.msra.mxu0 0.0
  %33 = vmatprep.subr.mxu0 0.0
  %34 = vmatpush1.msra.mxu0 0.0
  %35 = vmatprep.subr.mxu0 0.0
  %36 = vmatpush1.msra.mxu0 0.0
  %37 = vmatprep.subr.mxu0 0.0
  %38 = vmatpush1.msra.mxu0 0.0
  %39 = vmatprep.subr.mxu0 0.0
  %40 = vmatpush1.msra.mxu0 0.0
  %41 = vmatprep.subr.mxu0 0.0
  %42 = vmatpush1.msra.mxu0 0.0
  %43 = vmatprep.subr.mxu0 0.0
  %44 = vmatpush1.msra.mxu0 0.0
  %45 = vmatprep.subr.mxu0 0.0
  %46 = vmatpush1.msra.mxu0 0.0
  %47 = vmatprep.subr.mxu0 0.0
  %48 = vmatpush1.msra.mxu0 0.0
  %49 = vmatprep.subr.mxu0 0.0
  %50 = vmatpush1.msra.mxu0 0.0
  %51 = vmatprep.subr.mxu0 0.0
  %52 = vmatpush1.msra.mxu0 0.0
  %53 = vmatprep.subr.mxu0 0.0
  %54 = vmatpush1.msra.mxu0 0.0
  %55 = vmatprep.subr.mxu0 0.0
  %56 = vmatpush1.msra.mxu0 0.0
  %57 = vmatprep.subr.mxu0 0.0
  %58 = vmatpush1.msra.mxu0 0.0
  %59 = vmatprep.subr.mxu0 %v16
  %60 = vmatpush1.msra.mxu0 %v15
  %61 = vmatprep.subr.mxu0 0.0
  %62 = vmatpush2.msra.mxu0 0.0
  %63 = vmatprep.subr.mxu0 0.0
  %64 = vmatpush2.msra.mxu0 0.0
  %65 = vmatprep.subr.mxu0 0.0
  %66 = vmatpush2.msra.mxu0 0.0
  %67 = vmatprep.subr.mxu0 0.0
  %68 = vmatpush2.msra.mxu0 0.0
  %69 = vmatprep.subr.mxu0 0.0
  %70 = vmatpush2.msra.mxu0 0.0
  %71 = vmatprep.subr.mxu0 0.0
  %72 = vmatpush2.msra.mxu0 0.0
  %73 = vmatprep.subr.mxu0 0.0
  %74 = vmatpush2.msra.mxu0 0.0
  %75 = vmatprep.subr.mxu0 0.0
  %76 = vmatpush2.msra.mxu0 0.0
  %77 = vmatprep.subr.mxu0 0.0
  %78 = vmatpush2.msra.mxu0 0.0
  %79 = vmatprep.subr.mxu0 0.0
  %80 = vmatpush2.msra.mxu0 0.0
  %81 = vmatprep.subr.mxu0 0.0
  %82 = vmatpush2.msra.mxu0 0.0
  %83 = vmatprep.subr.mxu0 0.0
  %84 = vmatpush2.msra.mxu0 0.0
  %85 = vmatprep.subr.mxu0 0.0
  %86 = vmatpush2.msra.mxu0 0.0
  %87 = vmatprep.subr.mxu0 0.0
  %88 = vmatpush2.msra.mxu0 0.0
  %89 = vmatprep.subr.mxu0 0.0
  %90 = vmatpush2.msra.mxu0 0.0
  %91 = vmatprep.subr.mxu0 0.0
  %92 = vmatpush2.msra.mxu0 0.0
  %93 = vmatprep.mubr.f32.mxu0 0.0
  %94 = vmatmul.mubr.f32.gmra.mxu0 %v27
  %v95 = vpop.f32.mrf.mxu0
  %v96 = vadd.f32 %v23, %v95
  %v97 = vpop.f32.mrf.mxu0
  %v98 = vadd.f32 %v23, %v97
  %99 = vdwg.mxu0
  %100 = vmatprep.subr.mxu0 0.0
  %101 = vmatpush1.msra.mxu0 0.0
  %102 = vmatprep.subr.mxu0 0.0
  %103 = vmatpush1.msra.mxu0 0.0
  %104 = vmatprep.subr.mxu0 0.0
  %105 = vmatpush1.msra.mxu0 0.0
  %106 = vmatprep.subr.mxu0 0.0
  %107 = vmatpush1.msra.mxu0 0.0
  %108 = vmatprep.subr.mxu0 0.0
  %109 = vmatpush1.msra.mxu0 0.0
  %110 = vmatprep.subr.mxu0 0.0
  %111 = vmatpush1.msra.mxu0 0.0
  %112 = vmatprep.subr.mxu0 0.0
  %113 = vmatpush1.msra.mxu0 0.0
  %114 = vmatprep.subr.mxu0 0.0
  %115 = vmatpush1.msra.mxu0 0.0
  %116 = vmatprep.subr.mxu0 0.0
  %117 = vmatpush1.msra.mxu0 0.0
  %118 = vmatprep.subr.mxu0 0.0
  %119 = vmatpush1.msra.mxu0 0.0
  %120 = vmatprep.subr.mxu0 0.0
  %121 = vmatpush1.msra.mxu0 0.0
  %122 = vmatprep.subr.mxu0 0.0
  %123 = vmatpush1.msra.mxu0 0.0
  %124 = vmatprep.subr.mxu0 0.0
  %125 = vmatpush1.msra.mxu0 0.0
  %126 = vmatprep.subr.mxu0 0.0
  %127 = vmatpush1.msra.mxu0 0.0
  %128 = vmatprep.subr.mxu0 0.0
  %129 = vmatpush1.msra.mxu0 0.0
  %130 = vmatprep.subr.mxu0 %v18
  %131 = vmatpush1.msra.mxu0 %v17
  %132 = vmatprep.subr.mxu0 0.0
  %133 = vmatpush2.msra.mxu0 0.0
  %134 = vmatprep.subr.mxu0 0.0
  %135 = vmatpush2.msra.mxu0 0.0
  %136 = vmatprep.subr.mxu0 0.0
  %137 = vmatpush2.msra.mxu0 0.0
  %138 = vmatprep.subr.mxu0 0.0
  %139 = vmatpush2.msra.mxu0 0.0
  %140 = vmatprep.subr.mxu0 0.0
  %141 = vmatpush2.msra.mxu0 0.0
  %142 = vmatprep.subr.mxu0 0.0
  %143 = vmatpush2.msra.mxu0 0.0
  %144 = vmatprep.subr.mxu0 0.0
  %145 = vmatpush2.msra.mxu0 0.0
  %146 = vmatprep.subr.mxu0 0.0
  %147 = vmatpush2.msra.mxu0 0.0
  %148 = vmatprep.subr.mxu0 0.0
  %149 = vmatpush2.msra.mxu0 0.0
  %150 = vmatprep.subr.mxu0 0.0
  %151 = vmatpush2.msra.mxu0 0.0
  %152 = vmatprep.subr.mxu0 0.0
  %153 = vmatpush2.msra.mxu0 0.0
  %154 = vmatprep.subr.mxu0 0.0
  %155 = vmatpush2.msra.mxu0 0.0
  %156 = vmatprep.subr.mxu0 0.0
  %157 = vmatpush2.msra.mxu0 0.0
  %158 = vmatprep.subr.mxu0 0.0
  %159 = vmatpush2.msra.mxu0 0.0
  %160 = vmatprep.subr.mxu0 0.0
  %161 = vmatpush2.msra.mxu0 0.0
  %162 = vmatprep.subr.mxu0 0.0
  %163 = vmatpush2.msra.mxu0 0.0
  %164 = vmatprep.mubr.f32.mxu0 0.0
  %165 = vmatmul.mubr.f32.gmra.mxu0 %v27
  %v166 = vpop.f32.mrf.mxu0
  %v167 = vadd.f32 %v23, %v166
  %v168 = vpop.f32.mrf.mxu0
  %v169 = vadd.f32 %v23, %v168
  %170 = vdwg.mxu0
  %vm171 = vcmp.ge.f32.partialorder %v96, 0.0
  %vm172 = vcmp.ge.f32.partialorder %v98, 0.0
  %vm173 = vcmp.ge.f32.partialorder %v167, 0.0
  %vm174 = vcmp.ge.f32.partialorder %v169, 0.0
  %v175 = vmul.f32 %v96, 0.05
  %v176 = vmul.f32 %v98, 0.05
  %v177 = vmul.f32 %v167, 0.05
  %v178 = vmul.f32 %v169, 0.05
  %v179 = vsel %vm171, %v96, %v175
  %v180 = vsel %vm172, %v98, %v176
  %v181 = vsel %vm173, %v167, %v177
  %v182 = vsel %vm174, %v169, %v178
  %v187 = vcombine.low %v179, %v180
  %v188 = vcombine.low %v181, %v182
  %191 = vst [vmem:[%s3] sm:$0xff] %v187
  %192 = vst [vmem:[%s3 + $0x8] sm:$0xff] %v188
  // Predicated region
  $region14: #{m_rfdb_forward.11} parent=0 // pred_check
    _
  $region15: #{m_rfdb_forward.11} parent=0 // pred_check_branch
    %194 = sbr.rel (0) target = $region17
  $region16: #{m_rfdb_forward.11} parent=0 // pred_region
    _
  $region17: #{m_rfdb_forward.11} parent=0 // pred_fallthru
    _
  // Predicated region
  $region18: #{m_rfdb_forward.11} parent=0 // pred_check
    _
  $region19: #{m_rfdb_forward.11} parent=0 // pred_check_branch
    %196 = sbr.rel (0) target = $region21
  $region20: #{m_rfdb_forward.11} parent=0 // pred_region
    _
  $region21: #{m_rfdb_forward.11} parent=0 // pred_fallthru
    _

// kernel: m_rfdb_forward.18
$region0: #{m_rfdb_forward.18}
  #allocation0 [shape = 'u32[]', space=smem, size = 0x4, offset = 0x4, fixed_abs, tag = 'smem constant byte address 0x4 - core index']
  #allocation1 [shape = 'u32[144,128]{1,0:T(1,128)}', space=vmem, size = 0x12000, scoped, tag = 'internal scratch']
  %s0 = inlined_call_operand.vmem [shape: f32[4,512], index: 0, kind: input, shape index: {}]
  %s1 = inlined_call_operand.vmem [shape: f32[4,512], index: 1, kind: input, shape index: {}]
  %s2 = inlined_call_operand.vmem [shape: f32[4,512], index: 2, kind: input, shape index: {}]
  %s3 = inlined_call_operand.vmem [shape: f32[4,512], index: 3, kind: input, shape index: {}]
  %s4 = inlined_call_operand.vmem [shape: f32[8,4], index: 4, kind: input, shape index: {}]
  %s5 = inlined_call_operand.vmem [shape: f32[8,4], index: 5, kind: input, shape index: {}]
  %s6 = inlined_call_operand.vmem [shape: f32[8,4], index: 6, kind: input, shape index: {}]
  %s7 = inlined_call_operand.vmem [shape: f32[8,4], index: 7, kind: input, shape index: {}]
  %s8 = inlined_call_operand.vmem [shape: f32[8,1], index: 8, kind: input, shape index: {}]
  %s9 = inlined_call_operand.vmem [shape: f32[2,8], index: 9, kind: input, shape index: {}]
  %s10 = inlined_call_operand.vmem [shape: f32[2,1], index: 10, kind: input, shape index: {}]
  %s11 = inlined_call_operand.vmem [shape: f32[8,512], index: 11, kind: output, shape index: {0}]
  %s12 = inlined_call_operand.vmem [shape: f32[2,512], index: 12, kind: output, shape index: {1}]
  %13 = xla_tuple %s11, %s12
  %s14 = sld [smem:[#allocation0]]
  $region62: #{m_rfdb_forward.18} parent=0
    _
  %s16 = ssub.s32 1, %s14
  %s17 = scalar_select 0, %s16, %s14
  // Predicated region
  $region2: #{m_rfdb_forward.18} parent=0 // pred_check
    _
  $region3: #{m_rfdb_forward.18} parent=0 // pred_check_branch
    %19 = sbr.rel (0) target = $region5
  $region4: #{m_rfdb_forward.18} parent=0 // pred_region
    _
  $region5: #{m_rfdb_forward.18} parent=0 // pred_fallthru
    _
  // Predicated region
  $region6: #{m_rfdb_forward.18} parent=0 // pred_check
    _
  $region7: #{m_rfdb_forward.18} parent=0 // pred_check_branch
    %21 = sbr.rel (0) target = $region9
  $region8: #{m_rfdb_forward.18} parent=0 // pred_region
    _
  $region9: #{m_rfdb_forward.18} parent=0 // pred_fallthru
    _
  // Predicated region
  $region10: #{m_rfdb_forward.18} parent=0 // pred_check
    _
  $region11: #{m_rfdb_forward.18} parent=0 // pred_check_branch
    %23 = sbr.rel (0) target = $region13
  $region12: #{m_rfdb_forward.18} parent=0 // pred_region
    _
  $region13: #{m_rfdb_forward.18} parent=0 // pred_fallthru
    _
  // Predicated region
  $region14: #{m_rfdb_forward.18} parent=0 // pred_check
    _
  $region15: #{m_rfdb_forward.18} parent=0 // pred_check_branch
    %25 = sbr.rel (0) target = $region17
  $region16: #{m_rfdb_forward.18} parent=0 // pred_region
    _
  $region17: #{m_rfdb_forward.18} parent=0 // pred_fallthru
    _
  // Predicated region
  $region18: #{m_rfdb_forward.18} parent=0 // pred_check
    _
  $region19: #{m_rfdb_forward.18} parent=0 // pred_check_branch
    %27 = sbr.rel (0) target = $region21
  $region20: #{m_rfdb_forward.18} parent=0 // pred_region
    _
  $region21: #{m_rfdb_forward.18} parent=0 // pred_fallthru
    _
  // Predicated region
  $region22: #{m_rfdb_forward.18} parent=0 // pred_check
    _
  $region23: #{m_rfdb_forward.18} parent=0 // pred_check_branch
    %29 = sbr.rel (0) target = $region25
  $region24: #{m_rfdb_forward.18} parent=0 // pred_region
    _
  $region25: #{m_rfdb_forward.18} parent=0 // pred_fallthru
    _
  // Predicated region
  $region26: #{m_rfdb_forward.18} parent=0 // pred_check
    _
  $region27: #{m_rfdb_forward.18} parent=0 // pred_check_branch
    %31 = sbr.rel (0) target = $region29
  $region28: #{m_rfdb_forward.18} parent=0 // pred_region
    _
  $region29: #{m_rfdb_forward.18} parent=0 // pred_fallthru
    _
  // Predicated region
  $region30: #{m_rfdb_forward.18} parent=0 // pred_check
    _
  $region31: #{m_rfdb_forward.18} parent=0 // pred_check_branch
    %33 = sbr.rel (0) target = $region33
  $region32: #{m_rfdb_forward.18} parent=0 // pred_region
    _
  $region33: #{m_rfdb_forward.18} parent=0 // pred_fallthru
    _
  // Predicated region
  $region34: #{m_rfdb_forward.18} parent=0 // pred_check
    _
  $region35: #{m_rfdb_forward.18} parent=0 // pred_check_branch
    %35 = sbr.rel (0) target = $region37
  $region36: #{m_rfdb_forward.18} parent=0 // pred_region
    _
  $region37: #{m_rfdb_forward.18} parent=0 // pred_fallthru
    _
  // Predicated region
  $region38: #{m_rfdb_forward.18} parent=0 // pred_check
    _
  $region39: #{m_rfdb_forward.18} parent=0 // pred_check_branch
    %37 = sbr.rel (0) target = $region41
  $region40: #{m_rfdb_forward.18} parent=0 // pred_region
    _
  $region41: #{m_rfdb_forward.18} parent=0 // pred_fallthru
    _
  // Predicated region
  $region42: #{m_rfdb_forward.18} parent=0 // pred_check
    _
  $region43: #{m_rfdb_forward.18} parent=0 // pred_check_branch
    %39 = sbr.rel (0) target = $region45
  $region44: #{m_rfdb_forward.18} parent=0 // pred_region
    _
  $region45: #{m_rfdb_forward.18} parent=0 // pred_fallthru
    _
  %v40 = vld [vmem:[%s4] sm:$0xff]
  %v41 = vld [vmem:[%s0] sm:$0xff]
  %v42 = vld [vmem:[%s0 + $0x8] sm:$0xff]
  %v43 = vld [vmem:[%s5] sm:$0xff]
  %v44 = vld [vmem:[%s1] sm:$0xff]
  %v45 = vld [vmem:[%s1 + $0x8] sm:$0xff]
  %v48 = vcombine.high %v44, %v44
  %v49 = vcombine.high %v45, %v45
  %vm50 = vcmask 31744
  %v52 = vsel %vm50, %v43, 0
  %vm54 = vcmask 1043456
  %v55 = vsel %vm54, %v44, 0
  %v57 = vsel %vm54, %v48, 0
  %v59 = vsel %vm54, %v45, 0
  %v61 = vsel %vm54, %v49, 0
  %63 = vmatprep.subr.mxu0 0.0
  %64 = vmatpush1.msra.mxu0 0.0
  %65 = vmatprep.subr.mxu0 0.0
  %66 = vmatpush1.msra.mxu0 0.0
  %67 = vmatprep.subr.mxu0 0.0
  %68 = vmatpush1.msra.mxu0 0.0
  %69 = vmatprep.subr.mxu0 0.0
  %70 = vmatpush1.msra.mxu0 0.0
  %71 = vmatprep.subr.mxu0 0.0
  %72 = vmatpush1.msra.mxu0 0.0
  %73 = vmatprep.subr.mxu0 0.0
  %74 = vmatpush1.msra.mxu0 0.0
  %75 = vmatprep.subr.mxu0 0.0
  %76 = vmatpush1.msra.mxu0 0.0
  %77 = vmatprep.subr.mxu0 0.0
  %78 = vmatpush1.msra.mxu0 0.0
  %79 = vmatprep.subr.mxu0 0.0
  %80 = vmatpush1.msra.mxu0 0.0
  %81 = vmatprep.subr.mxu0 0.0
  %82 = vmatpush1.msra.mxu0 0.0
  %83 = vmatprep.subr.mxu0 0.0
  %84 = vmatpush1.msra.mxu0 0.0
  %85 = vmatprep.subr.mxu0 0.0
  %86 = vmatpush1.msra.mxu0 0.0
  %87 = vmatprep.subr.mxu0 0.0
  %88 = vmatpush1.msra.mxu0 0.0
  %89 = vmatprep.subr.mxu0 0.0
  %90 = vmatpush1.msra.mxu0 0.0
  %91 = vmatprep.subr.mxu0 0.0
  %92 = vmatpush1.msra.mxu0 0.0
  %93 = vmatprep.subr.mxu0 %v57
  %94 = vmatpush1.msra.mxu0 %v55
  %95 = vmatprep.subr.mxu0 0.0
  %96 = vmatpush2.msra.mxu0 0.0
  %97 = vmatprep.subr.mxu0 0.0
  %98 = vmatpush2.msra.mxu0 0.0
  %99 = vmatprep.subr.mxu0 0.0
  %100 = vmatpush2.msra.mxu0 0.0
  %101 = vmatprep.subr.mxu0 0.0
  %102 = vmatpush2.msra.mxu0 0.0
  %103 = vmatprep.subr.mxu0 0.0
  %104 = vmatpush2.msra.mxu0 0.0
  %105 = vmatprep.subr.mxu0 0.0
  %106 = vmatpush2.msra.mxu0 0.0
  %107 = vmatprep.subr.mxu0 0.0
  %108 = vmatpush2.msra.mxu0 0.0
  %109 = vmatprep.subr.mxu0 0.0
  %110 = vmatpush2.msra.mxu0 0.0
  %111 = vmatprep.subr.mxu0 0.0
  %112 = vmatpush2.msra.mxu0 0.0
  %113 = vmatprep.subr.mxu0 0.0
  %114 = vmatpush2.msra.mxu0 0.0
  %115 = vmatprep.subr.mxu0 0.0
  %116 = vmatpush2.msra.mxu0 0.0
  %117 = vmatprep.subr.mxu0 0.0
  %118 = vmatpush2.msra.mxu0 0.0
  %119 = vmatprep.subr.mxu0 0.0
  %120 = vmatpush2.msra.mxu0 0.0
  %121 = vmatprep.subr.mxu0 0.0
  %122 = vmatpush2.msra.mxu0 0.0
  %123 = vmatprep.subr.mxu0 0.0
  %124 = vmatpush2.msra.mxu0 0.0
  %125 = vmatprep.subr.mxu0 0.0
  %126 = vmatpush2.msra.mxu0 0.0
  %127 = vmatprep.mubr.f32.mxu0 0.0
  %128 = vmatmul.mubr.f32.gmra.mxu0 %v52
  %v129 = vpop.f32.mrf.mxu0
  %v130 = vadd.f32 0.0, %v129
  %v131 = vpop.f32.mrf.mxu0
  %v132 = vadd.f32 0.0, %v131
  %133 = vdwg.mxu0
  %134 = vmatprep.subr.mxu0 0.0
  %135 = vmatpush1.msra.mxu0 0.0
  %136 = vmatprep.subr.mxu0 0.0
  %137 = vmatpush1.msra.mxu0 0.0
  %138 = vmatprep.subr.mxu0 0.0
  %139 = vmatpush1.msra.mxu0 0.0
  %140 = vmatprep.subr.mxu0 0.0
  %141 = vmatpush1.msra.mxu0 0.0
  %142 = vmatprep.subr.mxu0 0.0
  %143 = vmatpush1.msra.mxu0 0.0
  %144 = vmatprep.subr.mxu0 0.0
  %145 = vmatpush1.msra.mxu0 0.0
  %146 = vmatprep.subr.mxu0 0.0
  %147 = vmatpush1.msra.mxu0 0.0
  %148 = vmatprep.subr.mxu0 0.0
  %149 = vmatpush1.msra.mxu0 0.0
  %150 = vmatprep.subr.mxu0 0.0
  %151 = vmatpush1.msra.mxu0 0.0
  %152 = vmatprep.subr.mxu0 0.0
  %153 = vmatpush1.msra.mxu0 0.0
  %154 = vmatprep.subr.mxu0 0.0
  %155 = vmatpush1.msra.mxu0 0.0
  %156 = vmatprep.subr.mxu0 0.0
  %157 = vmatpush1.msra.mxu0 0.0
  %158 = vmatprep.subr.mxu0 0.0
  %159 = vmatpush1.msra.mxu0 0.0
  %160 = vmatprep.subr.mxu0 0.0
  %161 = vmatpush1.msra.mxu0 0.0
  %162 = vmatprep.subr.mxu0 0.0
  %163 = vmatpush1.msra.mxu0 0.0
  %164 = vmatprep.subr.mxu0 %v61
  %165 = vmatpush1.msra.mxu0 %v59
  %166 = vmatprep.subr.mxu0 0.0
  %167 = vmatpush2.msra.mxu0 0.0
  %168 = vmatprep.subr.mxu0 0.0
  %169 = vmatpush2.msra.mxu0 0.0
  %170 = vmatprep.subr.mxu0 0.0
  %171 = vmatpush2.msra.mxu0 0.0
  %172 = vmatprep.subr.mxu0 0.0
  %173 = vmatpush2.msra.mxu0 0.0
  %174 = vmatprep.subr.mxu0 0.0
  %175 = vmatpush2.msra.mxu0 0.0
  %176 = vmatprep.subr.mxu0 0.0
  %177 = vmatpush2.msra.mxu0 0.0
  %178 = vmatprep.subr.mxu0 0.0
  %179 = vmatpush2.msra.mxu0 0.0
  %180 = vmatprep.subr.mxu0 0.0
  %181 = vmatpush2.msra.mxu0 0.0
  %182 = vmatprep.subr.mxu0 0.0
  %183 = vmatpush2.msra.mxu0 0.0
  %184 = vmatprep.subr.mxu0 0.0
  %185 = vmatpush2.msra.mxu0 0.0
  %186 = vmatprep.subr.mxu0 0.0
  %187 = vmatpush2.msra.mxu0 0.0
  %188 = vmatprep.subr.mxu0 0.0
  %189 = vmatpush2.msra.mxu0 0.0
  %190 = vmatprep.subr.mxu0 0.0
  %191 = vmatpush2.msra.mxu0 0.0
  %192 = vmatprep.subr.mxu0 0.0
  %193 = vmatpush2.msra.mxu0 0.0
  %194 = vmatprep.subr.mxu0 0.0
  %195 = vmatpush2.msra.mxu0 0.0
  %196 = vmatprep.subr.mxu0 0.0
  %197 = vmatpush2.msra.mxu0 0.0
  %198 = vmatprep.mubr.f32.mxu0 0.0
  %199 = vmatmul.mubr.f32.gmra.mxu0 %v52
  %v200 = vpop.f32.mrf.mxu0
  %v201 = vadd.f32 0.0, %v200
  %v202 = vpop.f32.mrf.mxu0
  %v203 = vadd.f32 0.0, %v202
  %204 = vdwg.mxu0
  %v207 = vcombine.high %v41, %v41
  %v208 = vcombine.high %v42, %v42
  %v210 = vsel %vm50, %v40, 0
  %v212 = vsel %vm54, %v41, 0
  %v214 = vsel %vm54, %v207, 0
  %v216 = vsel %vm54, %v42, 0
  %v218 = vsel %vm54, %v208, 0
  %220 = vmatprep.subr.mxu0 0.0
  %221 = vmatpush1.msra.mxu0 0.0
  %222 = vmatprep.subr.mxu0 0.0
  %223 = vmatpush1.msra.mxu0 0.0
  %224 = vmatprep.subr.mxu0 0.0
  %225 = vmatpush1.msra.mxu0 0.0
  %226 = vmatprep.subr.mxu0 0.0
  %227 = vmatpush1.msra.mxu0 0.0
  %228 = vmatprep.subr.mxu0 0.0
  %229 = vmatpush1.msra.mxu0 0.0
  %230 = vmatprep.subr.mxu0 0.0
  %231 = vmatpush1.msra.mxu0 0.0
  %232 = vmatprep.subr.mxu0 0.0
  %233 = vmatpush1.msra.mxu0 0.0
  %234 = vmatprep.subr.mxu0 0.0
  %235 = vmatpush1.msra.mxu0 0.0
  %236 = vmatprep.subr.mxu0 0.0
  %237 = vmatpush1.msra.mxu0 0.0
  %238 = vmatprep.subr.mxu0 0.0
  %239 = vmatpush1.msra.mxu0 0.0
  %240 = vmatprep.subr.mxu0 0.0
  %241 = vmatpush1.msra.mxu0 0.0
  %242 = vmatprep.subr.mxu0 0.0
  %243 = vmatpush1.msra.mxu0 0.0
  %244 = vmatprep.subr.mxu0 0.0
  %245 = vmatpush1.msra.mxu0 0.0
  %246 = vmatprep.subr.mxu0 0.0
  %247 = vmatpush1.msra.mxu0 0.0
  %248 = vmatprep.subr.mxu0 0.0
  %249 = vmatpush1.msra.mxu0 0.0
  %250 = vmatprep.subr.mxu0 %v214
  %251 = vmatpush1.msra.mxu0 %v212
  %252 = vmatprep.subr.mxu0 0.0
  %253 = vmatpush2.msra.mxu0 0.0
  %254 = vmatprep.subr.mxu0 0.0
  %255 = vmatpush2.msra.mxu0 0.0
  %256 = vmatprep.subr.mxu0 0.0
  %257 = vmatpush2.msra.mxu0 0.0
  %258 = vmatprep.subr.mxu0 0.0
  %259 = vmatpush2.msra.mxu0 0.0
  %260 = vmatprep.subr.mxu0 0.0
  %261 = vmatpush2.msra.mxu0 0.0
  %262 = vmatprep.subr.mxu0 0.0
  %263 = vmatpush2.msra.mxu0 0.0
  %264 = vmatprep.subr.mxu0 0.0
  %265 = vmatpush2.msra.mxu0 0.0
  %266 = vmatprep.subr.mxu0 0.0
  %267 = vmatpush2.msra.mxu0 0.0
  %268 = vmatprep.subr.mxu0 0.0
  %269 = vmatpush2.msra.mxu0 0.0
  %270 = vmatprep.subr.mxu0 0.0
  %271 = vmatpush2.msra.mxu0 0.0
  %272 = vmatprep.subr.mxu0 0.0
  %273 = vmatpush2.msra.mxu0 0.0
  %274 = vmatprep.subr.mxu0 0.0
  %275 = vmatpush2.msra.mxu0 0.0
  %276 = vmatprep.subr.mxu0 0.0
  %277 = vmatpush2.msra.mxu0 0.0
  %278 = vmatprep.subr.mxu0 0.0
  %279 = vmatpush2.msra.mxu0 0.0
  %280 = vmatprep.subr.mxu0 0.0
  %281 = vmatpush2.msra.mxu0 0.0
  %282 = vmatprep.subr.mxu0 0.0
  %283 = vmatpush2.msra.mxu0 0.0
  %284 = vmatprep.mubr.f32.mxu0 0.0
  %285 = vmatmul.mubr.f32.gmra.mxu0 %v210
  %v286 = vpop.f32.mrf.mxu0
  %v287 = vadd.f32 %v130, %v286
  %v288 = vpop.f32.mrf.mxu0
  %v289 = vadd.f32 %v132, %v288
  %290 = vdwg.mxu0
  %291 = vmatprep.subr.mxu0 0.0
  %292 = vmatpush1.msra.mxu0 0.0
  %293 = vmatprep.subr.mxu0 0.0
  %294 = vmatpush1.msra.mxu0 0.0
  %295 = vmatprep.subr.mxu0 0.0
  %296 = vmatpush1.msra.mxu0 0.0
  %297 = vmatprep.subr.mxu0 0.0
  %298 = vmatpush1.msra.mxu0 0.0
  %299 = vmatprep.subr.mxu0 0.0
  %300 = vmatpush1.msra.mxu0 0.0
  %301 = vmatprep.subr.mxu0 0.0
  %302 = vmatpush1.msra.mxu0 0.0
  %303 = vmatprep.subr.mxu0 0.0
  %304 = vmatpush1.msra.mxu0 0.0
  %305 = vmatprep.subr.mxu0 0.0
  %306 = vmatpush1.msra.mxu0 0.0
  %307 = vmatprep.subr.mxu0 0.0
  %308 = vmatpush1.msra.mxu0 0.0
  %309 = vmatprep.subr.mxu0 0.0
  %310 = vmatpush1.msra.mxu0 0.0
  %311 = vmatprep.subr.mxu0 0.0
  %312 = vmatpush1.msra.mxu0 0.0
  %313 = vmatprep.subr.mxu0 0.0
  %314 = vmatpush1.msra.mxu0 0.0
  %315 = vmatprep.subr.mxu0 0.0
  %316 = vmatpush1.msra.mxu0 0.0
  %317 = vmatprep.subr.mxu0 0.0
  %318 = vmatpush1.msra.mxu0 0.0
  %319 = vmatprep.subr.mxu0 0.0
  %320 = vmatpush1.msra.mxu0 0.0
  %321 = vmatprep.subr.mxu0 %v218
  %322 = vmatpush1.msra.mxu0 %v216
  %323 = vmatprep.subr.mxu0 0.0
  %324 = vmatpush2.msra.mxu0 0.0
  %325 = vmatprep.subr.mxu0 0.0
  %326 = vmatpush2.msra.mxu0 0.0
  %327 = vmatprep.subr.mxu0 0.0
  %328 = vmatpush2.msra.mxu0 0.0
  %329 = vmatprep.subr.mxu0 0.0
  %330 = vmatpush2.msra.mxu0 0.0
  %331 = vmatprep.subr.mxu0 0.0
  %332 = vmatpush2.msra.mxu0 0.0
  %333 = vmatprep.subr.mxu0 0.0
  %334 = vmatpush2.msra.mxu0 0.0
  %335 = vmatprep.subr.mxu0 0.0
  %336 = vmatpush2.msra.mxu0 0.0
  %337 = vmatprep.subr.mxu0 0.0
  %338 = vmatpush2.msra.mxu0 0.0
  %339 = vmatprep.subr.mxu0 0.0
  %340 = vmatpush2.msra.mxu0 0.0
  %341 = vmatprep.subr.mxu0 0.0
  %342 = vmatpush2.msra.mxu0 0.0
  %343 = vmatprep.subr.mxu0 0.0
  %344 = vmatpush2.msra.mxu0 0.0
  %345 = vmatprep.subr.mxu0 0.0
  %346 = vmatpush2.msra.mxu0 0.0
  %347 = vmatprep.subr.mxu0 0.0
  %348 = vmatpush2.msra.mxu0 0.0
  %349 = vmatprep.subr.mxu0 0.0
  %350 = vmatpush2.msra.mxu0 0.0
  %351 = vmatprep.subr.mxu0 0.0
  %352 = vmatpush2.msra.mxu0 0.0
  %353 = vmatprep.subr.mxu0 0.0
  %354 = vmatpush2.msra.mxu0 0.0
  %355 = vmatprep.mubr.f32.mxu0 0.0
  %356 = vmatmul.mubr.f32.gmra.mxu0 %v210
  %v357 = vpop.f32.mrf.mxu0
  %v358 = vadd.f32 %v201, %v357
  %v359 = vpop.f32.mrf.mxu0
  %v360 = vadd.f32 %v203, %v359
  %361 = vdwg.mxu0
  %v362 = vld [vmem:[%s6] sm:$0xff]
  %v363 = vld [vmem:[%s2] sm:$0xff]
  %v364 = vld [vmem:[%s2 + $0x8] sm:$0xff]
  %v367 = vcombine.high %v363, %v363
  %v368 = vcombine.high %v364, %v364
  %v370 = vsel %vm50, %v362, 0
  %v372 = vsel %vm54, %v363, 0
  %v374 = vsel %vm54, %v367, 0
  %v376 = vsel %vm54, %v364, 0
  %v378 = vsel %vm54, %v368, 0
  %380 = vmatprep.subr.mxu0 0.0
  %381 = vmatpush1.msra.mxu0 0.0
  %382 = vmatprep.subr.mxu0 0.0
  %383 = vmatpush1.msra.mxu0 0.0
  %384 = vmatprep.subr.mxu0 0.0
  %385 = vmatpush1.msra.mxu0 0.0
  %386 = vmatprep.subr.mxu0 0.0
  %387 = vmatpush1.msra.mxu0 0.0
  %388 = vmatprep.subr.mxu0 0.0
  %389 = vmatpush1.msra.mxu0 0.0
  %390 = vmatprep.subr.mxu0 0.0
  %391 = vmatpush1.msra.mxu0 0.0
  %392 = vmatprep.subr.mxu0 0.0
  %393 = vmatpush1.msra.mxu0 0.0
  %394 = vmatprep.subr.mxu0 0.0
  %395 = vmatpush1.msra.mxu0 0.0
  %396 = vmatprep.subr.mxu0 0.0
  %397 = vmatpush1.msra.mxu0 0.0
  %398 = vmatprep.subr.mxu0 0.0
  %399 = vmatpush1.msra.mxu0 0.0
  %400 = vmatprep.subr.mxu0 0.0
  %401 = vmatpush1.msra.mxu0 0.0
  %402 = vmatprep.subr.mxu0 0.0
  %403 = vmatpush1.msra.mxu0 0.0
  %404 = vmatprep.subr.mxu0 0.0
  %405 = vmatpush1.msra.mxu0 0.0
  %406 = vmatprep.subr.mxu0 0.0
  %407 = vmatpush1.msra.mxu0 0.0
  %408 = vmatprep.subr.mxu0 0.0
  %409 = vmatpush1.msra.mxu0 0.0
  %410 = vmatprep.subr.mxu0 %v374
  %411 = vmatpush1.msra.mxu0 %v372
  %412 = vmatprep.subr.mxu0 0.0
  %413 = vmatpush2.msra.mxu0 0.0
  %414 = vmatprep.subr.mxu0 0.0
  %415 = vmatpush2.msra.mxu0 0.0
  %416 = vmatprep.subr.mxu0 0.0
  %417 = vmatpush2.msra.mxu0 0.0
  %418 = vmatprep.subr.mxu0 0.0
  %419 = vmatpush2.msra.mxu0 0.0
  %420 = vmatprep.subr.mxu0 0.0
  %421 = vmatpush2.msra.mxu0 0.0
  %422 = vmatprep.subr.mxu0 0.0
  %423 = vmatpush2.msra.mxu0 0.0
  %424 = vmatprep.subr.mxu0 0.0
  %425 = vmatpush2.msra.mxu0 0.0
  %426 = vmatprep.subr.mxu0 0.0
  %427 = vmatpush2.msra.mxu0 0.0
  %428 = vmatprep.subr.mxu0 0.0
  %429 = vmatpush2.msra.mxu0 0.0
  %430 = vmatprep.subr.mxu0 0.0
  %431 = vmatpush2.msra.mxu0 0.0
  %432 = vmatprep.subr.mxu0 0.0
  %433 = vmatpush2.msra.mxu0 0.0
  %434 = vmatprep.subr.mxu0 0.0
  %435 = vmatpush2.msra.mxu0 0.0
  %436 = vmatprep.subr.mxu0 0.0
  %437 = vmatpush2.msra.mxu0 0.0
  %438 = vmatprep.subr.mxu0 0.0
  %439 = vmatpush2.msra.mxu0 0.0
  %440 = vmatprep.subr.mxu0 0.0
  %441 = vmatpush2.msra.mxu0 0.0
  %442 = vmatprep.subr.mxu0 0.0
  %443 = vmatpush2.msra.mxu0 0.0
  %444 = vmatprep.mubr.f32.mxu0 0.0
  %445 = vmatmul.mubr.f32.gmra.mxu0 %v370
  %v446 = vpop.f32.mrf.mxu0
  %v447 = vadd.f32 0.0, %v446
  %v448 = vpop.f32.mrf.mxu0
  %v449 = vadd.f32 0.0, %v448
  %450 = vdwg.mxu0
  %451 = vmatprep.subr.mxu0 0.0
  %452 = vmatpush1.msra.mxu0 0.0
  %453 = vmatprep.subr.mxu0 0.0
  %454 = vmatpush1.msra.mxu0 0.0
  %455 = vmatprep.subr.mxu0 0.0
  %456 = vmatpush1.msra.mxu0 0.0
  %457 = vmatprep.subr.mxu0 0.0
  %458 = vmatpush1.msra.mxu0 0.0
  %459 = vmatprep.subr.mxu0 0.0
  %460 = vmatpush1.msra.mxu0 0.0
  %461 = vmatprep.subr.mxu0 0.0
  %462 = vmatpush1.msra.mxu0 0.0
  %463 = vmatprep.subr.mxu0 0.0
  %464 = vmatpush1.msra.mxu0 0.0
  %465 = vmatprep.subr.mxu0 0.0
  %466 = vmatpush1.msra.mxu0 0.0
  %467 = vmatprep.subr.mxu0 0.0
  %468 = vmatpush1.msra.mxu0 0.0
  %469 = vmatprep.subr.mxu0 0.0
  %470 = vmatpush1.msra.mxu0 0.0
  %471 = vmatprep.subr.mxu0 0.0
  %472 = vmatpush1.msra.mxu0 0.0
  %473 = vmatprep.subr.mxu0 0.0
  %474 = vmatpush1.msra.mxu0 0.0
  %475 = vmatprep.subr.mxu0 0.0
  %476 = vmatpush1.msra.mxu0 0.0
  %477 = vmatprep.subr.mxu0 0.0
  %478 = vmatpush1.msra.mxu0 0.0
  %479 = vmatprep.subr.mxu0 0.0
  %480 = vmatpush1.msra.mxu0 0.0
  %481 = vmatprep.subr.mxu0 %v378
  %482 = vmatpush1.msra.mxu0 %v376
  %483 = vmatprep.subr.mxu0 0.0
  %484 = vmatpush2.msra.mxu0 0.0
  %485 = vmatprep.subr.mxu0 0.0
  %486 = vmatpush2.msra.mxu0 0.0
  %487 = vmatprep.subr.mxu0 0.0
  %488 = vmatpush2.msra.mxu0 0.0
  %489 = vmatprep.subr.mxu0 0.0
  %490 = vmatpush2.msra.mxu0 0.0
  %491 = vmatprep.subr.mxu0 0.0
  %492 = vmatpush2.msra.mxu0 0.0
  %493 = vmatprep.subr.mxu0 0.0
  %494 = vmatpush2.msra.mxu0 0.0
  %495 = vmatprep.subr.mxu0 0.0
  %496 = vmatpush2.msra.mxu0 0.0
  %497 = vmatprep.subr.mxu0 0.0
  %498 = vmatpush2.msra.mxu0 0.0
  %499 = vmatprep.subr.mxu0 0.0
  %500 = vmatpush2.msra.mxu0 0.0
  %501 = vmatprep.subr.mxu0 0.0
  %502 = vmatpush2.msra.mxu0 0.0
  %503 = vmatprep.subr.mxu0 0.0
  %504 = vmatpush2.msra.mxu0 0.0
  %505 = vmatprep.subr.mxu0 0.0
  %506 = vmatpush2.msra.mxu0 0.0
  %507 = vmatprep.subr.mxu0 0.0
  %508 = vmatpush2.msra.mxu0 0.0
  %509 = vmatprep.subr.mxu0 0.0
  %510 = vmatpush2.msra.mxu0 0.0
  %511 = vmatprep.subr.mxu0 0.0
  %512 = vmatpush2.msra.mxu0 0.0
  %513 = vmatprep.subr.mxu0 0.0
  %514 = vmatpush2.msra.mxu0 0.0
  %515 = vmatprep.mubr.f32.mxu0 0.0
  %516 = vmatmul.mubr.f32.gmra.mxu0 %v370
  %v517 = vpop.f32.mrf.mxu0
  %v518 = vadd.f32 0.0, %v517
  %v519 = vpop.f32.mrf.mxu0
  %v520 = vadd.f32 0.0, %v519
  %521 = vdwg.mxu0
  %v522 = vadd.f32 %v287, %v447
  %v523 = vadd.f32 %v289, %v449
  %v524 = vadd.f32 %v358, %v518
  %v525 = vadd.f32 %v360, %v520
  %v526 = vld [vmem:[%s7] sm:$0xff]
  %v527 = vld [vmem:[%s3] sm:$0xff]
  %v528 = vld [vmem:[%s3 + $0x8] sm:$0xff]
  %v531 = vcombine.high %v527, %v527
  %v532 = vcombine.high %v528, %v528
  %v534 = vsel %vm50, %v526, 0
  %v536 = vsel %vm54, %v527, 0
  %v538 = vsel %vm54, %v531, 0
  %v540 = vsel %vm54, %v528, 0
  %v542 = vsel %vm54, %v532, 0
  %544 = vmatprep.subr.mxu0 0.0
  %545 = vmatpush1.msra.mxu0 0.0
  %546 = vmatprep.subr.mxu0 0.0
  %547 = vmatpush1.msra.mxu0 0.0
  %548 = vmatprep.subr.mxu0 0.0
  %549 = vmatpush1.msra.mxu0 0.0
  %550 = vmatprep.subr.mxu0 0.0
  %551 = vmatpush1.msra.mxu0 0.0
  %552 = vmatprep.subr.mxu0 0.0
  %553 = vmatpush1.msra.mxu0 0.0
  %554 = vmatprep.subr.mxu0 0.0
  %555 = vmatpush1.msra.mxu0 0.0
  %556 = vmatprep.subr.mxu0 0.0
  %557 = vmatpush1.msra.mxu0 0.0
  %558 = vmatprep.subr.mxu0 0.0
  %559 = vmatpush1.msra.mxu0 0.0
  %560 = vmatprep.subr.mxu0 0.0
  %561 = vmatpush1.msra.mxu0 0.0
  %562 = vmatprep.subr.mxu0 0.0
  %563 = vmatpush1.msra.mxu0 0.0
  %564 = vmatprep.subr.mxu0 0.0
  %565 = vmatpush1.msra.mxu0 0.0
  %566 = vmatprep.subr.mxu0 0.0
  %567 = vmatpush1.msra.mxu0 0.0
  %568 = vmatprep.subr.mxu0 0.0
  %569 = vmatpush1.msra.mxu0 0.0
  %570 = vmatprep.subr.mxu0 0.0
  %571 = vmatpush1.msra.mxu0 0.0
  %572 = vmatprep.subr.mxu0 0.0
  %573 = vmatpush1.msra.mxu0 0.0
  %574 = vmatprep.subr.mxu0 %v538
  %575 = vmatpush1.msra.mxu0 %v536
  %576 = vmatprep.subr.mxu0 0.0
  %577 = vmatpush2.msra.mxu0 0.0
  %578 = vmatprep.subr.mxu0 0.0
  %579 = vmatpush2.msra.mxu0 0.0
  %580 = vmatprep.subr.mxu0 0.0
  %581 = vmatpush2.msra.mxu0 0.0
  %582 = vmatprep.subr.mxu0 0.0
  %583 = vmatpush2.msra.mxu0 0.0
  %584 = vmatprep.subr.mxu0 0.0
  %585 = vmatpush2.msra.mxu0 0.0
  %586 = vmatprep.subr.mxu0 0.0
  %587 = vmatpush2.msra.mxu0 0.0
  %588 = vmatprep.subr.mxu0 0.0
  %589 = vmatpush2.msra.mxu0 0.0
  %590 = vmatprep.subr.mxu0 0.0
  %591 = vmatpush2.msra.mxu0 0.0
  %592 = vmatprep.subr.mxu0 0.0
  %593 = vmatpush2.msra.mxu0 0.0
  %594 = vmatprep.subr.mxu0 0.0
  %595 = vmatpush2.msra.mxu0 0.0
  %596 = vmatprep.subr.mxu0 0.0
  %597 = vmatpush2.msra.mxu0 0.0
  %598 = vmatprep.subr.mxu0 0.0
  %599 = vmatpush2.msra.mxu0 0.0
  %600 = vmatprep.subr.mxu0 0.0
  %601 = vmatpush2.msra.mxu0 0.0
  %602 = vmatprep.subr.mxu0 0.0
  %603 = vmatpush2.msra.mxu0 0.0
  %604 = vmatprep.subr.mxu0 0.0
  %605 = vmatpush2.msra.mxu0 0.0
  %606 = vmatprep.subr.mxu0 0.0
  %607 = vmatpush2.msra.mxu0 0.0
  %608 = vmatprep.mubr.f32.mxu0 0.0
  %609 = vmatmul.mubr.f32.gmra.mxu0 %v534
  %v610 = vpop.f32.mrf.mxu0
  %v611 = vadd.f32 0.0, %v610
  %v612 = vpop.f32.mrf.mxu0
  %v613 = vadd.f32 0.0, %v612
  %614 = vdwg.mxu0
  %615 = vmatprep.subr.mxu0 0.0
  %616 = vmatpush1.msra.mxu0 0.0
  %617 = vmatprep.subr.mxu0 0.0
  %618 = vmatpush1.msra.mxu0 0.0
  %619 = vmatprep.subr.mxu0 0.0
  %620 = vmatpush1.msra.mxu0 0.0
  %621 = vmatprep.subr.mxu0 0.0
  %622 = vmatpush1.msra.mxu0 0.0
  %623 = vmatprep.subr.mxu0 0.0
  %624 = vmatpush1.msra.mxu0 0.0
  %625 = vmatprep.subr.mxu0 0.0
  %626 = vmatpush1.msra.mxu0 0.0
  %627 = vmatprep.subr.mxu0 0.0
  %628 = vmatpush1.msra.mxu0 0.0
  %629 = vmatprep.subr.mxu0 0.0
  %630 = vmatpush1.msra.mxu0 0.0
  %631 = vmatprep.subr.mxu0 0.0
  %632 = vmatpush1.msra.mxu0 0.0
  %633 = vmatprep.subr.mxu0 0.0
  %634 = vmatpush1.msra.mxu0 0.0
  %635 = vmatprep.subr.mxu0 0.0
  %636 = vmatpush1.msra.mxu0 0.0
  %637 = vmatprep.subr.mxu0 0.0
  %638 = vmatpush1.msra.mxu0 0.0
  %639 = vmatprep.subr.mxu0 0.0
  %640 = vmatpush1.msra.mxu0 0.0
  %641 = vmatprep.subr.mxu0 0.0
  %642 = vmatpush1.msra.mxu0 0.0
  %643 = vmatprep.subr.mxu0 0.0
  %644 = vmatpush1.msra.mxu0 0.0
  %645 = vmatprep.subr.mxu0 %v542
  %646 = vmatpush1.msra.mxu0 %v540
  %647 = vmatprep.subr.mxu0 0.0
  %648 = vmatpush2.msra.mxu0 0.0
  %649 = vmatprep.subr.mxu0 0.0
  %650 = vmatpush2.msra.mxu0 0.0
  %651 = vmatprep.subr.mxu0 0.0
  %652 = vmatpush2.msra.mxu0 0.0
  %653 = vmatprep.subr.mxu0 0.0
  %654 = vmatpush2.msra.mxu0 0.0
  %655 = vmatprep.subr.mxu0 0.0
  %656 = vmatpush2.msra.mxu0 0.0
  %657 = vmatprep.subr.mxu0 0.0
  %658 = vmatpush2.msra.mxu0 0.0
  %659 = vmatprep.subr.mxu0 0.0
  %660 = vmatpush2.msra.mxu0 0.0
  %661 = vmatprep.subr.mxu0 0.0
  %662 = vmatpush2.msra.mxu0 0.0
  %663 = vmatprep.subr.mxu0 0.0
  %664 = vmatpush2.msra.mxu0 0.0
  %665 = vmatprep.subr.mxu0 0.0
  %666 = vmatpush2.msra.mxu0 0.0
  %667 = vmatprep.subr.mxu0 0.0
  %668 = vmatpush2.msra.mxu0 0.0
  %669 = vmatprep.subr.mxu0 0.0
  %670 = vmatpush2.msra.mxu0 0.0
  %671 = vmatprep.subr.mxu0 0.0
  %672 = vmatpush2.msra.mxu0 0.0
  %673 = vmatprep.subr.mxu0 0.0
  %674 = vmatpush2.msra.mxu0 0.0
  %675 = vmatprep.subr.mxu0 0.0
  %676 = vmatpush2.msra.mxu0 0.0
  %677 = vmatprep.subr.mxu0 0.0
  %678 = vmatpush2.msra.mxu0 0.0
  %679 = vmatprep.mubr.f32.mxu0 0.0
  %680 = vmatmul.mubr.f32.gmra.mxu0 %v534
  %v681 = vpop.f32.mrf.mxu0
  %v682 = vadd.f32 0.0, %v681
  %v683 = vpop.f32.mrf.mxu0
  %v684 = vadd.f32 0.0, %v683
  %685 = vdwg.mxu0
  %v686 = vadd.f32 %v522, %v611
  %v687 = vadd.f32 %v523, %v613
  %v688 = vadd.f32 %v524, %v682
  %v689 = vadd.f32 %v525, %v684
  %v690 = vld [vmem:[%s8] sm:$0xff]
  %692 = vset.pattern.permute.xlu0 0
  %693 = vperm.xlu0 %692, %v690
  %v694 = vpop.permute.xlu0 %693
  %v696 = vadd.f32 %v686, %v694
  %v697 = vadd.f32 %v687, %v694
  %v698 = vadd.f32 %v688, %v694
  %v699 = vadd.f32 %v689, %v694
  %700 = vst [vmem:[%s11] sm:$0xff] %v696
  %701 = vst [vmem:[%s11 + $0x8] sm:$0xff] %v697
  %702 = vst [vmem:[%s11 + $0x10] sm:$0xff] %v698
  %703 = vst [vmem:[%s11 + $0x18] sm:$0xff] %v699
  %v704 = vld [vmem:[%s9] sm:$0x3]
  %v705 = vld [vmem:[%s10] sm:$0x3]
  %707 = vset.pattern.permute.xlu0 0
  %708 = vperm.xlu0 %707, %v705
  %v709 = vpop.permute.xlu0 %708
  %vm711 = vcmask 64512
  %v713 = vsel %vm711, %v704, 0
  %715 = vmatprep.subr.mxu0 0.0
  %716 = vmatpush1.msra.mxu0 0.0
  %717 = vmatprep.subr.mxu0 0.0
  %718 = vmatpush1.msra.mxu0 0.0
  %719 = vmatprep.subr.mxu0 0.0
  %720 = vmatpush1.msra.mxu0 0.0
  %721 = vmatprep.subr.mxu0 0.0
  %722 = vmatpush1.msra.mxu0 0.0
  %723 = vmatprep.subr.mxu0 0.0
  %724 = vmatpush1.msra.mxu0 0.0
  %725 = vmatprep.subr.mxu0 0.0
  %726 = vmatpush1.msra.mxu0 0.0
  %727 = vmatprep.subr.mxu0 0.0
  %728 = vmatpush1.msra.mxu0 0.0
  %729 = vmatprep.subr.mxu0 0.0
  %730 = vmatpush1.msra.mxu0 0.0
  %731 = vmatprep.subr.mxu0 0.0
  %732 = vmatpush1.msra.mxu0 0.0
  %733 = vmatprep.subr.mxu0 0.0
  %734 = vmatpush1.msra.mxu0 0.0
  %735 = vmatprep.subr.mxu0 0.0
  %736 = vmatpush1.msra.mxu0 0.0
  %737 = vmatprep.subr.mxu0 0.0
  %738 = vmatpush1.msra.mxu0 0.0
  %739 = vmatprep.subr.mxu0 0.0
  %740 = vmatpush1.msra.mxu0 0.0
  %741 = vmatprep.subr.mxu0 0.0
  %742 = vmatpush1.msra.mxu0 0.0
  %743 = vmatprep.subr.mxu0 0.0
  %744 = vmatpush1.msra.mxu0 0.0
  %745 = vmatprep.subr.mxu0 %v697
  %746 = vmatpush1.msra.mxu0 %v696
  %747 = vmatprep.subr.mxu0 0.0
  %748 = vmatpush2.msra.mxu0 0.0
  %749 = vmatprep.subr.mxu0 0.0
  %750 = vmatpush2.msra.mxu0 0.0
  %751 = vmatprep.subr.mxu0 0.0
  %752 = vmatpush2.msra.mxu0 0.0
  %753 = vmatprep.subr.mxu0 0.0
  %754 = vmatpush2.msra.mxu0 0.0
  %755 = vmatprep.subr.mxu0 0.0
  %756 = vmatpush2.msra.mxu0 0.0
  %757 = vmatprep.subr.mxu0 0.0
  %758 = vmatpush2.msra.mxu0 0.0
  %759 = vmatprep.subr.mxu0 0.0
  %760 = vmatpush2.msra.mxu0 0.0
  %761 = vmatprep.subr.mxu0 0.0
  %762 = vmatpush2.msra.mxu0 0.0
  %763 = vmatprep.subr.mxu0 0.0
  %764 = vmatpush2.msra.mxu0 0.0
  %765 = vmatprep.subr.mxu0 0.0
  %766 = vmatpush2.msra.mxu0 0.0
  %767 = vmatprep.subr.mxu0 0.0
  %768 = vmatpush2.msra.mxu0 0.0
  %769 = vmatprep.subr.mxu0 0.0
  %770 = vmatpush2.msra.mxu0 0.0
  %771 = vmatprep.subr.mxu0 0.0
  %772 = vmatpush2.msra.mxu0 0.0
  %773 = vmatprep.subr.mxu0 0.0
  %774 = vmatpush2.msra.mxu0 0.0
  %775 = vmatprep.subr.mxu0 0.0
  %776 = vmatpush2.msra.mxu0 0.0
  %777 = vmatprep.subr.mxu0 0.0
  %778 = vmatpush2.msra.mxu0 0.0
  %779 = vmatprep.mubr.f32.mxu0 0.0
  %780 = vmatmul.mubr.f32.gmra.mxu0 %v713
  %v781 = vpop.f32.mrf.mxu0
  %v782 = vadd.f32 %v709, %v781
  %v783 = vpop.f32.mrf.mxu0
  %v784 = vadd.f32 %v709, %v783
  %785 = vdwg.mxu0
  %786 = vmatprep.subr.mxu0 0.0
  %787 = vmatpush1.msra.mxu0 0.0
  %788 = vmatprep.subr.mxu0 0.0
  %789 = vmatpush1.msra.mxu0 0.0
  %790 = vmatprep.subr.mxu0 0.0
  %791 = vmatpush1.msra.mxu0 0.0
  %792 = vmatprep.subr.mxu0 0.0
  %793 = vmatpush1.msra.mxu0 0.0
  %794 = vmatprep.subr.mxu0 0.0
  %795 = vmatpush1.msra.mxu0 0.0
  %796 = vmatprep.subr.mxu0 0.0
  %797 = vmatpush1.msra.mxu0 0.0
  %798 = vmatprep.subr.mxu0 0.0
  %799 = vmatpush1.msra.mxu0 0.0
  %800 = vmatprep.subr.mxu0 0.0
  %801 = vmatpush1.msra.mxu0 0.0
  %802 = vmatprep.subr.mxu0 0.0
  %803 = vmatpush1.msra.mxu0 0.0
  %804 = vmatprep.subr.mxu0 0.0
  %805 = vmatpush1.msra.mxu0 0.0
  %806 = vmatprep.subr.mxu0 0.0
  %807 = vmatpush1.msra.mxu0 0.0
  %808 = vmatprep.subr.mxu0 0.0
  %809 = vmatpush1.msra.mxu0 0.0
  %810 = vmatprep.subr.mxu0 0.0
  %811 = vmatpush1.msra.mxu0 0.0
  %812 = vmatprep.subr.mxu0 0.0
  %813 = vmatpush1.msra.mxu0 0.0
  %814 = vmatprep.subr.mxu0 0.0
  %815 = vmatpush1.msra.mxu0 0.0
  %816 = vmatprep.subr.mxu0 %v699
  %817 = vmatpush1.msra.mxu0 %v698
  %818 = vmatprep.subr.mxu0 0.0
  %819 = vmatpush2.msra.mxu0 0.0
  %820 = vmatprep.subr.mxu0 0.0
  %821 = vmatpush2.msra.mxu0 0.0
  %822 = vmatprep.subr.mxu0 0.0
  %823 = vmatpush2.msra.mxu0 0.0
  %824 = vmatprep.subr.mxu0 0.0
  %825 = vmatpush2.msra.mxu0 0.0
  %826 = vmatprep.subr.mxu0 0.0
  %827 = vmatpush2.msra.mxu0 0.0
  %828 = vmatprep.subr.mxu0 0.0
  %829 = vmatpush2.msra.mxu0 0.0
  %830 = vmatprep.subr.mxu0 0.0
  %831 = vmatpush2.msra.mxu0 0.0
  %832 = vmatprep.subr.mxu0 0.0
  %833 = vmatpush2.msra.mxu0 0.0
  %834 = vmatprep.subr.mxu0 0.0
  %835 = vmatpush2.msra.mxu0 0.0
  %836 = vmatprep.subr.mxu0 0.0
  %837 = vmatpush2.msra.mxu0 0.0
  %838 = vmatprep.subr.mxu0 0.0
  %839 = vmatpush2.msra.mxu0 0.0
  %840 = vmatprep.subr.mxu0 0.0
  %841 = vmatpush2.msra.mxu0 0.0
  %842 = vmatprep.subr.mxu0 0.0
  %843 = vmatpush2.msra.mxu0 0.0
  %844 = vmatprep.subr.mxu0 0.0
  %845 = vmatpush2.msra.mxu0 0.0
  %846 = vmatprep.subr.mxu0 0.0
  %847 = vmatpush2.msra.mxu0 0.0
  %848 = vmatprep.subr.mxu0 0.0
  %849 = vmatpush2.msra.mxu0 0.0
  %850 = vmatprep.mubr.f32.mxu0 0.0
  %851 = vmatmul.mubr.f32.gmra.mxu0 %v713
  %v852 = vpop.f32.mrf.mxu0
  %v853 = vadd.f32 %v709, %v852
  %v854 = vpop.f32.mrf.mxu0
  %v855 = vadd.f32 %v709, %v854
  %856 = vdwg.mxu0
  %v861 = vcombine.low %v782, %v784
  %v862 = vcombine.low %v853, %v855
  %v864 = vunpack.c.l.s4 1983009808
  %v865 = vunpack.c.0.s8 %v864
  %v866 = vlaneseq
  %v867 = vshrl.u32 %v866, 7
  %v868 = vsub.s32 %v865, %v867
  %v869 = vrot.slane %v861, %v868
  %v871 = vunpack.c.l.s4 1983009808
  %v872 = vunpack.c.0.s8 %v871
  %v873 = vlaneseq
  %v874 = vshrl.u32 %v873, 7
  %v875 = vsub.s32 %v872, %v874
  %v876 = vrot.slane %v862, %v875
  %v877 = vcombine.low %v869, %v876
  %879 = vst [vmem:[%s12] sm:$0xff] %v877
  // Predicated region
  $region46: #{m_rfdb_forward.18} parent=0 // pred_check
    _
  $region47: #{m_rfdb_forward.18} parent=0 // pred_check_branch
    %881 = sbr.rel (0) target = $region49
  $region48: #{m_rfdb_forward.18} parent=0 // pred_region
    _
  $region49: #{m_rfdb_forward.18} parent=0 // pred_fallthru
    _
  // Predicated region
  $region50: #{m_rfdb_forward.18} parent=0 // pred_check
    _
  $region51: #{m_rfdb_forward.18} parent=0 // pred_check_branch
    %883 = sbr.rel (0) target = $region53
  $region52: #{m_rfdb_forward.18} parent=0 // pred_region
    _
  $region53: #{m_rfdb_forward.18} parent=0 // pred_fallthru
    _
  // Predicated region
  $region54: #{m_rfdb_forward.18} parent=0 // pred_check
    _
  $region55: #{m_rfdb_forward.18} parent=0 // pred_check_branch
    %885 = sbr.rel (0) target = $region57
  $region56: #{m_rfdb_forward.18} parent=0 // pred_region
    _
  $region57: #{m_rfdb_forward.18} parent=0 // pred_fallthru
    _
  // Predicated region
  $region58: #{m_rfdb_forward.18} parent=0 // pred_check
    _
  $region59: #{m_rfdb_forward.18} parent=0 // pred_check_branch
    %887 = sbr.rel (0) target = $region61
  $region60: #{m_rfdb_forward.18} parent=0 // pred_region
    _
  $region61: #{m_rfdb_forward.18} parent=0 // pred_fallthru
    _

// kernel: m_rfdb_forward.12
$region0: #{m_rfdb_forward.12}
  #allocation0 [shape = 'u32[]', space=smem, size = 0x4, offset = 0x4, fixed_abs, tag = 'smem constant byte address 0x4 - core index']
  #allocation1 [shape = 'u32[144,128]{1,0:T(1,128)}', space=vmem, size = 0x12000, scoped, tag = 'internal scratch']
  %s0 = inlined_call_operand.vmem [shape: f32[8,512], index: 0, kind: input, shape index: {}]
  %s1 = inlined_call_operand.vmem [shape: f32[25,1,512], index: 1, kind: input, shape index: {}]
  %s2 = inlined_call_operand.vmem [shape: f32[8,8], index: 2, kind: input, shape index: {}]
  %s3 = inlined_call_operand.vmem [shape: f32[8,9], index: 3, kind: input, shape index: {}]
  %s4 = inlined_call_operand.vmem [shape: f32[8,8], index: 4, kind: input, shape index: {}]
  %s5 = inlined_call_operand.vmem [shape: f32[8,25], index: 5, kind: input, shape index: {}]
  %s6 = inlined_call_operand.vmem [shape: f32[8,8], index: 6, kind: input, shape index: {}]
  %s7 = inlined_call_operand.vmem [shape: f32[8,1], index: 7, kind: input, shape index: {}]
  %s8 = inlined_call_operand.vmem [shape: f32[8,512], index: 8, kind: output, shape index: {}]
  %s9 = sld [smem:[#allocation0]]
  $region42: #{m_rfdb_forward.12} parent=0
    _
  %s11 = ssub.s32 1, %s9
  %s12 = scalar_select 0, %s11, %s9
  // Predicated region
  $region2: #{m_rfdb_forward.12} parent=0 // pred_check
    _
  $region3: #{m_rfdb_forward.12} parent=0 // pred_check_branch
    %14 = sbr.rel (0) target = $region5
  $region4: #{m_rfdb_forward.12} parent=0 // pred_region
    _
  $region5: #{m_rfdb_forward.12} parent=0 // pred_fallthru
    _
  // Predicated region
  $region6: #{m_rfdb_forward.12} parent=0 // pred_check
    _
  $region7: #{m_rfdb_forward.12} parent=0 // pred_check_branch
    %16 = sbr.rel (0) target = $region9
  $region8: #{m_rfdb_forward.12} parent=0 // pred_region
    _
  $region9: #{m_rfdb_forward.12} parent=0 // pred_fallthru
    _
  // Predicated region
  $region10: #{m_rfdb_forward.12} parent=0 // pred_check
    _
  $region11: #{m_rfdb_forward.12} parent=0 // pred_check_branch
    %18 = sbr.rel (0) target = $region13
  $region12: #{m_rfdb_forward.12} parent=0 // pred_region
    _
  $region13: #{m_rfdb_forward.12} parent=0 // pred_fallthru
    _
  // Predicated region
  $region14: #{m_rfdb_forward.12} parent=0 // pred_check
    _
  $region15: #{m_rfdb_forward.12} parent=0 // pred_check_branch
    %20 = sbr.rel (0) target = $region17
  $region16: #{m_rfdb_forward.12} parent=0 // pred_region
    _
  $region17: #{m_rfdb_forward.12} parent=0 // pred_fallthru
    _
  // Predicated region
  $region18: #{m_rfdb_forward.12} parent=0 // pred_check
    _
  $region19: #{m_rfdb_forward.12} parent=0 // pred_check_branch
    %22 = sbr.rel (0) target = $region21
  $region20: #{m_rfdb_forward.12} parent=0 // pred_region
    _
  $region21: #{m_rfdb_forward.12} parent=0 // pred_fallthru
    _
  // Predicated region
  $region22: #{m_rfdb_forward.12} parent=0 // pred_check
    _
  $region23: #{m_rfdb_forward.12} parent=0 // pred_check_branch
    %24 = sbr.rel (0) target = $region25
  $region24: #{m_rfdb_forward.12} parent=0 // pred_region
    _
  $region25: #{m_rfdb_forward.12} parent=0 // pred_fallthru
    _
  // Predicated region
  $region26: #{m_rfdb_forward.12} parent=0 // pred_check
    _
  $region27: #{m_rfdb_forward.12} parent=0 // pred_check_branch
    %26 = sbr.rel (0) target = $region29
  $region28: #{m_rfdb_forward.12} parent=0 // pred_region
    _
  $region29: #{m_rfdb_forward.12} parent=0 // pred_fallthru
    _
  // Predicated region
  $region30: #{m_rfdb_forward.12} parent=0 // pred_check
    _
  $region31: #{m_rfdb_forward.12} parent=0 // pred_check_branch
    %28 = sbr.rel (0) target = $region33
  $region32: #{m_rfdb_forward.12} parent=0 // pred_region
    _
  $region33: #{m_rfdb_forward.12} parent=0 // pred_fallthru
    _
  %v29 = vld [vmem:[%s0] sm:$0xff]
  %v30 = vld [vmem:[%s0 + $0x8] sm:$0xff]
  %v31 = vld [vmem:[%s0 + $0x10] sm:$0xff]
  %v32 = vld [vmem:[%s0 + $0x18] sm:$0xff]
  %v33 = vld [vmem:[%s1] sm:$0xf]
  %v34 = vld [vmem:[%s1 + $0x4] sm:$0xf]
  %v35 = vld [vmem:[%s1 + $0x8] sm:$0xf]
  %v36 = vld [vmem:[%s1 + $0xc] sm:$0xf]
  %v37 = vld [vmem:[%s1 + $0x10] sm:$0xf]
  %v38 = vld [vmem:[%s1 + $0x14] sm:$0xf]
  %v39 = vld [vmem:[%s1 + $0x18] sm:$0xf]
  %v40 = vld [vmem:[%s1 + $0x1c] sm:$0xf]
  %v41 = vld [vmem:[%s1 + $0x20] sm:$0xf]
  %v42 = vld [vmem:[%s1 + $0x24] sm:$0xf]
  %v43 = vld [vmem:[%s1 + $0x28] sm:$0xf]
  %v44 = vld [vmem:[%s1 + $0x2c] sm:$0xf]
  %v45 = vld [vmem:[%s1 + $0x30] sm:$0xf]
  %v46 = vld [vmem:[%s1 + $0x34] sm:$0xf]
  %v47 = vld [vmem:[%s1 + $0x38] sm:$0xf]
  %v48 = vld [vmem:[%s1 + $0x3c] sm:$0xf]
  %v49 = vld [vmem:[%s1 + $0x40] sm:$0xf]
  %v50 = vld [vmem:[%s1 + $0x44] sm:$0xf]
  %v51 = vld [vmem:[%s1 + $0x48] sm:$0xf]
  %v52 = vld [vmem:[%s1 + $0x4c] sm:$0xf]
  %v53 = vld [vmem:[%s1 + $0x50] sm:$0xf]
  %v54 = vld [vmem:[%s1 + $0x54] sm:$0xf]
  %v55 = vld [vmem:[%s1 + $0x58] sm:$0xf]
  %v56 = vld [vmem:[%s1 + $0x5c] sm:$0xf]
  %v57 = vld [vmem:[%s1 + $0x60] sm:$0xf]
  %v58 = vld [vmem:[%s2] sm:$0xff]
  %v59 = vld [vmem:[%s7] sm:$0xff]
  %61 = vset.pattern.permute.xlu0 0
  %62 = vperm.xlu0 %61, %v59
  %v63 = vpop.permute.xlu0 %62
  %vm65 = vcmask 64512
  %v67 = vsel %vm65, %v58, 0
  %69 = vmatprep.subr.mxu0 0.0
  %70 = vmatpush1.msra.mxu0 0.0
  %71 = vmatprep.subr.mxu0 0.0
  %72 = vmatpush1.msra.mxu0 0.0
  %73 = vmatprep.subr.mxu0 0.0
  %74 = vmatpush1.msra.mxu0 0.0
  %75 = vmatprep.subr.mxu0 0.0
  %76 = vmatpush1.msra.mxu0 0.0
  %77 = vmatprep.subr.mxu0 0.0
  %78 = vmatpush1.msra.mxu0 0.0
  %79 = vmatprep.subr.mxu0 0.0
  %80 = vmatpush1.msra.mxu0 0.0
  %81 = vmatprep.subr.mxu0 0.0
  %82 = vmatpush1.msra.mxu0 0.0
  %83 = vmatprep.subr.mxu0 0.0
  %84 = vmatpush1.msra.mxu0 0.0
  %85 = vmatprep.subr.mxu0 0.0
  %86 = vmatpush1.msra.mxu0 0.0
  %87 = vmatprep.subr.mxu0 0.0
  %88 = vmatpush1.msra.mxu0 0.0
  %89 = vmatprep.subr.mxu0 0.0
  %90 = vmatpush1.msra.mxu0 0.0
  %91 = vmatprep.subr.mxu0 0.0
  %92 = vmatpush1.msra.mxu0 0.0
  %93 = vmatprep.subr.mxu0 0.0
  %94 = vmatpush1.msra.mxu0 0.0
  %95 = vmatprep.subr.mxu0 0.0
  %96 = vmatpush1.msra.mxu0 0.0
  %97 = vmatprep.subr.mxu0 0.0
  %98 = vmatpush1.msra.mxu0 0.0
  %99 = vmatprep.subr.mxu0 %v30
  %100 = vmatpush1.msra.mxu0 %v29
  %101 = vmatprep.subr.mxu0 0.0
  %102 = vmatpush2.msra.mxu0 0.0
  %103 = vmatprep.subr.mxu0 0.0
  %104 = vmatpush2.msra.mxu0 0.0
  %105 = vmatprep.subr.mxu0 0.0
  %106 = vmatpush2.msra.mxu0 0.0
  %107 = vmatprep.subr.mxu0 0.0
  %108 = vmatpush2.msra.mxu0 0.0
  %109 = vmatprep.subr.mxu0 0.0
  %110 = vmatpush2.msra.mxu0 0.0
  %111 = vmatprep.subr.mxu0 0.0
  %112 = vmatpush2.msra.mxu0 0.0
  %113 = vmatprep.subr.mxu0 0.0
  %114 = vmatpush2.msra.mxu0 0.0
  %115 = vmatprep.subr.mxu0 0.0
  %116 = vmatpush2.msra.mxu0 0.0
  %117 = vmatprep.subr.mxu0 0.0
  %118 = vmatpush2.msra.mxu0 0.0
  %119 = vmatprep.subr.mxu0 0.0
  %120 = vmatpush2.msra.mxu0 0.0
  %121 = vmatprep.subr.mxu0 0.0
  %122 = vmatpush2.msra.mxu0 0.0
  %123 = vmatprep.subr.mxu0 0.0
  %124 = vmatpush2.msra.mxu0 0.0
  %125 = vmatprep.subr.mxu0 0.0
  %126 = vmatpush2.msra.mxu0 0.0
  %127 = vmatprep.subr.mxu0 0.0
  %128 = vmatpush2.msra.mxu0 0.0
  %129 = vmatprep.subr.mxu0 0.0
  %130 = vmatpush2.msra.mxu0 0.0
  %131 = vmatprep.subr.mxu0 0.0
  %132 = vmatpush2.msra.mxu0 0.0
  %133 = vmatprep.mubr.f32.mxu0 0.0
  %134 = vmatmul.mubr.f32.gmra.mxu0 %v67
  %v135 = vpop.f32.mrf.mxu0
  %v136 = vadd.f32 %v63, %v135
  %v137 = vpop.f32.mrf.mxu0
  %v138 = vadd.f32 %v63, %v137
  %139 = vdwg.mxu0
  %140 = vmatprep.subr.mxu0 0.0
  %141 = vmatpush1.msra.mxu0 0.0
  %142 = vmatprep.subr.mxu0 0.0
  %143 = vmatpush1.msra.mxu0 0.0
  %144 = vmatprep.subr.mxu0 0.0
  %145 = vmatpush1.msra.mxu0 0.0
  %146 = vmatprep.subr.mxu0 0.0
  %147 = vmatpush1.msra.mxu0 0.0
  %148 = vmatprep.subr.mxu0 0.0
  %149 = vmatpush1.msra.mxu0 0.0
  %150 = vmatprep.subr.mxu0 0.0
  %151 = vmatpush1.msra.mxu0 0.0
  %152 = vmatprep.subr.mxu0 0.0
  %153 = vmatpush1.msra.mxu0 0.0
  %154 = vmatprep.subr.mxu0 0.0
  %155 = vmatpush1.msra.mxu0 0.0
  %156 = vmatprep.subr.mxu0 0.0
  %157 = vmatpush1.msra.mxu0 0.0
  %158 = vmatprep.subr.mxu0 0.0
  %159 = vmatpush1.msra.mxu0 0.0
  %160 = vmatprep.subr.mxu0 0.0
  %161 = vmatpush1.msra.mxu0 0.0
  %162 = vmatprep.subr.mxu0 0.0
  %163 = vmatpush1.msra.mxu0 0.0
  %164 = vmatprep.subr.mxu0 0.0
  %165 = vmatpush1.msra.mxu0 0.0
  %166 = vmatprep.subr.mxu0 0.0
  %167 = vmatpush1.msra.mxu0 0.0
  %168 = vmatprep.subr.mxu0 0.0
  %169 = vmatpush1.msra.mxu0 0.0
  %170 = vmatprep.subr.mxu0 %v32
  %171 = vmatpush1.msra.mxu0 %v31
  %172 = vmatprep.subr.mxu0 0.0
  %173 = vmatpush2.msra.mxu0 0.0
  %174 = vmatprep.subr.mxu0 0.0
  %175 = vmatpush2.msra.mxu0 0.0
  %176 = vmatprep.subr.mxu0 0.0
  %177 = vmatpush2.msra.mxu0 0.0
  %178 = vmatprep.subr.mxu0 0.0
  %179 = vmatpush2.msra.mxu0 0.0
  %180 = vmatprep.subr.mxu0 0.0
  %181 = vmatpush2.msra.mxu0 0.0
  %182 = vmatprep.subr.mxu0 0.0
  %183 = vmatpush2.msra.mxu0 0.0
  %184 = vmatprep.subr.mxu0 0.0
  %185 = vmatpush2.msra.mxu0 0.0
  %186 = vmatprep.subr.mxu0 0.0
  %187 = vmatpush2.msra.mxu0 0.0
  %188 = vmatprep.subr.mxu0 0.0
  %189 = vmatpush2.msra.mxu0 0.0
  %190 = vmatprep.subr.mxu0 0.0
  %191 = vmatpush2.msra.mxu0 0.0
  %192 = vmatprep.subr.mxu0 0.0
  %193 = vmatpush2.msra.mxu0 0.0
  %194 = vmatprep.subr.mxu0 0.0
  %195 = vmatpush2.msra.mxu0 0.0
  %196 = vmatprep.subr.mxu0 0.0
  %197 = vmatpush2.msra.mxu0 0.0
  %198 = vmatprep.subr.mxu0 0.0
  %199 = vmatpush2.msra.mxu0 0.0
  %200 = vmatprep.subr.mxu0 0.0
  %201 = vmatpush2.msra.mxu0 0.0
  %202 = vmatprep.subr.mxu0 0.0
  %203 = vmatpush2.msra.mxu0 0.0
  %204 = vmatprep.mubr.f32.mxu0 0.0
  %205 = vmatmul.mubr.f32.gmra.mxu0 %v67
  %v206 = vpop.f32.mrf.mxu0
  %v207 = vadd.f32 %v63, %v206
  %v208 = vpop.f32.mrf.mxu0
  %v209 = vadd.f32 %v63, %v208
  %210 = vdwg.mxu0
  %v211 = vld [vmem:[%s3] sm:$0xff]
  %v212 = vld [vmem:[%s5] sm:$0xff]
  %214 = vrot.lane.b32.xlu0 %v32, 34
  %v215 = vpop.permute.xlu0 %214
  %220 = vrot.lane.b32.xlu0 %v29, 34
  %v221 = vpop.permute.xlu0 %220
  %222 = vrot.lane.b32.xlu0 %v30, 34
  %v223 = vpop.permute.xlu0 %222
  %224 = vrot.lane.b32.xlu0 %v31, 34
  %v225 = vpop.permute.xlu0 %224
  %vm226 = vcmask 277504
  %v227 = vsel %vm226, %v221, %v223
  %v228 = vsel %vm226, %v223, %v225
  %v229 = vsel %vm226, %v225, %v215
  %v234 = vsel %vm226, %v215, %v221
  %v236 = vlaneseq
  %v237 = vshrl.u32 %v236, 7
  %v238 = vsub.s32 0, %v237
  %v239 = vrot.slane %v33, %v238
  %v240 = vlaneseq
  %v241 = vshrl.u32 %v240, 7
  %v242 = vsub.s32 1, %v241
  %v243 = vrot.slane %v33, %v242
  %v244 = vlaneseq
  %v245 = vshrl.u32 %v244, 7
  %v246 = vsub.s32 2, %v245
  %v247 = vrot.slane %v33, %v246
  %v248 = vlaneseq
  %v249 = vshrl.u32 %v248, 7
  %v250 = vsub.s32 3, %v249
  %v251 = vrot.slane %v33, %v250
  %v256 = vmul.f32 %v234, %v239
  %v257 = vmul.f32 %v227, %v243
  %v258 = vmul.f32 %v228, %v247
  %v259 = vmul.f32 %v229, %v251
  %261 = vset.pattern.permute.xlu0 0
  %262 = vperm.xlu0 %261, %v212
  %v263 = vpop.permute.xlu0 %262
  %v265 = vmul.f32 %v263, %v256
  %v266 = vmul.f32 %v263, %v257
  %v267 = vmul.f32 %v263, %v258
  %v268 = vmul.f32 %v263, %v259
  %v269 = vadd.f32 %v265, 0.0
  %v270 = vadd.f32 %v266, 0.0
  %v271 = vadd.f32 %v267, 0.0
  %v272 = vadd.f32 %v268, 0.0
  %273 = vrot.lane.b32.xlu0 %v32, 33
  %v274 = vpop.permute.xlu0 %273
  %276 = vrot.lane.b32.xlu0 %v29, 33
  %v277 = vpop.permute.xlu0 %276
  %278 = vrot.lane.b32.xlu0 %v30, 33
  %v279 = vpop.permute.xlu0 %278
  %280 = vrot.lane.b32.xlu0 %v31, 33
  %v281 = vpop.permute.xlu0 %280
  %vm282 = vcmask 269312
  %v283 = vsel %vm282, %v277, %v279
  %v284 = vsel %vm282, %v279, %v281
  %v285 = vsel %vm282, %v281, %v274
  %v290 = vsel %vm282, %v274, %v277
  %v292 = vlaneseq
  %v293 = vshrl.u32 %v292, 7
  %v294 = vsub.s32 0, %v293
  %v295 = vrot.slane %v34, %v294
  %v296 = vlaneseq
  %v297 = vshrl.u32 %v296, 7
  %v298 = vsub.s32 1, %v297
  %v299 = vrot.slane %v34, %v298
  %v300 = vlaneseq
  %v301 = vshrl.u32 %v300, 7
  %v302 = vsub.s32 2, %v301
  %v303 = vrot.slane %v34, %v302
  %v304 = vlaneseq
  %v305 = vshrl.u32 %v304, 7
  %v306 = vsub.s32 3, %v305
  %v307 = vrot.slane %v34, %v306
  %v312 = vmul.f32 %v290, %v295
  %v313 = vmul.f32 %v283, %v299
  %v314 = vmul.f32 %v284, %v303
  %v315 = vmul.f32 %v285, %v307
  %316 = vset.pattern.permute.xlu0 1
  %317 = vperm.xlu0 %316, %v212
  %v318 = vpop.permute.xlu0 %317
  %v320 = vmul.f32 %v318, %v312
  %v321 = vmul.f32 %v318, %v313
  %v322 = vmul.f32 %v318, %v314
  %v323 = vmul.f32 %v318, %v315
  %v324 = vadd.f32 %v269, %v320
  %v325 = vadd.f32 %v270, %v321
  %v326 = vadd.f32 %v271, %v322
  %v327 = vadd.f32 %v272, %v323
  %328 = vrot.lane.b32.xlu0 %v32, 32
  %v329 = vpop.permute.xlu0 %328
  %331 = vrot.lane.b32.xlu0 %v29, 32
  %v332 = vpop.permute.xlu0 %331
  %333 = vrot.lane.b32.xlu0 %v30, 32
  %v334 = vpop.permute.xlu0 %333
  %335 = vrot.lane.b32.xlu0 %v31, 32
  %v336 = vpop.permute.xlu0 %335
  %vm337 = vcmask 261120
  %v338 = vsel %vm337, %v332, %v334
  %v339 = vsel %vm337, %v334, %v336
  %v340 = vsel %vm337, %v336, %v329
  %v345 = vsel %vm337, %v329, %v332
  %v347 = vlaneseq
  %v348 = vshrl.u32 %v347, 7
  %v349 = vsub.s32 0, %v348
  %v350 = vrot.slane %v35, %v349
  %v351 = vlaneseq
  %v352 = vshrl.u32 %v351, 7
  %v353 = vsub.s32 1, %v352
  %v354 = vrot.slane %v35, %v353
  %v355 = vlaneseq
  %v356 = vshrl.u32 %v355, 7
  %v357 = vsub.s32 2, %v356
  %v358 = vrot.slane %v35, %v357
  %v359 = vlaneseq
  %v360 = vshrl.u32 %v359, 7
  %v361 = vsub.s32 3, %v360
  %v362 = vrot.slane %v35, %v361
  %v367 = vmul.f32 %v345, %v350
  %v368 = vmul.f32 %v338, %v354
  %v369 = vmul.f32 %v339, %v358
  %v370 = vmul.f32 %v340, %v362
  %371 = vset.pattern.permute.xlu0 2
  %372 = vperm.xlu0 %371, %v212
  %v373 = vpop.permute.xlu0 %372
  %v375 = vmul.f32 %v373, %v367
  %v376 = vmul.f32 %v373, %v368
  %v377 = vmul.f32 %v373, %v369
  %v378 = vmul.f32 %v373, %v370
  %v379 = vadd.f32 %v324, %v375
  %v380 = vadd.f32 %v325, %v376
  %v381 = vadd.f32 %v326, %v377
  %v382 = vadd.f32 %v327, %v378
  %383 = vrot.lane.b32.xlu0 %v32, 31
  %v384 = vpop.permute.xlu0 %383
  %386 = vrot.lane.b32.xlu0 %v29, 31
  %v387 = vpop.permute.xlu0 %386
  %388 = vrot.lane.b32.xlu0 %v30, 31
  %v389 = vpop.permute.xlu0 %388
  %390 = vrot.lane.b32.xlu0 %v31, 31
  %v391 = vpop.permute.xlu0 %390
  %vm392 = vcmask 252928
  %v393 = vsel %vm392, %v387, %v389
  %v394 = vsel %vm392, %v389, %v391
  %v395 = vsel %vm392, %v391, %v384
  %v400 = vsel %vm392, %v384, %v387
  %v402 = vlaneseq
  %v403 = vshrl.u32 %v402, 7
  %v404 = vsub.s32 0, %v403
  %v405 = vrot.slane %v36, %v404
  %v406 = vlaneseq
  %v407 = vshrl.u32 %v406, 7
  %v408 = vsub.s32 1, %v407
  %v409 = vrot.slane %v36, %v408
  %v410 = vlaneseq
  %v411 = vshrl.u32 %v410, 7
  %v412 = vsub.s32 2, %v411
  %v413 = vrot.slane %v36, %v412
  %v414 = vlaneseq
  %v415 = vshrl.u32 %v414, 7
  %v416 = vsub.s32 3, %v415
  %v417 = vrot.slane %v36, %v416
  %v422 = vmul.f32 %v400, %v405
  %v423 = vmul.f32 %v393, %v409
  %v424 = vmul.f32 %v394, %v413
  %v425 = vmul.f32 %v395, %v417
  %426 = vset.pattern.permute.xlu0 3
  %427 = vperm.xlu0 %426, %v212
  %v428 = vpop.permute.xlu0 %427
  %v430 = vmul.f32 %v428, %v422
  %v431 = vmul.f32 %v428, %v423
  %v432 = vmul.f32 %v428, %v424
  %v433 = vmul.f32 %v428, %v425
  %v434 = vadd.f32 %v379, %v430
  %v435 = vadd.f32 %v380, %v431
  %v436 = vadd.f32 %v381, %v432
  %v437 = vadd.f32 %v382, %v433
  %438 = vrot.lane.b32.xlu0 %v32, 30
  %v439 = vpop.permute.xlu0 %438
  %441 = vrot.lane.b32.xlu0 %v29, 30
  %v442 = vpop.permute.xlu0 %441
  %443 = vrot.lane.b32.xlu0 %v30, 30
  %v444 = vpop.permute.xlu0 %443
  %445 = vrot.lane.b32.xlu0 %v31, 30
  %v446 = vpop.permute.xlu0 %445
  %vm447 = vcmask 244736
  %v448 = vsel %vm447, %v442, %v444
  %v449 = vsel %vm447, %v444, %v446
  %v450 = vsel %vm447, %v446, %v439
  %v455 = vsel %vm447, %v439, %v442
  %v457 = vlaneseq
  %v458 = vshrl.u32 %v457, 7
  %v459 = vsub.s32 0, %v458
  %v460 = vrot.slane %v37, %v459
  %v461 = vlaneseq
  %v462 = vshrl.u32 %v461, 7
  %v463 = vsub.s32 1, %v462
  %v464 = vrot.slane %v37, %v463
  %v465 = vlaneseq
  %v466 = vshrl.u32 %v465, 7
  %v467 = vsub.s32 2, %v466
  %v468 = vrot.slane %v37, %v467
  %v469 = vlaneseq
  %v470 = vshrl.u32 %v469, 7
  %v471 = vsub.s32 3, %v470
  %v472 = vrot.slane %v37, %v471
  %v477 = vmul.f32 %v455, %v460
  %v478 = vmul.f32 %v448, %v464
  %v479 = vmul.f32 %v449, %v468
  %v480 = vmul.f32 %v450, %v472
  %481 = vset.pattern.permute.xlu0 4
  %482 = vperm.xlu0 %481, %v212
  %v483 = vpop.permute.xlu0 %482
  %v485 = vmul.f32 %v483, %v477
  %v486 = vmul.f32 %v483, %v478
  %v487 = vmul.f32 %v483, %v479
  %v488 = vmul.f32 %v483, %v480
  %v489 = vadd.f32 %v434, %v485
  %v490 = vadd.f32 %v435, %v486
  %v491 = vadd.f32 %v436, %v487
  %v492 = vadd.f32 %v437, %v488
  %493 = vrot.lane.b32.xlu0 %v32, 18
  %v494 = vpop.permute.xlu0 %493
  %496 = vrot.lane.b32.xlu0 %v29, 18
  %v497 = vpop.permute.xlu0 %496
  %498 = vrot.lane.b32.xlu0 %v30, 18
  %v499 = vpop.permute.xlu0 %498
  %500 = vrot.lane.b32.xlu0 %v31, 18
  %v501 = vpop.permute.xlu0 %500
  %vm502 = vcmask 146432
  %v503 = vsel %vm502, %v497, %v499
  %v504 = vsel %vm502, %v499, %v501
  %v505 = vsel %vm502, %v501, %v494
  %v510 = vsel %vm502, %v494, %v497
  %v512 = vlaneseq
  %v513 = vshrl.u32 %v512, 7
  %v514 = vsub.s32 0, %v513
  %v515 = vrot.slane %v38, %v514
  %v516 = vlaneseq
  %v517 = vshrl.u32 %v516, 7
  %v518 = vsub.s32 1, %v517
  %v519 = vrot.slane %v38, %v518
  %v520 = vlaneseq
  %v521 = vshrl.u32 %v520, 7
  %v522 = vsub.s32 2, %v521
  %v523 = vrot.slane %v38, %v522
  %v524 = vlaneseq
  %v525 = vshrl.u32 %v524, 7
  %v526 = vsub.s32 3, %v525
  %v527 = vrot.slane %v38, %v526
  %v532 = vmul.f32 %v510, %v515
  %v533 = vmul.f32 %v503, %v519
  %v534 = vmul.f32 %v504, %v523
  %v535 = vmul.f32 %v505, %v527
  %536 = vset.pattern.permute.xlu0 5
  %537 = vperm.xlu0 %536, %v212
  %v538 = vpop.permute.xlu0 %537
  %v540 = vmul.f32 %v538, %v532
  %v541 = vmul.f32 %v538, %v533
  %v542 = vmul.f32 %v538, %v534
  %v543 = vmul.f32 %v538, %v535
  %v544 = vadd.f32 %v489, %v540
  %v545 = vadd.f32 %v490, %v541
  %v546 = vadd.f32 %v491, %v542
  %v547 = vadd.f32 %v492, %v543
  %548 = vrot.lane.b32.xlu0 %v32, 17
  %v549 = vpop.permute.xlu0 %548
  %551 = vrot.lane.b32.xlu0 %v29, 17
  %v552 = vpop.permute.xlu0 %551
  %553 = vrot.lane.b32.xlu0 %v30, 17
  %v554 = vpop.permute.xlu0 %553
  %555 = vrot.lane.b32.xlu0 %v31, 17
  %v556 = vpop.permute.xlu0 %555
  %vm557 = vcmask 138240
  %v558 = vsel %vm557, %v552, %v554
  %v559 = vsel %vm557, %v554, %v556
  %v560 = vsel %vm557, %v556, %v549
  %v565 = vsel %vm557, %v549, %v552
  %v567 = vlaneseq
  %v568 = vshrl.u32 %v567, 7
  %v569 = vsub.s32 0, %v568
  %v570 = vrot.slane %v39, %v569
  %v571 = vlaneseq
  %v572 = vshrl.u32 %v571, 7
  %v573 = vsub.s32 1, %v572
  %v574 = vrot.slane %v39, %v573
  %v575 = vlaneseq
  %v576 = vshrl.u32 %v575, 7
  %v577 = vsub.s32 2, %v576
  %v578 = vrot.slane %v39, %v577
  %v579 = vlaneseq
  %v580 = vshrl.u32 %v579, 7
  %v581 = vsub.s32 3, %v580
  %v582 = vrot.slane %v39, %v581
  %v587 = vmul.f32 %v565, %v570
  %v588 = vmul.f32 %v558, %v574
  %v589 = vmul.f32 %v559, %v578
  %v590 = vmul.f32 %v560, %v582
  %591 = vset.pattern.permute.xlu0 6
  %592 = vperm.xlu0 %591, %v212
  %v593 = vpop.permute.xlu0 %592
  %v595 = vmul.f32 %v593, %v587
  %v596 = vmul.f32 %v593, %v588
  %v597 = vmul.f32 %v593, %v589
  %v598 = vmul.f32 %v593, %v590
  %v599 = vadd.f32 %v544, %v595
  %v600 = vadd.f32 %v545, %v596
  %v601 = vadd.f32 %v546, %v597
  %v602 = vadd.f32 %v547, %v598
  %604 = vset.pattern.permute.xlu0 0
  %605 = vperm.xlu0 %604, %v211
  %v606 = vpop.permute.xlu0 %605
  %v608 = vmul.f32 %v606, %v587
  %v609 = vmul.f32 %v606, %v588
  %v610 = vmul.f32 %v606, %v589
  %v611 = vmul.f32 %v606, %v590
  %v612 = vadd.f32 %v608, 0.0
  %v613 = vadd.f32 %v609, 0.0
  %v614 = vadd.f32 %v610, 0.0
  %v615 = vadd.f32 %v611, 0.0
  %616 = vrot.lane.b32.xlu0 %v32, 16
  %v617 = vpop.permute.xlu0 %616
  %619 = vrot.lane.b32.xlu0 %v29, 16
  %v620 = vpop.permute.xlu0 %619
  %621 = vrot.lane.b32.xlu0 %v30, 16
  %v622 = vpop.permute.xlu0 %621
  %623 = vrot.lane.b32.xlu0 %v31, 16
  %v624 = vpop.permute.xlu0 %623
  %vm625 = vcmask 130048
  %v626 = vsel %vm625, %v620, %v622
  %v627 = vsel %vm625, %v622, %v624
  %v628 = vsel %vm625, %v624, %v617
  %v633 = vsel %vm625, %v617, %v620
  %v635 = vlaneseq
  %v636 = vshrl.u32 %v635, 7
  %v637 = vsub.s32 0, %v636
  %v638 = vrot.slane %v40, %v637
  %v639 = vlaneseq
  %v640 = vshrl.u32 %v639, 7
  %v641 = vsub.s32 1, %v640
  %v642 = vrot.slane %v40, %v641
  %v643 = vlaneseq
  %v644 = vshrl.u32 %v643, 7
  %v645 = vsub.s32 2, %v644
  %v646 = vrot.slane %v40, %v645
  %v647 = vlaneseq
  %v648 = vshrl.u32 %v647, 7
  %v649 = vsub.s32 3, %v648
  %v650 = vrot.slane %v40, %v649
  %v655 = vmul.f32 %v633, %v638
  %v656 = vmul.f32 %v626, %v642
  %v657 = vmul.f32 %v627, %v646
  %v658 = vmul.f32 %v628, %v650
  %659 = vset.pattern.permute.xlu0 7
  %660 = vperm.xlu0 %659, %v212
  %v661 = vpop.permute.xlu0 %660
  %v663 = vmul.f32 %v661, %v655
  %v664 = vmul.f32 %v661, %v656
  %v665 = vmul.f32 %v661, %v657
  %v666 = vmul.f32 %v661, %v658
  %v667 = vadd.f32 %v599, %v663
  %v668 = vadd.f32 %v600, %v664
  %v669 = vadd.f32 %v601, %v665
  %v670 = vadd.f32 %v602, %v666
  %671 = vset.pattern.permute.xlu0 1
  %672 = vperm.xlu0 %671, %v211
  %v673 = vpop.permute.xlu0 %672
  %v675 = vmul.f32 %v673, %v655
  %v676 = vmul.f32 %v673, %v656
  %v677 = vmul.f32 %v673, %v657
  %v678 = vmul.f32 %v673, %v658
  %v679 = vadd.f32 %v612, %v675
  %v680 = vadd.f32 %v613, %v676
  %v681 = vadd.f32 %v614, %v677
  %v682 = vadd.f32 %v615, %v678
  %683 = vrot.lane.b32.xlu0 %v32, 15
  %v684 = vpop.permute.xlu0 %683
  %686 = vrot.lane.b32.xlu0 %v29, 15
  %v687 = vpop.permute.xlu0 %686
  %688 = vrot.lane.b32.xlu0 %v30, 15
  %v689 = vpop.permute.xlu0 %688
  %690 = vrot.lane.b32.xlu0 %v31, 15
  %v691 = vpop.permute.xlu0 %690
  %vm692 = vcmask 121856
  %v693 = vsel %vm692, %v687, %v689
  %v694 = vsel %vm692, %v689, %v691
  %v695 = vsel %vm692, %v691, %v684
  %v700 = vsel %vm692, %v684, %v687
  %v702 = vlaneseq
  %v703 = vshrl.u32 %v702, 7
  %v704 = vsub.s32 0, %v703
  %v705 = vrot.slane %v41, %v704
  %v706 = vlaneseq
  %v707 = vshrl.u32 %v706, 7
  %v708 = vsub.s32 1, %v707
  %v709 = vrot.slane %v41, %v708
  %v710 = vlaneseq
  %v711 = vshrl.u32 %v710, 7
  %v712 = vsub.s32 2, %v711
  %v713 = vrot.slane %v41, %v712
  %v714 = vlaneseq
  %v715 = vshrl.u32 %v714, 7
  %v716 = vsub.s32 3, %v715
  %v717 = vrot.slane %v41, %v716
  %v722 = vmul.f32 %v700, %v705
  %v723 = vmul.f32 %v693, %v709
  %v724 = vmul.f32 %v694, %v713
  %v725 = vmul.f32 %v695, %v717
  %726 = vset.pattern.permute.xlu0 8
  %727 = vperm.xlu0 %726, %v212
  %v728 = vpop.permute.xlu0 %727
  %v730 = vmul.f32 %v728, %v722
  %v731 = vmul.f32 %v728, %v723
  %v732 = vmul.f32 %v728, %v724
  %v733 = vmul.f32 %v728, %v725
  %v734 = vadd.f32 %v667, %v730
  %v735 = vadd.f32 %v668, %v731
  %v736 = vadd.f32 %v669, %v732
  %v737 = vadd.f32 %v670, %v733
  %738 = vset.pattern.permute.xlu0 2
  %739 = vperm.xlu0 %738, %v211
  %v740 = vpop.permute.xlu0 %739
  %v742 = vmul.f32 %v740, %v722
  %v743 = vmul.f32 %v740, %v723
  %v744 = vmul.f32 %v740, %v724
  %v745 = vmul.f32 %v740, %v725
  %v746 = vadd.f32 %v679, %v742
  %v747 = vadd.f32 %v680, %v743
  %v748 = vadd.f32 %v681, %v744
  %v749 = vadd.f32 %v682, %v745
  %750 = vrot.lane.b32.xlu0 %v32, 14
  %v751 = vpop.permute.xlu0 %750
  %753 = vrot.lane.b32.xlu0 %v29, 14
  %v754 = vpop.permute.xlu0 %753
  %755 = vrot.lane.b32.xlu0 %v30, 14
  %v756 = vpop.permute.xlu0 %755
  %757 = vrot.lane.b32.xlu0 %v31, 14
  %v758 = vpop.permute.xlu0 %757
  %vm759 = vcmask 113664
  %v760 = vsel %vm759, %v754, %v756
  %v761 = vsel %vm759, %v756, %v758
  %v762 = vsel %vm759, %v758, %v751
  %v767 = vsel %vm759, %v751, %v754
  %v769 = vlaneseq
  %v770 = vshrl.u32 %v769, 7
  %v771 = vsub.s32 0, %v770
  %v772 = vrot.slane %v42, %v771
  %v773 = vlaneseq
  %v774 = vshrl.u32 %v773, 7
  %v775 = vsub.s32 1, %v774
  %v776 = vrot.slane %v42, %v775
  %v777 = vlaneseq
  %v778 = vshrl.u32 %v777, 7
  %v779 = vsub.s32 2, %v778
  %v780 = vrot.slane %v42, %v779
  %v781 = vlaneseq
  %v782 = vshrl.u32 %v781, 7
  %v783 = vsub.s32 3, %v782
  %v784 = vrot.slane %v42, %v783
  %v789 = vmul.f32 %v767, %v772
  %v790 = vmul.f32 %v760, %v776
  %v791 = vmul.f32 %v761, %v780
  %v792 = vmul.f32 %v762, %v784
  %793 = vset.pattern.permute.xlu0 9
  %794 = vperm.xlu0 %793, %v212
  %v795 = vpop.permute.xlu0 %794
  %v797 = vmul.f32 %v795, %v789
  %v798 = vmul.f32 %v795, %v790
  %v799 = vmul.f32 %v795, %v791
  %v800 = vmul.f32 %v795, %v792
  %v801 = vadd.f32 %v734, %v797
  %v802 = vadd.f32 %v735, %v798
  %v803 = vadd.f32 %v736, %v799
  %v804 = vadd.f32 %v737, %v800
  %805 = vrot.lane.b32.xlu0 %v32, 2
  %v806 = vpop.permute.xlu0 %805
  %808 = vrot.lane.b32.xlu0 %v29, 2
  %v809 = vpop.permute.xlu0 %808
  %810 = vrot.lane.b32.xlu0 %v30, 2
  %v811 = vpop.permute.xlu0 %810
  %812 = vrot.lane.b32.xlu0 %v31, 2
  %v813 = vpop.permute.xlu0 %812
  %vm814 = vcmask 15360
  %v815 = vsel %vm814, %v809, %v811
  %v816 = vsel %vm814, %v811, %v813
  %v817 = vsel %vm814, %v813, %v806
  %v822 = vsel %vm814, %v806, %v809
  %v824 = vlaneseq
  %v825 = vshrl.u32 %v824, 7
  %v826 = vsub.s32 0, %v825
  %v827 = vrot.slane %v43, %v826
  %v828 = vlaneseq
  %v829 = vshrl.u32 %v828, 7
  %v830 = vsub.s32 1, %v829
  %v831 = vrot.slane %v43, %v830
  %v832 = vlaneseq
  %v833 = vshrl.u32 %v832, 7
  %v834 = vsub.s32 2, %v833
  %v835 = vrot.slane %v43, %v834
  %v836 = vlaneseq
  %v837 = vshrl.u32 %v836, 7
  %v838 = vsub.s32 3, %v837
  %v839 = vrot.slane %v43, %v838
  %v844 = vmul.f32 %v822, %v827
  %v845 = vmul.f32 %v815, %v831
  %v846 = vmul.f32 %v816, %v835
  %v847 = vmul.f32 %v817, %v839
  %848 = vset.pattern.permute.xlu0 10
  %849 = vperm.xlu0 %848, %v212
  %v850 = vpop.permute.xlu0 %849
  %v852 = vmul.f32 %v850, %v844
  %v853 = vmul.f32 %v850, %v845
  %v854 = vmul.f32 %v850, %v846
  %v855 = vmul.f32 %v850, %v847
  %v856 = vadd.f32 %v801, %v852
  %v857 = vadd.f32 %v802, %v853
  %v858 = vadd.f32 %v803, %v854
  %v859 = vadd.f32 %v804, %v855
  %860 = vrot.lane.b32.xlu0 %v32, 1
  %v861 = vpop.permute.xlu0 %860
  %863 = vrot.lane.b32.xlu0 %v29, 1
  %v864 = vpop.permute.xlu0 %863
  %865 = vrot.lane.b32.xlu0 %v30, 1
  %v866 = vpop.permute.xlu0 %865
  %867 = vrot.lane.b32.xlu0 %v31, 1
  %v868 = vpop.permute.xlu0 %867
  %vm869 = vcmask 7168
  %v870 = vsel %vm869, %v864, %v866
  %v871 = vsel %vm869, %v866, %v868
  %v872 = vsel %vm869, %v868, %v861
  %v877 = vsel %vm869, %v861, %v864
  %v879 = vlaneseq
  %v880 = vshrl.u32 %v879, 7
  %v881 = vsub.s32 0, %v880
  %v882 = vrot.slane %v44, %v881
  %v883 = vlaneseq
  %v884 = vshrl.u32 %v883, 7
  %v885 = vsub.s32 1, %v884
  %v886 = vrot.slane %v44, %v885
  %v887 = vlaneseq
  %v888 = vshrl.u32 %v887, 7
  %v889 = vsub.s32 2, %v888
  %v890 = vrot.slane %v44, %v889
  %v891 = vlaneseq
  %v892 = vshrl.u32 %v891, 7
  %v893 = vsub.s32 3, %v892
  %v894 = vrot.slane %v44, %v893
  %v899 = vmul.f32 %v877, %v882
  %v900 = vmul.f32 %v870, %v886
  %v901 = vmul.f32 %v871, %v890
  %v902 = vmul.f32 %v872, %v894
  %903 = vset.pattern.permute.xlu0 11
  %904 = vperm.xlu0 %903, %v212
  %v905 = vpop.permute.xlu0 %904
  %v907 = vmul.f32 %v905, %v899
  %v908 = vmul.f32 %v905, %v900
  %v909 = vmul.f32 %v905, %v901
  %v910 = vmul.f32 %v905, %v902
  %v911 = vadd.f32 %v856, %v907
  %v912 = vadd.f32 %v857, %v908
  %v913 = vadd.f32 %v858, %v909
  %v914 = vadd.f32 %v859, %v910
  %915 = vset.pattern.permute.xlu0 3
  %916 = vperm.xlu0 %915, %v211
  %v917 = vpop.permute.xlu0 %916
  %v919 = vmul.f32 %v917, %v899
  %v920 = vmul.f32 %v917, %v900
  %v921 = vmul.f32 %v917, %v901
  %v922 = vmul.f32 %v917, %v902
  %v923 = vadd.f32 %v746, %v919
  %v924 = vadd.f32 %v747, %v920
  %v925 = vadd.f32 %v748, %v921
  %v926 = vadd.f32 %v749, %v922
  %v928 = vlaneseq
  %v929 = vshrl.u32 %v928, 7
  %v930 = vsub.s32 0, %v929
  %v931 = vrot.slane %v45, %v930
  %v932 = vlaneseq
  %v933 = vshrl.u32 %v932, 7
  %v934 = vsub.s32 1, %v933
  %v935 = vrot.slane %v45, %v934
  %v936 = vlaneseq
  %v937 = vshrl.u32 %v936, 7
  %v938 = vsub.s32 2, %v937
  %v939 = vrot.slane %v45, %v938
  %v940 = vlaneseq
  %v941 = vshrl.u32 %v940, 7
  %v942 = vsub.s32 3, %v941
  %v943 = vrot.slane %v45, %v942
  %v948 = vmul.f32 %v29, %v931
  %v949 = vmul.f32 %v30, %v935
  %v950 = vmul.f32 %v31, %v939
  %v951 = vmul.f32 %v32, %v943
  %952 = vset.pattern.permute.xlu0 12
  %953 = vperm.xlu0 %952, %v212
  %v954 = vpop.permute.xlu0 %953
  %v956 = vmul.f32 %v954, %v948
  %v957 = vmul.f32 %v954, %v949
  %v958 = vmul.f32 %v954, %v950
  %v959 = vmul.f32 %v954, %v951
  %v960 = vadd.f32 %v911, %v956
  %v961 = vadd.f32 %v912, %v957
  %v962 = vadd.f32 %v913, %v958
  %v963 = vadd.f32 %v914, %v959
  %964 = vset.pattern.permute.xlu0 4
  %965 = vperm.xlu0 %964, %v211
  %v966 = vpop.permute.xlu0 %965
  %v968 = vmul.f32 %v966, %v948
  %v969 = vmul.f32 %v966, %v949
  %v970 = vmul.f32 %v966, %v950
  %v971 = vmul.f32 %v966, %v951
  %v972 = vadd.f32 %v923, %v968
  %v973 = vadd.f32 %v924, %v969
  %v974 = vadd.f32 %v925, %v970
  %v975 = vadd.f32 %v926, %v971
  %976 = vrot.lane.b32.xlu0 %v29, 127
  %v977 = vpop.permute.xlu0 %976
  %978 = vrot.lane.b32.xlu0 %v30, 127
  %v979 = vpop.permute.xlu0 %978
  %980 = vrot.lane.b32.xlu0 %v31, 127
  %v981 = vpop.permute.xlu0 %980
  %982 = vrot.lane.b32.xlu0 %v32, 127
  %v983 = vpop.permute.xlu0 %982
  %vm984 = vcmask 1039360
  %v985 = vsel %vm984, %v977, %v979
  %v986 = vsel %vm984, %v979, %v981
  %v987 = vsel %vm984, %v981, %v983
  %v993 = vsel %vm984, %v983, %v977
  %v995 = vlaneseq
  %v996 = vshrl.u32 %v995, 7
  %v997 = vsub.s32 0, %v996
  %v998 = vrot.slane %v46, %v997
  %v999 = vlaneseq
  %v1000 = vshrl.u32 %v999, 7
  %v1001 = vsub.s32 1, %v1000
  %v1002 = vrot.slane %v46, %v1001
  %v1003 = vlaneseq
  %v1004 = vshrl.u32 %v1003, 7
  %v1005 = vsub.s32 2, %v1004
  %v1006 = vrot.slane %v46, %v1005
  %v1007 = vlaneseq
  %v1008 = vshrl.u32 %v1007, 7
  %v1009 = vsub.s32 3, %v1008
  %v1010 = vrot.slane %v46, %v1009
  %v1015 = vmul.f32 %v985, %v998
  %v1016 = vmul.f32 %v986, %v1002
  %v1017 = vmul.f32 %v987, %v1006
  %v1018 = vmul.f32 %v993, %v1010
  %1019 = vset.pattern.permute.xlu0 13
  %1020 = vperm.xlu0 %1019, %v212
  %v1021 = vpop.permute.xlu0 %1020
  %v1023 = vmul.f32 %v1021, %v1015
  %v1024 = vmul.f32 %v1021, %v1016
  %v1025 = vmul.f32 %v1021, %v1017
  %v1026 = vmul.f32 %v1021, %v1018
  %v1027 = vadd.f32 %v960, %v1023
  %v1028 = vadd.f32 %v961, %v1024
  %v1029 = vadd.f32 %v962, %v1025
  %v1030 = vadd.f32 %v963, %v1026
  %1031 = vset.pattern.permute.xlu0 5
  %1032 = vperm.xlu0 %1031, %v211
  %v1033 = vpop.permute.xlu0 %1032
  %v1035 = vmul.f32 %v1033, %v1015
  %v1036 = vmul.f32 %v1033, %v1016
  %v1037 = vmul.f32 %v1033, %v1017
  %v1038 = vmul.f32 %v1033, %v1018
  %v1039 = vadd.f32 %v972, %v1035
  %v1040 = vadd.f32 %v973, %v1036
  %v1041 = vadd.f32 %v974, %v1037
  %v1042 = vadd.f32 %v975, %v1038
  %1043 = vrot.lane.b32.xlu0 %v29, 126
  %v1044 = vpop.permute.xlu0 %1043
  %1045 = vrot.lane.b32.xlu0 %v30, 126
  %v1046 = vpop.permute.xlu0 %1045
  %1047 = vrot.lane.b32.xlu0 %v31, 126
  %v1048 = vpop.permute.xlu0 %1047
  %1049 = vrot.lane.b32.xlu0 %v32, 126
  %v1050 = vpop.permute.xlu0 %1049
  %vm1051 = vcmask 1031168
  %v1052 = vsel %vm1051, %v1044, %v1046
  %v1053 = vsel %vm1051, %v1046, %v1048
  %v1054 = vsel %vm1051, %v1048, %v1050
  %v1060 = vsel %vm1051, %v1050, %v1044
  %v1062 = vlaneseq
  %v1063 = vshrl.u32 %v1062, 7
  %v1064 = vsub.s32 0, %v1063
  %v1065 = vrot.slane %v47, %v1064
  %v1066 = vlaneseq
  %v1067 = vshrl.u32 %v1066, 7
  %v1068 = vsub.s32 1, %v1067
  %v1069 = vrot.slane %v47, %v1068
  %v1070 = vlaneseq
  %v1071 = vshrl.u32 %v1070, 7
  %v1072 = vsub.s32 2, %v1071
  %v1073 = vrot.slane %v47, %v1072
  %v1074 = vlaneseq
  %v1075 = vshrl.u32 %v1074, 7
  %v1076 = vsub.s32 3, %v1075
  %v1077 = vrot.slane %v47, %v1076
  %v1082 = vmul.f32 %v1052, %v1065
  %v1083 = vmul.f32 %v1053, %v1069
  %v1084 = vmul.f32 %v1054, %v1073
  %v1085 = vmul.f32 %v1060, %v1077
  %1086 = vset.pattern.permute.xlu0 14
  %1087 = vperm.xlu0 %1086, %v212
  %v1088 = vpop.permute.xlu0 %1087
  %v1090 = vmul.f32 %v1088, %v1082
  %v1091 = vmul.f32 %v1088, %v1083
  %v1092 = vmul.f32 %v1088, %v1084
  %v1093 = vmul.f32 %v1088, %v1085
  %v1094 = vadd.f32 %v1027, %v1090
  %v1095 = vadd.f32 %v1028, %v1091
  %v1096 = vadd.f32 %v1029, %v1092
  %v1097 = vadd.f32 %v1030, %v1093
  %1098 = vrot.lane.b32.xlu0 %v29, 114
  %v1099 = vpop.permute.xlu0 %1098
  %1100 = vrot.lane.b32.xlu0 %v30, 114
  %v1101 = vpop.permute.xlu0 %1100
  %1102 = vrot.lane.b32.xlu0 %v31, 114
  %v1103 = vpop.permute.xlu0 %1102
  %1104 = vrot.lane.b32.xlu0 %v32, 114
  %v1105 = vpop.permute.xlu0 %1104
  %vm1106 = vcmask 932864
  %v1107 = vsel %vm1106, %v1099, %v1101
  %v1108 = vsel %vm1106, %v1101, %v1103
  %v1109 = vsel %vm1106, %v1103, %v1105
  %v1115 = vsel %vm1106, %v1105, %v1099
  %v1117 = vlaneseq
  %v1118 = vshrl.u32 %v1117, 7
  %v1119 = vsub.s32 0, %v1118
  %v1120 = vrot.slane %v48, %v1119
  %v1121 = vlaneseq
  %v1122 = vshrl.u32 %v1121, 7
  %v1123 = vsub.s32 1, %v1122
  %v1124 = vrot.slane %v48, %v1123
  %v1125 = vlaneseq
  %v1126 = vshrl.u32 %v1125, 7
  %v1127 = vsub.s32 2, %v1126
  %v1128 = vrot.slane %v48, %v1127
  %v1129 = vlaneseq
  %v1130 = vshrl.u32 %v1129, 7
  %v1131 = vsub.s32 3, %v1130
  %v1132 = vrot.slane %v48, %v1131
  %v1137 = vmul.f32 %v1107, %v1120
  %v1138 = vmul.f32 %v1108, %v1124
  %v1139 = vmul.f32 %v1109, %v1128
  %v1140 = vmul.f32 %v1115, %v1132
  %1141 = vset.pattern.permute.xlu0 15
  %1142 = vperm.xlu0 %1141, %v212
  %v1143 = vpop.permute.xlu0 %1142
  %v1145 = vmul.f32 %v1143, %v1137
  %v1146 = vmul.f32 %v1143, %v1138
  %v1147 = vmul.f32 %v1143, %v1139
  %v1148 = vmul.f32 %v1143, %v1140
  %v1149 = vadd.f32 %v1094, %v1145
  %v1150 = vadd.f32 %v1095, %v1146
  %v1151 = vadd.f32 %v1096, %v1147
  %v1152 = vadd.f32 %v1097, %v1148
  %1153 = vrot.lane.b32.xlu0 %v29, 113
  %v1154 = vpop.permute.xlu0 %1153
  %1155 = vrot.lane.b32.xlu0 %v30, 113
  %v1156 = vpop.permute.xlu0 %1155
  %1157 = vrot.lane.b32.xlu0 %v31, 113
  %v1158 = vpop.permute.xlu0 %1157
  %1159 = vrot.lane.b32.xlu0 %v32, 113
  %v1160 = vpop.permute.xlu0 %1159
  %vm1161 = vcmask 924672
  %v1162 = vsel %vm1161, %v1154, %v1156
  %v1163 = vsel %vm1161, %v1156, %v1158
  %v1164 = vsel %vm1161, %v1158, %v1160
  %v1170 = vsel %vm1161, %v1160, %v1154
  %v1172 = vlaneseq
  %v1173 = vshrl.u32 %v1172, 7
  %v1174 = vsub.s32 0, %v1173
  %v1175 = vrot.slane %v49, %v1174
  %v1176 = vlaneseq
  %v1177 = vshrl.u32 %v1176, 7
  %v1178 = vsub.s32 1, %v1177
  %v1179 = vrot.slane %v49, %v1178
  %v1180 = vlaneseq
  %v1181 = vshrl.u32 %v1180, 7
  %v1182 = vsub.s32 2, %v1181
  %v1183 = vrot.slane %v49, %v1182
  %v1184 = vlaneseq
  %v1185 = vshrl.u32 %v1184, 7
  %v1186 = vsub.s32 3, %v1185
  %v1187 = vrot.slane %v49, %v1186
  %v1192 = vmul.f32 %v1162, %v1175
  %v1193 = vmul.f32 %v1163, %v1179
  %v1194 = vmul.f32 %v1164, %v1183
  %v1195 = vmul.f32 %v1170, %v1187
  %1196 = vset.pattern.permute.xlu0 16
  %1197 = vperm.xlu0 %1196, %v212
  %v1198 = vpop.permute.xlu0 %1197
  %v1200 = vmul.f32 %v1198, %v1192
  %v1201 = vmul.f32 %v1198, %v1193
  %v1202 = vmul.f32 %v1198, %v1194
  %v1203 = vmul.f32 %v1198, %v1195
  %v1204 = vadd.f32 %v1149, %v1200
  %v1205 = vadd.f32 %v1150, %v1201
  %v1206 = vadd.f32 %v1151, %v1202
  %v1207 = vadd.f32 %v1152, %v1203
  %1208 = vset.pattern.permute.xlu0 6
  %1209 = vperm.xlu0 %1208, %v211
  %v1210 = vpop.permute.xlu0 %1209
  %v1212 = vmul.f32 %v1210, %v1192
  %v1213 = vmul.f32 %v1210, %v1193
  %v1214 = vmul.f32 %v1210, %v1194
  %v1215 = vmul.f32 %v1210, %v1195
  %v1216 = vadd.f32 %v1039, %v1212
  %v1217 = vadd.f32 %v1040, %v1213
  %v1218 = vadd.f32 %v1041, %v1214
  %v1219 = vadd.f32 %v1042, %v1215
  %1220 = vrot.lane.b32.xlu0 %v29, 112
  %v1221 = vpop.permute.xlu0 %1220
  %1222 = vrot.lane.b32.xlu0 %v30, 112
  %v1223 = vpop.permute.xlu0 %1222
  %1224 = vrot.lane.b32.xlu0 %v31, 112
  %v1225 = vpop.permute.xlu0 %1224
  %1226 = vrot.lane.b32.xlu0 %v32, 112
  %v1227 = vpop.permute.xlu0 %1226
  %vm1228 = vcmask 916480
  %v1229 = vsel %vm1228, %v1221, %v1223
  %v1230 = vsel %vm1228, %v1223, %v1225
  %v1231 = vsel %vm1228, %v1225, %v1227
  %v1237 = vsel %vm1228, %v1227, %v1221
  %v1239 = vlaneseq
  %v1240 = vshrl.u32 %v1239, 7
  %v1241 = vsub.s32 0, %v1240
  %v1242 = vrot.slane %v50, %v1241
  %v1243 = vlaneseq
  %v1244 = vshrl.u32 %v1243, 7
  %v1245 = vsub.s32 1, %v1244
  %v1246 = vrot.slane %v50, %v1245
  %v1247 = vlaneseq
  %v1248 = vshrl.u32 %v1247, 7
  %v1249 = vsub.s32 2, %v1248
  %v1250 = vrot.slane %v50, %v1249
  %v1251 = vlaneseq
  %v1252 = vshrl.u32 %v1251, 7
  %v1253 = vsub.s32 3, %v1252
  %v1254 = vrot.slane %v50, %v1253
  %v1259 = vmul.f32 %v1229, %v1242
  %v1260 = vmul.f32 %v1230, %v1246
  %v1261 = vmul.f32 %v1231, %v1250
  %v1262 = vmul.f32 %v1237, %v1254
  %1263 = vset.pattern.permute.xlu0 17
  %1264 = vperm.xlu0 %1263, %v212
  %v1265 = vpop.permute.xlu0 %1264
  %v1267 = vmul.f32 %v1265, %v1259
  %v1268 = vmul.f32 %v1265, %v1260
  %v1269 = vmul.f32 %v1265, %v1261
  %v1270 = vmul.f32 %v1265, %v1262
  %v1271 = vadd.f32 %v1204, %v1267
  %v1272 = vadd.f32 %v1205, %v1268
  %v1273 = vadd.f32 %v1206, %v1269
  %v1274 = vadd.f32 %v1207, %v1270
  %1275 = vset.pattern.permute.xlu0 7
  %1276 = vperm.xlu0 %1275, %v211
  %v1277 = vpop.permute.xlu0 %1276
  %v1279 = vmul.f32 %v1277, %v1259
  %v1280 = vmul.f32 %v1277, %v1260
  %v1281 = vmul.f32 %v1277, %v1261
  %v1282 = vmul.f32 %v1277, %v1262
  %v1283 = vadd.f32 %v1216, %v1279
  %v1284 = vadd.f32 %v1217, %v1280
  %v1285 = vadd.f32 %v1218, %v1281
  %v1286 = vadd.f32 %v1219, %v1282
  %1287 = vrot.lane.b32.xlu0 %v29, 111
  %v1288 = vpop.permute.xlu0 %1287
  %1289 = vrot.lane.b32.xlu0 %v30, 111
  %v1290 = vpop.permute.xlu0 %1289
  %1291 = vrot.lane.b32.xlu0 %v31, 111
  %v1292 = vpop.permute.xlu0 %1291
  %1293 = vrot.lane.b32.xlu0 %v32, 111
  %v1294 = vpop.permute.xlu0 %1293
  %vm1295 = vcmask 908288
  %v1296 = vsel %vm1295, %v1288, %v1290
  %v1297 = vsel %vm1295, %v1290, %v1292
  %v1298 = vsel %vm1295, %v1292, %v1294
  %v1304 = vsel %vm1295, %v1294, %v1288
  %v1306 = vlaneseq
  %v1307 = vshrl.u32 %v1306, 7
  %v1308 = vsub.s32 0, %v1307
  %v1309 = vrot.slane %v51, %v1308
  %v1310 = vlaneseq
  %v1311 = vshrl.u32 %v1310, 7
  %v1312 = vsub.s32 1, %v1311
  %v1313 = vrot.slane %v51, %v1312
  %v1314 = vlaneseq
  %v1315 = vshrl.u32 %v1314, 7
  %v1316 = vsub.s32 2, %v1315
  %v1317 = vrot.slane %v51, %v1316
  %v1318 = vlaneseq
  %v1319 = vshrl.u32 %v1318, 7
  %v1320 = vsub.s32 3, %v1319
  %v1321 = vrot.slane %v51, %v1320
  %v1326 = vmul.f32 %v1296, %v1309
  %v1327 = vmul.f32 %v1297, %v1313
  %v1328 = vmul.f32 %v1298, %v1317
  %v1329 = vmul.f32 %v1304, %v1321
  %1330 = vset.pattern.permute.xlu0 18
  %1331 = vperm.xlu0 %1330, %v212
  %v1332 = vpop.permute.xlu0 %1331
  %v1334 = vmul.f32 %v1332, %v1326
  %v1335 = vmul.f32 %v1332, %v1327
  %v1336 = vmul.f32 %v1332, %v1328
  %v1337 = vmul.f32 %v1332, %v1329
  %v1338 = vadd.f32 %v1271, %v1334
  %v1339 = vadd.f32 %v1272, %v1335
  %v1340 = vadd.f32 %v1273, %v1336
  %v1341 = vadd.f32 %v1274, %v1337
  %1342 = vset.pattern.permute.xlu0 8
  %1343 = vperm.xlu0 %1342, %v211
  %v1344 = vpop.permute.xlu0 %1343
  %v1346 = vmul.f32 %v1344, %v1326
  %v1347 = vmul.f32 %v1344, %v1327
  %v1348 = vmul.f32 %v1344, %v1328
  %v1349 = vmul.f32 %v1344, %v1329
  %v1350 = vadd.f32 %v1283, %v1346
  %v1351 = vadd.f32 %v1284, %v1347
  %v1352 = vadd.f32 %v1285, %v1348
  %v1353 = vadd.f32 %v1286, %v1349
  %1354 = vrot.lane.b32.xlu0 %v29, 110
  %v1355 = vpop.permute.xlu0 %1354
  %1356 = vrot.lane.b32.xlu0 %v30, 110
  %v1357 = vpop.permute.xlu0 %1356
  %1358 = vrot.lane.b32.xlu0 %v31, 110
  %v1359 = vpop.permute.xlu0 %1358
  %1360 = vrot.lane.b32.xlu0 %v32, 110
  %v1361 = vpop.permute.xlu0 %1360
  %vm1362 = vcmask 900096
  %v1363 = vsel %vm1362, %v1355, %v1357
  %v1364 = vsel %vm1362, %v1357, %v1359
  %v1365 = vsel %vm1362, %v1359, %v1361
  %v1371 = vsel %vm1362, %v1361, %v1355
  %v1373 = vlaneseq
  %v1374 = vshrl.u32 %v1373, 7
  %v1375 = vsub.s32 0, %v1374
  %v1376 = vrot.slane %v52, %v1375
  %v1377 = vlaneseq
  %v1378 = vshrl.u32 %v1377, 7
  %v1379 = vsub.s32 1, %v1378
  %v1380 = vrot.slane %v52, %v1379
  %v1381 = vlaneseq
  %v1382 = vshrl.u32 %v1381, 7
  %v1383 = vsub.s32 2, %v1382
  %v1384 = vrot.slane %v52, %v1383
  %v1385 = vlaneseq
  %v1386 = vshrl.u32 %v1385, 7
  %v1387 = vsub.s32 3, %v1386
  %v1388 = vrot.slane %v52, %v1387
  %v1393 = vmul.f32 %v1363, %v1376
  %v1394 = vmul.f32 %v1364, %v1380
  %v1395 = vmul.f32 %v1365, %v1384
  %v1396 = vmul.f32 %v1371, %v1388
  %1397 = vset.pattern.permute.xlu0 19
  %1398 = vperm.xlu0 %1397, %v212
  %v1399 = vpop.permute.xlu0 %1398
  %v1401 = vmul.f32 %v1399, %v1393
  %v1402 = vmul.f32 %v1399, %v1394
  %v1403 = vmul.f32 %v1399, %v1395
  %v1404 = vmul.f32 %v1399, %v1396
  %v1405 = vadd.f32 %v1338, %v1401
  %v1406 = vadd.f32 %v1339, %v1402
  %v1407 = vadd.f32 %v1340, %v1403
  %v1408 = vadd.f32 %v1341, %v1404
  %1409 = vrot.lane.b32.xlu0 %v29, 98
  %v1410 = vpop.permute.xlu0 %1409
  %1411 = vrot.lane.b32.xlu0 %v30, 98
  %v1412 = vpop.permute.xlu0 %1411
  %1413 = vrot.lane.b32.xlu0 %v31, 98
  %v1414 = vpop.permute.xlu0 %1413
  %1415 = vrot.lane.b32.xlu0 %v32, 98
  %v1416 = vpop.permute.xlu0 %1415
  %vm1417 = vcmask 801792
  %v1418 = vsel %vm1417, %v1410, %v1412
  %v1419 = vsel %vm1417, %v1412, %v1414
  %v1420 = vsel %vm1417, %v1414, %v1416
  %v1426 = vsel %vm1417, %v1416, %v1410
  %v1428 = vlaneseq
  %v1429 = vshrl.u32 %v1428, 7
  %v1430 = vsub.s32 0, %v1429
  %v1431 = vrot.slane %v53, %v1430
  %v1432 = vlaneseq
  %v1433 = vshrl.u32 %v1432, 7
  %v1434 = vsub.s32 1, %v1433
  %v1435 = vrot.slane %v53, %v1434
  %v1436 = vlaneseq
  %v1437 = vshrl.u32 %v1436, 7
  %v1438 = vsub.s32 2, %v1437
  %v1439 = vrot.slane %v53, %v1438
  %v1440 = vlaneseq
  %v1441 = vshrl.u32 %v1440, 7
  %v1442 = vsub.s32 3, %v1441
  %v1443 = vrot.slane %v53, %v1442
  %v1448 = vmul.f32 %v1418, %v1431
  %v1449 = vmul.f32 %v1419, %v1435
  %v1450 = vmul.f32 %v1420, %v1439
  %v1451 = vmul.f32 %v1426, %v1443
  %1452 = vset.pattern.permute.xlu0 20
  %1453 = vperm.xlu0 %1452, %v212
  %v1454 = vpop.permute.xlu0 %1453
  %v1456 = vmul.f32 %v1454, %v1448
  %v1457 = vmul.f32 %v1454, %v1449
  %v1458 = vmul.f32 %v1454, %v1450
  %v1459 = vmul.f32 %v1454, %v1451
  %v1460 = vadd.f32 %v1405, %v1456
  %v1461 = vadd.f32 %v1406, %v1457
  %v1462 = vadd.f32 %v1407, %v1458
  %v1463 = vadd.f32 %v1408, %v1459
  %1464 = vrot.lane.b32.xlu0 %v29, 97
  %v1465 = vpop.permute.xlu0 %1464
  %1466 = vrot.lane.b32.xlu0 %v30, 97
  %v1467 = vpop.permute.xlu0 %1466
  %1468 = vrot.lane.b32.xlu0 %v31, 97
  %v1469 = vpop.permute.xlu0 %1468
  %1470 = vrot.lane.b32.xlu0 %v32, 97
  %v1471 = vpop.permute.xlu0 %1470
  %vm1472 = vcmask 793600
  %v1473 = vsel %vm1472, %v1465, %v1467
  %v1474 = vsel %vm1472, %v1467, %v1469
  %v1475 = vsel %vm1472, %v1469, %v1471
  %v1481 = vsel %vm1472, %v1471, %v1465
  %v1483 = vlaneseq
  %v1484 = vshrl.u32 %v1483, 7
  %v1485 = vsub.s32 0, %v1484
  %v1486 = vrot.slane %v54, %v1485
  %v1487 = vlaneseq
  %v1488 = vshrl.u32 %v1487, 7
  %v1489 = vsub.s32 1, %v1488
  %v1490 = vrot.slane %v54, %v1489
  %v1491 = vlaneseq
  %v1492 = vshrl.u32 %v1491, 7
  %v1493 = vsub.s32 2, %v1492
  %v1494 = vrot.slane %v54, %v1493
  %v1495 = vlaneseq
  %v1496 = vshrl.u32 %v1495, 7
  %v1497 = vsub.s32 3, %v1496
  %v1498 = vrot.slane %v54, %v1497
  %v1503 = vmul.f32 %v1473, %v1486
  %v1504 = vmul.f32 %v1474, %v1490
  %v1505 = vmul.f32 %v1475, %v1494
  %v1506 = vmul.f32 %v1481, %v1498
  %1507 = vset.pattern.permute.xlu0 21
  %1508 = vperm.xlu0 %1507, %v212
  %v1509 = vpop.permute.xlu0 %1508
  %v1511 = vmul.f32 %v1509, %v1503
  %v1512 = vmul.f32 %v1509, %v1504
  %v1513 = vmul.f32 %v1509, %v1505
  %v1514 = vmul.f32 %v1509, %v1506
  %v1515 = vadd.f32 %v1460, %v1511
  %v1516 = vadd.f32 %v1461, %v1512
  %v1517 = vadd.f32 %v1462, %v1513
  %v1518 = vadd.f32 %v1463, %v1514
  %1519 = vrot.lane.b32.xlu0 %v29, 96
  %v1520 = vpop.permute.xlu0 %1519
  %1521 = vrot.lane.b32.xlu0 %v30, 96
  %v1522 = vpop.permute.xlu0 %1521
  %1523 = vrot.lane.b32.xlu0 %v31, 96
  %v1524 = vpop.permute.xlu0 %1523
  %1525 = vrot.lane.b32.xlu0 %v32, 96
  %v1526 = vpop.permute.xlu0 %1525
  %vm1527 = vcmask 785408
  %v1528 = vsel %vm1527, %v1520, %v1522
  %v1529 = vsel %vm1527, %v1522, %v1524
  %v1530 = vsel %vm1527, %v1524, %v1526
  %v1536 = vsel %vm1527, %v1526, %v1520
  %v1538 = vlaneseq
  %v1539 = vshrl.u32 %v1538, 7
  %v1540 = vsub.s32 0, %v1539
  %v1541 = vrot.slane %v55, %v1540
  %v1542 = vlaneseq
  %v1543 = vshrl.u32 %v1542, 7
  %v1544 = vsub.s32 1, %v1543
  %v1545 = vrot.slane %v55, %v1544
  %v1546 = vlaneseq
  %v1547 = vshrl.u32 %v1546, 7
  %v1548 = vsub.s32 2, %v1547
  %v1549 = vrot.slane %v55, %v1548
  %v1550 = vlaneseq
  %v1551 = vshrl.u32 %v1550, 7
  %v1552 = vsub.s32 3, %v1551
  %v1553 = vrot.slane %v55, %v1552
  %v1558 = vmul.f32 %v1528, %v1541
  %v1559 = vmul.f32 %v1529, %v1545
  %v1560 = vmul.f32 %v1530, %v1549
  %v1561 = vmul.f32 %v1536, %v1553
  %1562 = vset.pattern.permute.xlu0 22
  %1563 = vperm.xlu0 %1562, %v212
  %v1564 = vpop.permute.xlu0 %1563
  %v1566 = vmul.f32 %v1564, %v1558
  %v1567 = vmul.f32 %v1564, %v1559
  %v1568 = vmul.f32 %v1564, %v1560
  %v1569 = vmul.f32 %v1564, %v1561
  %v1570 = vadd.f32 %v1515, %v1566
  %v1571 = vadd.f32 %v1516, %v1567
  %v1572 = vadd.f32 %v1517, %v1568
  %v1573 = vadd.f32 %v1518, %v1569
  %1574 = vrot.lane.b32.xlu0 %v29, 95
  %v1575 = vpop.permute.xlu0 %1574
  %1576 = vrot.lane.b32.xlu0 %v30, 95
  %v1577 = vpop.permute.xlu0 %1576
  %1578 = vrot.lane.b32.xlu0 %v31, 95
  %v1579 = vpop.permute.xlu0 %1578
  %1580 = vrot.lane.b32.xlu0 %v32, 95
  %v1581 = vpop.permute.xlu0 %1580
  %vm1582 = vcmask 777216
  %v1583 = vsel %vm1582, %v1575, %v1577
  %v1584 = vsel %vm1582, %v1577, %v1579
  %v1585 = vsel %vm1582, %v1579, %v1581
  %v1591 = vsel %vm1582, %v1581, %v1575
  %v1593 = vlaneseq
  %v1594 = vshrl.u32 %v1593, 7
  %v1595 = vsub.s32 0, %v1594
  %v1596 = vrot.slane %v56, %v1595
  %v1597 = vlaneseq
  %v1598 = vshrl.u32 %v1597, 7
  %v1599 = vsub.s32 1, %v1598
  %v1600 = vrot.slane %v56, %v1599
  %v1601 = vlaneseq
  %v1602 = vshrl.u32 %v1601, 7
  %v1603 = vsub.s32 2, %v1602
  %v1604 = vrot.slane %v56, %v1603
  %v1605 = vlaneseq
  %v1606 = vshrl.u32 %v1605, 7
  %v1607 = vsub.s32 3, %v1606
  %v1608 = vrot.slane %v56, %v1607
  %v1613 = vmul.f32 %v1583, %v1596
  %v1614 = vmul.f32 %v1584, %v1600
  %v1615 = vmul.f32 %v1585, %v1604
  %v1616 = vmul.f32 %v1591, %v1608
  %1617 = vset.pattern.permute.xlu0 23
  %1618 = vperm.xlu0 %1617, %v212
  %v1619 = vpop.permute.xlu0 %1618
  %v1621 = vmul.f32 %v1619, %v1613
  %v1622 = vmul.f32 %v1619, %v1614
  %v1623 = vmul.f32 %v1619, %v1615
  %v1624 = vmul.f32 %v1619, %v1616
  %v1625 = vadd.f32 %v1570, %v1621
  %v1626 = vadd.f32 %v1571, %v1622
  %v1627 = vadd.f32 %v1572, %v1623
  %v1628 = vadd.f32 %v1573, %v1624
  %1629 = vrot.lane.b32.xlu0 %v29, 94
  %v1630 = vpop.permute.xlu0 %1629
  %1631 = vrot.lane.b32.xlu0 %v30, 94
  %v1632 = vpop.permute.xlu0 %1631
  %1633 = vrot.lane.b32.xlu0 %v31, 94
  %v1634 = vpop.permute.xlu0 %1633
  %1635 = vrot.lane.b32.xlu0 %v32, 94
  %v1636 = vpop.permute.xlu0 %1635
  %vm1637 = vcmask 769024
  %v1638 = vsel %vm1637, %v1630, %v1632
  %v1639 = vsel %vm1637, %v1632, %v1634
  %v1640 = vsel %vm1637, %v1634, %v1636
  %v1646 = vsel %vm1637, %v1636, %v1630
  %v1648 = vlaneseq
  %v1649 = vshrl.u32 %v1648, 7
  %v1650 = vsub.s32 0, %v1649
  %v1651 = vrot.slane %v57, %v1650
  %v1652 = vlaneseq
  %v1653 = vshrl.u32 %v1652, 7
  %v1654 = vsub.s32 1, %v1653
  %v1655 = vrot.slane %v57, %v1654
  %v1656 = vlaneseq
  %v1657 = vshrl.u32 %v1656, 7
  %v1658 = vsub.s32 2, %v1657
  %v1659 = vrot.slane %v57, %v1658
  %v1660 = vlaneseq
  %v1661 = vshrl.u32 %v1660, 7
  %v1662 = vsub.s32 3, %v1661
  %v1663 = vrot.slane %v57, %v1662
  %v1668 = vmul.f32 %v1638, %v1651
  %v1669 = vmul.f32 %v1639, %v1655
  %v1670 = vmul.f32 %v1640, %v1659
  %v1671 = vmul.f32 %v1646, %v1663
  %1672 = vset.pattern.permute.xlu0 24
  %1673 = vperm.xlu0 %1672, %v212
  %v1674 = vpop.permute.xlu0 %1673
  %v1676 = vmul.f32 %v1674, %v1668
  %v1677 = vmul.f32 %v1674, %v1669
  %v1678 = vmul.f32 %v1674, %v1670
  %v1679 = vmul.f32 %v1674, %v1671
  %v1680 = vadd.f32 %v1625, %v1676
  %v1681 = vadd.f32 %v1626, %v1677
  %v1682 = vadd.f32 %v1627, %v1678
  %v1683 = vadd.f32 %v1628, %v1679
  %v1684 = vld [vmem:[%s4] sm:$0xff]
  %v1686 = vsel %vm65, %v1684, 0
  %1688 = vmatprep.subr.mxu0 0.0
  %1689 = vmatpush1.msra.mxu0 0.0
  %1690 = vmatprep.subr.mxu0 0.0
  %1691 = vmatpush1.msra.mxu0 0.0
  %1692 = vmatprep.subr.mxu0 0.0
  %1693 = vmatpush1.msra.mxu0 0.0
  %1694 = vmatprep.subr.mxu0 0.0
  %1695 = vmatpush1.msra.mxu0 0.0
  %1696 = vmatprep.subr.mxu0 0.0
  %1697 = vmatpush1.msra.mxu0 0.0
  %1698 = vmatprep.subr.mxu0 0.0
  %1699 = vmatpush1.msra.mxu0 0.0
  %1700 = vmatprep.subr.mxu0 0.0
  %1701 = vmatpush1.msra.mxu0 0.0
  %1702 = vmatprep.subr.mxu0 0.0
  %1703 = vmatpush1.msra.mxu0 0.0
  %1704 = vmatprep.subr.mxu0 0.0
  %1705 = vmatpush1.msra.mxu0 0.0
  %1706 = vmatprep.subr.mxu0 0.0
  %1707 = vmatpush1.msra.mxu0 0.0
  %1708 = vmatprep.subr.mxu0 0.0
  %1709 = vmatpush1.msra.mxu0 0.0
  %1710 = vmatprep.subr.mxu0 0.0
  %1711 = vmatpush1.msra.mxu0 0.0
  %1712 = vmatprep.subr.mxu0 0.0
  %1713 = vmatpush1.msra.mxu0 0.0
  %1714 = vmatprep.subr.mxu0 0.0
  %1715 = vmatpush1.msra.mxu0 0.0
  %1716 = vmatprep.subr.mxu0 0.0
  %1717 = vmatpush1.msra.mxu0 0.0
  %1718 = vmatprep.subr.mxu0 %v1351
  %1719 = vmatpush1.msra.mxu0 %v1350
  %1720 = vmatprep.subr.mxu0 0.0
  %1721 = vmatpush2.msra.mxu0 0.0
  %1722 = vmatprep.subr.mxu0 0.0
  %1723 = vmatpush2.msra.mxu0 0.0
  %1724 = vmatprep.subr.mxu0 0.0
  %1725 = vmatpush2.msra.mxu0 0.0
  %1726 = vmatprep.subr.mxu0 0.0
  %1727 = vmatpush2.msra.mxu0 0.0
  %1728 = vmatprep.subr.mxu0 0.0
  %1729 = vmatpush2.msra.mxu0 0.0
  %1730 = vmatprep.subr.mxu0 0.0
  %1731 = vmatpush2.msra.mxu0 0.0
  %1732 = vmatprep.subr.mxu0 0.0
  %1733 = vmatpush2.msra.mxu0 0.0
  %1734 = vmatprep.subr.mxu0 0.0
  %1735 = vmatpush2.msra.mxu0 0.0
  %1736 = vmatprep.subr.mxu0 0.0
  %1737 = vmatpush2.msra.mxu0 0.0
  %1738 = vmatprep.subr.mxu0 0.0
  %1739 = vmatpush2.msra.mxu0 0.0
  %1740 = vmatprep.subr.mxu0 0.0
  %1741 = vmatpush2.msra.mxu0 0.0
  %1742 = vmatprep.subr.mxu0 0.0
  %1743 = vmatpush2.msra.mxu0 0.0
  %1744 = vmatprep.subr.mxu0 0.0
  %1745 = vmatpush2.msra.mxu0 0.0
  %1746 = vmatprep.subr.mxu0 0.0
  %1747 = vmatpush2.msra.mxu0 0.0
  %1748 = vmatprep.subr.mxu0 0.0
  %1749 = vmatpush2.msra.mxu0 0.0
  %1750 = vmatprep.subr.mxu0 0.0
  %1751 = vmatpush2.msra.mxu0 0.0
  %1752 = vmatprep.mubr.f32.mxu0 0.0
  %1753 = vmatmul.mubr.f32.gmra.mxu0 %v1686
  %v1754 = vpop.f32.mrf.mxu0
  %v1755 = vadd.f32 0.0, %v1754
  %v1756 = vpop.f32.mrf.mxu0
  %v1757 = vadd.f32 0.0, %v1756
  %1758 = vdwg.mxu0
  %1759 = vmatprep.subr.mxu0 0.0
  %1760 = vmatpush1.msra.mxu0 0.0
  %1761 = vmatprep.subr.mxu0 0.0
  %1762 = vmatpush1.msra.mxu0 0.0
  %1763 = vmatprep.subr.mxu0 0.0
  %1764 = vmatpush1.msra.mxu0 0.0
  %1765 = vmatprep.subr.mxu0 0.0
  %1766 = vmatpush1.msra.mxu0 0.0
  %1767 = vmatprep.subr.mxu0 0.0
  %1768 = vmatpush1.msra.mxu0 0.0
  %1769 = vmatprep.subr.mxu0 0.0
  %1770 = vmatpush1.msra.mxu0 0.0
  %1771 = vmatprep.subr.mxu0 0.0
  %1772 = vmatpush1.msra.mxu0 0.0
  %1773 = vmatprep.subr.mxu0 0.0
  %1774 = vmatpush1.msra.mxu0 0.0
  %1775 = vmatprep.subr.mxu0 0.0
  %1776 = vmatpush1.msra.mxu0 0.0
  %1777 = vmatprep.subr.mxu0 0.0
  %1778 = vmatpush1.msra.mxu0 0.0
  %1779 = vmatprep.subr.mxu0 0.0
  %1780 = vmatpush1.msra.mxu0 0.0
  %1781 = vmatprep.subr.mxu0 0.0
  %1782 = vmatpush1.msra.mxu0 0.0
  %1783 = vmatprep.subr.mxu0 0.0
  %1784 = vmatpush1.msra.mxu0 0.0
  %1785 = vmatprep.subr.mxu0 0.0
  %1786 = vmatpush1.msra.mxu0 0.0
  %1787 = vmatprep.subr.mxu0 0.0
  %1788 = vmatpush1.msra.mxu0 0.0
  %1789 = vmatprep.subr.mxu0 %v1353
  %1790 = vmatpush1.msra.mxu0 %v1352
  %1791 = vmatprep.subr.mxu0 0.0
  %1792 = vmatpush2.msra.mxu0 0.0
  %1793 = vmatprep.subr.mxu0 0.0
  %1794 = vmatpush2.msra.mxu0 0.0
  %1795 = vmatprep.subr.mxu0 0.0
  %1796 = vmatpush2.msra.mxu0 0.0
  %1797 = vmatprep.subr.mxu0 0.0
  %1798 = vmatpush2.msra.mxu0 0.0
  %1799 = vmatprep.subr.mxu0 0.0
  %1800 = vmatpush2.msra.mxu0 0.0
  %1801 = vmatprep.subr.mxu0 0.0
  %1802 = vmatpush2.msra.mxu0 0.0
  %1803 = vmatprep.subr.mxu0 0.0
  %1804 = vmatpush2.msra.mxu0 0.0
  %1805 = vmatprep.subr.mxu0 0.0
  %1806 = vmatpush2.msra.mxu0 0.0
  %1807 = vmatprep.subr.mxu0 0.0
  %1808 = vmatpush2.msra.mxu0 0.0
  %1809 = vmatprep.subr.mxu0 0.0
  %1810 = vmatpush2.msra.mxu0 0.0
  %1811 = vmatprep.subr.mxu0 0.0
  %1812 = vmatpush2.msra.mxu0 0.0
  %1813 = vmatprep.subr.mxu0 0.0
  %1814 = vmatpush2.msra.mxu0 0.0
  %1815 = vmatprep.subr.mxu0 0.0
  %1816 = vmatpush2.msra.mxu0 0.0
  %1817 = vmatprep.subr.mxu0 0.0
  %1818 = vmatpush2.msra.mxu0 0.0
  %1819 = vmatprep.subr.mxu0 0.0
  %1820 = vmatpush2.msra.mxu0 0.0
  %1821 = vmatprep.subr.mxu0 0.0
  %1822 = vmatpush2.msra.mxu0 0.0
  %1823 = vmatprep.mubr.f32.mxu0 0.0
  %1824 = vmatmul.mubr.f32.gmra.mxu0 %v1686
  %v1825 = vpop.f32.mrf.mxu0
  %v1826 = vadd.f32 0.0, %v1825
  %v1827 = vpop.f32.mrf.mxu0
  %v1828 = vadd.f32 0.0, %v1827
  %1829 = vdwg.mxu0
  %v1830 = vadd.f32 %v136, %v1755
  %v1831 = vadd.f32 %v138, %v1757
  %v1832 = vadd.f32 %v207, %v1826
  %v1833 = vadd.f32 %v209, %v1828
  %v1834 = vld [vmem:[%s6] sm:$0xff]
  %v1836 = vsel %vm65, %v1834, 0
  %1838 = vmatprep.subr.mxu0 0.0
  %1839 = vmatpush1.msra.mxu0 0.0
  %1840 = vmatprep.subr.mxu0 0.0
  %1841 = vmatpush1.msra.mxu0 0.0
  %1842 = vmatprep.subr.mxu0 0.0
  %1843 = vmatpush1.msra.mxu0 0.0
  %1844 = vmatprep.subr.mxu0 0.0
  %1845 = vmatpush1.msra.mxu0 0.0
  %1846 = vmatprep.subr.mxu0 0.0
  %1847 = vmatpush1.msra.mxu0 0.0
  %1848 = vmatprep.subr.mxu0 0.0
  %1849 = vmatpush1.msra.mxu0 0.0
  %1850 = vmatprep.subr.mxu0 0.0
  %1851 = vmatpush1.msra.mxu0 0.0
  %1852 = vmatprep.subr.mxu0 0.0
  %1853 = vmatpush1.msra.mxu0 0.0
  %1854 = vmatprep.subr.mxu0 0.0
  %1855 = vmatpush1.msra.mxu0 0.0
  %1856 = vmatprep.subr.mxu0 0.0
  %1857 = vmatpush1.msra.mxu0 0.0
  %1858 = vmatprep.subr.mxu0 0.0
  %1859 = vmatpush1.msra.mxu0 0.0
  %1860 = vmatprep.subr.mxu0 0.0
  %1861 = vmatpush1.msra.mxu0 0.0
  %1862 = vmatprep.subr.mxu0 0.0
  %1863 = vmatpush1.msra.mxu0 0.0
  %1864 = vmatprep.subr.mxu0 0.0
  %1865 = vmatpush1.msra.mxu0 0.0
  %1866 = vmatprep.subr.mxu0 0.0
  %1867 = vmatpush1.msra.mxu0 0.0
  %1868 = vmatprep.subr.mxu0 %v1681
  %1869 = vmatpush1.msra.mxu0 %v1680
  %1870 = vmatprep.subr.mxu0 0.0
  %1871 = vmatpush2.msra.mxu0 0.0
  %1872 = vmatprep.subr.mxu0 0.0
  %1873 = vmatpush2.msra.mxu0 0.0
  %1874 = vmatprep.subr.mxu0 0.0
  %1875 = vmatpush2.msra.mxu0 0.0
  %1876 = vmatprep.subr.mxu0 0.0
  %1877 = vmatpush2.msra.mxu0 0.0
  %1878 = vmatprep.subr.mxu0 0.0
  %1879 = vmatpush2.msra.mxu0 0.0
  %1880 = vmatprep.subr.mxu0 0.0
  %1881 = vmatpush2.msra.mxu0 0.0
  %1882 = vmatprep.subr.mxu0 0.0
  %1883 = vmatpush2.msra.mxu0 0.0
  %1884 = vmatprep.subr.mxu0 0.0
  %1885 = vmatpush2.msra.mxu0 0.0
  %1886 = vmatprep.subr.mxu0 0.0
  %1887 = vmatpush2.msra.mxu0 0.0
  %1888 = vmatprep.subr.mxu0 0.0
  %1889 = vmatpush2.msra.mxu0 0.0
  %1890 = vmatprep.subr.mxu0 0.0
  %1891 = vmatpush2.msra.mxu0 0.0
  %1892 = vmatprep.subr.mxu0 0.0
  %1893 = vmatpush2.msra.mxu0 0.0
  %1894 = vmatprep.subr.mxu0 0.0
  %1895 = vmatpush2.msra.mxu0 0.0
  %1896 = vmatprep.subr.mxu0 0.0
  %1897 = vmatpush2.msra.mxu0 0.0
  %1898 = vmatprep.subr.mxu0 0.0
  %1899 = vmatpush2.msra.mxu0 0.0
  %1900 = vmatprep.subr.mxu0 0.0
  %1901 = vmatpush2.msra.mxu0 0.0
  %1902 = vmatprep.mubr.f32.mxu0 0.0
  %1903 = vmatmul.mubr.f32.gmra.mxu0 %v1836
  %v1904 = vpop.f32.mrf.mxu0
  %v1905 = vadd.f32 0.0, %v1904
  %v1906 = vpop.f32.mrf.mxu0
  %v1907 = vadd.f32 0.0, %v1906
  %1908 = vdwg.mxu0
  %1909 = vmatprep.subr.mxu0 0.0
  %1910 = vmatpush1.msra.mxu0 0.0
  %1911 = vmatprep.subr.mxu0 0.0
  %1912 = vmatpush1.msra.mxu0 0.0
  %1913 = vmatprep.subr.mxu0 0.0
  %1914 = vmatpush1.msra.mxu0 0.0
  %1915 = vmatprep.subr.mxu0 0.0
  %1916 = vmatpush1.msra.mxu0 0.0
  %1917 = vmatprep.subr.mxu0 0.0
  %1918 = vmatpush1.msra.mxu0 0.0
  %1919 = vmatprep.subr.mxu0 0.0
  %1920 = vmatpush1.msra.mxu0 0.0
  %1921 = vmatprep.subr.mxu0 0.0
  %1922 = vmatpush1.msra.mxu0 0.0
  %1923 = vmatprep.subr.mxu0 0.0
  %1924 = vmatpush1.msra.mxu0 0.0
  %1925 = vmatprep.subr.mxu0 0.0
  %1926 = vmatpush1.msra.mxu0 0.0
  %1927 = vmatprep.subr.mxu0 0.0
  %1928 = vmatpush1.msra.mxu0 0.0
  %1929 = vmatprep.subr.mxu0 0.0
  %1930 = vmatpush1.msra.mxu0 0.0
  %1931 = vmatprep.subr.mxu0 0.0
  %1932 = vmatpush1.msra.mxu0 0.0
  %1933 = vmatprep.subr.mxu0 0.0
  %1934 = vmatpush1.msra.mxu0 0.0
  %1935 = vmatprep.subr.mxu0 0.0
  %1936 = vmatpush1.msra.mxu0 0.0
  %1937 = vmatprep.subr.mxu0 0.0
  %1938 = vmatpush1.msra.mxu0 0.0
  %1939 = vmatprep.subr.mxu0 %v1683
  %1940 = vmatpush1.msra.mxu0 %v1682
  %1941 = vmatprep.subr.mxu0 0.0
  %1942 = vmatpush2.msra.mxu0 0.0
  %1943 = vmatprep.subr.mxu0 0.0
  %1944 = vmatpush2.msra.mxu0 0.0
  %1945 = vmatprep.subr.mxu0 0.0
  %1946 = vmatpush2.msra.mxu0 0.0
  %1947 = vmatprep.subr.mxu0 0.0
  %1948 = vmatpush2.msra.mxu0 0.0
  %1949 = vmatprep.subr.mxu0 0.0
  %1950 = vmatpush2.msra.mxu0 0.0
  %1951 = vmatprep.subr.mxu0 0.0
  %1952 = vmatpush2.msra.mxu0 0.0
  %1953 = vmatprep.subr.mxu0 0.0
  %1954 = vmatpush2.msra.mxu0 0.0
  %1955 = vmatprep.subr.mxu0 0.0
  %1956 = vmatpush2.msra.mxu0 0.0
  %1957 = vmatprep.subr.mxu0 0.0
  %1958 = vmatpush2.msra.mxu0 0.0
  %1959 = vmatprep.subr.mxu0 0.0
  %1960 = vmatpush2.msra.mxu0 0.0
  %1961 = vmatprep.subr.mxu0 0.0
  %1962 = vmatpush2.msra.mxu0 0.0
  %1963 = vmatprep.subr.mxu0 0.0
  %1964 = vmatpush2.msra.mxu0 0.0
  %1965 = vmatprep.subr.mxu0 0.0
  %1966 = vmatpush2.msra.mxu0 0.0
  %1967 = vmatprep.subr.mxu0 0.0
  %1968 = vmatpush2.msra.mxu0 0.0
  %1969 = vmatprep.subr.mxu0 0.0
  %1970 = vmatpush2.msra.mxu0 0.0
  %1971 = vmatprep.subr.mxu0 0.0
  %1972 = vmatpush2.msra.mxu0 0.0
  %1973 = vmatprep.mubr.f32.mxu0 0.0
  %1974 = vmatmul.mubr.f32.gmra.mxu0 %v1836
  %v1975 = vpop.f32.mrf.mxu0
  %v1976 = vadd.f32 0.0, %v1975
  %v1977 = vpop.f32.mrf.mxu0
  %v1978 = vadd.f32 0.0, %v1977
  %1979 = vdwg.mxu0
  %v1980 = vadd.f32 %v1830, %v1905
  %v1981 = vadd.f32 %v1831, %v1907
  %v1982 = vadd.f32 %v1832, %v1976
  %v1983 = vadd.f32 %v1833, %v1978
  %v1984 = vadd.f32 %v1980, %v29
  %v1985 = vadd.f32 %v1981, %v30
  %v1986 = vadd.f32 %v1982, %v31
  %v1987 = vadd.f32 %v1983, %v32
  %vm1988 = vcmp.ge.f32.partialorder %v1984, 0.0
  %vm1989 = vcmp.ge.f32.partialorder %v1985, 0.0
  %vm1990 = vcmp.ge.f32.partialorder %v1986, 0.0
  %vm1991 = vcmp.ge.f32.partialorder %v1987, 0.0
  %v1992 = vmul.f32 %v1984, 0.05
  %v1993 = vmul.f32 %v1985, 0.05
  %v1994 = vmul.f32 %v1986, 0.05
  %v1995 = vmul.f32 %v1987, 0.05
  %v1996 = vsel %vm1988, %v1984, %v1992
  %v1997 = vsel %vm1989, %v1985, %v1993
  %v1998 = vsel %vm1990, %v1986, %v1994
  %v1999 = vsel %vm1991, %v1987, %v1995
  %2000 = vst [vmem:[%s8] sm:$0xff] %v1996
  %2001 = vst [vmem:[%s8 + $0x8] sm:$0xff] %v1997
  %2002 = vst [vmem:[%s8 + $0x10] sm:$0xff] %v1998
  %2003 = vst [vmem:[%s8 + $0x18] sm:$0xff] %v1999
  // Predicated region
  $region34: #{m_rfdb_forward.12} parent=0 // pred_check
    _
  $region35: #{m_rfdb_forward.12} parent=0 // pred_check_branch
    %2005 = sbr.rel (0) target = $region37
  $region36: #{m_rfdb_forward.12} parent=0 // pred_region
    _
  $region37: #{m_rfdb_forward.12} parent=0 // pred_fallthru
    _
  // Predicated region
  $region38: #{m_rfdb_forward.12} parent=0 // pred_check
    _
  $region39: #{m_rfdb_forward.12} parent=0 // pred_check_branch
    %2007 = sbr.rel (0) target = $region41
  $region40: #{m_rfdb_forward.12} parent=0 // pred_region
    _
  $region41: #{m_rfdb_forward.12} parent=0 // pred_fallthru
    _

// kernel: m_rfdb_forward.17
$region0: #{m_rfdb_forward.17}
  #allocation0 [shape = 'u32[]', space=smem, size = 0x4, offset = 0x4, fixed_abs, tag = 'smem constant byte address 0x4 - core index']
  #allocation1 [shape = 'u32[144,128]{1,0:T(1,128)}', space=vmem, size = 0x12000, scoped, tag = 'internal scratch']
  %s0 = inlined_call_operand.vmem [shape: f32[8,512], index: 0, kind: input, shape index: {}]
  %s1 = inlined_call_operand.vmem [shape: f32[25,1,512], index: 1, kind: input, shape index: {}]
  %s2 = inlined_call_operand.vmem [shape: f32[4,8], index: 2, kind: input, shape index: {}]
  %s3 = inlined_call_operand.vmem [shape: f32[8,9], index: 3, kind: input, shape index: {}]
  %s4 = inlined_call_operand.vmem [shape: f32[4,8], index: 4, kind: input, shape index: {}]
  %s5 = inlined_call_operand.vmem [shape: f32[8,25], index: 5, kind: input, shape index: {}]
  %s6 = inlined_call_operand.vmem [shape: f32[4,8], index: 6, kind: input, shape index: {}]
  %s7 = inlined_call_operand.vmem [shape: f32[4,1], index: 7, kind: input, shape index: {}]
  %s8 = inlined_call_operand.vmem [shape: f32[4,512], index: 8, kind: output, shape index: {}]
  %s9 = sld [smem:[#allocation0]]
  $region42: #{m_rfdb_forward.17} parent=0
    _
  %s11 = ssub.s32 1, %s9
  %s12 = scalar_select 0, %s11, %s9
  // Predicated region
  $region2: #{m_rfdb_forward.17} parent=0 // pred_check
    _
  $region3: #{m_rfdb_forward.17} parent=0 // pred_check_branch
    %14 = sbr.rel (0) target = $region5
  $region4: #{m_rfdb_forward.17} parent=0 // pred_region
    _
  $region5: #{m_rfdb_forward.17} parent=0 // pred_fallthru
    _
  // Predicated region
  $region6: #{m_rfdb_forward.17} parent=0 // pred_check
    _
  $region7: #{m_rfdb_forward.17} parent=0 // pred_check_branch
    %16 = sbr.rel (0) target = $region9
  $region8: #{m_rfdb_forward.17} parent=0 // pred_region
    _
  $region9: #{m_rfdb_forward.17} parent=0 // pred_fallthru
    _
  // Predicated region
  $region10: #{m_rfdb_forward.17} parent=0 // pred_check
    _
  $region11: #{m_rfdb_forward.17} parent=0 // pred_check_branch
    %18 = sbr.rel (0) target = $region13
  $region12: #{m_rfdb_forward.17} parent=0 // pred_region
    _
  $region13: #{m_rfdb_forward.17} parent=0 // pred_fallthru
    _
  // Predicated region
  $region14: #{m_rfdb_forward.17} parent=0 // pred_check
    _
  $region15: #{m_rfdb_forward.17} parent=0 // pred_check_branch
    %20 = sbr.rel (0) target = $region17
  $region16: #{m_rfdb_forward.17} parent=0 // pred_region
    _
  $region17: #{m_rfdb_forward.17} parent=0 // pred_fallthru
    _
  // Predicated region
  $region18: #{m_rfdb_forward.17} parent=0 // pred_check
    _
  $region19: #{m_rfdb_forward.17} parent=0 // pred_check_branch
    %22 = sbr.rel (0) target = $region21
  $region20: #{m_rfdb_forward.17} parent=0 // pred_region
    _
  $region21: #{m_rfdb_forward.17} parent=0 // pred_fallthru
    _
  // Predicated region
  $region22: #{m_rfdb_forward.17} parent=0 // pred_check
    _
  $region23: #{m_rfdb_forward.17} parent=0 // pred_check_branch
    %24 = sbr.rel (0) target = $region25
  $region24: #{m_rfdb_forward.17} parent=0 // pred_region
    _
  $region25: #{m_rfdb_forward.17} parent=0 // pred_fallthru
    _
  // Predicated region
  $region26: #{m_rfdb_forward.17} parent=0 // pred_check
    _
  $region27: #{m_rfdb_forward.17} parent=0 // pred_check_branch
    %26 = sbr.rel (0) target = $region29
  $region28: #{m_rfdb_forward.17} parent=0 // pred_region
    _
  $region29: #{m_rfdb_forward.17} parent=0 // pred_fallthru
    _
  // Predicated region
  $region30: #{m_rfdb_forward.17} parent=0 // pred_check
    _
  $region31: #{m_rfdb_forward.17} parent=0 // pred_check_branch
    %28 = sbr.rel (0) target = $region33
  $region32: #{m_rfdb_forward.17} parent=0 // pred_region
    _
  $region33: #{m_rfdb_forward.17} parent=0 // pred_fallthru
    _
  %v29 = vld [vmem:[%s0] sm:$0xff]
  %v30 = vld [vmem:[%s0 + $0x8] sm:$0xff]
  %v31 = vld [vmem:[%s0 + $0x10] sm:$0xff]
  %v32 = vld [vmem:[%s0 + $0x18] sm:$0xff]
  %v33 = vld [vmem:[%s1] sm:$0xf]
  %v34 = vld [vmem:[%s1 + $0x4] sm:$0xf]
  %v35 = vld [vmem:[%s1 + $0x8] sm:$0xf]
  %v36 = vld [vmem:[%s1 + $0xc] sm:$0xf]
  %v37 = vld [vmem:[%s1 + $0x10] sm:$0xf]
  %v38 = vld [vmem:[%s1 + $0x14] sm:$0xf]
  %v39 = vld [vmem:[%s1 + $0x18] sm:$0xf]
  %v40 = vld [vmem:[%s1 + $0x1c] sm:$0xf]
  %v41 = vld [vmem:[%s1 + $0x20] sm:$0xf]
  %v42 = vld [vmem:[%s1 + $0x24] sm:$0xf]
  %v43 = vld [vmem:[%s1 + $0x28] sm:$0xf]
  %v44 = vld [vmem:[%s1 + $0x2c] sm:$0xf]
  %v45 = vld [vmem:[%s1 + $0x30] sm:$0xf]
  %v46 = vld [vmem:[%s1 + $0x34] sm:$0xf]
  %v47 = vld [vmem:[%s1 + $0x38] sm:$0xf]
  %v48 = vld [vmem:[%s1 + $0x3c] sm:$0xf]
  %v49 = vld [vmem:[%s1 + $0x40] sm:$0xf]
  %v50 = vld [vmem:[%s1 + $0x44] sm:$0xf]
  %v51 = vld [vmem:[%s1 + $0x48] sm:$0xf]
  %v52 = vld [vmem:[%s1 + $0x4c] sm:$0xf]
  %v53 = vld [vmem:[%s1 + $0x50] sm:$0xf]
  %v54 = vld [vmem:[%s1 + $0x54] sm:$0xf]
  %v55 = vld [vmem:[%s1 + $0x58] sm:$0xf]
  %v56 = vld [vmem:[%s1 + $0x5c] sm:$0xf]
  %v57 = vld [vmem:[%s1 + $0x60] sm:$0xf]
  %v58 = vld [vmem:[%s2] sm:$0xf]
  %v59 = vld [vmem:[%s7] sm:$0xf]
  %61 = vset.pattern.permute.xlu0 0
  %62 = vperm.xlu0 %61, %v59
  %v63 = vpop.permute.xlu0 %62
  %vm65 = vcmask 64512
  %v67 = vsel %vm65, %v58, 0
  %69 = vmatprep.subr.mxu0 0.0
  %70 = vmatpush1.msra.mxu0 0.0
  %71 = vmatprep.subr.mxu0 0.0
  %72 = vmatpush1.msra.mxu0 0.0
  %73 = vmatprep.subr.mxu0 0.0
  %74 = vmatpush1.msra.mxu0 0.0
  %75 = vmatprep.subr.mxu0 0.0
  %76 = vmatpush1.msra.mxu0 0.0
  %77 = vmatprep.subr.mxu0 0.0
  %78 = vmatpush1.msra.mxu0 0.0
  %79 = vmatprep.subr.mxu0 0.0
  %80 = vmatpush1.msra.mxu0 0.0
  %81 = vmatprep.subr.mxu0 0.0
  %82 = vmatpush1.msra.mxu0 0.0
  %83 = vmatprep.subr.mxu0 0.0
  %84 = vmatpush1.msra.mxu0 0.0
  %85 = vmatprep.subr.mxu0 0.0
  %86 = vmatpush1.msra.mxu0 0.0
  %87 = vmatprep.subr.mxu0 0.0
  %88 = vmatpush1.msra.mxu0 0.0
  %89 = vmatprep.subr.mxu0 0.0
  %90 = vmatpush1.msra.mxu0 0.0
  %91 = vmatprep.subr.mxu0 0.0
  %92 = vmatpush1.msra.mxu0 0.0
  %93 = vmatprep.subr.mxu0 0.0
  %94 = vmatpush1.msra.mxu0 0.0
  %95 = vmatprep.subr.mxu0 0.0
  %96 = vmatpush1.msra.mxu0 0.0
  %97 = vmatprep.subr.mxu0 0.0
  %98 = vmatpush1.msra.mxu0 0.0
  %99 = vmatprep.subr.mxu0 %v30
  %100 = vmatpush1.msra.mxu0 %v29
  %101 = vmatprep.subr.mxu0 0.0
  %102 = vmatpush2.msra.mxu0 0.0
  %103 = vmatprep.subr.mxu0 0.0
  %104 = vmatpush2.msra.mxu0 0.0
  %105 = vmatprep.subr.mxu0 0.0
  %106 = vmatpush2.msra.mxu0 0.0
  %107 = vmatprep.subr.mxu0 0.0
  %108 = vmatpush2.msra.mxu0 0.0
  %109 = vmatprep.subr.mxu0 0.0
  %110 = vmatpush2.msra.mxu0 0.0
  %111 = vmatprep.subr.mxu0 0.0
  %112 = vmatpush2.msra.mxu0 0.0
  %113 = vmatprep.subr.mxu0 0.0
  %114 = vmatpush2.msra.mxu0 0.0
  %115 = vmatprep.subr.mxu0 0.0
  %116 = vmatpush2.msra.mxu0 0.0
  %117 = vmatprep.subr.mxu0 0.0
  %118 = vmatpush2.msra.mxu0 0.0
  %119 = vmatprep.subr.mxu0 0.0
  %120 = vmatpush2.msra.mxu0 0.0
  %121 = vmatprep.subr.mxu0 0.0
  %122 = vmatpush2.msra.mxu0 0.0
  %123 = vmatprep.subr.mxu0 0.0
  %124 = vmatpush2.msra.mxu0 0.0
  %125 = vmatprep.subr.mxu0 0.0
  %126 = vmatpush2.msra.mxu0 0.0
  %127 = vmatprep.subr.mxu0 0.0
  %128 = vmatpush2.msra.mxu0 0.0
  %129 = vmatprep.subr.mxu0 0.0
  %130 = vmatpush2.msra.mxu0 0.0
  %131 = vmatprep.subr.mxu0 0.0
  %132 = vmatpush2.msra.mxu0 0.0
  %133 = vmatprep.mubr.f32.mxu0 0.0
  %134 = vmatmul.mubr.f32.gmra.mxu0 %v67
  %v135 = vpop.f32.mrf.mxu0
  %v136 = vadd.f32 %v63, %v135
  %v137 = vpop.f32.mrf.mxu0
  %v138 = vadd.f32 %v63, %v137
  %139 = vdwg.mxu0
  %140 = vmatprep.subr.mxu0 0.0
  %141 = vmatpush1.msra.mxu0 0.0
  %142 = vmatprep.subr.mxu0 0.0
  %143 = vmatpush1.msra.mxu0 0.0
  %144 = vmatprep.subr.mxu0 0.0
  %145 = vmatpush1.msra.mxu0 0.0
  %146 = vmatprep.subr.mxu0 0.0
  %147 = vmatpush1.msra.mxu0 0.0
  %148 = vmatprep.subr.mxu0 0.0
  %149 = vmatpush1.msra.mxu0 0.0
  %150 = vmatprep.subr.mxu0 0.0
  %151 = vmatpush1.msra.mxu0 0.0
  %152 = vmatprep.subr.mxu0 0.0
  %153 = vmatpush1.msra.mxu0 0.0
  %154 = vmatprep.subr.mxu0 0.0
  %155 = vmatpush1.msra.mxu0 0.0
  %156 = vmatprep.subr.mxu0 0.0
  %157 = vmatpush1.msra.mxu0 0.0
  %158 = vmatprep.subr.mxu0 0.0
  %159 = vmatpush1.msra.mxu0 0.0
  %160 = vmatprep.subr.mxu0 0.0
  %161 = vmatpush1.msra.mxu0 0.0
  %162 = vmatprep.subr.mxu0 0.0
  %163 = vmatpush1.msra.mxu0 0.0
  %164 = vmatprep.subr.mxu0 0.0
  %165 = vmatpush1.msra.mxu0 0.0
  %166 = vmatprep.subr.mxu0 0.0
  %167 = vmatpush1.msra.mxu0 0.0
  %168 = vmatprep.subr.mxu0 0.0
  %169 = vmatpush1.msra.mxu0 0.0
  %170 = vmatprep.subr.mxu0 %v32
  %171 = vmatpush1.msra.mxu0 %v31
  %172 = vmatprep.subr.mxu0 0.0
  %173 = vmatpush2.msra.mxu0 0.0
  %174 = vmatprep.subr.mxu0 0.0
  %175 = vmatpush2.msra.mxu0 0.0
  %176 = vmatprep.subr.mxu0 0.0
  %177 = vmatpush2.msra.mxu0 0.0
  %178 = vmatprep.subr.mxu0 0.0
  %179 = vmatpush2.msra.mxu0 0.0
  %180 = vmatprep.subr.mxu0 0.0
  %181 = vmatpush2.msra.mxu0 0.0
  %182 = vmatprep.subr.mxu0 0.0
  %183 = vmatpush2.msra.mxu0 0.0
  %184 = vmatprep.subr.mxu0 0.0
  %185 = vmatpush2.msra.mxu0 0.0
  %186 = vmatprep.subr.mxu0 0.0
  %187 = vmatpush2.msra.mxu0 0.0
  %188 = vmatprep.subr.mxu0 0.0
  %189 = vmatpush2.msra.mxu0 0.0
  %190 = vmatprep.subr.mxu0 0.0
  %191 = vmatpush2.msra.mxu0 0.0
  %192 = vmatprep.subr.mxu0 0.0
  %193 = vmatpush2.msra.mxu0 0.0
  %194 = vmatprep.subr.mxu0 0.0
  %195 = vmatpush2.msra.mxu0 0.0
  %196 = vmatprep.subr.mxu0 0.0
  %197 = vmatpush2.msra.mxu0 0.0
  %198 = vmatprep.subr.mxu0 0.0
  %199 = vmatpush2.msra.mxu0 0.0
  %200 = vmatprep.subr.mxu0 0.0
  %201 = vmatpush2.msra.mxu0 0.0
  %202 = vmatprep.subr.mxu0 0.0
  %203 = vmatpush2.msra.mxu0 0.0
  %204 = vmatprep.mubr.f32.mxu0 0.0
  %205 = vmatmul.mubr.f32.gmra.mxu0 %v67
  %v206 = vpop.f32.mrf.mxu0
  %v207 = vadd.f32 %v63, %v206
  %v208 = vpop.f32.mrf.mxu0
  %v209 = vadd.f32 %v63, %v208
  %210 = vdwg.mxu0
  %v211 = vld [vmem:[%s3] sm:$0xff]
  %v212 = vld [vmem:[%s5] sm:$0xff]
  %214 = vrot.lane.b32.xlu0 %v32, 34
  %v215 = vpop.permute.xlu0 %214
  %220 = vrot.lane.b32.xlu0 %v29, 34
  %v221 = vpop.permute.xlu0 %220
  %222 = vrot.lane.b32.xlu0 %v30, 34
  %v223 = vpop.permute.xlu0 %222
  %224 = vrot.lane.b32.xlu0 %v31, 34
  %v225 = vpop.permute.xlu0 %224
  %vm226 = vcmask 277504
  %v227 = vsel %vm226, %v221, %v223
  %v228 = vsel %vm226, %v223, %v225
  %v229 = vsel %vm226, %v225, %v215
  %v234 = vsel %vm226, %v215, %v221
  %v236 = vlaneseq
  %v237 = vshrl.u32 %v236, 7
  %v238 = vsub.s32 0, %v237
  %v239 = vrot.slane %v33, %v238
  %v240 = vlaneseq
  %v241 = vshrl.u32 %v240, 7
  %v242 = vsub.s32 1, %v241
  %v243 = vrot.slane %v33, %v242
  %v244 = vlaneseq
  %v245 = vshrl.u32 %v244, 7
  %v246 = vsub.s32 2, %v245
  %v247 = vrot.slane %v33, %v246
  %v248 = vlaneseq
  %v249 = vshrl.u32 %v248, 7
  %v250 = vsub.s32 3, %v249
  %v251 = vrot.slane %v33, %v250
  %v256 = vmul.f32 %v234, %v239
  %v257 = vmul.f32 %v227, %v243
  %v258 = vmul.f32 %v228, %v247
  %v259 = vmul.f32 %v229, %v251
  %261 = vset.pattern.permute.xlu0 0
  %262 = vperm.xlu0 %261, %v212
  %v263 = vpop.permute.xlu0 %262
  %v265 = vmul.f32 %v263, %v256
  %v266 = vmul.f32 %v263, %v257
  %v267 = vmul.f32 %v263, %v258
  %v268 = vmul.f32 %v263, %v259
  %v269 = vadd.f32 %v265, 0.0
  %v270 = vadd.f32 %v266, 0.0
  %v271 = vadd.f32 %v267, 0.0
  %v272 = vadd.f32 %v268, 0.0
  %273 = vrot.lane.b32.xlu0 %v32, 33
  %v274 = vpop.permute.xlu0 %273
  %276 = vrot.lane.b32.xlu0 %v29, 33
  %v277 = vpop.permute.xlu0 %276
  %278 = vrot.lane.b32.xlu0 %v30, 33
  %v279 = vpop.permute.xlu0 %278
  %280 = vrot.lane.b32.xlu0 %v31, 33
  %v281 = vpop.permute.xlu0 %280
  %vm282 = vcmask 269312
  %v283 = vsel %vm282, %v277, %v279
  %v284 = vsel %vm282, %v279, %v281
  %v285 = vsel %vm282, %v281, %v274
  %v290 = vsel %vm282, %v274, %v277
  %v292 = vlaneseq
  %v293 = vshrl.u32 %v292, 7
  %v294 = vsub.s32 0, %v293
  %v295 = vrot.slane %v34, %v294
  %v296 = vlaneseq
  %v297 = vshrl.u32 %v296, 7
  %v298 = vsub.s32 1, %v297
  %v299 = vrot.slane %v34, %v298
  %v300 = vlaneseq
  %v301 = vshrl.u32 %v300, 7
  %v302 = vsub.s32 2, %v301
  %v303 = vrot.slane %v34, %v302
  %v304 = vlaneseq
  %v305 = vshrl.u32 %v304, 7
  %v306 = vsub.s32 3, %v305
  %v307 = vrot.slane %v34, %v306
  %v312 = vmul.f32 %v290, %v295
  %v313 = vmul.f32 %v283, %v299
  %v314 = vmul.f32 %v284, %v303
  %v315 = vmul.f32 %v285, %v307
  %316 = vset.pattern.permute.xlu0 1
  %317 = vperm.xlu0 %316, %v212
  %v318 = vpop.permute.xlu0 %317
  %v320 = vmul.f32 %v318, %v312
  %v321 = vmul.f32 %v318, %v313
  %v322 = vmul.f32 %v318, %v314
  %v323 = vmul.f32 %v318, %v315
  %v324 = vadd.f32 %v269, %v320
  %v325 = vadd.f32 %v270, %v321
  %v326 = vadd.f32 %v271, %v322
  %v327 = vadd.f32 %v272, %v323
  %328 = vrot.lane.b32.xlu0 %v32, 32
  %v329 = vpop.permute.xlu0 %328
  %331 = vrot.lane.b32.xlu0 %v29, 32
  %v332 = vpop.permute.xlu0 %331
  %333 = vrot.lane.b32.xlu0 %v30, 32
  %v334 = vpop.permute.xlu0 %333
  %335 = vrot.lane.b32.xlu0 %v31, 32
  %v336 = vpop.permute.xlu0 %335
  %vm337 = vcmask 261120
  %v338 = vsel %vm337, %v332, %v334
  %v339 = vsel %vm337, %v334, %v336
  %v340 = vsel %vm337, %v336, %v329
  %v345 = vsel %vm337, %v329, %v332
  %v347 = vlaneseq
  %v348 = vshrl.u32 %v347, 7
  %v349 = vsub.s32 0, %v348
  %v350 = vrot.slane %v35, %v349
  %v351 = vlaneseq
  %v352 = vshrl.u32 %v351, 7
  %v353 = vsub.s32 1, %v352
  %v354 = vrot.slane %v35, %v353
  %v355 = vlaneseq
  %v356 = vshrl.u32 %v355, 7
  %v357 = vsub.s32 2, %v356
  %v358 = vrot.slane %v35, %v357
  %v359 = vlaneseq
  %v360 = vshrl.u32 %v359, 7
  %v361 = vsub.s32 3, %v360
  %v362 = vrot.slane %v35, %v361
  %v367 = vmul.f32 %v345, %v350
  %v368 = vmul.f32 %v338, %v354
  %v369 = vmul.f32 %v339, %v358
  %v370 = vmul.f32 %v340, %v362
  %371 = vset.pattern.permute.xlu0 2
  %372 = vperm.xlu0 %371, %v212
  %v373 = vpop.permute.xlu0 %372
  %v375 = vmul.f32 %v373, %v367
  %v376 = vmul.f32 %v373, %v368
  %v377 = vmul.f32 %v373, %v369
  %v378 = vmul.f32 %v373, %v370
  %v379 = vadd.f32 %v324, %v375
  %v380 = vadd.f32 %v325, %v376
  %v381 = vadd.f32 %v326, %v377
  %v382 = vadd.f32 %v327, %v378
  %383 = vrot.lane.b32.xlu0 %v32, 31
  %v384 = vpop.permute.xlu0 %383
  %386 = vrot.lane.b32.xlu0 %v29, 31
  %v387 = vpop.permute.xlu0 %386
  %388 = vrot.lane.b32.xlu0 %v30, 31
  %v389 = vpop.permute.xlu0 %388
  %390 = vrot.lane.b32.xlu0 %v31, 31
  %v391 = vpop.permute.xlu0 %390
  %vm392 = vcmask 252928
  %v393 = vsel %vm392, %v387, %v389
  %v394 = vsel %vm392, %v389, %v391
  %v395 = vsel %vm392, %v391, %v384
  %v400 = vsel %vm392, %v384, %v387
  %v402 = vlaneseq
  %v403 = vshrl.u32 %v402, 7
  %v404 = vsub.s32 0, %v403
  %v405 = vrot.slane %v36, %v404
  %v406 = vlaneseq
  %v407 = vshrl.u32 %v406, 7
  %v408 = vsub.s32 1, %v407
  %v409 = vrot.slane %v36, %v408
  %v410 = vlaneseq
  %v411 = vshrl.u32 %v410, 7
  %v412 = vsub.s32 2, %v411
  %v413 = vrot.slane %v36, %v412
  %v414 = vlaneseq
  %v415 = vshrl.u32 %v414, 7
  %v416 = vsub.s32 3, %v415
  %v417 = vrot.slane %v36, %v416
  %v422 = vmul.f32 %v400, %v405
  %v423 = vmul.f32 %v393, %v409
  %v424 = vmul.f32 %v394, %v413
  %v425 = vmul.f32 %v395, %v417
  %426 = vset.pattern.permute.xlu0 3
  %427 = vperm.xlu0 %426, %v212
  %v428 = vpop.permute.xlu0 %427
  %v430 = vmul.f32 %v428, %v422
  %v431 = vmul.f32 %v428, %v423
  %v432 = vmul.f32 %v428, %v424
  %v433 = vmul.f32 %v428, %v425
  %v434 = vadd.f32 %v379, %v430
  %v435 = vadd.f32 %v380, %v431
  %v436 = vadd.f32 %v381, %v432
  %v437 = vadd.f32 %v382, %v433
  %438 = vrot.lane.b32.xlu0 %v32, 30
  %v439 = vpop.permute.xlu0 %438
  %441 = vrot.lane.b32.xlu0 %v29, 30
  %v442 = vpop.permute.xlu0 %441
  %443 = vrot.lane.b32.xlu0 %v30, 30
  %v444 = vpop.permute.xlu0 %443
  %445 = vrot.lane.b32.xlu0 %v31, 30
  %v446 = vpop.permute.xlu0 %445
  %vm447 = vcmask 244736
  %v448 = vsel %vm447, %v442, %v444
  %v449 = vsel %vm447, %v444, %v446
  %v450 = vsel %vm447, %v446, %v439
  %v455 = vsel %vm447, %v439, %v442
  %v457 = vlaneseq
  %v458 = vshrl.u32 %v457, 7
  %v459 = vsub.s32 0, %v458
  %v460 = vrot.slane %v37, %v459
  %v461 = vlaneseq
  %v462 = vshrl.u32 %v461, 7
  %v463 = vsub.s32 1, %v462
  %v464 = vrot.slane %v37, %v463
  %v465 = vlaneseq
  %v466 = vshrl.u32 %v465, 7
  %v467 = vsub.s32 2, %v466
  %v468 = vrot.slane %v37, %v467
  %v469 = vlaneseq
  %v470 = vshrl.u32 %v469, 7
  %v471 = vsub.s32 3, %v470
  %v472 = vrot.slane %v37, %v471
  %v477 = vmul.f32 %v455, %v460
  %v478 = vmul.f32 %v448, %v464
  %v479 = vmul.f32 %v449, %v468
  %v480 = vmul.f32 %v450, %v472
  %481 = vset.pattern.permute.xlu0 4
  %482 = vperm.xlu0 %481, %v212
  %v483 = vpop.permute.xlu0 %482
  %v485 = vmul.f32 %v483, %v477
  %v486 = vmul.f32 %v483, %v478
  %v487 = vmul.f32 %v483, %v479
  %v488 = vmul.f32 %v483, %v480
  %v489 = vadd.f32 %v434, %v485
  %v490 = vadd.f32 %v435, %v486
  %v491 = vadd.f32 %v436, %v487
  %v492 = vadd.f32 %v437, %v488
  %493 = vrot.lane.b32.xlu0 %v32, 18
  %v494 = vpop.permute.xlu0 %493
  %496 = vrot.lane.b32.xlu0 %v29, 18
  %v497 = vpop.permute.xlu0 %496
  %498 = vrot.lane.b32.xlu0 %v30, 18
  %v499 = vpop.permute.xlu0 %498
  %500 = vrot.lane.b32.xlu0 %v31, 18
  %v501 = vpop.permute.xlu0 %500
  %vm502 = vcmask 146432
  %v503 = vsel %vm502, %v497, %v499
  %v504 = vsel %vm502, %v499, %v501
  %v505 = vsel %vm502, %v501, %v494
  %v510 = vsel %vm502, %v494, %v497
  %v512 = vlaneseq
  %v513 = vshrl.u32 %v512, 7
  %v514 = vsub.s32 0, %v513
  %v515 = vrot.slane %v38, %v514
  %v516 = vlaneseq
  %v517 = vshrl.u32 %v516, 7
  %v518 = vsub.s32 1, %v517
  %v519 = vrot.slane %v38, %v518
  %v520 = vlaneseq
  %v521 = vshrl.u32 %v520, 7
  %v522 = vsub.s32 2, %v521
  %v523 = vrot.slane %v38, %v522
  %v524 = vlaneseq
  %v525 = vshrl.u32 %v524, 7
  %v526 = vsub.s32 3, %v525
  %v527 = vrot.slane %v38, %v526
  %v532 = vmul.f32 %v510, %v515
  %v533 = vmul.f32 %v503, %v519
  %v534 = vmul.f32 %v504, %v523
  %v535 = vmul.f32 %v505, %v527
  %536 = vset.pattern.permute.xlu0 5
  %537 = vperm.xlu0 %536, %v212
  %v538 = vpop.permute.xlu0 %537
  %v540 = vmul.f32 %v538, %v532
  %v541 = vmul.f32 %v538, %v533
  %v542 = vmul.f32 %v538, %v534
  %v543 = vmul.f32 %v538, %v535
  %v544 = vadd.f32 %v489, %v540
  %v545 = vadd.f32 %v490, %v541
  %v546 = vadd.f32 %v491, %v542
  %v547 = vadd.f32 %v492, %v543
  %548 = vrot.lane.b32.xlu0 %v32, 17
  %v549 = vpop.permute.xlu0 %548
  %551 = vrot.lane.b32.xlu0 %v29, 17
  %v552 = vpop.permute.xlu0 %551
  %553 = vrot.lane.b32.xlu0 %v30, 17
  %v554 = vpop.permute.xlu0 %553
  %555 = vrot.lane.b32.xlu0 %v31, 17
  %v556 = vpop.permute.xlu0 %555
  %vm557 = vcmask 138240
  %v558 = vsel %vm557, %v552, %v554
  %v559 = vsel %vm557, %v554, %v556
  %v560 = vsel %vm557, %v556, %v549
  %v565 = vsel %vm557, %v549, %v552
  %v567 = vlaneseq
  %v568 = vshrl.u32 %v567, 7
  %v569 = vsub.s32 0, %v568
  %v570 = vrot.slane %v39, %v569
  %v571 = vlaneseq
  %v572 = vshrl.u32 %v571, 7
  %v573 = vsub.s32 1, %v572
  %v574 = vrot.slane %v39, %v573
  %v575 = vlaneseq
  %v576 = vshrl.u32 %v575, 7
  %v577 = vsub.s32 2, %v576
  %v578 = vrot.slane %v39, %v577
  %v579 = vlaneseq
  %v580 = vshrl.u32 %v579, 7
  %v581 = vsub.s32 3, %v580
  %v582 = vrot.slane %v39, %v581
  %v587 = vmul.f32 %v565, %v570
  %v588 = vmul.f32 %v558, %v574
  %v589 = vmul.f32 %v559, %v578
  %v590 = vmul.f32 %v560, %v582
  %591 = vset.pattern.permute.xlu0 6
  %592 = vperm.xlu0 %591, %v212
  %v593 = vpop.permute.xlu0 %592
  %v595 = vmul.f32 %v593, %v587
  %v596 = vmul.f32 %v593, %v588
  %v597 = vmul.f32 %v593, %v589
  %v598 = vmul.f32 %v593, %v590
  %v599 = vadd.f32 %v544, %v595
  %v600 = vadd.f32 %v545, %v596
  %v601 = vadd.f32 %v546, %v597
  %v602 = vadd.f32 %v547, %v598
  %604 = vset.pattern.permute.xlu0 0
  %605 = vperm.xlu0 %604, %v211
  %v606 = vpop.permute.xlu0 %605
  %v608 = vmul.f32 %v606, %v587
  %v609 = vmul.f32 %v606, %v588
  %v610 = vmul.f32 %v606, %v589
  %v611 = vmul.f32 %v606, %v590
  %v612 = vadd.f32 %v608, 0.0
  %v613 = vadd.f32 %v609, 0.0
  %v614 = vadd.f32 %v610, 0.0
  %v615 = vadd.f32 %v611, 0.0
  %616 = vrot.lane.b32.xlu0 %v32, 16
  %v617 = vpop.permute.xlu0 %616
  %619 = vrot.lane.b32.xlu0 %v29, 16
  %v620 = vpop.permute.xlu0 %619
  %621 = vrot.lane.b32.xlu0 %v30, 16
  %v622 = vpop.permute.xlu0 %621
  %623 = vrot.lane.b32.xlu0 %v31, 16
  %v624 = vpop.permute.xlu0 %623
  %vm625 = vcmask 130048
  %v626 = vsel %vm625, %v620, %v622
  %v627 = vsel %vm625, %v622, %v624
  %v628 = vsel %vm625, %v624, %v617
  %v633 = vsel %vm625, %v617, %v620
  %v635 = vlaneseq
  %v636 = vshrl.u32 %v635, 7
  %v637 = vsub.s32 0, %v636
  %v638 = vrot.slane %v40, %v637
  %v639 = vlaneseq
  %v640 = vshrl.u32 %v639, 7
  %v641 = vsub.s32 1, %v640
  %v642 = vrot.slane %v40, %v641
  %v643 = vlaneseq
  %v644 = vshrl.u32 %v643, 7
  %v645 = vsub.s32 2, %v644
  %v646 = vrot.slane %v40, %v645
  %v647 = vlaneseq
  %v648 = vshrl.u32 %v647, 7
  %v649 = vsub.s32 3, %v648
  %v650 = vrot.slane %v40, %v649
  %v655 = vmul.f32 %v633, %v638
  %v656 = vmul.f32 %v626, %v642
  %v657 = vmul.f32 %v627, %v646
  %v658 = vmul.f32 %v628, %v650
  %659 = vset.pattern.permute.xlu0 7
  %660 = vperm.xlu0 %659, %v212
  %v661 = vpop.permute.xlu0 %660
  %v663 = vmul.f32 %v661, %v655
  %v664 = vmul.f32 %v661, %v656
  %v665 = vmul.f32 %v661, %v657
  %v666 = vmul.f32 %v661, %v658
  %v667 = vadd.f32 %v599, %v663
  %v668 = vadd.f32 %v600, %v664
  %v669 = vadd.f32 %v601, %v665
  %v670 = vadd.f32 %v602, %v666
  %671 = vset.pattern.permute.xlu0 1
  %672 = vperm.xlu0 %671, %v211
  %v673 = vpop.permute.xlu0 %672
  %v675 = vmul.f32 %v673, %v655
  %v676 = vmul.f32 %v673, %v656
  %v677 = vmul.f32 %v673, %v657
  %v678 = vmul.f32 %v673, %v658
  %v679 = vadd.f32 %v612, %v675
  %v680 = vadd.f32 %v613, %v676
  %v681 = vadd.f32 %v614, %v677
  %v682 = vadd.f32 %v615, %v678
  %683 = vrot.lane.b32.xlu0 %v32, 15
  %v684 = vpop.permute.xlu0 %683
  %686 = vrot.lane.b32.xlu0 %v29, 15
  %v687 = vpop.permute.xlu0 %686
  %688 = vrot.lane.b32.xlu0 %v30, 15
  %v689 = vpop.permute.xlu0 %688
  %690 = vrot.lane.b32.xlu0 %v31, 15
  %v691 = vpop.permute.xlu0 %690
  %vm692 = vcmask 121856
  %v693 = vsel %vm692, %v687, %v689
  %v694 = vsel %vm692, %v689, %v691
  %v695 = vsel %vm692, %v691, %v684
  %v700 = vsel %vm692, %v684, %v687
  %v702 = vlaneseq
  %v703 = vshrl.u32 %v702, 7
  %v704 = vsub.s32 0, %v703
  %v705 = vrot.slane %v41, %v704
  %v706 = vlaneseq
  %v707 = vshrl.u32 %v706, 7
  %v708 = vsub.s32 1, %v707
  %v709 = vrot.slane %v41, %v708
  %v710 = vlaneseq
  %v711 = vshrl.u32 %v710, 7
  %v712 = vsub.s32 2, %v711
  %v713 = vrot.slane %v41, %v712
  %v714 = vlaneseq
  %v715 = vshrl.u32 %v714, 7
  %v716 = vsub.s32 3, %v715
  %v717 = vrot.slane %v41, %v716
  %v722 = vmul.f32 %v700, %v705
  %v723 = vmul.f32 %v693, %v709
  %v724 = vmul.f32 %v694, %v713
  %v725 = vmul.f32 %v695, %v717
  %726 = vset.pattern.permute.xlu0 8
  %727 = vperm.xlu0 %726, %v212
  %v728 = vpop.permute.xlu0 %727
  %v730 = vmul.f32 %v728, %v722
  %v731 = vmul.f32 %v728, %v723
  %v732 = vmul.f32 %v728, %v724
  %v733 = vmul.f32 %v728, %v725
  %v734 = vadd.f32 %v667, %v730
  %v735 = vadd.f32 %v668, %v731
  %v736 = vadd.f32 %v669, %v732
  %v737 = vadd.f32 %v670, %v733
  %738 = vset.pattern.permute.xlu0 2
  %739 = vperm.xlu0 %738, %v211
  %v740 = vpop.permute.xlu0 %739
  %v742 = vmul.f32 %v740, %v722
  %v743 = vmul.f32 %v740, %v723
  %v744 = vmul.f32 %v740, %v724
  %v745 = vmul.f32 %v740, %v725
  %v746 = vadd.f32 %v679, %v742
  %v747 = vadd.f32 %v680, %v743
  %v748 = vadd.f32 %v681, %v744
  %v749 = vadd.f32 %v682, %v745
  %750 = vrot.lane.b32.xlu0 %v32, 14
  %v751 = vpop.permute.xlu0 %750
  %753 = vrot.lane.b32.xlu0 %v29, 14
  %v754 = vpop.permute.xlu0 %753
  %755 = vrot.lane.b32.xlu0 %v30, 14
  %v756 = vpop.permute.xlu0 %755
  %757 = vrot.lane.b32.xlu0 %v31, 14
  %v758 = vpop.permute.xlu0 %757
  %vm759 = vcmask 113664
  %v760 = vsel %vm759, %v754, %v756
  %v761 = vsel %vm759, %v756, %v758
  %v762 = vsel %vm759, %v758, %v751
  %v767 = vsel %vm759, %v751, %v754
  %v769 = vlaneseq
  %v770 = vshrl.u32 %v769, 7
  %v771 = vsub.s32 0, %v770
  %v772 = vrot.slane %v42, %v771
  %v773 = vlaneseq
  %v774 = vshrl.u32 %v773, 7
  %v775 = vsub.s32 1, %v774
  %v776 = vrot.slane %v42, %v775
  %v777 = vlaneseq
  %v778 = vshrl.u32 %v777, 7
  %v779 = vsub.s32 2, %v778
  %v780 = vrot.slane %v42, %v779
  %v781 = vlaneseq
  %v782 = vshrl.u32 %v781, 7
  %v783 = vsub.s32 3, %v782
  %v784 = vrot.slane %v42, %v783
  %v789 = vmul.f32 %v767, %v772
  %v790 = vmul.f32 %v760, %v776
  %v791 = vmul.f32 %v761, %v780
  %v792 = vmul.f32 %v762, %v784
  %793 = vset.pattern.permute.xlu0 9
  %794 = vperm.xlu0 %793, %v212
  %v795 = vpop.permute.xlu0 %794
  %v797 = vmul.f32 %v795, %v789
  %v798 = vmul.f32 %v795, %v790
  %v799 = vmul.f32 %v795, %v791
  %v800 = vmul.f32 %v795, %v792
  %v801 = vadd.f32 %v734, %v797
  %v802 = vadd.f32 %v735, %v798
  %v803 = vadd.f32 %v736, %v799
  %v804 = vadd.f32 %v737, %v800
  %805 = vrot.lane.b32.xlu0 %v32, 2
  %v806 = vpop.permute.xlu0 %805
  %808 = vrot.lane.b32.xlu0 %v29, 2
  %v809 = vpop.permute.xlu0 %808
  %810 = vrot.lane.b32.xlu0 %v30, 2
  %v811 = vpop.permute.xlu0 %810
  %812 = vrot.lane.b32.xlu0 %v31, 2
  %v813 = vpop.permute.xlu0 %812
  %vm814 = vcmask 15360
  %v815 = vsel %vm814, %v809, %v811
  %v816 = vsel %vm814, %v811, %v813
  %v817 = vsel %vm814, %v813, %v806
  %v822 = vsel %vm814, %v806, %v809
  %v824 = vlaneseq
  %v825 = vshrl.u32 %v824, 7
  %v826 = vsub.s32 0, %v825
  %v827 = vrot.slane %v43, %v826
  %v828 = vlaneseq
  %v829 = vshrl.u32 %v828, 7
  %v830 = vsub.s32 1, %v829
  %v831 = vrot.slane %v43, %v830
  %v832 = vlaneseq
  %v833 = vshrl.u32 %v832, 7
  %v834 = vsub.s32 2, %v833
  %v835 = vrot.slane %v43, %v834
  %v836 = vlaneseq
  %v837 = vshrl.u32 %v836, 7
  %v838 = vsub.s32 3, %v837
  %v839 = vrot.slane %v43, %v838
  %v844 = vmul.f32 %v822, %v827
  %v845 = vmul.f32 %v815, %v831
  %v846 = vmul.f32 %v816, %v835
  %v847 = vmul.f32 %v817, %v839
  %848 = vset.pattern.permute.xlu0 10
  %849 = vperm.xlu0 %848, %v212
  %v850 = vpop.permute.xlu0 %849
  %v852 = vmul.f32 %v850, %v844
  %v853 = vmul.f32 %v850, %v845
  %v854 = vmul.f32 %v850, %v846
  %v855 = vmul.f32 %v850, %v847
  %v856 = vadd.f32 %v801, %v852
  %v857 = vadd.f32 %v802, %v853
  %v858 = vadd.f32 %v803, %v854
  %v859 = vadd.f32 %v804, %v855
  %860 = vrot.lane.b32.xlu0 %v32, 1
  %v861 = vpop.permute.xlu0 %860
  %863 = vrot.lane.b32.xlu0 %v29, 1
  %v864 = vpop.permute.xlu0 %863
  %865 = vrot.lane.b32.xlu0 %v30, 1
  %v866 = vpop.permute.xlu0 %865
  %867 = vrot.lane.b32.xlu0 %v31, 1
  %v868 = vpop.permute.xlu0 %867
  %vm869 = vcmask 7168
  %v870 = vsel %vm869, %v864, %v866
  %v871 = vsel %vm869, %v866, %v868
  %v872 = vsel %vm869, %v868, %v861
  %v877 = vsel %vm869, %v861, %v864
  %v879 = vlaneseq
  %v880 = vshrl.u32 %v879, 7
  %v881 = vsub.s32 0, %v880
  %v882 = vrot.slane %v44, %v881
  %v883 = vlaneseq
  %v884 = vshrl.u32 %v883, 7
  %v885 = vsub.s32 1, %v884
  %v886 = vrot.slane %v44, %v885
  %v887 = vlaneseq
  %v888 = vshrl.u32 %v887, 7
  %v889 = vsub.s32 2, %v888
  %v890 = vrot.slane %v44, %v889
  %v891 = vlaneseq
  %v892 = vshrl.u32 %v891, 7
  %v893 = vsub.s32 3, %v892
  %v894 = vrot.slane %v44, %v893
  %v899 = vmul.f32 %v877, %v882
  %v900 = vmul.f32 %v870, %v886
  %v901 = vmul.f32 %v871, %v890
  %v902 = vmul.f32 %v872, %v894
  %903 = vset.pattern.permute.xlu0 11
  %904 = vperm.xlu0 %903, %v212
  %v905 = vpop.permute.xlu0 %904
  %v907 = vmul.f32 %v905, %v899
  %v908 = vmul.f32 %v905, %v900
  %v909 = vmul.f32 %v905, %v901
  %v910 = vmul.f32 %v905, %v902
  %v911 = vadd.f32 %v856, %v907
  %v912 = vadd.f32 %v857, %v908
  %v913 = vadd.f32 %v858, %v909
  %v914 = vadd.f32 %v859, %v910
  %915 = vset.pattern.permute.xlu0 3
  %916 = vperm.xlu0 %915, %v211
  %v917 = vpop.permute.xlu0 %916
  %v919 = vmul.f32 %v917, %v899
  %v920 = vmul.f32 %v917, %v900
  %v921 = vmul.f32 %v917, %v901
  %v922 = vmul.f32 %v917, %v902
  %v923 = vadd.f32 %v746, %v919
  %v924 = vadd.f32 %v747, %v920
  %v925 = vadd.f32 %v748, %v921
  %v926 = vadd.f32 %v749, %v922
  %v928 = vlaneseq
  %v929 = vshrl.u32 %v928, 7
  %v930 = vsub.s32 0, %v929
  %v931 = vrot.slane %v45, %v930
  %v932 = vlaneseq
  %v933 = vshrl.u32 %v932, 7
  %v934 = vsub.s32 1, %v933
  %v935 = vrot.slane %v45, %v934
  %v936 = vlaneseq
  %v937 = vshrl.u32 %v936, 7
  %v938 = vsub.s32 2, %v937
  %v939 = vrot.slane %v45, %v938
  %v940 = vlaneseq
  %v941 = vshrl.u32 %v940, 7
  %v942 = vsub.s32 3, %v941
  %v943 = vrot.slane %v45, %v942
  %v948 = vmul.f32 %v29, %v931
  %v949 = vmul.f32 %v30, %v935
  %v950 = vmul.f32 %v31, %v939
  %v951 = vmul.f32 %v32, %v943
  %952 = vset.pattern.permute.xlu0 12
  %953 = vperm.xlu0 %952, %v212
  %v954 = vpop.permute.xlu0 %953
  %v956 = vmul.f32 %v954, %v948
  %v957 = vmul.f32 %v954, %v949
  %v958 = vmul.f32 %v954, %v950
  %v959 = vmul.f32 %v954, %v951
  %v960 = vadd.f32 %v911, %v956
  %v961 = vadd.f32 %v912, %v957
  %v962 = vadd.f32 %v913, %v958
  %v963 = vadd.f32 %v914, %v959
  %964 = vset.pattern.permute.xlu0 4
  %965 = vperm.xlu0 %964, %v211
  %v966 = vpop.permute.xlu0 %965
  %v968 = vmul.f32 %v966, %v948
  %v969 = vmul.f32 %v966, %v949
  %v970 = vmul.f32 %v966, %v950
  %v971 = vmul.f32 %v966, %v951
  %v972 = vadd.f32 %v923, %v968
  %v973 = vadd.f32 %v924, %v969
  %v974 = vadd.f32 %v925, %v970
  %v975 = vadd.f32 %v926, %v971
  %976 = vrot.lane.b32.xlu0 %v29, 127
  %v977 = vpop.permute.xlu0 %976
  %978 = vrot.lane.b32.xlu0 %v30, 127
  %v979 = vpop.permute.xlu0 %978
  %980 = vrot.lane.b32.xlu0 %v31, 127
  %v981 = vpop.permute.xlu0 %980
  %982 = vrot.lane.b32.xlu0 %v32, 127
  %v983 = vpop.permute.xlu0 %982
  %vm984 = vcmask 1039360
  %v985 = vsel %vm984, %v977, %v979
  %v986 = vsel %vm984, %v979, %v981
  %v987 = vsel %vm984, %v981, %v983
  %v993 = vsel %vm984, %v983, %v977
  %v995 = vlaneseq
  %v996 = vshrl.u32 %v995, 7
  %v997 = vsub.s32 0, %v996
  %v998 = vrot.slane %v46, %v997
  %v999 = vlaneseq
  %v1000 = vshrl.u32 %v999, 7
  %v1001 = vsub.s32 1, %v1000
  %v1002 = vrot.slane %v46, %v1001
  %v1003 = vlaneseq
  %v1004 = vshrl.u32 %v1003, 7
  %v1005 = vsub.s32 2, %v1004
  %v1006 = vrot.slane %v46, %v1005
  %v1007 = vlaneseq
  %v1008 = vshrl.u32 %v1007, 7
  %v1009 = vsub.s32 3, %v1008
  %v1010 = vrot.slane %v46, %v1009
  %v1015 = vmul.f32 %v985, %v998
  %v1016 = vmul.f32 %v986, %v1002
  %v1017 = vmul.f32 %v987, %v1006
  %v1018 = vmul.f32 %v993, %v1010
  %1019 = vset.pattern.permute.xlu0 13
  %1020 = vperm.xlu0 %1019, %v212
  %v1021 = vpop.permute.xlu0 %1020
  %v1023 = vmul.f32 %v1021, %v1015
  %v1024 = vmul.f32 %v1021, %v1016
  %v1025 = vmul.f32 %v1021, %v1017
  %v1026 = vmul.f32 %v1021, %v1018
  %v1027 = vadd.f32 %v960, %v1023
  %v1028 = vadd.f32 %v961, %v1024
  %v1029 = vadd.f32 %v962, %v1025
  %v1030 = vadd.f32 %v963, %v1026
  %1031 = vset.pattern.permute.xlu0 5
  %1032 = vperm.xlu0 %1031, %v211
  %v1033 = vpop.permute.xlu0 %1032
  %v1035 = vmul.f32 %v1033, %v1015
  %v1036 = vmul.f32 %v1033, %v1016
  %v1037 = vmul.f32 %v1033, %v1017
  %v1038 = vmul.f32 %v1033, %v1018
  %v1039 = vadd.f32 %v972, %v1035
  %v1040 = vadd.f32 %v973, %v1036
  %v1041 = vadd.f32 %v974, %v1037
  %v1042 = vadd.f32 %v975, %v1038
  %1043 = vrot.lane.b32.xlu0 %v29, 126
  %v1044 = vpop.permute.xlu0 %1043
  %1045 = vrot.lane.b32.xlu0 %v30, 126
  %v1046 = vpop.permute.xlu0 %1045
  %1047 = vrot.lane.b32.xlu0 %v31, 126
  %v1048 = vpop.permute.xlu0 %1047
  %1049 = vrot.lane.b32.xlu0 %v32, 126
  %v1050 = vpop.permute.xlu0 %1049
  %vm1051 = vcmask 1031168
  %v1052 = vsel %vm1051, %v1044, %v1046
  %v1053 = vsel %vm1051, %v1046, %v1048
  %v1054 = vsel %vm1051, %v1048, %v1050
  %v1060 = vsel %vm1051, %v1050, %v1044
  %v1062 = vlaneseq
  %v1063 = vshrl.u32 %v1062, 7
  %v1064 = vsub.s32 0, %v1063
  %v1065 = vrot.slane %v47, %v1064
  %v1066 = vlaneseq
  %v1067 = vshrl.u32 %v1066, 7
  %v1068 = vsub.s32 1, %v1067
  %v1069 = vrot.slane %v47, %v1068
  %v1070 = vlaneseq
  %v1071 = vshrl.u32 %v1070, 7
  %v1072 = vsub.s32 2, %v1071
  %v1073 = vrot.slane %v47, %v1072
  %v1074 = vlaneseq
  %v1075 = vshrl.u32 %v1074, 7
  %v1076 = vsub.s32 3, %v1075
  %v1077 = vrot.slane %v47, %v1076
  %v1082 = vmul.f32 %v1052, %v1065
  %v1083 = vmul.f32 %v1053, %v1069
  %v1084 = vmul.f32 %v1054, %v1073
  %v1085 = vmul.f32 %v1060, %v1077
  %1086 = vset.pattern.permute.xlu0 14
  %1087 = vperm.xlu0 %1086, %v212
  %v1088 = vpop.permute.xlu0 %1087
  %v1090 = vmul.f32 %v1088, %v1082
  %v1091 = vmul.f32 %v1088, %v1083
  %v1092 = vmul.f32 %v1088, %v1084
  %v1093 = vmul.f32 %v1088, %v1085
  %v1094 = vadd.f32 %v1027, %v1090
  %v1095 = vadd.f32 %v1028, %v1091
  %v1096 = vadd.f32 %v1029, %v1092
  %v1097 = vadd.f32 %v1030, %v1093
  %1098 = vrot.lane.b32.xlu0 %v29, 114
  %v1099 = vpop.permute.xlu0 %1098
  %1100 = vrot.lane.b32.xlu0 %v30, 114
  %v1101 = vpop.permute.xlu0 %1100
  %1102 = vrot.lane.b32.xlu0 %v31, 114
  %v1103 = vpop.permute.xlu0 %1102
  %1104 = vrot.lane.b32.xlu0 %v32, 114
  %v1105 = vpop.permute.xlu0 %1104
  %vm1106 = vcmask 932864
  %v1107 = vsel %vm1106, %v1099, %v1101
  %v1108 = vsel %vm1106, %v1101, %v1103
  %v1109 = vsel %vm1106, %v1103, %v1105
  %v1115 = vsel %vm1106, %v1105, %v1099
  %v1117 = vlaneseq
  %v1118 = vshrl.u32 %v1117, 7
  %v1119 = vsub.s32 0, %v1118
  %v1120 = vrot.slane %v48, %v1119
  %v1121 = vlaneseq
  %v1122 = vshrl.u32 %v1121, 7
  %v1123 = vsub.s32 1, %v1122
  %v1124 = vrot.slane %v48, %v1123
  %v1125 = vlaneseq
  %v1126 = vshrl.u32 %v1125, 7
  %v1127 = vsub.s32 2, %v1126
  %v1128 = vrot.slane %v48, %v1127
  %v1129 = vlaneseq
  %v1130 = vshrl.u32 %v1129, 7
  %v1131 = vsub.s32 3, %v1130
  %v1132 = vrot.slane %v48, %v1131
  %v1137 = vmul.f32 %v1107, %v1120
  %v1138 = vmul.f32 %v1108, %v1124
  %v1139 = vmul.f32 %v1109, %v1128
  %v1140 = vmul.f32 %v1115, %v1132
  %1141 = vset.pattern.permute.xlu0 15
  %1142 = vperm.xlu0 %1141, %v212
  %v1143 = vpop.permute.xlu0 %1142
  %v1145 = vmul.f32 %v1143, %v1137
  %v1146 = vmul.f32 %v1143, %v1138
  %v1147 = vmul.f32 %v1143, %v1139
  %v1148 = vmul.f32 %v1143, %v1140
  %v1149 = vadd.f32 %v1094, %v1145
  %v1150 = vadd.f32 %v1095, %v1146
  %v1151 = vadd.f32 %v1096, %v1147
  %v1152 = vadd.f32 %v1097, %v1148
  %1153 = vrot.lane.b32.xlu0 %v29, 113
  %v1154 = vpop.permute.xlu0 %1153
  %1155 = vrot.lane.b32.xlu0 %v30, 113
  %v1156 = vpop.permute.xlu0 %1155
  %1157 = vrot.lane.b32.xlu0 %v31, 113
  %v1158 = vpop.permute.xlu0 %1157
  %1159 = vrot.lane.b32.xlu0 %v32, 113
  %v1160 = vpop.permute.xlu0 %1159
  %vm1161 = vcmask 924672
  %v1162 = vsel %vm1161, %v1154, %v1156
  %v1163 = vsel %vm1161, %v1156, %v1158
  %v1164 = vsel %vm1161, %v1158, %v1160
  %v1170 = vsel %vm1161, %v1160, %v1154
  %v1172 = vlaneseq
  %v1173 = vshrl.u32 %v1172, 7
  %v1174 = vsub.s32 0, %v1173
  %v1175 = vrot.slane %v49, %v1174
  %v1176 = vlaneseq
  %v1177 = vshrl.u32 %v1176, 7
  %v1178 = vsub.s32 1, %v1177
  %v1179 = vrot.slane %v49, %v1178
  %v1180 = vlaneseq
  %v1181 = vshrl.u32 %v1180, 7
  %v1182 = vsub.s32 2, %v1181
  %v1183 = vrot.slane %v49, %v1182
  %v1184 = vlaneseq
  %v1185 = vshrl.u32 %v1184, 7
  %v1186 = vsub.s32 3, %v1185
  %v1187 = vrot.slane %v49, %v1186
  %v1192 = vmul.f32 %v1162, %v1175
  %v1193 = vmul.f32 %v1163, %v1179
  %v1194 = vmul.f32 %v1164, %v1183
  %v1195 = vmul.f32 %v1170, %v1187
  %1196 = vset.pattern.permute.xlu0 16
  %1197 = vperm.xlu0 %1196, %v212
  %v1198 = vpop.permute.xlu0 %1197
  %v1200 = vmul.f32 %v1198, %v1192
  %v1201 = vmul.f32 %v1198, %v1193
  %v1202 = vmul.f32 %v1198, %v1194
  %v1203 = vmul.f32 %v1198, %v1195
  %v1204 = vadd.f32 %v1149, %v1200
  %v1205 = vadd.f32 %v1150, %v1201
  %v1206 = vadd.f32 %v1151, %v1202
  %v1207 = vadd.f32 %v1152, %v1203
  %1208 = vset.pattern.permute.xlu0 6
  %1209 = vperm.xlu0 %1208, %v211
  %v1210 = vpop.permute.xlu0 %1209
  %v1212 = vmul.f32 %v1210, %v1192
  %v1213 = vmul.f32 %v1210, %v1193
  %v1214 = vmul.f32 %v1210, %v1194
  %v1215 = vmul.f32 %v1210, %v1195
  %v1216 = vadd.f32 %v1039, %v1212
  %v1217 = vadd.f32 %v1040, %v1213
  %v1218 = vadd.f32 %v1041, %v1214
  %v1219 = vadd.f32 %v1042, %v1215
  %1220 = vrot.lane.b32.xlu0 %v29, 112
  %v1221 = vpop.permute.xlu0 %1220
  %1222 = vrot.lane.b32.xlu0 %v30, 112
  %v1223 = vpop.permute.xlu0 %1222
  %1224 = vrot.lane.b32.xlu0 %v31, 112
  %v1225 = vpop.permute.xlu0 %1224
  %1226 = vrot.lane.b32.xlu0 %v32, 112
  %v1227 = vpop.permute.xlu0 %1226
  %vm1228 = vcmask 916480
  %v1229 = vsel %vm1228, %v1221, %v1223
  %v1230 = vsel %vm1228, %v1223, %v1225
  %v1231 = vsel %vm1228, %v1225, %v1227
  %v1237 = vsel %vm1228, %v1227, %v1221
  %v1239 = vlaneseq
  %v1240 = vshrl.u32 %v1239, 7
  %v1241 = vsub.s32 0, %v1240
  %v1242 = vrot.slane %v50, %v1241
  %v1243 = vlaneseq
  %v1244 = vshrl.u32 %v1243, 7
  %v1245 = vsub.s32 1, %v1244
  %v1246 = vrot.slane %v50, %v1245
  %v1247 = vlaneseq
  %v1248 = vshrl.u32 %v1247, 7
  %v1249 = vsub.s32 2, %v1248
  %v1250 = vrot.slane %v50, %v1249
  %v1251 = vlaneseq
  %v1252 = vshrl.u32 %v1251, 7
  %v1253 = vsub.s32 3, %v1252
  %v1254 = vrot.slane %v50, %v1253
  %v1259 = vmul.f32 %v1229, %v1242
  %v1260 = vmul.f32 %v1230, %v1246
  %v1261 = vmul.f32 %v1231, %v1250
  %v1262 = vmul.f32 %v1237, %v1254
  %1263 = vset.pattern.permute.xlu0 17
  %1264 = vperm.xlu0 %1263, %v212
  %v1265 = vpop.permute.xlu0 %1264
  %v1267 = vmul.f32 %v1265, %v1259
  %v1268 = vmul.f32 %v1265, %v1260
  %v1269 = vmul.f32 %v1265, %v1261
  %v1270 = vmul.f32 %v1265, %v1262
  %v1271 = vadd.f32 %v1204, %v1267
  %v1272 = vadd.f32 %v1205, %v1268
  %v1273 = vadd.f32 %v1206, %v1269
  %v1274 = vadd.f32 %v1207, %v1270
  %1275 = vset.pattern.permute.xlu0 7
  %1276 = vperm.xlu0 %1275, %v211
  %v1277 = vpop.permute.xlu0 %1276
  %v1279 = vmul.f32 %v1277, %v1259
  %v1280 = vmul.f32 %v1277, %v1260
  %v1281 = vmul.f32 %v1277, %v1261
  %v1282 = vmul.f32 %v1277, %v1262
  %v1283 = vadd.f32 %v1216, %v1279
  %v1284 = vadd.f32 %v1217, %v1280
  %v1285 = vadd.f32 %v1218, %v1281
  %v1286 = vadd.f32 %v1219, %v1282
  %1287 = vrot.lane.b32.xlu0 %v29, 111
  %v1288 = vpop.permute.xlu0 %1287
  %1289 = vrot.lane.b32.xlu0 %v30, 111
  %v1290 = vpop.permute.xlu0 %1289
  %1291 = vrot.lane.b32.xlu0 %v31, 111
  %v1292 = vpop.permute.xlu0 %1291
  %1293 = vrot.lane.b32.xlu0 %v32, 111
  %v1294 = vpop.permute.xlu0 %1293
  %vm1295 = vcmask 908288
  %v1296 = vsel %vm1295, %v1288, %v1290
  %v1297 = vsel %vm1295, %v1290, %v1292
  %v1298 = vsel %vm1295, %v1292, %v1294
  %v1304 = vsel %vm1295, %v1294, %v1288
  %v1306 = vlaneseq
  %v1307 = vshrl.u32 %v1306, 7
  %v1308 = vsub.s32 0, %v1307
  %v1309 = vrot.slane %v51, %v1308
  %v1310 = vlaneseq
  %v1311 = vshrl.u32 %v1310, 7
  %v1312 = vsub.s32 1, %v1311
  %v1313 = vrot.slane %v51, %v1312
  %v1314 = vlaneseq
  %v1315 = vshrl.u32 %v1314, 7
  %v1316 = vsub.s32 2, %v1315
  %v1317 = vrot.slane %v51, %v1316
  %v1318 = vlaneseq
  %v1319 = vshrl.u32 %v1318, 7
  %v1320 = vsub.s32 3, %v1319
  %v1321 = vrot.slane %v51, %v1320
  %v1326 = vmul.f32 %v1296, %v1309
  %v1327 = vmul.f32 %v1297, %v1313
  %v1328 = vmul.f32 %v1298, %v1317
  %v1329 = vmul.f32 %v1304, %v1321
  %1330 = vset.pattern.permute.xlu0 18
  %1331 = vperm.xlu0 %1330, %v212
  %v1332 = vpop.permute.xlu0 %1331
  %v1334 = vmul.f32 %v1332, %v1326
  %v1335 = vmul.f32 %v1332, %v1327
  %v1336 = vmul.f32 %v1332, %v1328
  %v1337 = vmul.f32 %v1332, %v1329
  %v1338 = vadd.f32 %v1271, %v1334
  %v1339 = vadd.f32 %v1272, %v1335
  %v1340 = vadd.f32 %v1273, %v1336
  %v1341 = vadd.f32 %v1274, %v1337
  %1342 = vset.pattern.permute.xlu0 8
  %1343 = vperm.xlu0 %1342, %v211
  %v1344 = vpop.permute.xlu0 %1343
  %v1346 = vmul.f32 %v1344, %v1326
  %v1347 = vmul.f32 %v1344, %v1327
  %v1348 = vmul.f32 %v1344, %v1328
  %v1349 = vmul.f32 %v1344, %v1329
  %v1350 = vadd.f32 %v1283, %v1346
  %v1351 = vadd.f32 %v1284, %v1347
  %v1352 = vadd.f32 %v1285, %v1348
  %v1353 = vadd.f32 %v1286, %v1349
  %1354 = vrot.lane.b32.xlu0 %v29, 110
  %v1355 = vpop.permute.xlu0 %1354
  %1356 = vrot.lane.b32.xlu0 %v30, 110
  %v1357 = vpop.permute.xlu0 %1356
  %1358 = vrot.lane.b32.xlu0 %v31, 110
  %v1359 = vpop.permute.xlu0 %1358
  %1360 = vrot.lane.b32.xlu0 %v32, 110
  %v1361 = vpop.permute.xlu0 %1360
  %vm1362 = vcmask 900096
  %v1363 = vsel %vm1362, %v1355, %v1357
  %v1364 = vsel %vm1362, %v1357, %v1359
  %v1365 = vsel %vm1362, %v1359, %v1361
  %v1371 = vsel %vm1362, %v1361, %v1355
  %v1373 = vlaneseq
  %v1374 = vshrl.u32 %v1373, 7
  %v1375 = vsub.s32 0, %v1374
  %v1376 = vrot.slane %v52, %v1375
  %v1377 = vlaneseq
  %v1378 = vshrl.u32 %v1377, 7
  %v1379 = vsub.s32 1, %v1378
  %v1380 = vrot.slane %v52, %v1379
  %v1381 = vlaneseq
  %v1382 = vshrl.u32 %v1381, 7
  %v1383 = vsub.s32 2, %v1382
  %v1384 = vrot.slane %v52, %v1383
  %v1385 = vlaneseq
  %v1386 = vshrl.u32 %v1385, 7
  %v1387 = vsub.s32 3, %v1386
  %v1388 = vrot.slane %v52, %v1387
  %v1393 = vmul.f32 %v1363, %v1376
  %v1394 = vmul.f32 %v1364, %v1380
  %v1395 = vmul.f32 %v1365, %v1384
  %v1396 = vmul.f32 %v1371, %v1388
  %1397 = vset.pattern.permute.xlu0 19
  %1398 = vperm.xlu0 %1397, %v212
  %v1399 = vpop.permute.xlu0 %1398
  %v1401 = vmul.f32 %v1399, %v1393
  %v1402 = vmul.f32 %v1399, %v1394
  %v1403 = vmul.f32 %v1399, %v1395
  %v1404 = vmul.f32 %v1399, %v1396
  %v1405 = vadd.f32 %v1338, %v1401
  %v1406 = vadd.f32 %v1339, %v1402
  %v1407 = vadd.f32 %v1340, %v1403
  %v1408 = vadd.f32 %v1341, %v1404
  %1409 = vrot.lane.b32.xlu0 %v29, 98
  %v1410 = vpop.permute.xlu0 %1409
  %1411 = vrot.lane.b32.xlu0 %v30, 98
  %v1412 = vpop.permute.xlu0 %1411
  %1413 = vrot.lane.b32.xlu0 %v31, 98
  %v1414 = vpop.permute.xlu0 %1413
  %1415 = vrot.lane.b32.xlu0 %v32, 98
  %v1416 = vpop.permute.xlu0 %1415
  %vm1417 = vcmask 801792
  %v1418 = vsel %vm1417, %v1410, %v1412
  %v1419 = vsel %vm1417, %v1412, %v1414
  %v1420 = vsel %vm1417, %v1414, %v1416
  %v1426 = vsel %vm1417, %v1416, %v1410
  %v1428 = vlaneseq
  %v1429 = vshrl.u32 %v1428, 7
  %v1430 = vsub.s32 0, %v1429
  %v1431 = vrot.slane %v53, %v1430
  %v1432 = vlaneseq
  %v1433 = vshrl.u32 %v1432, 7
  %v1434 = vsub.s32 1, %v1433
  %v1435 = vrot.slane %v53, %v1434
  %v1436 = vlaneseq
  %v1437 = vshrl.u32 %v1436, 7
  %v1438 = vsub.s32 2, %v1437
  %v1439 = vrot.slane %v53, %v1438
  %v1440 = vlaneseq
  %v1441 = vshrl.u32 %v1440, 7
  %v1442 = vsub.s32 3, %v1441
  %v1443 = vrot.slane %v53, %v1442
  %v1448 = vmul.f32 %v1418, %v1431
  %v1449 = vmul.f32 %v1419, %v1435
  %v1450 = vmul.f32 %v1420, %v1439
  %v1451 = vmul.f32 %v1426, %v1443
  %1452 = vset.pattern.permute.xlu0 20
  %1453 = vperm.xlu0 %1452, %v212
  %v1454 = vpop.permute.xlu0 %1453
  %v1456 = vmul.f32 %v1454, %v1448
  %v1457 = vmul.f32 %v1454, %v1449
  %v1458 = vmul.f32 %v1454, %v1450
  %v1459 = vmul.f32 %v1454, %v1451
  %v1460 = vadd.f32 %v1405, %v1456
  %v1461 = vadd.f32 %v1406, %v1457
  %v1462 = vadd.f32 %v1407, %v1458
  %v1463 = vadd.f32 %v1408, %v1459
  %1464 = vrot.lane.b32.xlu0 %v29, 97
  %v1465 = vpop.permute.xlu0 %1464
  %1466 = vrot.lane.b32.xlu0 %v30, 97
  %v1467 = vpop.permute.xlu0 %1466
  %1468 = vrot.lane.b32.xlu0 %v31, 97
  %v1469 = vpop.permute.xlu0 %1468
  %1470 = vrot.lane.b32.xlu0 %v32, 97
  %v1471 = vpop.permute.xlu0 %1470
  %vm1472 = vcmask 793600
  %v1473 = vsel %vm1472, %v1465, %v1467
  %v1474 = vsel %vm1472, %v1467, %v1469
  %v1475 = vsel %vm1472, %v1469, %v1471
  %v1481 = vsel %vm1472, %v1471, %v1465
  %v1483 = vlaneseq
  %v1484 = vshrl.u32 %v1483, 7
  %v1485 = vsub.s32 0, %v1484
  %v1486 = vrot.slane %v54, %v1485
  %v1487 = vlaneseq
  %v1488 = vshrl.u32 %v1487, 7
  %v1489 = vsub.s32 1, %v1488
  %v1490 = vrot.slane %v54, %v1489
  %v1491 = vlaneseq
  %v1492 = vshrl.u32 %v1491, 7
  %v1493 = vsub.s32 2, %v1492
  %v1494 = vrot.slane %v54, %v1493
  %v1495 = vlaneseq
  %v1496 = vshrl.u32 %v1495, 7
  %v1497 = vsub.s32 3, %v1496
  %v1498 = vrot.slane %v54, %v1497
  %v1503 = vmul.f32 %v1473, %v1486
  %v1504 = vmul.f32 %v1474, %v1490
  %v1505 = vmul.f32 %v1475, %v1494
  %v1506 = vmul.f32 %v1481, %v1498
  %1507 = vset.pattern.permute.xlu0 21
  %1508 = vperm.xlu0 %1507, %v212
  %v1509 = vpop.permute.xlu0 %1508
  %v1511 = vmul.f32 %v1509, %v1503
  %v1512 = vmul.f32 %v1509, %v1504
  %v1513 = vmul.f32 %v1509, %v1505
  %v1514 = vmul.f32 %v1509, %v1506
  %v1515 = vadd.f32 %v1460, %v1511
  %v1516 = vadd.f32 %v1461, %v1512
  %v1517 = vadd.f32 %v1462, %v1513
  %v1518 = vadd.f32 %v1463, %v1514
  %1519 = vrot.lane.b32.xlu0 %v29, 96
  %v1520 = vpop.permute.xlu0 %1519
  %1521 = vrot.lane.b32.xlu0 %v30, 96
  %v1522 = vpop.permute.xlu0 %1521
  %1523 = vrot.lane.b32.xlu0 %v31, 96
  %v1524 = vpop.permute.xlu0 %1523
  %1525 = vrot.lane.b32.xlu0 %v32, 96
  %v1526 = vpop.permute.xlu0 %1525
  %vm1527 = vcmask 785408
  %v1528 = vsel %vm1527, %v1520, %v1522
  %v1529 = vsel %vm1527, %v1522, %v1524
  %v1530 = vsel %vm1527, %v1524, %v1526
  %v1536 = vsel %vm1527, %v1526, %v1520
  %v1538 = vlaneseq
  %v1539 = vshrl.u32 %v1538, 7
  %v1540 = vsub.s32 0, %v1539
  %v1541 = vrot.slane %v55, %v1540
  %v1542 = vlaneseq
  %v1543 = vshrl.u32 %v1542, 7
  %v1544 = vsub.s32 1, %v1543
  %v1545 = vrot.slane %v55, %v1544
  %v1546 = vlaneseq
  %v1547 = vshrl.u32 %v1546, 7
  %v1548 = vsub.s32 2, %v1547
  %v1549 = vrot.slane %v55, %v1548
  %v1550 = vlaneseq
  %v1551 = vshrl.u32 %v1550, 7
  %v1552 = vsub.s32 3, %v1551
  %v1553 = vrot.slane %v55, %v1552
  %v1558 = vmul.f32 %v1528, %v1541
  %v1559 = vmul.f32 %v1529, %v1545
  %v1560 = vmul.f32 %v1530, %v1549
  %v1561 = vmul.f32 %v1536, %v1553
  %1562 = vset.pattern.permute.xlu0 22
  %1563 = vperm.xlu0 %1562, %v212
  %v1564 = vpop.permute.xlu0 %1563
  %v1566 = vmul.f32 %v1564, %v1558
  %v1567 = vmul.f32 %v1564, %v1559
  %v1568 = vmul.f32 %v1564, %v1560
  %v1569 = vmul.f32 %v1564, %v1561
  %v1570 = vadd.f32 %v1515, %v1566
  %v1571 = vadd.f32 %v1516, %v1567
  %v1572 = vadd.f32 %v1517, %v1568
  %v1573 = vadd.f32 %v1518, %v1569
  %1574 = vrot.lane.b32.xlu0 %v29, 95
  %v1575 = vpop.permute.xlu0 %1574
  %1576 = vrot.lane.b32.xlu0 %v30, 95
  %v1577 = vpop.permute.xlu0 %1576
  %1578 = vrot.lane.b32.xlu0 %v31, 95
  %v1579 = vpop.permute.xlu0 %1578
  %1580 = vrot.lane.b32.xlu0 %v32, 95
  %v1581 = vpop.permute.xlu0 %1580
  %vm1582 = vcmask 777216
  %v1583 = vsel %vm1582, %v1575, %v1577
  %v1584 = vsel %vm1582, %v1577, %v1579
  %v1585 = vsel %vm1582, %v1579, %v1581
  %v1591 = vsel %vm1582, %v1581, %v1575
  %v1593 = vlaneseq
  %v1594 = vshrl.u32 %v1593, 7
  %v1595 = vsub.s32 0, %v1594
  %v1596 = vrot.slane %v56, %v1595
  %v1597 = vlaneseq
  %v1598 = vshrl.u32 %v1597, 7
  %v1599 = vsub.s32 1, %v1598
  %v1600 = vrot.slane %v56, %v1599
  %v1601 = vlaneseq
  %v1602 = vshrl.u32 %v1601, 7
  %v1603 = vsub.s32 2, %v1602
  %v1604 = vrot.slane %v56, %v1603
  %v1605 = vlaneseq
  %v1606 = vshrl.u32 %v1605, 7
  %v1607 = vsub.s32 3, %v1606
  %v1608 = vrot.slane %v56, %v1607
  %v1613 = vmul.f32 %v1583, %v1596
  %v1614 = vmul.f32 %v1584, %v1600
  %v1615 = vmul.f32 %v1585, %v1604
  %v1616 = vmul.f32 %v1591, %v1608
  %1617 = vset.pattern.permute.xlu0 23
  %1618 = vperm.xlu0 %1617, %v212
  %v1619 = vpop.permute.xlu0 %1618
  %v1621 = vmul.f32 %v1619, %v1613
  %v1622 = vmul.f32 %v1619, %v1614
  %v1623 = vmul.f32 %v1619, %v1615
  %v1624 = vmul.f32 %v1619, %v1616
  %v1625 = vadd.f32 %v1570, %v1621
  %v1626 = vadd.f32 %v1571, %v1622
  %v1627 = vadd.f32 %v1572, %v1623
  %v1628 = vadd.f32 %v1573, %v1624
  %1629 = vrot.lane.b32.xlu0 %v29, 94
  %v1630 = vpop.permute.xlu0 %1629
  %1631 = vrot.lane.b32.xlu0 %v30, 94
  %v1632 = vpop.permute.xlu0 %1631
  %1633 = vrot.lane.b32.xlu0 %v31, 94
  %v1634 = vpop.permute.xlu0 %1633
  %1635 = vrot.lane.b32.xlu0 %v32, 94
  %v1636 = vpop.permute.xlu0 %1635
  %vm1637 = vcmask 769024
  %v1638 = vsel %vm1637, %v1630, %v1632
  %v1639 = vsel %vm1637, %v1632, %v1634
  %v1640 = vsel %vm1637, %v1634, %v1636
  %v1646 = vsel %vm1637, %v1636, %v1630
  %v1648 = vlaneseq
  %v1649 = vshrl.u32 %v1648, 7
  %v1650 = vsub.s32 0, %v1649
  %v1651 = vrot.slane %v57, %v1650
  %v1652 = vlaneseq
  %v1653 = vshrl.u32 %v1652, 7
  %v1654 = vsub.s32 1, %v1653
  %v1655 = vrot.slane %v57, %v1654
  %v1656 = vlaneseq
  %v1657 = vshrl.u32 %v1656, 7
  %v1658 = vsub.s32 2, %v1657
  %v1659 = vrot.slane %v57, %v1658
  %v1660 = vlaneseq
  %v1661 = vshrl.u32 %v1660, 7
  %v1662 = vsub.s32 3, %v1661
  %v1663 = vrot.slane %v57, %v1662
  %v1668 = vmul.f32 %v1638, %v1651
  %v1669 = vmul.f32 %v1639, %v1655
  %v1670 = vmul.f32 %v1640, %v1659
  %v1671 = vmul.f32 %v1646, %v1663
  %1672 = vset.pattern.permute.xlu0 24
  %1673 = vperm.xlu0 %1672, %v212
  %v1674 = vpop.permute.xlu0 %1673
  %v1676 = vmul.f32 %v1674, %v1668
  %v1677 = vmul.f32 %v1674, %v1669
  %v1678 = vmul.f32 %v1674, %v1670
  %v1679 = vmul.f32 %v1674, %v1671
  %v1680 = vadd.f32 %v1625, %v1676
  %v1681 = vadd.f32 %v1626, %v1677
  %v1682 = vadd.f32 %v1627, %v1678
  %v1683 = vadd.f32 %v1628, %v1679
  %v1684 = vld [vmem:[%s4] sm:$0xf]
  %v1686 = vsel %vm65, %v1684, 0
  %1688 = vmatprep.subr.mxu0 0.0
  %1689 = vmatpush1.msra.mxu0 0.0
  %1690 = vmatprep.subr.mxu0 0.0
  %1691 = vmatpush1.msra.mxu0 0.0
  %1692 = vmatprep.subr.mxu0 0.0
  %1693 = vmatpush1.msra.mxu0 0.0
  %1694 = vmatprep.subr.mxu0 0.0
  %1695 = vmatpush1.msra.mxu0 0.0
  %1696 = vmatprep.subr.mxu0 0.0
  %1697 = vmatpush1.msra.mxu0 0.0
  %1698 = vmatprep.subr.mxu0 0.0
  %1699 = vmatpush1.msra.mxu0 0.0
  %1700 = vmatprep.subr.mxu0 0.0
  %1701 = vmatpush1.msra.mxu0 0.0
  %1702 = vmatprep.subr.mxu0 0.0
  %1703 = vmatpush1.msra.mxu0 0.0
  %1704 = vmatprep.subr.mxu0 0.0
  %1705 = vmatpush1.msra.mxu0 0.0
  %1706 = vmatprep.subr.mxu0 0.0
  %1707 = vmatpush1.msra.mxu0 0.0
  %1708 = vmatprep.subr.mxu0 0.0
  %1709 = vmatpush1.msra.mxu0 0.0
  %1710 = vmatprep.subr.mxu0 0.0
  %1711 = vmatpush1.msra.mxu0 0.0
  %1712 = vmatprep.subr.mxu0 0.0
  %1713 = vmatpush1.msra.mxu0 0.0
  %1714 = vmatprep.subr.mxu0 0.0
  %1715 = vmatpush1.msra.mxu0 0.0
  %1716 = vmatprep.subr.mxu0 0.0
  %1717 = vmatpush1.msra.mxu0 0.0
  %1718 = vmatprep.subr.mxu0 %v1351
  %1719 = vmatpush1.msra.mxu0 %v1350
  %1720 = vmatprep.subr.mxu0 0.0
  %1721 = vmatpush2.msra.mxu0 0.0
  %1722 = vmatprep.subr.mxu0 0.0
  %1723 = vmatpush2.msra.mxu0 0.0
  %1724 = vmatprep.subr.mxu0 0.0
  %1725 = vmatpush2.msra.mxu0 0.0
  %1726 = vmatprep.subr.mxu0 0.0
  %1727 = vmatpush2.msra.mxu0 0.0
  %1728 = vmatprep.subr.mxu0 0.0
  %1729 = vmatpush2.msra.mxu0 0.0
  %1730 = vmatprep.subr.mxu0 0.0
  %1731 = vmatpush2.msra.mxu0 0.0
  %1732 = vmatprep.subr.mxu0 0.0
  %1733 = vmatpush2.msra.mxu0 0.0
  %1734 = vmatprep.subr.mxu0 0.0
  %1735 = vmatpush2.msra.mxu0 0.0
  %1736 = vmatprep.subr.mxu0 0.0
  %1737 = vmatpush2.msra.mxu0 0.0
  %1738 = vmatprep.subr.mxu0 0.0
  %1739 = vmatpush2.msra.mxu0 0.0
  %1740 = vmatprep.subr.mxu0 0.0
  %1741 = vmatpush2.msra.mxu0 0.0
  %1742 = vmatprep.subr.mxu0 0.0
  %1743 = vmatpush2.msra.mxu0 0.0
  %1744 = vmatprep.subr.mxu0 0.0
  %1745 = vmatpush2.msra.mxu0 0.0
  %1746 = vmatprep.subr.mxu0 0.0
  %1747 = vmatpush2.msra.mxu0 0.0
  %1748 = vmatprep.subr.mxu0 0.0
  %1749 = vmatpush2.msra.mxu0 0.0
  %1750 = vmatprep.subr.mxu0 0.0
  %1751 = vmatpush2.msra.mxu0 0.0
  %1752 = vmatprep.mubr.f32.mxu0 0.0
  %1753 = vmatmul.mubr.f32.gmra.mxu0 %v1686
  %v1754 = vpop.f32.mrf.mxu0
  %v1755 = vadd.f32 0.0, %v1754
  %v1756 = vpop.f32.mrf.mxu0
  %v1757 = vadd.f32 0.0, %v1756
  %1758 = vdwg.mxu0
  %1759 = vmatprep.subr.mxu0 0.0
  %1760 = vmatpush1.msra.mxu0 0.0
  %1761 = vmatprep.subr.mxu0 0.0
  %1762 = vmatpush1.msra.mxu0 0.0
  %1763 = vmatprep.subr.mxu0 0.0
  %1764 = vmatpush1.msra.mxu0 0.0
  %1765 = vmatprep.subr.mxu0 0.0
  %1766 = vmatpush1.msra.mxu0 0.0
  %1767 = vmatprep.subr.mxu0 0.0
  %1768 = vmatpush1.msra.mxu0 0.0
  %1769 = vmatprep.subr.mxu0 0.0
  %1770 = vmatpush1.msra.mxu0 0.0
  %1771 = vmatprep.subr.mxu0 0.0
  %1772 = vmatpush1.msra.mxu0 0.0
  %1773 = vmatprep.subr.mxu0 0.0
  %1774 = vmatpush1.msra.mxu0 0.0
  %1775 = vmatprep.subr.mxu0 0.0
  %1776 = vmatpush1.msra.mxu0 0.0
  %1777 = vmatprep.subr.mxu0 0.0
  %1778 = vmatpush1.msra.mxu0 0.0
  %1779 = vmatprep.subr.mxu0 0.0
  %1780 = vmatpush1.msra.mxu0 0.0
  %1781 = vmatprep.subr.mxu0 0.0
  %1782 = vmatpush1.msra.mxu0 0.0
  %1783 = vmatprep.subr.mxu0 0.0
  %1784 = vmatpush1.msra.mxu0 0.0
  %1785 = vmatprep.subr.mxu0 0.0
  %1786 = vmatpush1.msra.mxu0 0.0
  %1787 = vmatprep.subr.mxu0 0.0
  %1788 = vmatpush1.msra.mxu0 0.0
  %1789 = vmatprep.subr.mxu0 %v1353
  %1790 = vmatpush1.msra.mxu0 %v1352
  %1791 = vmatprep.subr.mxu0 0.0
  %1792 = vmatpush2.msra.mxu0 0.0
  %1793 = vmatprep.subr.mxu0 0.0
  %1794 = vmatpush2.msra.mxu0 0.0
  %1795 = vmatprep.subr.mxu0 0.0
  %1796 = vmatpush2.msra.mxu0 0.0
  %1797 = vmatprep.subr.mxu0 0.0
  %1798 = vmatpush2.msra.mxu0 0.0
  %1799 = vmatprep.subr.mxu0 0.0
  %1800 = vmatpush2.msra.mxu0 0.0
  %1801 = vmatprep.subr.mxu0 0.0
  %1802 = vmatpush2.msra.mxu0 0.0
  %1803 = vmatprep.subr.mxu0 0.0
  %1804 = vmatpush2.msra.mxu0 0.0
  %1805 = vmatprep.subr.mxu0 0.0
  %1806 = vmatpush2.msra.mxu0 0.0
  %1807 = vmatprep.subr.mxu0 0.0
  %1808 = vmatpush2.msra.mxu0 0.0
  %1809 = vmatprep.subr.mxu0 0.0
  %1810 = vmatpush2.msra.mxu0 0.0
  %1811 = vmatprep.subr.mxu0 0.0
  %1812 = vmatpush2.msra.mxu0 0.0
  %1813 = vmatprep.subr.mxu0 0.0
  %1814 = vmatpush2.msra.mxu0 0.0
  %1815 = vmatprep.subr.mxu0 0.0
  %1816 = vmatpush2.msra.mxu0 0.0
  %1817 = vmatprep.subr.mxu0 0.0
  %1818 = vmatpush2.msra.mxu0 0.0
  %1819 = vmatprep.subr.mxu0 0.0
  %1820 = vmatpush2.msra.mxu0 0.0
  %1821 = vmatprep.subr.mxu0 0.0
  %1822 = vmatpush2.msra.mxu0 0.0
  %1823 = vmatprep.mubr.f32.mxu0 0.0
  %1824 = vmatmul.mubr.f32.gmra.mxu0 %v1686
  %v1825 = vpop.f32.mrf.mxu0
  %v1826 = vadd.f32 0.0, %v1825
  %v1827 = vpop.f32.mrf.mxu0
  %v1828 = vadd.f32 0.0, %v1827
  %1829 = vdwg.mxu0
  %v1830 = vadd.f32 %v136, %v1755
  %v1831 = vadd.f32 %v138, %v1757
  %v1832 = vadd.f32 %v207, %v1826
  %v1833 = vadd.f32 %v209, %v1828
  %v1834 = vld [vmem:[%s6] sm:$0xf]
  %v1836 = vsel %vm65, %v1834, 0
  %1838 = vmatprep.subr.mxu0 0.0
  %1839 = vmatpush1.msra.mxu0 0.0
  %1840 = vmatprep.subr.mxu0 0.0
  %1841 = vmatpush1.msra.mxu0 0.0
  %1842 = vmatprep.subr.mxu0 0.0
  %1843 = vmatpush1.msra.mxu0 0.0
  %1844 = vmatprep.subr.mxu0 0.0
  %1845 = vmatpush1.msra.mxu0 0.0
  %1846 = vmatprep.subr.mxu0 0.0
  %1847 = vmatpush1.msra.mxu0 0.0
  %1848 = vmatprep.subr.mxu0 0.0
  %1849 = vmatpush1.msra.mxu0 0.0
  %1850 = vmatprep.subr.mxu0 0.0
  %1851 = vmatpush1.msra.mxu0 0.0
  %1852 = vmatprep.subr.mxu0 0.0
  %1853 = vmatpush1.msra.mxu0 0.0
  %1854 = vmatprep.subr.mxu0 0.0
  %1855 = vmatpush1.msra.mxu0 0.0
  %1856 = vmatprep.subr.mxu0 0.0
  %1857 = vmatpush1.msra.mxu0 0.0
  %1858 = vmatprep.subr.mxu0 0.0
  %1859 = vmatpush1.msra.mxu0 0.0
  %1860 = vmatprep.subr.mxu0 0.0
  %1861 = vmatpush1.msra.mxu0 0.0
  %1862 = vmatprep.subr.mxu0 0.0
  %1863 = vmatpush1.msra.mxu0 0.0
  %1864 = vmatprep.subr.mxu0 0.0
  %1865 = vmatpush1.msra.mxu0 0.0
  %1866 = vmatprep.subr.mxu0 0.0
  %1867 = vmatpush1.msra.mxu0 0.0
  %1868 = vmatprep.subr.mxu0 %v1681
  %1869 = vmatpush1.msra.mxu0 %v1680
  %1870 = vmatprep.subr.mxu0 0.0
  %1871 = vmatpush2.msra.mxu0 0.0
  %1872 = vmatprep.subr.mxu0 0.0
  %1873 = vmatpush2.msra.mxu0 0.0
  %1874 = vmatprep.subr.mxu0 0.0
  %1875 = vmatpush2.msra.mxu0 0.0
  %1876 = vmatprep.subr.mxu0 0.0
  %1877 = vmatpush2.msra.mxu0 0.0
  %1878 = vmatprep.subr.mxu0 0.0
  %1879 = vmatpush2.msra.mxu0 0.0
  %1880 = vmatprep.subr.mxu0 0.0
  %1881 = vmatpush2.msra.mxu0 0.0
  %1882 = vmatprep.subr.mxu0 0.0
  %1883 = vmatpush2.msra.mxu0 0.0
  %1884 = vmatprep.subr.mxu0 0.0
  %1885 = vmatpush2.msra.mxu0 0.0
  %1886 = vmatprep.subr.mxu0 0.0
  %1887 = vmatpush2.msra.mxu0 0.0
  %1888 = vmatprep.subr.mxu0 0.0
  %1889 = vmatpush2.msra.mxu0 0.0
  %1890 = vmatprep.subr.mxu0 0.0
  %1891 = vmatpush2.msra.mxu0 0.0
  %1892 = vmatprep.subr.mxu0 0.0
  %1893 = vmatpush2.msra.mxu0 0.0
  %1894 = vmatprep.subr.mxu0 0.0
  %1895 = vmatpush2.msra.mxu0 0.0
  %1896 = vmatprep.subr.mxu0 0.0
  %1897 = vmatpush2.msra.mxu0 0.0
  %1898 = vmatprep.subr.mxu0 0.0
  %1899 = vmatpush2.msra.mxu0 0.0
  %1900 = vmatprep.subr.mxu0 0.0
  %1901 = vmatpush2.msra.mxu0 0.0
  %1902 = vmatprep.mubr.f32.mxu0 0.0
  %1903 = vmatmul.mubr.f32.gmra.mxu0 %v1836
  %v1904 = vpop.f32.mrf.mxu0
  %v1905 = vadd.f32 0.0, %v1904
  %v1906 = vpop.f32.mrf.mxu0
  %v1907 = vadd.f32 0.0, %v1906
  %1908 = vdwg.mxu0
  %1909 = vmatprep.subr.mxu0 0.0
  %1910 = vmatpush1.msra.mxu0 0.0
  %1911 = vmatprep.subr.mxu0 0.0
  %1912 = vmatpush1.msra.mxu0 0.0
  %1913 = vmatprep.subr.mxu0 0.0
  %1914 = vmatpush1.msra.mxu0 0.0
  %1915 = vmatprep.subr.mxu0 0.0
  %1916 = vmatpush1.msra.mxu0 0.0
  %1917 = vmatprep.subr.mxu0 0.0
  %1918 = vmatpush1.msra.mxu0 0.0
  %1919 = vmatprep.subr.mxu0 0.0
  %1920 = vmatpush1.msra.mxu0 0.0
  %1921 = vmatprep.subr.mxu0 0.0
  %1922 = vmatpush1.msra.mxu0 0.0
  %1923 = vmatprep.subr.mxu0 0.0
  %1924 = vmatpush1.msra.mxu0 0.0
  %1925 = vmatprep.subr.mxu0 0.0
  %1926 = vmatpush1.msra.mxu0 0.0
  %1927 = vmatprep.subr.mxu0 0.0
  %1928 = vmatpush1.msra.mxu0 0.0
  %1929 = vmatprep.subr.mxu0 0.0
  %1930 = vmatpush1.msra.mxu0 0.0
  %1931 = vmatprep.subr.mxu0 0.0
  %1932 = vmatpush1.msra.mxu0 0.0
  %1933 = vmatprep.subr.mxu0 0.0
  %1934 = vmatpush1.msra.mxu0 0.0
  %1935 = vmatprep.subr.mxu0 0.0
  %1936 = vmatpush1.msra.mxu0 0.0
  %1937 = vmatprep.subr.mxu0 0.0
  %1938 = vmatpush1.msra.mxu0 0.0
  %1939 = vmatprep.subr.mxu0 %v1683
  %1940 = vmatpush1.msra.mxu0 %v1682
  %1941 = vmatprep.subr.mxu0 0.0
  %1942 = vmatpush2.msra.mxu0 0.0
  %1943 = vmatprep.subr.mxu0 0.0
  %1944 = vmatpush2.msra.mxu0 0.0
  %1945 = vmatprep.subr.mxu0 0.0
  %1946 = vmatpush2.msra.mxu0 0.0
  %1947 = vmatprep.subr.mxu0 0.0
  %1948 = vmatpush2.msra.mxu0 0.0
  %1949 = vmatprep.subr.mxu0 0.0
  %1950 = vmatpush2.msra.mxu0 0.0
  %1951 = vmatprep.subr.mxu0 0.0
  %1952 = vmatpush2.msra.mxu0 0.0
  %1953 = vmatprep.subr.mxu0 0.0
  %1954 = vmatpush2.msra.mxu0 0.0
  %1955 = vmatprep.subr.mxu0 0.0
  %1956 = vmatpush2.msra.mxu0 0.0
  %1957 = vmatprep.subr.mxu0 0.0
  %1958 = vmatpush2.msra.mxu0 0.0
  %1959 = vmatprep.subr.mxu0 0.0
  %1960 = vmatpush2.msra.mxu0 0.0
  %1961 = vmatprep.subr.mxu0 0.0
  %1962 = vmatpush2.msra.mxu0 0.0
  %1963 = vmatprep.subr.mxu0 0.0
  %1964 = vmatpush2.msra.mxu0 0.0
  %1965 = vmatprep.subr.mxu0 0.0
  %1966 = vmatpush2.msra.mxu0 0.0
  %1967 = vmatprep.subr.mxu0 0.0
  %1968 = vmatpush2.msra.mxu0 0.0
  %1969 = vmatprep.subr.mxu0 0.0
  %1970 = vmatpush2.msra.mxu0 0.0
  %1971 = vmatprep.subr.mxu0 0.0
  %1972 = vmatpush2.msra.mxu0 0.0
  %1973 = vmatprep.mubr.f32.mxu0 0.0
  %1974 = vmatmul.mubr.f32.gmra.mxu0 %v1836
  %v1975 = vpop.f32.mrf.mxu0
  %v1976 = vadd.f32 0.0, %v1975
  %v1977 = vpop.f32.mrf.mxu0
  %v1978 = vadd.f32 0.0, %v1977
  %1979 = vdwg.mxu0
  %v1980 = vadd.f32 %v1830, %v1905
  %v1981 = vadd.f32 %v1831, %v1907
  %v1982 = vadd.f32 %v1832, %v1976
  %v1983 = vadd.f32 %v1833, %v1978
  %vm1984 = vcmp.ge.f32.partialorder %v1980, 0.0
  %vm1985 = vcmp.ge.f32.partialorder %v1981, 0.0
  %vm1986 = vcmp.ge.f32.partialorder %v1982, 0.0
  %vm1987 = vcmp.ge.f32.partialorder %v1983, 0.0
  %v1988 = vmul.f32 %v1980, 0.05
  %v1989 = vmul.f32 %v1981, 0.05
  %v1990 = vmul.f32 %v1982, 0.05
  %v1991 = vmul.f32 %v1983, 0.05
  %v1992 = vsel %vm1984, %v1980, %v1988
  %v1993 = vsel %vm1985, %v1981, %v1989
  %v1994 = vsel %vm1986, %v1982, %v1990
  %v1995 = vsel %vm1987, %v1983, %v1991
  %v2000 = vcombine.low %v1992, %v1993
  %v2001 = vcombine.low %v1994, %v1995
  %2004 = vst [vmem:[%s8] sm:$0xff] %v2000
  %2005 = vst [vmem:[%s8 + $0x8] sm:$0xff] %v2001
  // Predicated region
  $region34: #{m_rfdb_forward.17} parent=0 // pred_check
    _
  $region35: #{m_rfdb_forward.17} parent=0 // pred_check_branch
    %2007 = sbr.rel (0) target = $region37
  $region36: #{m_rfdb_forward.17} parent=0 // pred_region
    _
  $region37: #{m_rfdb_forward.17} parent=0 // pred_fallthru
    _
  // Predicated region
  $region38: #{m_rfdb_forward.17} parent=0 // pred_check
    _
  $region39: #{m_rfdb_forward.17} parent=0 // pred_check_branch
    %2009 = sbr.rel (0) target = $region41
  $region40: #{m_rfdb_forward.17} parent=0 // pred_region
    _
  $region41: #{m_rfdb_forward.17} parent=0 // pred_fallthru
    _

// kernel: m_rfdb_forward.19
$region0: #{m_rfdb_forward.19}
  #allocation0 [shape = 'u32[]', space=smem, size = 0x4, offset = 0x4, fixed_abs, tag = 'smem constant byte address 0x4 - core index']
  #allocation1 [shape = 'u32[144,128]{1,0:T(1,128)}', space=vmem, size = 0x12000, scoped, tag = 'internal scratch']
  %s0 = inlined_call_operand.vmem [shape: f32[18,98], index: 0, kind: input, shape index: {}]
  %s1 = inlined_call_operand.vmem [shape: f32[2,18], index: 1, kind: input, shape index: {}]
  %s2 = inlined_call_operand.vmem [shape: f32[2,1], index: 2, kind: input, shape index: {}]
  %s3 = inlined_call_operand.vmem [shape: f32[2,98], index: 3, kind: output, shape index: {}]
  %s4 = sld [smem:[#allocation0]]
  $region22: #{m_rfdb_forward.19} parent=0
    _
  %s6 = ssub.s32 1, %s4
  %s7 = scalar_select 0, %s6, %s4
  // Predicated region
  $region2: #{m_rfdb_forward.19} parent=0 // pred_check
    _
  $region3: #{m_rfdb_forward.19} parent=0 // pred_check_branch
    %9 = sbr.rel (0) target = $region5
  $region4: #{m_rfdb_forward.19} parent=0 // pred_region
    _
  $region5: #{m_rfdb_forward.19} parent=0 // pred_fallthru
    _
  // Predicated region
  $region6: #{m_rfdb_forward.19} parent=0 // pred_check
    _
  $region7: #{m_rfdb_forward.19} parent=0 // pred_check_branch
    %11 = sbr.rel (0) target = $region9
  $region8: #{m_rfdb_forward.19} parent=0 // pred_region
    _
  $region9: #{m_rfdb_forward.19} parent=0 // pred_fallthru
    _
  // Predicated region
  $region10: #{m_rfdb_forward.19} parent=0 // pred_check
    _
  $region11: #{m_rfdb_forward.19} parent=0 // pred_check_branch
    %13 = sbr.rel (0) target = $region13
  $region12: #{m_rfdb_forward.19} parent=0 // pred_region
    _
  $region13: #{m_rfdb_forward.19} parent=0 // pred_fallthru
    _
  %v14 = vld [vmem:[%s1] sm:$0x3]
  %v15 = vld [vmem:[%s0] sm:$0xff]
  %v16 = vld [vmem:[%s0 + $0x8] sm:$0xff]
  %v17 = vld [vmem:[%s0 + $0x10] sm:$0x3]
  %v18 = vld [vmem:[%s2] sm:$0x3]
  %20 = vset.pattern.permute.xlu0 0
  %21 = vperm.xlu0 %20, %v18
  %v22 = vpop.permute.xlu0 %21
  %vm24 = vcmask 146432
  %v26 = vsel %vm24, %v14, 0
  %vm28 = vcmask 1041408
  %v30 = vsel %vm28, %v17, 0
  %32 = vmatprep.subr.mxu0 0.0
  %33 = vmatpush1.msra.mxu0 0.0
  %34 = vmatprep.subr.mxu0 0.0
  %35 = vmatpush1.msra.mxu0 0.0
  %36 = vmatprep.subr.mxu0 0.0
  %37 = vmatpush1.msra.mxu0 0.0
  %38 = vmatprep.subr.mxu0 0.0
  %39 = vmatpush1.msra.mxu0 0.0
  %40 = vmatprep.subr.mxu0 0.0
  %41 = vmatpush1.msra.mxu0 0.0
  %42 = vmatprep.subr.mxu0 0.0
  %43 = vmatpush1.msra.mxu0 0.0
  %44 = vmatprep.subr.mxu0 0.0
  %45 = vmatpush1.msra.mxu0 0.0
  %46 = vmatprep.subr.mxu0 0.0
  %47 = vmatpush1.msra.mxu0 0.0
  %48 = vmatprep.subr.mxu0 0.0
  %49 = vmatpush1.msra.mxu0 0.0
  %50 = vmatprep.subr.mxu0 0.0
  %51 = vmatpush1.msra.mxu0 0.0
  %52 = vmatprep.subr.mxu0 0.0
  %53 = vmatpush1.msra.mxu0 0.0
  %54 = vmatprep.subr.mxu0 0.0
  %55 = vmatpush1.msra.mxu0 0.0
  %56 = vmatprep.subr.mxu0 0.0
  %57 = vmatpush1.msra.mxu0 0.0
  %58 = vmatprep.subr.mxu0 0.0
  %59 = vmatpush1.msra.mxu0 %v30
  %60 = vmatprep.subr.mxu0 0.0
  %61 = vmatpush1.msra.mxu0 %v16
  %62 = vmatprep.subr.mxu0 0.0
  %63 = vmatpush1.msra.mxu0 %v15
  %64 = vmatprep.subr.mxu0 0.0
  %65 = vmatpush2.msra.mxu0 0.0
  %66 = vmatprep.subr.mxu0 0.0
  %67 = vmatpush2.msra.mxu0 0.0
  %68 = vmatprep.subr.mxu0 0.0
  %69 = vmatpush2.msra.mxu0 0.0
  %70 = vmatprep.subr.mxu0 0.0
  %71 = vmatpush2.msra.mxu0 0.0
  %72 = vmatprep.subr.mxu0 0.0
  %73 = vmatpush2.msra.mxu0 0.0
  %74 = vmatprep.subr.mxu0 0.0
  %75 = vmatpush2.msra.mxu0 0.0
  %76 = vmatprep.subr.mxu0 0.0
  %77 = vmatpush2.msra.mxu0 0.0
  %78 = vmatprep.subr.mxu0 0.0
  %79 = vmatpush2.msra.mxu0 0.0
  %80 = vmatprep.subr.mxu0 0.0
  %81 = vmatpush2.msra.mxu0 0.0
  %82 = vmatprep.subr.mxu0 0.0
  %83 = vmatpush2.msra.mxu0 0.0
  %84 = vmatprep.subr.mxu0 0.0
  %85 = vmatpush2.msra.mxu0 0.0
  %86 = vmatprep.subr.mxu0 0.0
  %87 = vmatpush2.msra.mxu0 0.0
  %88 = vmatprep.subr.mxu0 0.0
  %89 = vmatpush2.msra.mxu0 0.0
  %90 = vmatprep.subr.mxu0 0.0
  %91 = vmatpush2.msra.mxu0 0.0
  %92 = vmatprep.subr.mxu0 0.0
  %93 = vmatpush2.msra.mxu0 0.0
  %94 = vmatprep.subr.mxu0 0.0
  %95 = vmatpush2.msra.mxu0 0.0
  %96 = vmatprep.mubr.f32.mxu0 0.0
  %97 = vmatmul.mubr.f32.gmra.mxu0 %v26
  %v98 = vpop.f32.mrf.mxu0
  %v99 = vadd.f32 %v22, %v98
  %v100 = vpop.f32.mrf.mxu0
  %101 = vdwg.mxu0
  %vm102 = vcmask 795648
  %103 = vst.msk [vmem:[%s3] sm:$0x3] %vm102, %v99
  // Predicated region
  $region14: #{m_rfdb_forward.19} parent=0 // pred_check
    _
  $region15: #{m_rfdb_forward.19} parent=0 // pred_check_branch
    %105 = sbr.rel (0) target = $region17
  $region16: #{m_rfdb_forward.19} parent=0 // pred_region
    _
  $region17: #{m_rfdb_forward.19} parent=0 // pred_fallthru
    _
  // Predicated region
  $region18: #{m_rfdb_forward.19} parent=0 // pred_check
    _
  $region19: #{m_rfdb_forward.19} parent=0 // pred_check_branch
    %107 = sbr.rel (0) target = $region21
  $region20: #{m_rfdb_forward.19} parent=0 // pred_region
    _
  $region21: #{m_rfdb_forward.19} parent=0 // pred_fallthru
    _

// kernel: m_rfdb_forward.21
$region0: #{m_rfdb_forward.21}
  #allocation0 [shape = 'u32[]', space=smem, size = 0x4, offset = 0x4, fixed_abs, tag = 'smem constant byte address 0x4 - core index']
  #allocation1 [shape = 'u32[144,128]{1,0:T(1,128)}', space=vmem, size = 0x12000, scoped, tag = 'internal scratch']
  %s0 = inlined_call_operand.vmem [shape: f32[8,512], index: 0, kind: input, shape index: {}]
  %s1 = inlined_call_operand.vmem [shape: f32[2,512], index: 1, kind: input, shape index: {}]
  %s2 = inlined_call_operand.vmem [shape: f32[2,512], index: 2, kind: input, shape index: {}]
  %s3 = inlined_call_operand.vmem [shape: f32[2,2], index: 3, kind: input, shape index: {}]
  %s4 = inlined_call_operand.vmem [shape: f32[2,1], index: 4, kind: input, shape index: {}]
  %s5 = inlined_call_operand.vmem [shape: f32[8,2], index: 5, kind: input, shape index: {}]
  %s6 = inlined_call_operand.vmem [shape: f32[8,1], index: 6, kind: input, shape index: {}]
  %s7 = inlined_call_operand.vmem [shape: f32[8,512], index: 7, kind: output, shape index: {}]
  %s8 = sld [smem:[#allocation0]]
  $region38: #{m_rfdb_forward.21} parent=0
    _
  %s10 = ssub.s32 1, %s8
  %s11 = scalar_select 0, %s10, %s8
  // Predicated region
  $region2: #{m_rfdb_forward.21} parent=0 // pred_check
    _
  $region3: #{m_rfdb_forward.21} parent=0 // pred_check_branch
    %13 = sbr.rel (0) target = $region5
  $region4: #{m_rfdb_forward.21} parent=0 // pred_region
    _
  $region5: #{m_rfdb_forward.21} parent=0 // pred_fallthru
    _
  // Predicated region
  $region6: #{m_rfdb_forward.21} parent=0 // pred_check
    _
  $region7: #{m_rfdb_forward.21} parent=0 // pred_check_branch
    %15 = sbr.rel (0) target = $region9
  $region8: #{m_rfdb_forward.21} parent=0 // pred_region
    _
  $region9: #{m_rfdb_forward.21} parent=0 // pred_fallthru
    _
  // Predicated region
  $region10: #{m_rfdb_forward.21} parent=0 // pred_check
    _
  $region11: #{m_rfdb_forward.21} parent=0 // pred_check_branch
    %17 = sbr.rel (0) target = $region13
  $region12: #{m_rfdb_forward.21} parent=0 // pred_region
    _
  $region13: #{m_rfdb_forward.21} parent=0 // pred_fallthru
    _
  // Predicated region
  $region14: #{m_rfdb_forward.21} parent=0 // pred_check
    _
  $region15: #{m_rfdb_forward.21} parent=0 // pred_check_branch
    %19 = sbr.rel (0) target = $region17
  $region16: #{m_rfdb_forward.21} parent=0 // pred_region
    _
  $region17: #{m_rfdb_forward.21} parent=0 // pred_fallthru
    _
  // Predicated region
  $region18: #{m_rfdb_forward.21} parent=0 // pred_check
    _
  $region19: #{m_rfdb_forward.21} parent=0 // pred_check_branch
    %21 = sbr.rel (0) target = $region21
  $region20: #{m_rfdb_forward.21} parent=0 // pred_region
    _
  $region21: #{m_rfdb_forward.21} parent=0 // pred_fallthru
    _
  // Predicated region
  $region22: #{m_rfdb_forward.21} parent=0 // pred_check
    _
  $region23: #{m_rfdb_forward.21} parent=0 // pred_check_branch
    %23 = sbr.rel (0) target = $region25
  $region24: #{m_rfdb_forward.21} parent=0 // pred_region
    _
  $region25: #{m_rfdb_forward.21} parent=0 // pred_fallthru
    _
  // Predicated region
  $region26: #{m_rfdb_forward.21} parent=0 // pred_check
    _
  $region27: #{m_rfdb_forward.21} parent=0 // pred_check_branch
    %25 = sbr.rel (0) target = $region29
  $region28: #{m_rfdb_forward.21} parent=0 // pred_region
    _
  $region29: #{m_rfdb_forward.21} parent=0 // pred_fallthru
    _
  %v26 = vld [vmem:[%s3] sm:$0x3]
  %v27 = vld [vmem:[%s1] sm:$0xff]
  %v28 = vld [vmem:[%s4] sm:$0x3]
  %30 = vset.pattern.permute.xlu0 0
  %31 = vperm.xlu0 %30, %v28
  %v32 = vpop.permute.xlu0 %31
  %v35 = vcombine.high %v27, %v27
  %v37 = vunpack.c.l.s4 1983009808
  %v38 = vunpack.c.0.s8 %v37
  %v39 = vlaneseq
  %v40 = vshrl.u32 %v39, 7
  %v41 = vsub.s32 %v38, %v40
  %v42 = vrot.slane %v27, %v41
  %v44 = vunpack.c.l.s4 1983009808
  %v45 = vunpack.c.0.s8 %v44
  %v46 = vlaneseq
  %v47 = vshrl.u32 %v46, 7
  %v48 = vsub.s32 %v45, %v47
  %v49 = vrot.slane %v35, %v48
  %v50 = vcombine.high %v42, %v42
  %v51 = vcombine.high %v49, %v49
  %vm52 = vcmask 15360
  %v54 = vsel %vm52, %v26, 0
  %vm56 = vcmask 1041408
  %v57 = vsel %vm56, %v42, 0
  %v59 = vsel %vm56, %v50, 0
  %v61 = vsel %vm56, %v49, 0
  %v63 = vsel %vm56, %v51, 0
  %65 = vmatprep.subr.mxu0 0.0
  %66 = vmatpush1.msra.mxu0 0.0
  %67 = vmatprep.subr.mxu0 0.0
  %68 = vmatpush1.msra.mxu0 0.0
  %69 = vmatprep.subr.mxu0 0.0
  %70 = vmatpush1.msra.mxu0 0.0
  %71 = vmatprep.subr.mxu0 0.0
  %72 = vmatpush1.msra.mxu0 0.0
  %73 = vmatprep.subr.mxu0 0.0
  %74 = vmatpush1.msra.mxu0 0.0
  %75 = vmatprep.subr.mxu0 0.0
  %76 = vmatpush1.msra.mxu0 0.0
  %77 = vmatprep.subr.mxu0 0.0
  %78 = vmatpush1.msra.mxu0 0.0
  %79 = vmatprep.subr.mxu0 0.0
  %80 = vmatpush1.msra.mxu0 0.0
  %81 = vmatprep.subr.mxu0 0.0
  %82 = vmatpush1.msra.mxu0 0.0
  %83 = vmatprep.subr.mxu0 0.0
  %84 = vmatpush1.msra.mxu0 0.0
  %85 = vmatprep.subr.mxu0 0.0
  %86 = vmatpush1.msra.mxu0 0.0
  %87 = vmatprep.subr.mxu0 0.0
  %88 = vmatpush1.msra.mxu0 0.0
  %89 = vmatprep.subr.mxu0 0.0
  %90 = vmatpush1.msra.mxu0 0.0
  %91 = vmatprep.subr.mxu0 0.0
  %92 = vmatpush1.msra.mxu0 0.0
  %93 = vmatprep.subr.mxu0 0.0
  %94 = vmatpush1.msra.mxu0 0.0
  %95 = vmatprep.subr.mxu0 %v59
  %96 = vmatpush1.msra.mxu0 %v57
  %97 = vmatprep.subr.mxu0 0.0
  %98 = vmatpush2.msra.mxu0 0.0
  %99 = vmatprep.subr.mxu0 0.0
  %100 = vmatpush2.msra.mxu0 0.0
  %101 = vmatprep.subr.mxu0 0.0
  %102 = vmatpush2.msra.mxu0 0.0
  %103 = vmatprep.subr.mxu0 0.0
  %104 = vmatpush2.msra.mxu0 0.0
  %105 = vmatprep.subr.mxu0 0.0
  %106 = vmatpush2.msra.mxu0 0.0
  %107 = vmatprep.subr.mxu0 0.0
  %108 = vmatpush2.msra.mxu0 0.0
  %109 = vmatprep.subr.mxu0 0.0
  %110 = vmatpush2.msra.mxu0 0.0
  %111 = vmatprep.subr.mxu0 0.0
  %112 = vmatpush2.msra.mxu0 0.0
  %113 = vmatprep.subr.mxu0 0.0
  %114 = vmatpush2.msra.mxu0 0.0
  %115 = vmatprep.subr.mxu0 0.0
  %116 = vmatpush2.msra.mxu0 0.0
  %117 = vmatprep.subr.mxu0 0.0
  %118 = vmatpush2.msra.mxu0 0.0
  %119 = vmatprep.subr.mxu0 0.0
  %120 = vmatpush2.msra.mxu0 0.0
  %121 = vmatprep.subr.mxu0 0.0
  %122 = vmatpush2.msra.mxu0 0.0
  %123 = vmatprep.subr.mxu0 0.0
  %124 = vmatpush2.msra.mxu0 0.0
  %125 = vmatprep.subr.mxu0 0.0
  %126 = vmatpush2.msra.mxu0 0.0
  %127 = vmatprep.subr.mxu0 0.0
  %128 = vmatpush2.msra.mxu0 0.0
  %129 = vmatprep.mubr.f32.mxu0 0.0
  %130 = vmatmul.mubr.f32.gmra.mxu0 %v54
  %v131 = vpop.f32.mrf.mxu0
  %v132 = vadd.f32 %v32, %v131
  %v133 = vpop.f32.mrf.mxu0
  %v134 = vadd.f32 %v32, %v133
  %135 = vdwg.mxu0
  %136 = vmatprep.subr.mxu0 0.0
  %137 = vmatpush1.msra.mxu0 0.0
  %138 = vmatprep.subr.mxu0 0.0
  %139 = vmatpush1.msra.mxu0 0.0
  %140 = vmatprep.subr.mxu0 0.0
  %141 = vmatpush1.msra.mxu0 0.0
  %142 = vmatprep.subr.mxu0 0.0
  %143 = vmatpush1.msra.mxu0 0.0
  %144 = vmatprep.subr.mxu0 0.0
  %145 = vmatpush1.msra.mxu0 0.0
  %146 = vmatprep.subr.mxu0 0.0
  %147 = vmatpush1.msra.mxu0 0.0
  %148 = vmatprep.subr.mxu0 0.0
  %149 = vmatpush1.msra.mxu0 0.0
  %150 = vmatprep.subr.mxu0 0.0
  %151 = vmatpush1.msra.mxu0 0.0
  %152 = vmatprep.subr.mxu0 0.0
  %153 = vmatpush1.msra.mxu0 0.0
  %154 = vmatprep.subr.mxu0 0.0
  %155 = vmatpush1.msra.mxu0 0.0
  %156 = vmatprep.subr.mxu0 0.0
  %157 = vmatpush1.msra.mxu0 0.0
  %158 = vmatprep.subr.mxu0 0.0
  %159 = vmatpush1.msra.mxu0 0.0
  %160 = vmatprep.subr.mxu0 0.0
  %161 = vmatpush1.msra.mxu0 0.0
  %162 = vmatprep.subr.mxu0 0.0
  %163 = vmatpush1.msra.mxu0 0.0
  %164 = vmatprep.subr.mxu0 0.0
  %165 = vmatpush1.msra.mxu0 0.0
  %166 = vmatprep.subr.mxu0 %v63
  %167 = vmatpush1.msra.mxu0 %v61
  %168 = vmatprep.subr.mxu0 0.0
  %169 = vmatpush2.msra.mxu0 0.0
  %170 = vmatprep.subr.mxu0 0.0
  %171 = vmatpush2.msra.mxu0 0.0
  %172 = vmatprep.subr.mxu0 0.0
  %173 = vmatpush2.msra.mxu0 0.0
  %174 = vmatprep.subr.mxu0 0.0
  %175 = vmatpush2.msra.mxu0 0.0
  %176 = vmatprep.subr.mxu0 0.0
  %177 = vmatpush2.msra.mxu0 0.0
  %178 = vmatprep.subr.mxu0 0.0
  %179 = vmatpush2.msra.mxu0 0.0
  %180 = vmatprep.subr.mxu0 0.0
  %181 = vmatpush2.msra.mxu0 0.0
  %182 = vmatprep.subr.mxu0 0.0
  %183 = vmatpush2.msra.mxu0 0.0
  %184 = vmatprep.subr.mxu0 0.0
  %185 = vmatpush2.msra.mxu0 0.0
  %186 = vmatprep.subr.mxu0 0.0
  %187 = vmatpush2.msra.mxu0 0.0
  %188 = vmatprep.subr.mxu0 0.0
  %189 = vmatpush2.msra.mxu0 0.0
  %190 = vmatprep.subr.mxu0 0.0
  %191 = vmatpush2.msra.mxu0 0.0
  %192 = vmatprep.subr.mxu0 0.0
  %193 = vmatpush2.msra.mxu0 0.0
  %194 = vmatprep.subr.mxu0 0.0
  %195 = vmatpush2.msra.mxu0 0.0
  %196 = vmatprep.subr.mxu0 0.0
  %197 = vmatpush2.msra.mxu0 0.0
  %198 = vmatprep.subr.mxu0 0.0
  %199 = vmatpush2.msra.mxu0 0.0
  %200 = vmatprep.mubr.f32.mxu0 0.0
  %201 = vmatmul.mubr.f32.gmra.mxu0 %v54
  %v202 = vpop.f32.mrf.mxu0
  %v203 = vadd.f32 %v32, %v202
  %v204 = vpop.f32.mrf.mxu0
  %v205 = vadd.f32 %v32, %v204
  %206 = vdwg.mxu0
  %v207 = vld [vmem:[%s5] sm:$0xff]
  %v208 = vld [vmem:[%s2] sm:$0xff]
  %v213 = vcombine.low %v132, %v134
  %v214 = vcombine.low %v203, %v205
  %v216 = vunpack.c.l.s4 1983009808
  %v217 = vunpack.c.0.s8 %v216
  %v218 = vlaneseq
  %v219 = vshrl.u32 %v218, 7
  %v220 = vsub.s32 %v217, %v219
  %v221 = vrot.slane %v213, %v220
  %v223 = vunpack.c.l.s4 1983009808
  %v224 = vunpack.c.0.s8 %v223
  %v225 = vlaneseq
  %v226 = vshrl.u32 %v225, 7
  %v227 = vsub.s32 %v224, %v226
  %v228 = vrot.slane %v214, %v227
  %v229 = vcombine.low %v221, %v228
  %v231 = vadd.f32 %v208, %v229
  %v232 = vld [vmem:[%s6] sm:$0xff]
  %234 = vset.pattern.permute.xlu0 0
  %235 = vperm.xlu0 %234, %v232
  %v236 = vpop.permute.xlu0 %235
  %v239 = vcombine.high %v231, %v231
  %v241 = vunpack.c.l.s4 1983009808
  %v242 = vunpack.c.0.s8 %v241
  %v243 = vlaneseq
  %v244 = vshrl.u32 %v243, 7
  %v245 = vsub.s32 %v242, %v244
  %v246 = vrot.slane %v231, %v245
  %v248 = vunpack.c.l.s4 1983009808
  %v249 = vunpack.c.0.s8 %v248
  %v250 = vlaneseq
  %v251 = vshrl.u32 %v250, 7
  %v252 = vsub.s32 %v249, %v251
  %v253 = vrot.slane %v239, %v252
  %v254 = vcombine.high %v246, %v246
  %v255 = vcombine.high %v253, %v253
  %v257 = vsel %vm52, %v207, 0
  %v259 = vsel %vm56, %v246, 0
  %v261 = vsel %vm56, %v254, 0
  %v263 = vsel %vm56, %v253, 0
  %v265 = vsel %vm56, %v255, 0
  %267 = vmatprep.subr.mxu0 0.0
  %268 = vmatpush1.msra.mxu0 0.0
  %269 = vmatprep.subr.mxu0 0.0
  %270 = vmatpush1.msra.mxu0 0.0
  %271 = vmatprep.subr.mxu0 0.0
  %272 = vmatpush1.msra.mxu0 0.0
  %273 = vmatprep.subr.mxu0 0.0
  %274 = vmatpush1.msra.mxu0 0.0
  %275 = vmatprep.subr.mxu0 0.0
  %276 = vmatpush1.msra.mxu0 0.0
  %277 = vmatprep.subr.mxu0 0.0
  %278 = vmatpush1.msra.mxu0 0.0
  %279 = vmatprep.subr.mxu0 0.0
  %280 = vmatpush1.msra.mxu0 0.0
  %281 = vmatprep.subr.mxu0 0.0
  %282 = vmatpush1.msra.mxu0 0.0
  %283 = vmatprep.subr.mxu0 0.0
  %284 = vmatpush1.msra.mxu0 0.0
  %285 = vmatprep.subr.mxu0 0.0
  %286 = vmatpush1.msra.mxu0 0.0
  %287 = vmatprep.subr.mxu0 0.0
  %288 = vmatpush1.msra.mxu0 0.0
  %289 = vmatprep.subr.mxu0 0.0
  %290 = vmatpush1.msra.mxu0 0.0
  %291 = vmatprep.subr.mxu0 0.0
  %292 = vmatpush1.msra.mxu0 0.0
  %293 = vmatprep.subr.mxu0 0.0
  %294 = vmatpush1.msra.mxu0 0.0
  %295 = vmatprep.subr.mxu0 0.0
  %296 = vmatpush1.msra.mxu0 0.0
  %297 = vmatprep.subr.mxu0 %v261
  %298 = vmatpush1.msra.mxu0 %v259
  %299 = vmatprep.subr.mxu0 0.0
  %300 = vmatpush2.msra.mxu0 0.0
  %301 = vmatprep.subr.mxu0 0.0
  %302 = vmatpush2.msra.mxu0 0.0
  %303 = vmatprep.subr.mxu0 0.0
  %304 = vmatpush2.msra.mxu0 0.0
  %305 = vmatprep.subr.mxu0 0.0
  %306 = vmatpush2.msra.mxu0 0.0
  %307 = vmatprep.subr.mxu0 0.0
  %308 = vmatpush2.msra.mxu0 0.0
  %309 = vmatprep.subr.mxu0 0.0
  %310 = vmatpush2.msra.mxu0 0.0
  %311 = vmatprep.subr.mxu0 0.0
  %312 = vmatpush2.msra.mxu0 0.0
  %313 = vmatprep.subr.mxu0 0.0
  %314 = vmatpush2.msra.mxu0 0.0
  %315 = vmatprep.subr.mxu0 0.0
  %316 = vmatpush2.msra.mxu0 0.0
  %317 = vmatprep.subr.mxu0 0.0
  %318 = vmatpush2.msra.mxu0 0.0
  %319 = vmatprep.subr.mxu0 0.0
  %320 = vmatpush2.msra.mxu0 0.0
  %321 = vmatprep.subr.mxu0 0.0
  %322 = vmatpush2.msra.mxu0 0.0
  %323 = vmatprep.subr.mxu0 0.0
  %324 = vmatpush2.msra.mxu0 0.0
  %325 = vmatprep.subr.mxu0 0.0
  %326 = vmatpush2.msra.mxu0 0.0
  %327 = vmatprep.subr.mxu0 0.0
  %328 = vmatpush2.msra.mxu0 0.0
  %329 = vmatprep.subr.mxu0 0.0
  %330 = vmatpush2.msra.mxu0 0.0
  %331 = vmatprep.mubr.f32.mxu0 0.0
  %332 = vmatmul.mubr.f32.gmra.mxu0 %v257
  %v333 = vpop.f32.mrf.mxu0
  %v334 = vadd.f32 %v236, %v333
  %v335 = vpop.f32.mrf.mxu0
  %v336 = vadd.f32 %v236, %v335
  %337 = vdwg.mxu0
  %338 = vmatprep.subr.mxu0 0.0
  %339 = vmatpush1.msra.mxu0 0.0
  %340 = vmatprep.subr.mxu0 0.0
  %341 = vmatpush1.msra.mxu0 0.0
  %342 = vmatprep.subr.mxu0 0.0
  %343 = vmatpush1.msra.mxu0 0.0
  %344 = vmatprep.subr.mxu0 0.0
  %345 = vmatpush1.msra.mxu0 0.0
  %346 = vmatprep.subr.mxu0 0.0
  %347 = vmatpush1.msra.mxu0 0.0
  %348 = vmatprep.subr.mxu0 0.0
  %349 = vmatpush1.msra.mxu0 0.0
  %350 = vmatprep.subr.mxu0 0.0
  %351 = vmatpush1.msra.mxu0 0.0
  %352 = vmatprep.subr.mxu0 0.0
  %353 = vmatpush1.msra.mxu0 0.0
  %354 = vmatprep.subr.mxu0 0.0
  %355 = vmatpush1.msra.mxu0 0.0
  %356 = vmatprep.subr.mxu0 0.0
  %357 = vmatpush1.msra.mxu0 0.0
  %358 = vmatprep.subr.mxu0 0.0
  %359 = vmatpush1.msra.mxu0 0.0
  %360 = vmatprep.subr.mxu0 0.0
  %361 = vmatpush1.msra.mxu0 0.0
  %362 = vmatprep.subr.mxu0 0.0
  %363 = vmatpush1.msra.mxu0 0.0
  %364 = vmatprep.subr.mxu0 0.0
  %365 = vmatpush1.msra.mxu0 0.0
  %366 = vmatprep.subr.mxu0 0.0
  %367 = vmatpush1.msra.mxu0 0.0
  %368 = vmatprep.subr.mxu0 %v265
  %369 = vmatpush1.msra.mxu0 %v263
  %370 = vmatprep.subr.mxu0 0.0
  %371 = vmatpush2.msra.mxu0 0.0
  %372 = vmatprep.subr.mxu0 0.0
  %373 = vmatpush2.msra.mxu0 0.0
  %374 = vmatprep.subr.mxu0 0.0
  %375 = vmatpush2.msra.mxu0 0.0
  %376 = vmatprep.subr.mxu0 0.0
  %377 = vmatpush2.msra.mxu0 0.0
  %378 = vmatprep.subr.mxu0 0.0
  %379 = vmatpush2.msra.mxu0 0.0
  %380 = vmatprep.subr.mxu0 0.0
  %381 = vmatpush2.msra.mxu0 0.0
  %382 = vmatprep.subr.mxu0 0.0
  %383 = vmatpush2.msra.mxu0 0.0
  %384 = vmatprep.subr.mxu0 0.0
  %385 = vmatpush2.msra.mxu0 0.0
  %386 = vmatprep.subr.mxu0 0.0
  %387 = vmatpush2.msra.mxu0 0.0
  %388 = vmatprep.subr.mxu0 0.0
  %389 = vmatpush2.msra.mxu0 0.0
  %390 = vmatprep.subr.mxu0 0.0
  %391 = vmatpush2.msra.mxu0 0.0
  %392 = vmatprep.subr.mxu0 0.0
  %393 = vmatpush2.msra.mxu0 0.0
  %394 = vmatprep.subr.mxu0 0.0
  %395 = vmatpush2.msra.mxu0 0.0
  %396 = vmatprep.subr.mxu0 0.0
  %397 = vmatpush2.msra.mxu0 0.0
  %398 = vmatprep.subr.mxu0 0.0
  %399 = vmatpush2.msra.mxu0 0.0
  %400 = vmatprep.subr.mxu0 0.0
  %401 = vmatpush2.msra.mxu0 0.0
  %402 = vmatprep.mubr.f32.mxu0 0.0
  %403 = vmatmul.mubr.f32.gmra.mxu0 %v257
  %v404 = vpop.f32.mrf.mxu0
  %v405 = vadd.f32 %v236, %v404
  %v406 = vpop.f32.mrf.mxu0
  %v407 = vadd.f32 %v236, %v406
  %408 = vdwg.mxu0
  %v409 = vmul.f32 %v334, 0.5
  %v410 = vmul.f32 %v336, 0.5
  %v411 = vmul.f32 %v405, 0.5
  %v412 = vmul.f32 %v407, 0.5
  %v413 = vtanh.pop %v409
  %v414 = vtanh.pop %v410
  %v415 = vtanh.pop %v411
  %v416 = vtanh.pop %v412
  %v417 = vadd.f32 %v413, 1.0
  %v418 = vadd.f32 %v414, 1.0
  %v419 = vadd.f32 %v415, 1.0
  %v420 = vadd.f32 %v416, 1.0
  %v421 = vmul.f32 %v417, 0.5
  %v422 = vmul.f32 %v418, 0.5
  %v423 = vmul.f32 %v419, 0.5
  %v424 = vmul.f32 %v420, 0.5
  %v425 = vld [vmem:[%s0] sm:$0xff]
  %v426 = vld [vmem:[%s0 + $0x8] sm:$0xff]
  %v427 = vld [vmem:[%s0 + $0x10] sm:$0xff]
  %v428 = vld [vmem:[%s0 + $0x18] sm:$0xff]
  %v429 = vmul.f32 %v425, %v421
  %v430 = vmul.f32 %v426, %v422
  %v431 = vmul.f32 %v427, %v423
  %v432 = vmul.f32 %v428, %v424
  %433 = vst [vmem:[%s7] sm:$0xff] %v429
  %434 = vst [vmem:[%s7 + $0x8] sm:$0xff] %v430
  %435 = vst [vmem:[%s7 + $0x10] sm:$0xff] %v431
  %436 = vst [vmem:[%s7 + $0x18] sm:$0xff] %v432
  // Predicated region
  $region30: #{m_rfdb_forward.21} parent=0 // pred_check
    _
  $region31: #{m_rfdb_forward.21} parent=0 // pred_check_branch
    %438 = sbr.rel (0) target = $region33
  $region32: #{m_rfdb_forward.21} parent=0 // pred_region
    _
  $region33: #{m_rfdb_forward.21} parent=0 // pred_fallthru
    _
  // Predicated region
  $region34: #{m_rfdb_forward.21} parent=0 // pred_check
    _
  $region35: #{m_rfdb_forward.21} parent=0 // pred_check_branch
    %440 = sbr.rel (0) target = $region37
  $region36: #{m_rfdb_forward.21} parent=0 // pred_region
    _
  $region37: #{m_rfdb_forward.21} parent=0 // pred_fallthru
    _

// kernel: m_rfdb_forward.20
$region0: #{m_rfdb_forward.20}
  #allocation0 [shape = 'u32[]', space=smem, size = 0x4, offset = 0x4, fixed_abs, tag = 'smem constant byte address 0x4 - core index']
  #allocation1 [shape = 'u32[144,128]{1,0:T(1,128)}', space=vmem, size = 0x12000, scoped, tag = 'internal scratch']
  %s0 = inlined_call_operand.vmem [shape: f32[49,2,2], index: 0, kind: input, shape index: {}]
  %s1 = inlined_call_operand.vmem [shape: f32[1,1,2], index: 1, kind: input, shape index: {}]
  %s2 = inlined_call_operand.vmem [shape: f32[9,2,2], index: 2, kind: input, shape index: {}]
  %s3 = inlined_call_operand.vmem [shape: f32[2,1], index: 3, kind: input, shape index: {}]
  %s4 = inlined_call_operand.vmem [shape: f32[9,2,2], index: 4, kind: input, shape index: {}]
  %s5 = inlined_call_operand.vmem [shape: f32[2,1], index: 5, kind: input, shape index: {}]
  %s6 = inlined_call_operand.vmem [shape: f32[9,2,2], index: 6, kind: input, shape index: {}]
  %s7 = inlined_call_operand.vmem [shape: f32[2,1], index: 7, kind: input, shape index: {}]
  %s8 = inlined_call_operand.vmem [shape: f32[2,2], index: 8, kind: output, shape index: {}]
  %s9 = sld [smem:[#allocation0]]
  $region42: #{m_rfdb_forward.20} parent=0
    _
  %s11 = ssub.s32 1, %s9
  %s12 = scalar_select 0, %s11, %s9
  // Predicated region
  $region2: #{m_rfdb_forward.20} parent=0 // pred_check
    _
  $region3: #{m_rfdb_forward.20} parent=0 // pred_check_branch
    %14 = sbr.rel (0) target = $region5
  $region4: #{m_rfdb_forward.20} parent=0 // pred_region
    _
  $region5: #{m_rfdb_forward.20} parent=0 // pred_fallthru
    _
  // Predicated region
  $region6: #{m_rfdb_forward.20} parent=0 // pred_check
    _
  $region7: #{m_rfdb_forward.20} parent=0 // pred_check_branch
    %16 = sbr.rel (0) target = $region9
  $region8: #{m_rfdb_forward.20} parent=0 // pred_region
    _
  $region9: #{m_rfdb_forward.20} parent=0 // pred_fallthru
    _
  // Predicated region
  $region10: #{m_rfdb_forward.20} parent=0 // pred_check
    _
  $region11: #{m_rfdb_forward.20} parent=0 // pred_check_branch
    %18 = sbr.rel (0) target = $region13
  $region12: #{m_rfdb_forward.20} parent=0 // pred_region
    _
  $region13: #{m_rfdb_forward.20} parent=0 // pred_fallthru
    _
  // Predicated region
  $region14: #{m_rfdb_forward.20} parent=0 // pred_check
    _
  $region15: #{m_rfdb_forward.20} parent=0 // pred_check_branch
    %20 = sbr.rel (0) target = $region17
  $region16: #{m_rfdb_forward.20} parent=0 // pred_region
    _
  $region17: #{m_rfdb_forward.20} parent=0 // pred_fallthru
    _
  // Predicated region
  $region18: #{m_rfdb_forward.20} parent=0 // pred_check
    _
  $region19: #{m_rfdb_forward.20} parent=0 // pred_check_branch
    %22 = sbr.rel (0) target = $region21
  $region20: #{m_rfdb_forward.20} parent=0 // pred_region
    _
  $region21: #{m_rfdb_forward.20} parent=0 // pred_fallthru
    _
  // Predicated region
  $region22: #{m_rfdb_forward.20} parent=0 // pred_check
    _
  $region23: #{m_rfdb_forward.20} parent=0 // pred_check_branch
    %24 = sbr.rel (0) target = $region25
  $region24: #{m_rfdb_forward.20} parent=0 // pred_region
    _
  $region25: #{m_rfdb_forward.20} parent=0 // pred_fallthru
    _
  // Predicated region
  $region26: #{m_rfdb_forward.20} parent=0 // pred_check
    _
  $region27: #{m_rfdb_forward.20} parent=0 // pred_check_branch
    %26 = sbr.rel (0) target = $region29
  $region28: #{m_rfdb_forward.20} parent=0 // pred_region
    _
  $region29: #{m_rfdb_forward.20} parent=0 // pred_fallthru
    _
  // Predicated region
  $region30: #{m_rfdb_forward.20} parent=0 // pred_check
    _
  $region31: #{m_rfdb_forward.20} parent=0 // pred_check_branch
    %28 = sbr.rel (0) target = $region33
  $region32: #{m_rfdb_forward.20} parent=0 // pred_region
    _
  $region33: #{m_rfdb_forward.20} parent=0 // pred_fallthru
    _
  %v29 = vld [vmem:[%s0] sm:$0x3]
  %v30 = vld [vmem:[%s0 + $0x2] sm:$0x3]
  %v31 = vld [vmem:[%s0 + $0x4] sm:$0x3]
  %v32 = vld [vmem:[%s0 + $0x6] sm:$0x3]
  %v33 = vld [vmem:[%s0 + $0x8] sm:$0x3]
  %v34 = vld [vmem:[%s0 + $0xa] sm:$0x3]
  %v35 = vld [vmem:[%s0 + $0xc] sm:$0x3]
  %v36 = vld [vmem:[%s0 + $0xe] sm:$0x3]
  %v37 = vld [vmem:[%s0 + $0x10] sm:$0x3]
  %v38 = vld [vmem:[%s0 + $0x12] sm:$0x3]
  %v39 = vld [vmem:[%s0 + $0x14] sm:$0x3]
  %v40 = vld [vmem:[%s0 + $0x16] sm:$0x3]
  %v41 = vld [vmem:[%s0 + $0x18] sm:$0x3]
  %v42 = vld [vmem:[%s0 + $0x1a] sm:$0x3]
  %v43 = vld [vmem:[%s0 + $0x1c] sm:$0x3]
  %v44 = vld [vmem:[%s0 + $0x1e] sm:$0x3]
  %v45 = vld [vmem:[%s0 + $0x20] sm:$0x3]
  %v46 = vld [vmem:[%s0 + $0x22] sm:$0x3]
  %v47 = vld [vmem:[%s0 + $0x24] sm:$0x3]
  %v48 = vld [vmem:[%s0 + $0x26] sm:$0x3]
  %v49 = vld [vmem:[%s0 + $0x28] sm:$0x3]
  %v50 = vld [vmem:[%s0 + $0x2a] sm:$0x3]
  %v51 = vld [vmem:[%s0 + $0x2c] sm:$0x3]
  %v52 = vld [vmem:[%s0 + $0x2e] sm:$0x3]
  %v53 = vld [vmem:[%s0 + $0x30] sm:$0x3]
  %v54 = vld [vmem:[%s0 + $0x32] sm:$0x3]
  %v55 = vld [vmem:[%s0 + $0x34] sm:$0x3]
  %v56 = vld [vmem:[%s0 + $0x36] sm:$0x3]
  %v57 = vld [vmem:[%s0 + $0x38] sm:$0x3]
  %v58 = vld [vmem:[%s0 + $0x3a] sm:$0x3]
  %v59 = vld [vmem:[%s0 + $0x3c] sm:$0x3]
  %v60 = vld [vmem:[%s0 + $0x3e] sm:$0x3]
  %v61 = vld [vmem:[%s0 + $0x40] sm:$0x3]
  %v62 = vld [vmem:[%s0 + $0x42] sm:$0x3]
  %v63 = vld [vmem:[%s0 + $0x44] sm:$0x3]
  %v64 = vld [vmem:[%s0 + $0x46] sm:$0x3]
  %v65 = vld [vmem:[%s0 + $0x48] sm:$0x3]
  %v66 = vld [vmem:[%s0 + $0x4a] sm:$0x3]
  %v67 = vld [vmem:[%s0 + $0x4c] sm:$0x3]
  %v68 = vld [vmem:[%s0 + $0x4e] sm:$0x3]
  %v69 = vld [vmem:[%s0 + $0x50] sm:$0x3]
  %v70 = vld [vmem:[%s0 + $0x52] sm:$0x3]
  %v71 = vld [vmem:[%s0 + $0x54] sm:$0x3]
  %v72 = vld [vmem:[%s0 + $0x56] sm:$0x3]
  %v73 = vld [vmem:[%s0 + $0x58] sm:$0x3]
  %v74 = vld [vmem:[%s0 + $0x5a] sm:$0x3]
  %v75 = vld [vmem:[%s0 + $0x5c] sm:$0x3]
  %v76 = vld [vmem:[%s0 + $0x5e] sm:$0x3]
  %v77 = vld [vmem:[%s0 + $0x60] sm:$0x3]
  %vm78 = vcmask 9216
  %v79 = vsel %vm78, %v29, -inf
  %v80 = vsel %vm78, %v30, -inf
  %v81 = vsel %vm78, %v31, -inf
  %v82 = vsel %vm78, %v32, -inf
  %v83 = vsel %vm78, %v33, -inf
  %v84 = vmax.f32 %v79, %v83
  %v85 = vsel %vm78, %v34, -inf
  %v86 = vmax.f32 %v80, %v85
  %v87 = vsel %vm78, %v35, -inf
  %v88 = vmax.f32 %v81, %v87
  %v89 = vsel %vm78, %v36, -inf
  %v90 = vmax.f32 %v82, %v89
  %v91 = vsel %vm78, %v37, -inf
  %v92 = vmax.f32 %v84, %v91
  %v93 = vsel %vm78, %v38, -inf
  %v94 = vmax.f32 %v86, %v93
  %v95 = vsel %vm78, %v39, -inf
  %v96 = vmax.f32 %v88, %v95
  %v97 = vsel %vm78, %v40, -inf
  %v98 = vmax.f32 %v90, %v97
  %v99 = vsel %vm78, %v41, -inf
  %v100 = vmax.f32 %v92, %v99
  %v101 = vsel %vm78, %v42, -inf
  %v102 = vmax.f32 %v94, %v101
  %v103 = vsel %vm78, %v43, -inf
  %v104 = vmax.f32 %v96, %v103
  %v105 = vsel %vm78, %v44, -inf
  %v106 = vmax.f32 %v98, %v105
  %v107 = vsel %vm78, %v45, -inf
  %v108 = vmax.f32 %v100, %v107
  %v109 = vsel %vm78, %v46, -inf
  %v110 = vmax.f32 %v102, %v109
  %v111 = vsel %vm78, %v47, -inf
  %v112 = vmax.f32 %v104, %v111
  %v113 = vsel %vm78, %v48, -inf
  %v114 = vmax.f32 %v106, %v113
  %v115 = vsel %vm78, %v49, -inf
  %v116 = vmax.f32 %v108, %v115
  %v117 = vsel %vm78, %v50, -inf
  %v118 = vmax.f32 %v110, %v117
  %v119 = vsel %vm78, %v51, -inf
  %v120 = vmax.f32 %v112, %v119
  %v121 = vsel %vm78, %v52, -inf
  %v122 = vmax.f32 %v114, %v121
  %v123 = vsel %vm78, %v53, -inf
  %v124 = vmax.f32 %v116, %v123
  %v125 = vsel %vm78, %v54, -inf
  %v126 = vmax.f32 %v118, %v125
  %v127 = vsel %vm78, %v55, -inf
  %v128 = vmax.f32 %v120, %v127
  %v129 = vsel %vm78, %v56, -inf
  %v130 = vmax.f32 %v122, %v129
  %v131 = vsel %vm78, %v57, -inf
  %v132 = vmax.f32 %v124, %v131
  %v133 = vsel %vm78, %v58, -inf
  %v134 = vmax.f32 %v126, %v133
  %v135 = vsel %vm78, %v59, -inf
  %v136 = vmax.f32 %v128, %v135
  %v137 = vsel %vm78, %v60, -inf
  %v138 = vmax.f32 %v130, %v137
  %v139 = vsel %vm78, %v61, -inf
  %v140 = vmax.f32 %v132, %v139
  %v141 = vsel %vm78, %v62, -inf
  %v142 = vmax.f32 %v134, %v141
  %v143 = vsel %vm78, %v63, -inf
  %v144 = vmax.f32 %v136, %v143
  %v145 = vsel %vm78, %v64, -inf
  %v146 = vmax.f32 %v138, %v145
  %v147 = vsel %vm78, %v65, -inf
  %v148 = vmax.f32 %v140, %v147
  %v149 = vsel %vm78, %v66, -inf
  %v150 = vmax.f32 %v142, %v149
  %v151 = vsel %vm78, %v67, -inf
  %v152 = vmax.f32 %v144, %v151
  %v153 = vsel %vm78, %v68, -inf
  %v154 = vmax.f32 %v146, %v153
  %v155 = vsel %vm78, %v69, -inf
  %v156 = vmax.f32 %v148, %v155
  %v157 = vsel %vm78, %v70, -inf
  %v158 = vmax.f32 %v150, %v157
  %v159 = vsel %vm78, %v71, -inf
  %v160 = vmax.f32 %v152, %v159
  %v161 = vsel %vm78, %v72, -inf
  %v162 = vmax.f32 %v154, %v161
  %v163 = vsel %vm78, %v73, -inf
  %v164 = vmax.f32 %v156, %v163
  %v165 = vsel %vm78, %v74, -inf
  %v166 = vmax.f32 %v158, %v165
  %v167 = vsel %vm78, %v75, -inf
  %v168 = vmax.f32 %v160, %v167
  %v169 = vsel %vm78, %v76, -inf
  %v170 = vmax.f32 %v162, %v169
  %v171 = vsel %vm78, %v77, -inf
  %v172 = vmax.f32 %v164, %v171
  %v173 = vmax.f32 %v172, %v166
  %v174 = vmax.f32 %v168, %v170
  %v175 = vmax.f32 %v173, %v174
  %v176 = vld [vmem:[%s1] sm:$0x1]
  %v177 = vld [vmem:[%s2 + $0x8] sm:$0x3]
  %v178 = vld [vmem:[%s3] sm:$0x3]
  %180 = vset.pattern.permute.xlu0 0
  %181 = vperm.xlu0 %180, %v178
  %v182 = vpop.permute.xlu0 %181
  %v184 = vadd.f32 %v182, 0.0
  %v186 = vlaneseq
  %v187 = vshrl.u32 %v186, 7
  %v188 = vsub.s32 0, %v187
  %v189 = vrot.slane %v176, %v188
  %v191 = vmul.f32 %v175, %v189
  %vm192 = vcmask 15360
  %v194 = vsel %vm192, %v177, 0
  %vm196 = vcmask 1041408
  %v198 = vsel %vm196, %v191, 0
  %200 = vmatprep.subr.mxu0 0.0
  %201 = vmatpush1.msra.mxu0 0.0
  %202 = vmatprep.subr.mxu0 0.0
  %203 = vmatpush1.msra.mxu0 0.0
  %204 = vmatprep.subr.mxu0 0.0
  %205 = vmatpush1.msra.mxu0 0.0
  %206 = vmatprep.subr.mxu0 0.0
  %207 = vmatpush1.msra.mxu0 0.0
  %208 = vmatprep.subr.mxu0 0.0
  %209 = vmatpush1.msra.mxu0 0.0
  %210 = vmatprep.subr.mxu0 0.0
  %211 = vmatpush1.msra.mxu0 0.0
  %212 = vmatprep.subr.mxu0 0.0
  %213 = vmatpush1.msra.mxu0 0.0
  %214 = vmatprep.subr.mxu0 0.0
  %215 = vmatpush1.msra.mxu0 0.0
  %216 = vmatprep.subr.mxu0 0.0
  %217 = vmatpush1.msra.mxu0 0.0
  %218 = vmatprep.subr.mxu0 0.0
  %219 = vmatpush1.msra.mxu0 0.0
  %220 = vmatprep.subr.mxu0 0.0
  %221 = vmatpush1.msra.mxu0 0.0
  %222 = vmatprep.subr.mxu0 0.0
  %223 = vmatpush1.msra.mxu0 0.0
  %224 = vmatprep.subr.mxu0 0.0
  %225 = vmatpush1.msra.mxu0 0.0
  %226 = vmatprep.subr.mxu0 0.0
  %227 = vmatpush1.msra.mxu0 0.0
  %228 = vmatprep.subr.mxu0 0.0
  %229 = vmatpush1.msra.mxu0 0.0
  %230 = vmatprep.subr.mxu0 0.0
  %231 = vmatpush1.msra.mxu0 %v198
  %232 = vmatprep.subr.mxu0 0.0
  %233 = vmatpush2.msra.mxu0 0.0
  %234 = vmatprep.subr.mxu0 0.0
  %235 = vmatpush2.msra.mxu0 0.0
  %236 = vmatprep.subr.mxu0 0.0
  %237 = vmatpush2.msra.mxu0 0.0
  %238 = vmatprep.subr.mxu0 0.0
  %239 = vmatpush2.msra.mxu0 0.0
  %240 = vmatprep.subr.mxu0 0.0
  %241 = vmatpush2.msra.mxu0 0.0
  %242 = vmatprep.subr.mxu0 0.0
  %243 = vmatpush2.msra.mxu0 0.0
  %244 = vmatprep.subr.mxu0 0.0
  %245 = vmatpush2.msra.mxu0 0.0
  %246 = vmatprep.subr.mxu0 0.0
  %247 = vmatpush2.msra.mxu0 0.0
  %248 = vmatprep.subr.mxu0 0.0
  %249 = vmatpush2.msra.mxu0 0.0
  %250 = vmatprep.subr.mxu0 0.0
  %251 = vmatpush2.msra.mxu0 0.0
  %252 = vmatprep.subr.mxu0 0.0
  %253 = vmatpush2.msra.mxu0 0.0
  %254 = vmatprep.subr.mxu0 0.0
  %255 = vmatpush2.msra.mxu0 0.0
  %256 = vmatprep.subr.mxu0 0.0
  %257 = vmatpush2.msra.mxu0 0.0
  %258 = vmatprep.subr.mxu0 0.0
  %259 = vmatpush2.msra.mxu0 0.0
  %260 = vmatprep.subr.mxu0 0.0
  %261 = vmatpush2.msra.mxu0 0.0
  %262 = vmatprep.subr.mxu0 0.0
  %263 = vmatpush2.msra.mxu0 0.0
  %264 = vmatprep.mubr.f32.mxu0 0.0
  %265 = vmatmul.mubr.f32.gmra.mxu0 %v194
  %v266 = vpop.f32.mrf.mxu0
  %v267 = vadd.f32 0.0, %v266
  %v268 = vpop.f32.mrf.mxu0
  %269 = vdwg.mxu0
  %v270 = vadd.f32 %v184, %v267
  %v271 = vmax.f32 %v270, 0.0
  %v272 = vld [vmem:[%s4 + $0x8] sm:$0x3]
  %v273 = vld [vmem:[%s5] sm:$0x3]
  %275 = vset.pattern.permute.xlu0 0
  %276 = vperm.xlu0 %275, %v273
  %v277 = vpop.permute.xlu0 %276
  %v279 = vadd.f32 %v277, 0.0
  %v280 = vmul.f32 %v271, %v189
  %v282 = vsel %vm192, %v272, 0
  %v285 = vsel %vm196, %v280, 0
  %287 = vmatprep.subr.mxu0 0.0
  %288 = vmatpush1.msra.mxu0 0.0
  %289 = vmatprep.subr.mxu0 0.0
  %290 = vmatpush1.msra.mxu0 0.0
  %291 = vmatprep.subr.mxu0 0.0
  %292 = vmatpush1.msra.mxu0 0.0
  %293 = vmatprep.subr.mxu0 0.0
  %294 = vmatpush1.msra.mxu0 0.0
  %295 = vmatprep.subr.mxu0 0.0
  %296 = vmatpush1.msra.mxu0 0.0
  %297 = vmatprep.subr.mxu0 0.0
  %298 = vmatpush1.msra.mxu0 0.0
  %299 = vmatprep.subr.mxu0 0.0
  %300 = vmatpush1.msra.mxu0 0.0
  %301 = vmatprep.subr.mxu0 0.0
  %302 = vmatpush1.msra.mxu0 0.0
  %303 = vmatprep.subr.mxu0 0.0
  %304 = vmatpush1.msra.mxu0 0.0
  %305 = vmatprep.subr.mxu0 0.0
  %306 = vmatpush1.msra.mxu0 0.0
  %307 = vmatprep.subr.mxu0 0.0
  %308 = vmatpush1.msra.mxu0 0.0
  %309 = vmatprep.subr.mxu0 0.0
  %310 = vmatpush1.msra.mxu0 0.0
  %311 = vmatprep.subr.mxu0 0.0
  %312 = vmatpush1.msra.mxu0 0.0
  %313 = vmatprep.subr.mxu0 0.0
  %314 = vmatpush1.msra.mxu0 0.0
  %315 = vmatprep.subr.mxu0 0.0
  %316 = vmatpush1.msra.mxu0 0.0
  %317 = vmatprep.subr.mxu0 0.0
  %318 = vmatpush1.msra.mxu0 %v285
  %319 = vmatprep.subr.mxu0 0.0
  %320 = vmatpush2.msra.mxu0 0.0
  %321 = vmatprep.subr.mxu0 0.0
  %322 = vmatpush2.msra.mxu0 0.0
  %323 = vmatprep.subr.mxu0 0.0
  %324 = vmatpush2.msra.mxu0 0.0
  %325 = vmatprep.subr.mxu0 0.0
  %326 = vmatpush2.msra.mxu0 0.0
  %327 = vmatprep.subr.mxu0 0.0
  %328 = vmatpush2.msra.mxu0 0.0
  %329 = vmatprep.subr.mxu0 0.0
  %330 = vmatpush2.msra.mxu0 0.0
  %331 = vmatprep.subr.mxu0 0.0
  %332 = vmatpush2.msra.mxu0 0.0
  %333 = vmatprep.subr.mxu0 0.0
  %334 = vmatpush2.msra.mxu0 0.0
  %335 = vmatprep.subr.mxu0 0.0
  %336 = vmatpush2.msra.mxu0 0.0
  %337 = vmatprep.subr.mxu0 0.0
  %338 = vmatpush2.msra.mxu0 0.0
  %339 = vmatprep.subr.mxu0 0.0
  %340 = vmatpush2.msra.mxu0 0.0
  %341 = vmatprep.subr.mxu0 0.0
  %342 = vmatpush2.msra.mxu0 0.0
  %343 = vmatprep.subr.mxu0 0.0
  %344 = vmatpush2.msra.mxu0 0.0
  %345 = vmatprep.subr.mxu0 0.0
  %346 = vmatpush2.msra.mxu0 0.0
  %347 = vmatprep.subr.mxu0 0.0
  %348 = vmatpush2.msra.mxu0 0.0
  %349 = vmatprep.subr.mxu0 0.0
  %350 = vmatpush2.msra.mxu0 0.0
  %351 = vmatprep.mubr.f32.mxu0 0.0
  %352 = vmatmul.mubr.f32.gmra.mxu0 %v282
  %v353 = vpop.f32.mrf.mxu0
  %v354 = vadd.f32 0.0, %v353
  %v355 = vpop.f32.mrf.mxu0
  %356 = vdwg.mxu0
  %v357 = vadd.f32 %v279, %v354
  %v358 = vmax.f32 %v357, 0.0
  %v359 = vld [vmem:[%s6 + $0x8] sm:$0x3]
  %v360 = vld [vmem:[%s7] sm:$0x3]
  %362 = vset.pattern.permute.xlu0 0
  %363 = vperm.xlu0 %362, %v360
  %v364 = vpop.permute.xlu0 %363
  %v366 = vadd.f32 %v364, 0.0
  %v367 = vmul.f32 %v358, %v189
  %v369 = vsel %vm192, %v359, 0
  %v372 = vsel %vm196, %v367, 0
  %374 = vmatprep.subr.mxu0 0.0
  %375 = vmatpush1.msra.mxu0 0.0
  %376 = vmatprep.subr.mxu0 0.0
  %377 = vmatpush1.msra.mxu0 0.0
  %378 = vmatprep.subr.mxu0 0.0
  %379 = vmatpush1.msra.mxu0 0.0
  %380 = vmatprep.subr.mxu0 0.0
  %381 = vmatpush1.msra.mxu0 0.0
  %382 = vmatprep.subr.mxu0 0.0
  %383 = vmatpush1.msra.mxu0 0.0
  %384 = vmatprep.subr.mxu0 0.0
  %385 = vmatpush1.msra.mxu0 0.0
  %386 = vmatprep.subr.mxu0 0.0
  %387 = vmatpush1.msra.mxu0 0.0
  %388 = vmatprep.subr.mxu0 0.0
  %389 = vmatpush1.msra.mxu0 0.0
  %390 = vmatprep.subr.mxu0 0.0
  %391 = vmatpush1.msra.mxu0 0.0
  %392 = vmatprep.subr.mxu0 0.0
  %393 = vmatpush1.msra.mxu0 0.0
  %394 = vmatprep.subr.mxu0 0.0
  %395 = vmatpush1.msra.mxu0 0.0
  %396 = vmatprep.subr.mxu0 0.0
  %397 = vmatpush1.msra.mxu0 0.0
  %398 = vmatprep.subr.mxu0 0.0
  %399 = vmatpush1.msra.mxu0 0.0
  %400 = vmatprep.subr.mxu0 0.0
  %401 = vmatpush1.msra.mxu0 0.0
  %402 = vmatprep.subr.mxu0 0.0
  %403 = vmatpush1.msra.mxu0 0.0
  %404 = vmatprep.subr.mxu0 0.0
  %405 = vmatpush1.msra.mxu0 %v372
  %406 = vmatprep.subr.mxu0 0.0
  %407 = vmatpush2.msra.mxu0 0.0
  %408 = vmatprep.subr.mxu0 0.0
  %409 = vmatpush2.msra.mxu0 0.0
  %410 = vmatprep.subr.mxu0 0.0
  %411 = vmatpush2.msra.mxu0 0.0
  %412 = vmatprep.subr.mxu0 0.0
  %413 = vmatpush2.msra.mxu0 0.0
  %414 = vmatprep.subr.mxu0 0.0
  %415 = vmatpush2.msra.mxu0 0.0
  %416 = vmatprep.subr.mxu0 0.0
  %417 = vmatpush2.msra.mxu0 0.0
  %418 = vmatprep.subr.mxu0 0.0
  %419 = vmatpush2.msra.mxu0 0.0
  %420 = vmatprep.subr.mxu0 0.0
  %421 = vmatpush2.msra.mxu0 0.0
  %422 = vmatprep.subr.mxu0 0.0
  %423 = vmatpush2.msra.mxu0 0.0
  %424 = vmatprep.subr.mxu0 0.0
  %425 = vmatpush2.msra.mxu0 0.0
  %426 = vmatprep.subr.mxu0 0.0
  %427 = vmatpush2.msra.mxu0 0.0
  %428 = vmatprep.subr.mxu0 0.0
  %429 = vmatpush2.msra.mxu0 0.0
  %430 = vmatprep.subr.mxu0 0.0
  %431 = vmatpush2.msra.mxu0 0.0
  %432 = vmatprep.subr.mxu0 0.0
  %433 = vmatpush2.msra.mxu0 0.0
  %434 = vmatprep.subr.mxu0 0.0
  %435 = vmatpush2.msra.mxu0 0.0
  %436 = vmatprep.subr.mxu0 0.0
  %437 = vmatpush2.msra.mxu0 0.0
  %438 = vmatprep.mubr.f32.mxu0 0.0
  %439 = vmatmul.mubr.f32.gmra.mxu0 %v369
  %v440 = vpop.f32.mrf.mxu0
  %v441 = vadd.f32 0.0, %v440
  %v442 = vpop.f32.mrf.mxu0
  %443 = vdwg.mxu0
  %v444 = vadd.f32 %v366, %v441
  %445 = vst.msk [vmem:[%s8] sm:$0x3] %vm78, %v444
  // Predicated region
  $region34: #{m_rfdb_forward.20} parent=0 // pred_check
    _
  $region35: #{m_rfdb_forward.20} parent=0 // pred_check_branch
    %447 = sbr.rel (0) target = $region37
  $region36: #{m_rfdb_forward.20} parent=0 // pred_region
    _
  $region37: #{m_rfdb_forward.20} parent=0 // pred_fallthru
    _
  // Predicated region
  $region38: #{m_rfdb_forward.20} parent=0 // pred_check
    _
  $region39: #{m_rfdb_forward.20} parent=0 // pred_check_branch
    %449 = sbr.rel (0) target = $region41
  $region40: #{m_rfdb_forward.20} parent=0 // pred_region
    _
  $region41: #{m_rfdb_forward.20} parent=0 // pred_fallthru
    _

</llo_original>
